<compile_context>
chip_gen: v7x
topology: tpu7x:2x2x1
jax: 0.10.0
libtpu: 0.0.40
codegen_flags: <defaults>
</compile_context>

<pallas_src>
import numpy as np

import jax
import jax.numpy as jnp
from jax import lax
from jax.experimental import pallas as pl
from jax.experimental.pallas import tpu as pltpu


MXU_DTYPE = jnp.bfloat16          # matmul-input dtype (accumulation is always f32)


def _pad_up(n, m):
    return ((n + m - 1) // m) * m


# ----------------------------- in-kernel math helpers -----------------------------

def _mish(v):
    # mish(x) = x * tanh(softplus(x)); numerically-stable softplus.
    sp = jnp.maximum(v, 0.0) + jnp.log(1.0 + jnp.exp(-jnp.abs(v)))
    return v * jnp.tanh(sp)


def _matmul(a, w):
    """bf16 x bf16 -> f32 MXU matmul (single-pass on v5e/v6e/v7x)."""
    return jnp.dot(a.astype(MXU_DTYPE), w.astype(MXU_DTYPE),
                   preferred_element_type=jnp.float32)


def _slab(ref, spec):
    """Static (zero-cost) window of the packed weight slab: (rows, cols) f32."""
    off, r, c = spec
    return ref[off:off + r, 0:c]


def _vec(ref, spec):
    """One packed row vector as (1, c) f32."""
    off, r, c = spec
    return ref[off:off + 1, 0:c]


def _im2col(x, K):
    """'same' conv im2col (odd K only). x: (Bb, T, Cin) -> (Bb*T, K*Cin)."""
    Bb, T, Cin = x.shape
    if K == 1:
        return x.reshape(Bb * T, Cin)
    pad = K // 2
    z = jnp.zeros((Bb, pad, Cin), jnp.float32)
    xp = jnp.concatenate([z, x, z], axis=1)                       # in-kernel halo
    cols = jnp.concatenate([xp[:, k:k + T, :] for k in range(K)], axis=-1)
    return cols.reshape(Bb * T, K * Cin)


def _group_norm(y, gamma, beta, M, MT, eps=1e-5):
    """GroupNorm over (channels-in-group, time) per sample. Stats stay f32."""
    Bb, T, C = y.shape
    G = M.shape[-1]
    n = jnp.float32(T * (C // G))
    s1 = jnp.dot(jnp.sum(y, axis=1), M, preferred_element_type=jnp.float32)      # (Bb, G)
    s2 = jnp.dot(jnp.sum(y * y, axis=1), M, preferred_element_type=jnp.float32)  # (Bb, G)
    mean = s1 / n
    var = jnp.maximum(s2 / n - mean * mean, 0.0)     # clamp one-pass cancellation
    inv = lax.rsqrt(var + eps)
    mean_c = jnp.dot(mean, MT, preferred_element_type=jnp.float32)               # (Bb, C)
    inv_c = jnp.dot(inv, MT, preferred_element_type=jnp.float32)
    xhat = (y - mean_c[:, None, :]) * inv_c[:, None, :]
    return xhat * gamma[None, :, :] + beta[None, :, :]


def _res_block(x, scale, bias, w_ref, bm):
    """One ConditionalResidualBlock1D on in-VMEM values. x: (Bb, T, Cin)."""
    Bb, T, _ = x.shape
    K = bm["K"]
    Cout = bm["Cout"]
    identity = bm["identity"]

    # conv1 (and, for non-identity blocks, the fused 1x1 residual projection)
    cols = _im2col(x, K)
    y = _matmul(cols, _slab(w_ref, bm["w1"]))         # (Bb*T, Cout) or (Bb*T, 2*Cout)
    b1 = _vec(w_ref, bm["b1"])
    if identity:
        h = y + b1
        res = x                                       # nn.Identity residual
    else:
        h = y[:, :Cout] + b1
        res = (y[:, Cout:] + _vec(w_ref, bm["br"])).reshape(Bb, T, Cout)
    h = h.reshape(Bb, T, Cout)

    M = _slab(w_ref, bm["M"])
    MT = _slab(w_ref, bm["MT"])
    h = _group_norm(h, _vec(w_ref, bm["g1"]), _vec(w_ref, bm["be1"]), M, MT)
    h = _mish(h)

    # FiLM (scale/bias already computed by the single fused cond matmul)
    h = scale[:, None, :] * h + bias[:, None, :]

    # conv2
    h = _matmul(_im2col(h, K), _slab(w_ref, bm["w2"])) + _vec(w_ref, bm["b2"])
    h = h.reshape(Bb, T, Cout)
    h = _group_norm(h, _vec(w_ref, bm["g2"]), _vec(w_ref, bm["be2"]), M, MT)
    h = _mish(h)
    return h + res


def _head(x, w_ref, hm):
    """SeqTokenLearner (num_tokens=1) + Linear -> Mish -> Linear."""
    # TODO(synk): SeqTokenLearnerModule source was not provided; implemented the
    # standard TokenLearner (LayerNorm -> MLP(bottleneck, GELU) -> softmax over the
    # sequence -> weighted pooling); dropout_rate=0.0 so dropout is a no-op.
    Bb, T, C = x.shape
    ln_g = _vec(w_ref, hm["ln_g"])
    ln_b = _vec(w_ref, hm["ln_b"])
    mean = jnp.mean(x, axis=-1, keepdims=True)
    var = jnp.mean((x - mean) ** 2, axis=-1, keepdims=True)
    xn = (x - mean) * lax.rsqrt(var + 1e-5)
    xn = xn * ln_g[None, :, :] + ln_b[None, :, :]

    h = _matmul(xn.reshape(Bb * T, C), _slab(w_ref, hm["wt1"])) + _vec(w_ref, hm["bt1"])
    # TODO(synk): nn.GELU default is exact erf; tanh approximation used for TPU lowering.
    h = 0.5 * h * (1.0 + jnp.tanh(0.7978845608028654 * (h + 0.044715 * h * h * h)))

    logits = _matmul(h, _slab(w_ref, hm["wt2"])) + _vec(w_ref, hm["bt2"])
    logits = logits.reshape(Bb, T, 1)

    # softmax over time; exact divide (T is tiny, keeps parity with the reference)
    m = jnp.max(logits, axis=1, keepdims=True)
    e = jnp.exp(logits - m)
    attn = e / jnp.sum(e, axis=1, keepdims=True)
    pooled = jnp.sum(attn * x, axis=1)                                          # (Bb, C)

    z = _matmul(pooled, _slab(w_ref, hm["w1"])) + _vec(w_ref, hm["b1"])
    z = _mish(z)
    z = _matmul(z, _slab(w_ref, hm["w2"])) + _vec(w_ref, hm["b2"])
    return z                                                                    # (Bb, 1)


# ----------------------------- fused kernel -----------------------------

def _make_fused_kernel(meta):
    cond_dim = meta["cond_dim"]
    total = meta["film_total"]
    blocks = meta["blocks"]
    head = meta["head"]

    def kernel(x_ref, cond_ref, w_ref, film_ref, out_ref):
        x = x_ref[...].astype(jnp.float32)           # (Bb, T, Cin0)
        cond = cond_ref[...].astype(jnp.float32)     # (Bb, cond_dim), dense 2-D
        cond_m = _mish(cond)                         # shared by every FiLM block

        # ALL FiLM encoders fused into a single MXU push (N = sum over blocks of 2*Cout)
        wc = film_ref[0:cond_dim, 0:total]
        bc = film_ref[cond_dim:cond_dim + 1, 0:total]
        emb = _matmul(cond_m, wc) + bc               # (Bb, total)

        for bm in blocks:                            # statically unrolled
            off = bm["film_off"]
            Cout = bm["Cout"]
            x = _res_block(x,
                           emb[:, off:off + Cout],           # scale
                           emb[:, off + Cout:off + 2 * Cout],  # bias
                           w_ref, bm)

        z = _head(x, w_ref, head)                    # (Bb, 1)
        out_ref[...] = z.astype(out_ref.dtype)
    return kernel


# ----------------------------- host-side weight packing -----------------------------

class _SlabPacker:
    """Packs many small f32 2-D arrays into one (rows, width) slab.

    Every entry starts at a sublane-aligned (multiple-of-8) row offset so the
    in-kernel static slices stay tile-aligned.
    """

    def __init__(self, width):
        self.width = width
        self.parts = []
        self.rows = 0

    def add(self, arr):
        arr = np.asarray(arr, np.float32)
        if arr.ndim == 1:
            arr = arr.reshape(1, -1)
        r, c = arr.shape
        assert c <= self.width, (c, self.width)
        rp = _pad_up(r, 8)
        buf = np.zeros((rp, self.width), np.float32)
        buf[:r, :c] = arr
        off = self.rows
        self.parts.append(buf)
        self.rows += rp
        return (off, r, c)

    def finalize(self):
        if not self.parts:
            return jnp.zeros((8, self.width), jnp.float32)
        return jnp.asarray(np.concatenate(self.parts, axis=0))


def pack_params(params, n_groups=8):
    """Pack all weights into two slabs + static metadata (host-side, concrete arrays)."""
    blocks_p = []
    for lvl in params["down"]:
        blocks_p += [lvl["r1"], lvl["r2"]]
    for m in params["mid"]:
        blocks_p.append(m["r"])

    h = params["head"]
    c_head = int(np.asarray(h["wt1"]).shape[0])

    # slab width: widest non-FiLM entry, padded to a lane multiple
    width = c_head
    for p in blocks_p:
        _, _, cout = np.asarray(p["w1"]).shape
        width = max(width, 2 * cout)
    width = _pad_up(max(width, 8), 128)

    pk = _SlabPacker(width)
    gn_cache = {}
    blocks_meta = []
    film_w, film_b = [], []
    film_off = 0
    cond_dim = int(np.asarray(blocks_p[0]["wc"]).shape[0])

    for p in blocks_p:
        w1 = np.asarray(p["w1"], np.float32)           # (K, Cin, Cout)
        K, Cin, Cout = w1.shape
        assert K % 2 == 1, "same-padding construction assumes odd kernel size"
        assert Cout % n_groups == 0
        identity = "wr" not in p
        pad = K // 2
        w1f = w1.reshape(K * Cin, Cout)
        if identity:
            w1e = w1f
        else:
            # Fuse the 1x1 residual conv into conv1's im2col weight (centre-tap rows).
            wr = np.asarray(p["wr"], np.float32).reshape(Cin, Cout)
            w1e = np.zeros((K * Cin, 2 * Cout), np.float32)
            w1e[:, :Cout] = w1f
            w1e[pad * Cin:(pad + 1) * Cin, Cout:] = wr

        bm = {"K": int(K), "Cout": int(Cout), "identity": identity}
        bm["w1"] = pk.add(w1e)
        bm["b1"] = pk.add(p["b1"])
        bm["g1"] = pk.add(p["g1"])
        bm["be1"] = pk.add(p["be1"])
        if not identity:
            bm["br"] = pk.add(p["br"])
        bm["w2"] = pk.add(np.asarray(p["w2"], np.float32).reshape(K * Cout, Cout))
        bm["b2"] = pk.add(p["b2"])
        bm["g2"] = pk.add(p["g2"])
        bm["be2"] = pk.add(p["be2"])

        if Cout not in gn_cache:                       # dedupe GroupNorm one-hots
            cpg = Cout // n_groups
            Mh = (np.arange(Cout)[:, None] // cpg ==
                  np.arange(n_groups)[None, :]).astype(np.float32)
            gn_cache[Cout] = (pk.add(Mh), pk.add(Mh.T))
        bm["M"], bm["MT"] = gn_cache[Cout]

        film_w.append(np.asarray(p["wc"], np.float32))                 # (cond_dim, 2*Cout)
        film_b.append(np.asarray(p["bc"], np.float32).reshape(1, 2 * Cout))
        bm["film_off"] = film_off
        film_off += 2 * Cout
        blocks_meta.append(bm)

    head_meta = {
        "ln_g": pk.add(h["ln_g"]), "ln_b": pk.add(h["ln_b"]),
        "wt1": pk.add(h["wt1"]), "bt1": pk.add(h["bt1"]),
        "wt2": pk.add(h["wt2"]), "bt2": pk.add(h["bt2"]),
        "w1": pk.add(h["w1"]), "b1": pk.add(h["b1"]),
        "w2": pk.add(h["w2"]), "b2": pk.add(h["b2"]),
    }
    main_slab = pk.finalize()

    wc_all = np.concatenate(film_w, axis=1)            # (cond_dim, sum 2*Cout)
    bc_all = np.concatenate(film_b, axis=1)
    total = int(wc_all.shape[1])
    film = np.zeros((_pad_up(cond_dim + 1, 8), _pad_up(total, 128)), np.float32)
    film[:cond_dim, :total] = wc_all
    film[cond_dim, :total] = bc_all[0]
    film_slab = jnp.asarray(film)

    meta = {"blocks": blocks_meta, "head": head_meta,
            "cond_dim": cond_dim, "film_total": total}
    return main_slab, film_slab, meta


# ----------------------------- wrapper / glue -----------------------------

def conditional_cnn1d_forward(main_slab, film_slab, meta, action, global_cond,
                              block_b=None):
    """action: (B, T, input_dim), global_cond: (B, cond_dim) -> (B, 1)."""
    B, T, Cin0 = action.shape
    cond_dim = global_cond.shape[-1]
    assert cond_dim == meta["cond_dim"]

    # Batch tile: sublane-aligned (keeps 2-D cond / output blocks tiled), >= 2 grid
    # steps when B is large enough (v7x megacore), capped to amortize per-step
    # pipeline overhead without blowing VMEM. Per-sample math keeps padded trailing
    # blocks from polluting valid samples.
    if block_b is None:
        if B >= 16:
            block_b = min(256, _pad_up(pl.cdiv(B, 2), 8))
        else:
            block_b = B
    grid = (pl.cdiv(B, block_b),)

    x = action.astype(jnp.float32)
    cond = global_cond.astype(jnp.float32)

    in_specs = [
        pl.BlockSpec((block_b, T, Cin0), lambda i: (i, 0, 0)),
        pl.BlockSpec((block_b, cond_dim), lambda i: (i, 0)),      # dense 2-D cond block
        # Weight slabs: constant index_map -> DMA'd once, resident across the grid.
        pl.BlockSpec(main_slab.shape, lambda i: (0, 0)),
        pl.BlockSpec(film_slab.shape, lambda i: (0, 0)),
    ]
    return pl.pallas_call(
        _make_fused_kernel(meta),
        out_shape=jax.ShapeDtypeStruct((B, 1), jnp.float32),
        grid=grid,
        in_specs=in_specs,
        out_specs=pl.BlockSpec((block_b, 1), lambda i: (i, 0)),
        compiler_params=pltpu.CompilerParams(
            dimension_semantics=("parallel",),      # shard batch across TCs on v7x
            vmem_limit_bytes=32 * 1024 * 1024,      # explicit; fits v5e/v6e/v7x
        ),
    )(x, cond, main_slab, film_slab)


# ----------------------------- deterministic parameter init -----------------------------

def _uinit(key, fan_in, shape):
    bound = float(fan_in) ** -0.5
    return jax.random.uniform(key, shape, jnp.float32, -bound, bound)


def init_res_block(key, in_c, out_c, cond_dim, K):
    ks = jax.random.split(key, 8)
    p = {
        "w1": _uinit(ks[0], in_c * K, (K, in_c, out_c)),       # conv1 (K, Cin, Cout)
        "b1": _uinit(ks[1], in_c * K, (1, out_c)),
        "g1": jnp.ones((1, out_c), jnp.float32),
        "be1": jnp.zeros((1, out_c), jnp.float32),
        "wc": _uinit(ks[2], cond_dim, (cond_dim, 2 * out_c)),   # cond encoder Linear
        "bc": _uinit(ks[3], cond_dim, (1, 2 * out_c)),
        "w2": _uinit(ks[4], out_c * K, (K, out_c, out_c)),
        "b2": _uinit(ks[5], out_c * K, (1, out_c)),
        "g2": jnp.ones((1, out_c), jnp.float32),
        "be2": jnp.zeros((1, out_c), jnp.float32),
    }
    if in_c != out_c:                                           # 1x1 residual conv
        p["wr"] = _uinit(ks[6], in_c, (in_c, out_c))
        p["br"] = _uinit(ks[7], in_c, (1, out_c))
    # else: nn.Identity -> no residual params (kernel skips the projection)
    return p


def init_params(key, input_dim, global_cond_dim, down_dims, kernel_size=3, n_groups=8):
    all_dims = [input_dim] + list(down_dims)
    in_out = list(zip(all_dims[:-1], all_dims[1:]))
    mid_dim = all_dims[-1]
    kernel_size_list = [5, 3, 1]
    n_keys = 2 * len(in_out) + 2 + 8
    ki = iter(jax.random.split(key, n_keys))

    params = {"down": [], "mid": [], "head": {}}
    for ind, (din, dout) in enumerate(in_out):
        K = kernel_size_list[ind]
        params["down"].append({
            "K": K,
            "r1": init_res_block(next(ki), din, dout, global_cond_dim, K),
            "r2": init_res_block(next(ki), dout, dout, global_cond_dim, K),
        })
    for _ in range(2):
        params["mid"].append({
            "K": kernel_size,
            "r": init_res_block(next(ki), mid_dim, mid_dim, global_cond_dim, kernel_size),
        })

    bneck = mid_dim // 4
    h = params["head"]
    h["ln_g"] = jnp.ones((1, mid_dim), jnp.float32)
    h["ln_b"] = jnp.zeros((1, mid_dim), jnp.float32)
    h["wt1"] = _uinit(next(ki), mid_dim, (mid_dim, bneck))      # token-learner MLP
    h["bt1"] = _uinit(next(ki), mid_dim, (1, bneck))
    h["wt2"] = _uinit(next(ki), bneck, (bneck, 1))
    h["bt2"] = _uinit(next(ki), bneck, (1, 1))
    h["w1"] = _uinit(next(ki), mid_dim, (mid_dim, bneck))       # linear1
    h["b1"] = _uinit(next(ki), mid_dim, (1, bneck))
    h["w2"] = _uinit(next(ki), bneck, (bneck, 1))               # linear2
    h["b2"] = _uinit(next(ki), bneck, (1, 1))
    return params


# ----------------------------- demo -----------------------------

if __name__ == "__main__":
    key = jax.random.PRNGKey(0)
    kp, ka, kc, ka2, kc2 = jax.random.split(key, 5)

    B, T = 2, 8
    input_dim = 4
    global_cond_dim = 16
    down_dims = [16, 32]          # mid_dim = 32, bottleneck = 8, n_groups = 8

    params = init_params(kp, input_dim, global_cond_dim, down_dims,
                         kernel_size=3, n_groups=8)
    main_slab, film_slab, meta = pack_params(params, n_groups=8)

    fwd = jax.jit(lambda w, f, a, c: conditional_cnn1d_forward(w, f, meta, a, c))

    action = jax.random.normal(ka, (B, T, input_dim), jnp.float32)
    global_cond = jax.random.normal(kc, (B, global_cond_dim), jnp.float32)
    out = jax.block_until_ready(fwd(main_slab, film_slab, action, global_cond))
    assert out.shape == (B, 1), out.shape
    assert bool(jnp.all(jnp.isfinite(out)))

    # Larger batch exercises the multi-step batch grid (>= 2 steps -> v7x megacore).
    B2 = 32
    action2 = jax.random.normal(ka2, (B2, T, input_dim), jnp.float32)
    global_cond2 = jax.random.normal(kc2, (B2, global_cond_dim), jnp.float32)
    out2 = jax.block_until_ready(fwd(main_slab, film_slab, action2, global_cond2))
    assert out2.shape == (B2, 1), out2.shape
    assert bool(jnp.all(jnp.isfinite(out2)))

    print("KERNEL_OK")
</pallas_src>

<mosaic_0001>
module attributes {stable_mosaic.version = 11 : i64} {
  func.func @kernel(%arg0: i32, %arg1: memref<2x8x4xf32, #tpu.memory_space<vmem>>, %arg2: memref<2x16xf32, #tpu.memory_space<vmem>>, %arg3: memref<1480x128xf32, #tpu.memory_space<vmem>>, %arg4: memref<24x384xf32, #tpu.memory_space<vmem>>, %arg5: memref<2x1xf32, #tpu.memory_space<vmem>>) attributes {dimension_semantics = [#tpu.dimension_semantics<parallel>], iteration_bounds = array<i64: 1>, scalar_prefetch = 0 : i64, scratch_operands = 0 : i64, tpu.core_type = #tpu.core_type<tc>, window_params = [{transform_indices = @transform_0, window_bounds = array<i64: 2, 8, 4>}, {transform_indices = @transform_1, window_bounds = array<i64: 2, 16>}, {pipeline_mode = #tpu.pipeline_mode<synchronous>, transform_indices = @transform_2, window_bounds = array<i64: 1480, 128>}, {pipeline_mode = #tpu.pipeline_mode<synchronous>, transform_indices = @transform_3, window_bounds = array<i64: 24, 384>}, {transform_indices = @transform_4, window_bounds = array<i64: 2, 1>}]} {
    %c0 = arith.constant 0 : index
    %c0_0 = arith.constant 0 : index
    %c0_1 = arith.constant 0 : index
    %0 = vector.load %arg1[%c0, %c0_0, %c0_1] : memref<2x8x4xf32, #tpu.memory_space<vmem>>, vector<2x8x4xf32>
    %c0_2 = arith.constant 0 : index
    %c0_3 = arith.constant 0 : index
    %1 = vector.load %arg2[%c0_2, %c0_3] : memref<2x16xf32, #tpu.memory_space<vmem>>, vector<2x16xf32>
    %cst = arith.constant 0.000000e+00 : f32
    %2 = vector.broadcast %cst : f32 to vector<2x16xf32>
    %3 = arith.maximumf %1, %2 : vector<2x16xf32>
    %4 = math.absf %1 : vector<2x16xf32>
    %cst_4 = arith.constant 0.000000e+00 : f32
    %5 = vector.broadcast %cst_4 : f32 to vector<2x16xf32>
    %6 = arith.subf %5, %4 : vector<2x16xf32>
    %7 = math.exp %6 : vector<2x16xf32>
    %cst_5 = arith.constant 1.000000e+00 : f32
    %8 = vector.broadcast %cst_5 : f32 to vector<2x16xf32>
    %9 = arith.addf %8, %7 : vector<2x16xf32>
    %10 = math.log %9 : vector<2x16xf32>
    %11 = arith.addf %3, %10 : vector<2x16xf32>
    %12 = math.tanh %11 : vector<2x16xf32>
    %13 = arith.mulf %1, %12 : vector<2x16xf32>
    %c0_6 = arith.constant 0 : index
    %c0_7 = arith.constant 0 : index
    %14 = vector.load %arg4[%c0_6, %c0_7] : memref<24x384xf32, #tpu.memory_space<vmem>>, vector<16x320xf32>
    %c16 = arith.constant 16 : index
    %c0_8 = arith.constant 0 : index
    %15 = vector.load %arg4[%c16, %c0_8] : memref<24x384xf32, #tpu.memory_space<vmem>>, vector<1x320xf32>
    %16 = arith.truncf %13 : vector<2x16xf32> to vector<2x16xbf16>
    %17 = arith.truncf %14 : vector<16x320xf32> to vector<16x320xbf16>
    %cst_9 = arith.constant dense<0.000000e+00> : vector<2x320xf32>
    %18 = tpu.matmul %16, %17, %cst_9 {dimension_numbers = #tpu.dot_dimension_numbers<[1], [0], [0], [1], [0, 0, 1, 1], [], []>} : vector<2x16xbf16>, vector<16x320xbf16>, vector<2x320xf32> -> vector<2x320xf32>
    %19 = vector.broadcast %15 : vector<1x320xf32> to vector<2x320xf32>
    %20 = arith.addf %18, %19 : vector<2x320xf32>
    %21 = vector.extract_strided_slice %20 {offsets = [0, 0], sizes = [2, 16], strides = [1, 1]} : vector<2x320xf32> to vector<2x16xf32>
    %22 = vector.extract_strided_slice %20 {offsets = [0, 16], sizes = [2, 16], strides = [1, 1]} : vector<2x320xf32> to vector<2x16xf32>
    %cst_10 = arith.constant 0.000000e+00 : f32
    %23 = vector.broadcast %cst_10 : f32 to vector<2x2x4xf32>
    %24 = tpu.concatenate %23, %0, %23 in 1 : vector<2x2x4xf32>, vector<2x8x4xf32>, vector<2x2x4xf32> -> vector<2x12x4xf32>
    %25 = vector.extract_strided_slice %24 {offsets = [0, 0, 0], sizes = [2, 8, 4], strides = [1, 1, 1]} : vector<2x12x4xf32> to vector<2x8x4xf32>
    %26 = vector.extract_strided_slice %24 {offsets = [0, 1, 0], sizes = [2, 8, 4], strides = [1, 1, 1]} : vector<2x12x4xf32> to vector<2x8x4xf32>
    %27 = vector.extract_strided_slice %24 {offsets = [0, 2, 0], sizes = [2, 8, 4], strides = [1, 1, 1]} : vector<2x12x4xf32> to vector<2x8x4xf32>
    %28 = vector.extract_strided_slice %24 {offsets = [0, 3, 0], sizes = [2, 8, 4], strides = [1, 1, 1]} : vector<2x12x4xf32> to vector<2x8x4xf32>
    %29 = vector.extract_strided_slice %24 {offsets = [0, 4, 0], sizes = [2, 8, 4], strides = [1, 1, 1]} : vector<2x12x4xf32> to vector<2x8x4xf32>
    %30 = tpu.concatenate %25, %26, %27, %28, %29 in 2 : vector<2x8x4xf32>, vector<2x8x4xf32>, vector<2x8x4xf32>, vector<2x8x4xf32>, vector<2x8x4xf32> -> vector<2x8x20xf32>
    %31 = vector.shape_cast %30 : vector<2x8x20xf32> to vector<16x20xf32>
    %c0_11 = arith.constant 0 : index
    %c0_12 = arith.constant 0 : index
    %32 = vector.load %arg3[%c0_11, %c0_12] : memref<1480x128xf32, #tpu.memory_space<vmem>>, vector<20x32xf32>
    %33 = arith.truncf %31 : vector<16x20xf32> to vector<16x20xbf16>
    %34 = arith.truncf %32 : vector<20x32xf32> to vector<20x32xbf16>
    %cst_13 = arith.constant dense<0.000000e+00> : vector<16x32xf32>
    %35 = tpu.matmul %33, %34, %cst_13 {dimension_numbers = #tpu.dot_dimension_numbers<[1], [0], [0], [1], [0, 0, 1, 1], [], []>} : vector<16x20xbf16>, vector<20x32xbf16>, vector<16x32xf32> -> vector<16x32xf32>
    %c24 = arith.constant 24 : index
    %c0_14 = arith.constant 0 : index
    %36 = vector.load %arg3[%c24, %c0_14] : memref<1480x128xf32, #tpu.memory_space<vmem>>, vector<1x16xf32>
    %37 = vector.extract_strided_slice %35 {offsets = [0, 0], sizes = [16, 16], strides = [1, 1]} : vector<16x32xf32> to vector<16x16xf32>
    %38 = vector.broadcast %36 : vector<1x16xf32> to vector<16x16xf32>
    %39 = arith.addf %37, %38 : vector<16x16xf32>
    %40 = vector.extract_strided_slice %35 {offsets = [0, 16], sizes = [16, 16], strides = [1, 1]} : vector<16x32xf32> to vector<16x16xf32>
    %c48 = arith.constant 48 : index
    %c0_15 = arith.constant 0 : index
    %41 = vector.load %arg3[%c48, %c0_15] : memref<1480x128xf32, #tpu.memory_space<vmem>>, vector<1x16xf32>
    %42 = vector.broadcast %41 : vector<1x16xf32> to vector<16x16xf32>
    %43 = arith.addf %40, %42 : vector<16x16xf32>
    %44 = vector.shape_cast %43 : vector<16x16xf32> to vector<2x8x16xf32>
    %45 = vector.shape_cast %39 : vector<16x16xf32> to vector<2x8x16xf32>
    %c160 = arith.constant 160 : index
    %c0_16 = arith.constant 0 : index
    %46 = vector.load %arg3[%c160, %c0_16] : memref<1480x128xf32, #tpu.memory_space<vmem>>, vector<16x8xf32>
    %c176 = arith.constant 176 : index
    %c0_17 = arith.constant 0 : index
    %47 = vector.load %arg3[%c176, %c0_17] : memref<1480x128xf32, #tpu.memory_space<vmem>>, vector<8x16xf32>
    %c32 = arith.constant 32 : index
    %c0_18 = arith.constant 0 : index
    %48 = vector.load %arg3[%c32, %c0_18] : memref<1480x128xf32, #tpu.memory_space<vmem>>, vector<1x16xf32>
    %c40 = arith.constant 40 : index
    %c0_19 = arith.constant 0 : index
    %49 = vector.load %arg3[%c40, %c0_19] : memref<1480x128xf32, #tpu.memory_space<vmem>>, vector<1x16xf32>
    %cst_20 = arith.constant dense<0.000000e+00> : vector<2x16xf32>
    %50 = vector.multi_reduction <add>, %45, %cst_20 [1] : vector<2x8x16xf32> to vector<2x16xf32>
    %cst_21 = arith.constant dense<0.000000e+00> : vector<2x8xf32>
    %51 = tpu.matmul %50, %46, %cst_21 {dimension_numbers = #tpu.dot_dimension_numbers<[1], [0], [0], [1], [0, 0, 1, 1], [], []>} : vector<2x16xf32>, vector<16x8xf32>, vector<2x8xf32> -> vector<2x8xf32>
    %52 = arith.mulf %45, %45 : vector<2x8x16xf32>
    %cst_22 = arith.constant dense<0.000000e+00> : vector<2x16xf32>
    %53 = vector.multi_reduction <add>, %52, %cst_22 [1] : vector<2x8x16xf32> to vector<2x16xf32>
    %cst_23 = arith.constant dense<0.000000e+00> : vector<2x8xf32>
    %54 = tpu.matmul %53, %46, %cst_23 {dimension_numbers = #tpu.dot_dimension_numbers<[1], [0], [0], [1], [0, 0, 1, 1], [], []>} : vector<2x16xf32>, vector<16x8xf32>, vector<2x8xf32> -> vector<2x8xf32>
    %cst_24 = arith.constant 1.600000e+01 : f32
    %55 = vector.broadcast %cst_24 : f32 to vector<2x8xf32>
    %56 = arith.divf %51, %55 : vector<2x8xf32>
    %cst_25 = arith.constant 1.600000e+01 : f32
    %57 = vector.broadcast %cst_25 : f32 to vector<2x8xf32>
    %58 = arith.divf %54, %57 : vector<2x8xf32>
    %59 = arith.mulf %56, %56 : vector<2x8xf32>
    %60 = arith.subf %58, %59 : vector<2x8xf32>
    %cst_26 = arith.constant 0.000000e+00 : f32
    %61 = vector.broadcast %cst_26 : f32 to vector<2x8xf32>
    %62 = arith.maximumf %60, %61 : vector<2x8xf32>
    %cst_27 = arith.constant 9.99999974E-6 : f32
    %63 = vector.broadcast %cst_27 : f32 to vector<2x8xf32>
    %64 = arith.addf %62, %63 : vector<2x8xf32>
    %65 = math.rsqrt %64 : vector<2x8xf32>
    %cst_28 = arith.constant dense<0.000000e+00> : vector<2x16xf32>
    %66 = tpu.matmul %56, %47, %cst_28 {dimension_numbers = #tpu.dot_dimension_numbers<[1], [0], [0], [1], [0, 0, 1, 1], [], []>} : vector<2x8xf32>, vector<8x16xf32>, vector<2x16xf32> -> vector<2x16xf32>
    %cst_29 = arith.constant dense<0.000000e+00> : vector<2x16xf32>
    %67 = tpu.matmul %65, %47, %cst_29 {dimension_numbers = #tpu.dot_dimension_numbers<[1], [0], [0], [1], [0, 0, 1, 1], [], []>} : vector<2x8xf32>, vector<8x16xf32>, vector<2x16xf32> -> vector<2x16xf32>
    %68 = vector.shape_cast %66 : vector<2x16xf32> to vector<2x1x16xf32>
    %69 = vector.broadcast %68 : vector<2x1x16xf32> to vector<2x8x16xf32>
    %70 = arith.subf %45, %69 : vector<2x8x16xf32>
    %71 = vector.shape_cast %67 : vector<2x16xf32> to vector<2x1x16xf32>
    %72 = vector.broadcast %71 : vector<2x1x16xf32> to vector<2x8x16xf32>
    %73 = arith.mulf %70, %72 : vector<2x8x16xf32>
    %74 = vector.shape_cast %48 : vector<1x16xf32> to vector<1x1x16xf32>
    %75 = vector.broadcast %74 : vector<1x1x16xf32> to vector<2x8x16xf32>
    %76 = arith.mulf %73, %75 : vector<2x8x16xf32>
    %77 = vector.shape_cast %49 : vector<1x16xf32> to vector<1x1x16xf32>
    %78 = vector.broadcast %77 : vector<1x1x16xf32> to vector<2x8x16xf32>
    %79 = arith.addf %76, %78 : vector<2x8x16xf32>
    %cst_30 = arith.constant 0.000000e+00 : f32
    %80 = vector.broadcast %cst_30 : f32 to vector<2x8x16xf32>
    %81 = arith.maximumf %79, %80 : vector<2x8x16xf32>
    %82 = math.absf %79 : vector<2x8x16xf32>
    %cst_31 = arith.constant 0.000000e+00 : f32
    %83 = vector.broadcast %cst_31 : f32 to vector<2x8x16xf32>
    %84 = arith.subf %83, %82 : vector<2x8x16xf32>
    %85 = math.exp %84 : vector<2x8x16xf32>
    %cst_32 = arith.constant 1.000000e+00 : f32
    %86 = vector.broadcast %cst_32 : f32 to vector<2x8x16xf32>
    %87 = arith.addf %86, %85 : vector<2x8x16xf32>
    %88 = math.log %87 : vector<2x8x16xf32>
    %89 = arith.addf %81, %88 : vector<2x8x16xf32>
    %90 = math.tanh %89 : vector<2x8x16xf32>
    %91 = arith.mulf %79, %90 : vector<2x8x16xf32>
    %92 = vector.shape_cast %21 : vector<2x16xf32> to vector<2x1x16xf32>
    %93 = vector.broadcast %92 : vector<2x1x16xf32> to vector<2x8x16xf32>
    %94 = arith.mulf %93, %91 : vector<2x8x16xf32>
    %95 = vector.shape_cast %22 : vector<2x16xf32> to vector<2x1x16xf32>
    %96 = vector.broadcast %95 : vector<2x1x16xf32> to vector<2x8x16xf32>
    %97 = arith.addf %94, %96 : vector<2x8x16xf32>
    %cst_33 = arith.constant 0.000000e+00 : f32
    %98 = vector.broadcast %cst_33 : f32 to vector<2x2x16xf32>
    %99 = tpu.concatenate %98, %97, %98 in 1 : vector<2x2x16xf32>, vector<2x8x16xf32>, vector<2x2x16xf32> -> vector<2x12x16xf32>
    %100 = vector.extract_strided_slice %99 {offsets = [0, 0, 0], sizes = [2, 8, 16], strides = [1, 1, 1]} : vector<2x12x16xf32> to vector<2x8x16xf32>
    %101 = vector.extract_strided_slice %99 {offsets = [0, 1, 0], sizes = [2, 8, 16], strides = [1, 1, 1]} : vector<2x12x16xf32> to vector<2x8x16xf32>
    %102 = vector.extract_strided_slice %99 {offsets = [0, 2, 0], sizes = [2, 8, 16], strides = [1, 1, 1]} : vector<2x12x16xf32> to vector<2x8x16xf32>
    %103 = vector.extract_strided_slice %99 {offsets = [0, 3, 0], sizes = [2, 8, 16], strides = [1, 1, 1]} : vector<2x12x16xf32> to vector<2x8x16xf32>
    %104 = vector.extract_strided_slice %99 {offsets = [0, 4, 0], sizes = [2, 8, 16], strides = [1, 1, 1]} : vector<2x12x16xf32> to vector<2x8x16xf32>
    %105 = tpu.concatenate %100, %101, %102, %103, %104 in 2 : vector<2x8x16xf32>, vector<2x8x16xf32>, vector<2x8x16xf32>, vector<2x8x16xf32>, vector<2x8x16xf32> -> vector<2x8x80xf32>
    %106 = vector.shape_cast %105 : vector<2x8x80xf32> to vector<16x80xf32>
    %c56 = arith.constant 56 : index
    %c0_34 = arith.constant 0 : index
    %107 = vector.load %arg3[%c56, %c0_34] : memref<1480x128xf32, #tpu.memory_space<vmem>>, vector<80x16xf32>
    %108 = arith.truncf %106 : vector<16x80xf32> to vector<16x80xbf16>
    %109 = arith.truncf %107 : vector<80x16xf32> to vector<80x16xbf16>
    %cst_35 = arith.constant dense<0.000000e+00> : vector<16x16xf32>
    %110 = tpu.matmul %108, %109, %cst_35 {dimension_numbers = #tpu.dot_dimension_numbers<[1], [0], [0], [1], [0, 0, 1, 1], [], []>} : vector<16x80xbf16>, vector<80x16xbf16>, vector<16x16xf32> -> vector<16x16xf32>
    %c136 = arith.constant 136 : index
    %c0_36 = arith.constant 0 : index
    %111 = vector.load %arg3[%c136, %c0_36] : memref<1480x128xf32, #tpu.memory_space<vmem>>, vector<1x16xf32>
    %112 = vector.broadcast %111 : vector<1x16xf32> to vector<16x16xf32>
    %113 = arith.addf %110, %112 : vector<16x16xf32>
    %114 = vector.shape_cast %113 : vector<16x16xf32> to vector<2x8x16xf32>
    %c144 = arith.constant 144 : index
    %c0_37 = arith.constant 0 : index
    %115 = vector.load %arg3[%c144, %c0_37] : memref<1480x128xf32, #tpu.memory_space<vmem>>, vector<1x16xf32>
    %c152 = arith.constant 152 : index
    %c0_38 = arith.constant 0 : index
    %116 = vector.load %arg3[%c152, %c0_38] : memref<1480x128xf32, #tpu.memory_space<vmem>>, vector<1x16xf32>
    %cst_39 = arith.constant dense<0.000000e+00> : vector<2x16xf32>
    %117 = vector.multi_reduction <add>, %114, %cst_39 [1] : vector<2x8x16xf32> to vector<2x16xf32>
    %cst_40 = arith.constant dense<0.000000e+00> : vector<2x8xf32>
    %118 = tpu.matmul %117, %46, %cst_40 {dimension_numbers = #tpu.dot_dimension_numbers<[1], [0], [0], [1], [0, 0, 1, 1], [], []>} : vector<2x16xf32>, vector<16x8xf32>, vector<2x8xf32> -> vector<2x8xf32>
    %119 = arith.mulf %114, %114 : vector<2x8x16xf32>
    %cst_41 = arith.constant dense<0.000000e+00> : vector<2x16xf32>
    %120 = vector.multi_reduction <add>, %119, %cst_41 [1] : vector<2x8x16xf32> to vector<2x16xf32>
    %cst_42 = arith.constant dense<0.000000e+00> : vector<2x8xf32>
    %121 = tpu.matmul %120, %46, %cst_42 {dimension_numbers = #tpu.dot_dimension_numbers<[1], [0], [0], [1], [0, 0, 1, 1], [], []>} : vector<2x16xf32>, vector<16x8xf32>, vector<2x8xf32> -> vector<2x8xf32>
    %cst_43 = arith.constant 1.600000e+01 : f32
    %122 = vector.broadcast %cst_43 : f32 to vector<2x8xf32>
    %123 = arith.divf %118, %122 : vector<2x8xf32>
    %cst_44 = arith.constant 1.600000e+01 : f32
    %124 = vector.broadcast %cst_44 : f32 to vector<2x8xf32>
    %125 = arith.divf %121, %124 : vector<2x8xf32>
    %126 = arith.mulf %123, %123 : vector<2x8xf32>
    %127 = arith.subf %125, %126 : vector<2x8xf32>
    %cst_45 = arith.constant 0.000000e+00 : f32
    %128 = vector.broadcast %cst_45 : f32 to vector<2x8xf32>
    %129 = arith.maximumf %127, %128 : vector<2x8xf32>
    %cst_46 = arith.constant 9.99999974E-6 : f32
    %130 = vector.broadcast %cst_46 : f32 to vector<2x8xf32>
    %131 = arith.addf %129, %130 : vector<2x8xf32>
    %132 = math.rsqrt %131 : vector<2x8xf32>
    %cst_47 = arith.constant dense<0.000000e+00> : vector<2x16xf32>
    %133 = tpu.matmul %123, %47, %cst_47 {dimension_numbers = #tpu.dot_dimension_numbers<[1], [0], [0], [1], [0, 0, 1, 1], [], []>} : vector<2x8xf32>, vector<8x16xf32>, vector<2x16xf32> -> vector<2x16xf32>
    %cst_48 = arith.constant dense<0.000000e+00> : vector<2x16xf32>
    %134 = tpu.matmul %132, %47, %cst_48 {dimension_numbers = #tpu.dot_dimension_numbers<[1], [0], [0], [1], [0, 0, 1, 1], [], []>} : vector<2x8xf32>, vector<8x16xf32>, vector<2x16xf32> -> vector<2x16xf32>
    %135 = vector.shape_cast %133 : vector<2x16xf32> to vector<2x1x16xf32>
    %136 = vector.broadcast %135 : vector<2x1x16xf32> to vector<2x8x16xf32>
    %137 = arith.subf %114, %136 : vector<2x8x16xf32>
    %138 = vector.shape_cast %134 : vector<2x16xf32> to vector<2x1x16xf32>
    %139 = vector.broadcast %138 : vector<2x1x16xf32> to vector<2x8x16xf32>
    %140 = arith.mulf %137, %139 : vector<2x8x16xf32>
    %141 = vector.shape_cast %115 : vector<1x16xf32> to vector<1x1x16xf32>
    %142 = vector.broadcast %141 : vector<1x1x16xf32> to vector<2x8x16xf32>
    %143 = arith.mulf %140, %142 : vector<2x8x16xf32>
    %144 = vector.shape_cast %116 : vector<1x16xf32> to vector<1x1x16xf32>
    %145 = vector.broadcast %144 : vector<1x1x16xf32> to vector<2x8x16xf32>
    %146 = arith.addf %143, %145 : vector<2x8x16xf32>
    %cst_49 = arith.constant 0.000000e+00 : f32
    %147 = vector.broadcast %cst_49 : f32 to vector<2x8x16xf32>
    %148 = arith.maximumf %146, %147 : vector<2x8x16xf32>
    %149 = math.absf %146 : vector<2x8x16xf32>
    %cst_50 = arith.constant 0.000000e+00 : f32
    %150 = vector.broadcast %cst_50 : f32 to vector<2x8x16xf32>
    %151 = arith.subf %150, %149 : vector<2x8x16xf32>
    %152 = math.exp %151 : vector<2x8x16xf32>
    %cst_51 = arith.constant 1.000000e+00 : f32
    %153 = vector.broadcast %cst_51 : f32 to vector<2x8x16xf32>
    %154 = arith.addf %153, %152 : vector<2x8x16xf32>
    %155 = math.log %154 : vector<2x8x16xf32>
    %156 = arith.addf %148, %155 : vector<2x8x16xf32>
    %157 = math.tanh %156 : vector<2x8x16xf32>
    %158 = arith.mulf %146, %157 : vector<2x8x16xf32>
    %159 = arith.addf %158, %44 : vector<2x8x16xf32>
    %160 = vector.extract_strided_slice %20 {offsets = [0, 32], sizes = [2, 16], strides = [1, 1]} : vector<2x320xf32> to vector<2x16xf32>
    %161 = vector.extract_strided_slice %20 {offsets = [0, 48], sizes = [2, 16], strides = [1, 1]} : vector<2x320xf32> to vector<2x16xf32>
    %cst_52 = arith.constant 0.000000e+00 : f32
    %162 = vector.broadcast %cst_52 : f32 to vector<2x2x16xf32>
    %163 = tpu.concatenate %162, %159, %162 in 1 : vector<2x2x16xf32>, vector<2x8x16xf32>, vector<2x2x16xf32> -> vector<2x12x16xf32>
    %164 = vector.extract_strided_slice %163 {offsets = [0, 0, 0], sizes = [2, 8, 16], strides = [1, 1, 1]} : vector<2x12x16xf32> to vector<2x8x16xf32>
    %165 = vector.extract_strided_slice %163 {offsets = [0, 1, 0], sizes = [2, 8, 16], strides = [1, 1, 1]} : vector<2x12x16xf32> to vector<2x8x16xf32>
    %166 = vector.extract_strided_slice %163 {offsets = [0, 2, 0], sizes = [2, 8, 16], strides = [1, 1, 1]} : vector<2x12x16xf32> to vector<2x8x16xf32>
    %167 = vector.extract_strided_slice %163 {offsets = [0, 3, 0], sizes = [2, 8, 16], strides = [1, 1, 1]} : vector<2x12x16xf32> to vector<2x8x16xf32>
    %168 = vector.extract_strided_slice %163 {offsets = [0, 4, 0], sizes = [2, 8, 16], strides = [1, 1, 1]} : vector<2x12x16xf32> to vector<2x8x16xf32>
    %169 = tpu.concatenate %164, %165, %166, %167, %168 in 2 : vector<2x8x16xf32>, vector<2x8x16xf32>, vector<2x8x16xf32>, vector<2x8x16xf32>, vector<2x8x16xf32> -> vector<2x8x80xf32>
    %170 = vector.shape_cast %169 : vector<2x8x80xf32> to vector<16x80xf32>
    %c184 = arith.constant 184 : index
    %c0_53 = arith.constant 0 : index
    %171 = vector.load %arg3[%c184, %c0_53] : memref<1480x128xf32, #tpu.memory_space<vmem>>, vector<80x16xf32>
    %172 = arith.truncf %170 : vector<16x80xf32> to vector<16x80xbf16>
    %173 = arith.truncf %171 : vector<80x16xf32> to vector<80x16xbf16>
    %cst_54 = arith.constant dense<0.000000e+00> : vector<16x16xf32>
    %174 = tpu.matmul %172, %173, %cst_54 {dimension_numbers = #tpu.dot_dimension_numbers<[1], [0], [0], [1], [0, 0, 1, 1], [], []>} : vector<16x80xbf16>, vector<80x16xbf16>, vector<16x16xf32> -> vector<16x16xf32>
    %c264 = arith.constant 264 : index
    %c0_55 = arith.constant 0 : index
    %175 = vector.load %arg3[%c264, %c0_55] : memref<1480x128xf32, #tpu.memory_space<vmem>>, vector<1x16xf32>
    %176 = vector.broadcast %175 : vector<1x16xf32> to vector<16x16xf32>
    %177 = arith.addf %174, %176 : vector<16x16xf32>
    %178 = vector.shape_cast %177 : vector<16x16xf32> to vector<2x8x16xf32>
    %c160_56 = arith.constant 160 : index
    %c0_57 = arith.constant 0 : index
    %179 = vector.load %arg3[%c160_56, %c0_57] : memref<1480x128xf32, #tpu.memory_space<vmem>>, vector<16x8xf32>
    %c176_58 = arith.constant 176 : index
    %c0_59 = arith.constant 0 : index
    %180 = vector.load %arg3[%c176_58, %c0_59] : memref<1480x128xf32, #tpu.memory_space<vmem>>, vector<8x16xf32>
    %c272 = arith.constant 272 : index
    %c0_60 = arith.constant 0 : index
    %181 = vector.load %arg3[%c272, %c0_60] : memref<1480x128xf32, #tpu.memory_space<vmem>>, vector<1x16xf32>
    %c280 = arith.constant 280 : index
    %c0_61 = arith.constant 0 : index
    %182 = vector.load %arg3[%c280, %c0_61] : memref<1480x128xf32, #tpu.memory_space<vmem>>, vector<1x16xf32>
    %cst_62 = arith.constant dense<0.000000e+00> : vector<2x16xf32>
    %183 = vector.multi_reduction <add>, %178, %cst_62 [1] : vector<2x8x16xf32> to vector<2x16xf32>
    %cst_63 = arith.constant dense<0.000000e+00> : vector<2x8xf32>
    %184 = tpu.matmul %183, %179, %cst_63 {dimension_numbers = #tpu.dot_dimension_numbers<[1], [0], [0], [1], [0, 0, 1, 1], [], []>} : vector<2x16xf32>, vector<16x8xf32>, vector<2x8xf32> -> vector<2x8xf32>
    %185 = arith.mulf %178, %178 : vector<2x8x16xf32>
    %cst_64 = arith.constant dense<0.000000e+00> : vector<2x16xf32>
    %186 = vector.multi_reduction <add>, %185, %cst_64 [1] : vector<2x8x16xf32> to vector<2x16xf32>
    %cst_65 = arith.constant dense<0.000000e+00> : vector<2x8xf32>
    %187 = tpu.matmul %186, %179, %cst_65 {dimension_numbers = #tpu.dot_dimension_numbers<[1], [0], [0], [1], [0, 0, 1, 1], [], []>} : vector<2x16xf32>, vector<16x8xf32>, vector<2x8xf32> -> vector<2x8xf32>
    %cst_66 = arith.constant 1.600000e+01 : f32
    %188 = vector.broadcast %cst_66 : f32 to vector<2x8xf32>
    %189 = arith.divf %184, %188 : vector<2x8xf32>
    %cst_67 = arith.constant 1.600000e+01 : f32
    %190 = vector.broadcast %cst_67 : f32 to vector<2x8xf32>
    %191 = arith.divf %187, %190 : vector<2x8xf32>
    %192 = arith.mulf %189, %189 : vector<2x8xf32>
    %193 = arith.subf %191, %192 : vector<2x8xf32>
    %cst_68 = arith.constant 0.000000e+00 : f32
    %194 = vector.broadcast %cst_68 : f32 to vector<2x8xf32>
    %195 = arith.maximumf %193, %194 : vector<2x8xf32>
    %cst_69 = arith.constant 9.99999974E-6 : f32
    %196 = vector.broadcast %cst_69 : f32 to vector<2x8xf32>
    %197 = arith.addf %195, %196 : vector<2x8xf32>
    %198 = math.rsqrt %197 : vector<2x8xf32>
    %cst_70 = arith.constant dense<0.000000e+00> : vector<2x16xf32>
    %199 = tpu.matmul %189, %180, %cst_70 {dimension_numbers = #tpu.dot_dimension_numbers<[1], [0], [0], [1], [0, 0, 1, 1], [], []>} : vector<2x8xf32>, vector<8x16xf32>, vector<2x16xf32> -> vector<2x16xf32>
    %cst_71 = arith.constant dense<0.000000e+00> : vector<2x16xf32>
    %200 = tpu.matmul %198, %180, %cst_71 {dimension_numbers = #tpu.dot_dimension_numbers<[1], [0], [0], [1], [0, 0, 1, 1], [], []>} : vector<2x8xf32>, vector<8x16xf32>, vector<2x16xf32> -> vector<2x16xf32>
    %201 = vector.shape_cast %199 : vector<2x16xf32> to vector<2x1x16xf32>
    %202 = vector.broadcast %201 : vector<2x1x16xf32> to vector<2x8x16xf32>
    %203 = arith.subf %178, %202 : vector<2x8x16xf32>
    %204 = vector.shape_cast %200 : vector<2x16xf32> to vector<2x1x16xf32>
    %205 = vector.broadcast %204 : vector<2x1x16xf32> to vector<2x8x16xf32>
    %206 = arith.mulf %203, %205 : vector<2x8x16xf32>
    %207 = vector.shape_cast %181 : vector<1x16xf32> to vector<1x1x16xf32>
    %208 = vector.broadcast %207 : vector<1x1x16xf32> to vector<2x8x16xf32>
    %209 = arith.mulf %206, %208 : vector<2x8x16xf32>
    %210 = vector.shape_cast %182 : vector<1x16xf32> to vector<1x1x16xf32>
    %211 = vector.broadcast %210 : vector<1x1x16xf32> to vector<2x8x16xf32>
    %212 = arith.addf %209, %211 : vector<2x8x16xf32>
    %cst_72 = arith.constant 0.000000e+00 : f32
    %213 = vector.broadcast %cst_72 : f32 to vector<2x8x16xf32>
    %214 = arith.maximumf %212, %213 : vector<2x8x16xf32>
    %215 = math.absf %212 : vector<2x8x16xf32>
    %cst_73 = arith.constant 0.000000e+00 : f32
    %216 = vector.broadcast %cst_73 : f32 to vector<2x8x16xf32>
    %217 = arith.subf %216, %215 : vector<2x8x16xf32>
    %218 = math.exp %217 : vector<2x8x16xf32>
    %cst_74 = arith.constant 1.000000e+00 : f32
    %219 = vector.broadcast %cst_74 : f32 to vector<2x8x16xf32>
    %220 = arith.addf %219, %218 : vector<2x8x16xf32>
    %221 = math.log %220 : vector<2x8x16xf32>
    %222 = arith.addf %214, %221 : vector<2x8x16xf32>
    %223 = math.tanh %222 : vector<2x8x16xf32>
    %224 = arith.mulf %212, %223 : vector<2x8x16xf32>
    %225 = vector.shape_cast %160 : vector<2x16xf32> to vector<2x1x16xf32>
    %226 = vector.broadcast %225 : vector<2x1x16xf32> to vector<2x8x16xf32>
    %227 = arith.mulf %226, %224 : vector<2x8x16xf32>
    %228 = vector.shape_cast %161 : vector<2x16xf32> to vector<2x1x16xf32>
    %229 = vector.broadcast %228 : vector<2x1x16xf32> to vector<2x8x16xf32>
    %230 = arith.addf %227, %229 : vector<2x8x16xf32>
    %cst_75 = arith.constant 0.000000e+00 : f32
    %231 = vector.broadcast %cst_75 : f32 to vector<2x2x16xf32>
    %232 = tpu.concatenate %231, %230, %231 in 1 : vector<2x2x16xf32>, vector<2x8x16xf32>, vector<2x2x16xf32> -> vector<2x12x16xf32>
    %233 = vector.extract_strided_slice %232 {offsets = [0, 0, 0], sizes = [2, 8, 16], strides = [1, 1, 1]} : vector<2x12x16xf32> to vector<2x8x16xf32>
    %234 = vector.extract_strided_slice %232 {offsets = [0, 1, 0], sizes = [2, 8, 16], strides = [1, 1, 1]} : vector<2x12x16xf32> to vector<2x8x16xf32>
    %235 = vector.extract_strided_slice %232 {offsets = [0, 2, 0], sizes = [2, 8, 16], strides = [1, 1, 1]} : vector<2x12x16xf32> to vector<2x8x16xf32>
    %236 = vector.extract_strided_slice %232 {offsets = [0, 3, 0], sizes = [2, 8, 16], strides = [1, 1, 1]} : vector<2x12x16xf32> to vector<2x8x16xf32>
    %237 = vector.extract_strided_slice %232 {offsets = [0, 4, 0], sizes = [2, 8, 16], strides = [1, 1, 1]} : vector<2x12x16xf32> to vector<2x8x16xf32>
    %238 = tpu.concatenate %233, %234, %235, %236, %237 in 2 : vector<2x8x16xf32>, vector<2x8x16xf32>, vector<2x8x16xf32>, vector<2x8x16xf32>, vector<2x8x16xf32> -> vector<2x8x80xf32>
    %239 = vector.shape_cast %238 : vector<2x8x80xf32> to vector<16x80xf32>
    %c288 = arith.constant 288 : index
    %c0_76 = arith.constant 0 : index
    %240 = vector.load %arg3[%c288, %c0_76] : memref<1480x128xf32, #tpu.memory_space<vmem>>, vector<80x16xf32>
    %241 = arith.truncf %239 : vector<16x80xf32> to vector<16x80xbf16>
    %242 = arith.truncf %240 : vector<80x16xf32> to vector<80x16xbf16>
    %cst_77 = arith.constant dense<0.000000e+00> : vector<16x16xf32>
    %243 = tpu.matmul %241, %242, %cst_77 {dimension_numbers = #tpu.dot_dimension_numbers<[1], [0], [0], [1], [0, 0, 1, 1], [], []>} : vector<16x80xbf16>, vector<80x16xbf16>, vector<16x16xf32> -> vector<16x16xf32>
    %c368 = arith.constant 368 : index
    %c0_78 = arith.constant 0 : index
    %244 = vector.load %arg3[%c368, %c0_78] : memref<1480x128xf32, #tpu.memory_space<vmem>>, vector<1x16xf32>
    %245 = vector.broadcast %244 : vector<1x16xf32> to vector<16x16xf32>
    %246 = arith.addf %243, %245 : vector<16x16xf32>
    %247 = vector.shape_cast %246 : vector<16x16xf32> to vector<2x8x16xf32>
    %c376 = arith.constant 376 : index
    %c0_79 = arith.constant 0 : index
    %248 = vector.load %arg3[%c376, %c0_79] : memref<1480x128xf32, #tpu.memory_space<vmem>>, vector<1x16xf32>
    %c384 = arith.constant 384 : index
    %c0_80 = arith.constant 0 : index
    %249 = vector.load %arg3[%c384, %c0_80] : memref<1480x128xf32, #tpu.memory_space<vmem>>, vector<1x16xf32>
    %cst_81 = arith.constant dense<0.000000e+00> : vector<2x16xf32>
    %250 = vector.multi_reduction <add>, %247, %cst_81 [1] : vector<2x8x16xf32> to vector<2x16xf32>
    %cst_82 = arith.constant dense<0.000000e+00> : vector<2x8xf32>
    %251 = tpu.matmul %250, %179, %cst_82 {dimension_numbers = #tpu.dot_dimension_numbers<[1], [0], [0], [1], [0, 0, 1, 1], [], []>} : vector<2x16xf32>, vector<16x8xf32>, vector<2x8xf32> -> vector<2x8xf32>
    %252 = arith.mulf %247, %247 : vector<2x8x16xf32>
    %cst_83 = arith.constant dense<0.000000e+00> : vector<2x16xf32>
    %253 = vector.multi_reduction <add>, %252, %cst_83 [1] : vector<2x8x16xf32> to vector<2x16xf32>
    %cst_84 = arith.constant dense<0.000000e+00> : vector<2x8xf32>
    %254 = tpu.matmul %253, %179, %cst_84 {dimension_numbers = #tpu.dot_dimension_numbers<[1], [0], [0], [1], [0, 0, 1, 1], [], []>} : vector<2x16xf32>, vector<16x8xf32>, vector<2x8xf32> -> vector<2x8xf32>
    %cst_85 = arith.constant 1.600000e+01 : f32
    %255 = vector.broadcast %cst_85 : f32 to vector<2x8xf32>
    %256 = arith.divf %251, %255 : vector<2x8xf32>
    %cst_86 = arith.constant 1.600000e+01 : f32
    %257 = vector.broadcast %cst_86 : f32 to vector<2x8xf32>
    %258 = arith.divf %254, %257 : vector<2x8xf32>
    %259 = arith.mulf %256, %256 : vector<2x8xf32>
    %260 = arith.subf %258, %259 : vector<2x8xf32>
    %cst_87 = arith.constant 0.000000e+00 : f32
    %261 = vector.broadcast %cst_87 : f32 to vector<2x8xf32>
    %262 = arith.maximumf %260, %261 : vector<2x8xf32>
    %cst_88 = arith.constant 9.99999974E-6 : f32
    %263 = vector.broadcast %cst_88 : f32 to vector<2x8xf32>
    %264 = arith.addf %262, %263 : vector<2x8xf32>
    %265 = math.rsqrt %264 : vector<2x8xf32>
    %cst_89 = arith.constant dense<0.000000e+00> : vector<2x16xf32>
    %266 = tpu.matmul %256, %180, %cst_89 {dimension_numbers = #tpu.dot_dimension_numbers<[1], [0], [0], [1], [0, 0, 1, 1], [], []>} : vector<2x8xf32>, vector<8x16xf32>, vector<2x16xf32> -> vector<2x16xf32>
    %cst_90 = arith.constant dense<0.000000e+00> : vector<2x16xf32>
    %267 = tpu.matmul %265, %180, %cst_90 {dimension_numbers = #tpu.dot_dimension_numbers<[1], [0], [0], [1], [0, 0, 1, 1], [], []>} : vector<2x8xf32>, vector<8x16xf32>, vector<2x16xf32> -> vector<2x16xf32>
    %268 = vector.shape_cast %266 : vector<2x16xf32> to vector<2x1x16xf32>
    %269 = vector.broadcast %268 : vector<2x1x16xf32> to vector<2x8x16xf32>
    %270 = arith.subf %247, %269 : vector<2x8x16xf32>
    %271 = vector.shape_cast %267 : vector<2x16xf32> to vector<2x1x16xf32>
    %272 = vector.broadcast %271 : vector<2x1x16xf32> to vector<2x8x16xf32>
    %273 = arith.mulf %270, %272 : vector<2x8x16xf32>
    %274 = vector.shape_cast %248 : vector<1x16xf32> to vector<1x1x16xf32>
    %275 = vector.broadcast %274 : vector<1x1x16xf32> to vector<2x8x16xf32>
    %276 = arith.mulf %273, %275 : vector<2x8x16xf32>
    %277 = vector.shape_cast %249 : vector<1x16xf32> to vector<1x1x16xf32>
    %278 = vector.broadcast %277 : vector<1x1x16xf32> to vector<2x8x16xf32>
    %279 = arith.addf %276, %278 : vector<2x8x16xf32>
    %cst_91 = arith.constant 0.000000e+00 : f32
    %280 = vector.broadcast %cst_91 : f32 to vector<2x8x16xf32>
    %281 = arith.maximumf %279, %280 : vector<2x8x16xf32>
    %282 = math.absf %279 : vector<2x8x16xf32>
    %cst_92 = arith.constant 0.000000e+00 : f32
    %283 = vector.broadcast %cst_92 : f32 to vector<2x8x16xf32>
    %284 = arith.subf %283, %282 : vector<2x8x16xf32>
    %285 = math.exp %284 : vector<2x8x16xf32>
    %cst_93 = arith.constant 1.000000e+00 : f32
    %286 = vector.broadcast %cst_93 : f32 to vector<2x8x16xf32>
    %287 = arith.addf %286, %285 : vector<2x8x16xf32>
    %288 = math.log %287 : vector<2x8x16xf32>
    %289 = arith.addf %281, %288 : vector<2x8x16xf32>
    %290 = math.tanh %289 : vector<2x8x16xf32>
    %291 = arith.mulf %279, %290 : vector<2x8x16xf32>
    %292 = arith.addf %291, %159 : vector<2x8x16xf32>
    %293 = vector.extract_strided_slice %20 {offsets = [0, 64], sizes = [2, 32], strides = [1, 1]} : vector<2x320xf32> to vector<2x32xf32>
    %294 = vector.extract_strided_slice %20 {offsets = [0, 96], sizes = [2, 32], strides = [1, 1]} : vector<2x320xf32> to vector<2x32xf32>
    %cst_94 = arith.constant 0.000000e+00 : f32
    %295 = vector.broadcast %cst_94 : f32 to vector<2x1x16xf32>
    %296 = tpu.concatenate %295, %292, %295 in 1 : vector<2x1x16xf32>, vector<2x8x16xf32>, vector<2x1x16xf32> -> vector<2x10x16xf32>
    %297 = vector.extract_strided_slice %296 {offsets = [0, 0, 0], sizes = [2, 8, 16], strides = [1, 1, 1]} : vector<2x10x16xf32> to vector<2x8x16xf32>
    %298 = vector.extract_strided_slice %296 {offsets = [0, 1, 0], sizes = [2, 8, 16], strides = [1, 1, 1]} : vector<2x10x16xf32> to vector<2x8x16xf32>
    %299 = vector.extract_strided_slice %296 {offsets = [0, 2, 0], sizes = [2, 8, 16], strides = [1, 1, 1]} : vector<2x10x16xf32> to vector<2x8x16xf32>
    %300 = tpu.concatenate %297, %298, %299 in 2 : vector<2x8x16xf32>, vector<2x8x16xf32>, vector<2x8x16xf32> -> vector<2x8x48xf32>
    %301 = vector.shape_cast %300 : vector<2x8x48xf32> to vector<16x48xf32>
    %c392 = arith.constant 392 : index
    %c0_95 = arith.constant 0 : index
    %302 = vector.load %arg3[%c392, %c0_95] : memref<1480x128xf32, #tpu.memory_space<vmem>>, vector<48x64xf32>
    %303 = arith.truncf %301 : vector<16x48xf32> to vector<16x48xbf16>
    %304 = arith.truncf %302 : vector<48x64xf32> to vector<48x64xbf16>
    %cst_96 = arith.constant dense<0.000000e+00> : vector<16x64xf32>
    %305 = tpu.matmul %303, %304, %cst_96 {dimension_numbers = #tpu.dot_dimension_numbers<[1], [0], [0], [1], [0, 0, 1, 1], [], []>} : vector<16x48xbf16>, vector<48x64xbf16>, vector<16x64xf32> -> vector<16x64xf32>
    %c440 = arith.constant 440 : index
    %c0_97 = arith.constant 0 : index
    %306 = vector.load %arg3[%c440, %c0_97] : memref<1480x128xf32, #tpu.memory_space<vmem>>, vector<1x32xf32>
    %307 = vector.extract_strided_slice %305 {offsets = [0, 0], sizes = [16, 32], strides = [1, 1]} : vector<16x64xf32> to vector<16x32xf32>
    %308 = vector.broadcast %306 : vector<1x32xf32> to vector<16x32xf32>
    %309 = arith.addf %307, %308 : vector<16x32xf32>
    %310 = vector.extract_strided_slice %305 {offsets = [0, 32], sizes = [16, 32], strides = [1, 1]} : vector<16x64xf32> to vector<16x32xf32>
    %c464 = arith.constant 464 : index
    %c0_98 = arith.constant 0 : index
    %311 = vector.load %arg3[%c464, %c0_98] : memref<1480x128xf32, #tpu.memory_space<vmem>>, vector<1x32xf32>
    %312 = vector.broadcast %311 : vector<1x32xf32> to vector<16x32xf32>
    %313 = arith.addf %310, %312 : vector<16x32xf32>
    %314 = vector.shape_cast %313 : vector<16x32xf32> to vector<2x8x32xf32>
    %315 = vector.shape_cast %309 : vector<16x32xf32> to vector<2x8x32xf32>
    %c592 = arith.constant 592 : index
    %c0_99 = arith.constant 0 : index
    %316 = vector.load %arg3[%c592, %c0_99] : memref<1480x128xf32, #tpu.memory_space<vmem>>, vector<32x8xf32>
    %c624 = arith.constant 624 : index
    %c0_100 = arith.constant 0 : index
    %317 = vector.load %arg3[%c624, %c0_100] : memref<1480x128xf32, #tpu.memory_space<vmem>>, vector<8x32xf32>
    %c448 = arith.constant 448 : index
    %c0_101 = arith.constant 0 : index
    %318 = vector.load %arg3[%c448, %c0_101] : memref<1480x128xf32, #tpu.memory_space<vmem>>, vector<1x32xf32>
    %c456 = arith.constant 456 : index
    %c0_102 = arith.constant 0 : index
    %319 = vector.load %arg3[%c456, %c0_102] : memref<1480x128xf32, #tpu.memory_space<vmem>>, vector<1x32xf32>
    %cst_103 = arith.constant dense<0.000000e+00> : vector<2x32xf32>
    %320 = vector.multi_reduction <add>, %315, %cst_103 [1] : vector<2x8x32xf32> to vector<2x32xf32>
    %cst_104 = arith.constant dense<0.000000e+00> : vector<2x8xf32>
    %321 = tpu.matmul %320, %316, %cst_104 {dimension_numbers = #tpu.dot_dimension_numbers<[1], [0], [0], [1], [0, 0, 1, 1], [], []>} : vector<2x32xf32>, vector<32x8xf32>, vector<2x8xf32> -> vector<2x8xf32>
    %322 = arith.mulf %315, %315 : vector<2x8x32xf32>
    %cst_105 = arith.constant dense<0.000000e+00> : vector<2x32xf32>
    %323 = vector.multi_reduction <add>, %322, %cst_105 [1] : vector<2x8x32xf32> to vector<2x32xf32>
    %cst_106 = arith.constant dense<0.000000e+00> : vector<2x8xf32>
    %324 = tpu.matmul %323, %316, %cst_106 {dimension_numbers = #tpu.dot_dimension_numbers<[1], [0], [0], [1], [0, 0, 1, 1], [], []>} : vector<2x32xf32>, vector<32x8xf32>, vector<2x8xf32> -> vector<2x8xf32>
    %cst_107 = arith.constant 3.200000e+01 : f32
    %325 = vector.broadcast %cst_107 : f32 to vector<2x8xf32>
    %326 = arith.divf %321, %325 : vector<2x8xf32>
    %cst_108 = arith.constant 3.200000e+01 : f32
    %327 = vector.broadcast %cst_108 : f32 to vector<2x8xf32>
    %328 = arith.divf %324, %327 : vector<2x8xf32>
    %329 = arith.mulf %326, %326 : vector<2x8xf32>
    %330 = arith.subf %328, %329 : vector<2x8xf32>
    %cst_109 = arith.constant 0.000000e+00 : f32
    %331 = vector.broadcast %cst_109 : f32 to vector<2x8xf32>
    %332 = arith.maximumf %330, %331 : vector<2x8xf32>
    %cst_110 = arith.constant 9.99999974E-6 : f32
    %333 = vector.broadcast %cst_110 : f32 to vector<2x8xf32>
    %334 = arith.addf %332, %333 : vector<2x8xf32>
    %335 = math.rsqrt %334 : vector<2x8xf32>
    %cst_111 = arith.constant dense<0.000000e+00> : vector<2x32xf32>
    %336 = tpu.matmul %326, %317, %cst_111 {dimension_numbers = #tpu.dot_dimension_numbers<[1], [0], [0], [1], [0, 0, 1, 1], [], []>} : vector<2x8xf32>, vector<8x32xf32>, vector<2x32xf32> -> vector<2x32xf32>
    %cst_112 = arith.constant dense<0.000000e+00> : vector<2x32xf32>
    %337 = tpu.matmul %335, %317, %cst_112 {dimension_numbers = #tpu.dot_dimension_numbers<[1], [0], [0], [1], [0, 0, 1, 1], [], []>} : vector<2x8xf32>, vector<8x32xf32>, vector<2x32xf32> -> vector<2x32xf32>
    %338 = vector.shape_cast %336 : vector<2x32xf32> to vector<2x1x32xf32>
    %339 = vector.broadcast %338 : vector<2x1x32xf32> to vector<2x8x32xf32>
    %340 = arith.subf %315, %339 : vector<2x8x32xf32>
    %341 = vector.shape_cast %337 : vector<2x32xf32> to vector<2x1x32xf32>
    %342 = vector.broadcast %341 : vector<2x1x32xf32> to vector<2x8x32xf32>
    %343 = arith.mulf %340, %342 : vector<2x8x32xf32>
    %344 = vector.shape_cast %318 : vector<1x32xf32> to vector<1x1x32xf32>
    %345 = vector.broadcast %344 : vector<1x1x32xf32> to vector<2x8x32xf32>
    %346 = arith.mulf %343, %345 : vector<2x8x32xf32>
    %347 = vector.shape_cast %319 : vector<1x32xf32> to vector<1x1x32xf32>
    %348 = vector.broadcast %347 : vector<1x1x32xf32> to vector<2x8x32xf32>
    %349 = arith.addf %346, %348 : vector<2x8x32xf32>
    %cst_113 = arith.constant 0.000000e+00 : f32
    %350 = vector.broadcast %cst_113 : f32 to vector<2x8x32xf32>
    %351 = arith.maximumf %349, %350 : vector<2x8x32xf32>
    %352 = math.absf %349 : vector<2x8x32xf32>
    %cst_114 = arith.constant 0.000000e+00 : f32
    %353 = vector.broadcast %cst_114 : f32 to vector<2x8x32xf32>
    %354 = arith.subf %353, %352 : vector<2x8x32xf32>
    %355 = math.exp %354 : vector<2x8x32xf32>
    %cst_115 = arith.constant 1.000000e+00 : f32
    %356 = vector.broadcast %cst_115 : f32 to vector<2x8x32xf32>
    %357 = arith.addf %356, %355 : vector<2x8x32xf32>
    %358 = math.log %357 : vector<2x8x32xf32>
    %359 = arith.addf %351, %358 : vector<2x8x32xf32>
    %360 = math.tanh %359 : vector<2x8x32xf32>
    %361 = arith.mulf %349, %360 : vector<2x8x32xf32>
    %362 = vector.shape_cast %293 : vector<2x32xf32> to vector<2x1x32xf32>
    %363 = vector.broadcast %362 : vector<2x1x32xf32> to vector<2x8x32xf32>
    %364 = arith.mulf %363, %361 : vector<2x8x32xf32>
    %365 = vector.shape_cast %294 : vector<2x32xf32> to vector<2x1x32xf32>
    %366 = vector.broadcast %365 : vector<2x1x32xf32> to vector<2x8x32xf32>
    %367 = arith.addf %364, %366 : vector<2x8x32xf32>
    %cst_116 = arith.constant 0.000000e+00 : f32
    %368 = vector.broadcast %cst_116 : f32 to vector<2x1x32xf32>
    %369 = tpu.concatenate %368, %367, %368 in 1 : vector<2x1x32xf32>, vector<2x8x32xf32>, vector<2x1x32xf32> -> vector<2x10x32xf32>
    %370 = vector.extract_strided_slice %369 {offsets = [0, 0, 0], sizes = [2, 8, 32], strides = [1, 1, 1]} : vector<2x10x32xf32> to vector<2x8x32xf32>
    %371 = vector.extract_strided_slice %369 {offsets = [0, 1, 0], sizes = [2, 8, 32], strides = [1, 1, 1]} : vector<2x10x32xf32> to vector<2x8x32xf32>
    %372 = vector.extract_strided_slice %369 {offsets = [0, 2, 0], sizes = [2, 8, 32], strides = [1, 1, 1]} : vector<2x10x32xf32> to vector<2x8x32xf32>
    %373 = tpu.concatenate %370, %371, %372 in 2 : vector<2x8x32xf32>, vector<2x8x32xf32>, vector<2x8x32xf32> -> vector<2x8x96xf32>
    %374 = vector.shape_cast %373 : vector<2x8x96xf32> to vector<16x96xf32>
    %c472 = arith.constant 472 : index
    %c0_117 = arith.constant 0 : index
    %375 = vector.load %arg3[%c472, %c0_117] : memref<1480x128xf32, #tpu.memory_space<vmem>>, vector<96x32xf32>
    %376 = arith.truncf %374 : vector<16x96xf32> to vector<16x96xbf16>
    %377 = arith.truncf %375 : vector<96x32xf32> to vector<96x32xbf16>
    %cst_118 = arith.constant dense<0.000000e+00> : vector<16x32xf32>
    %378 = tpu.matmul %376, %377, %cst_118 {dimension_numbers = #tpu.dot_dimension_numbers<[1], [0], [0], [1], [0, 0, 1, 1], [], []>} : vector<16x96xbf16>, vector<96x32xbf16>, vector<16x32xf32> -> vector<16x32xf32>
    %c568 = arith.constant 568 : index
    %c0_119 = arith.constant 0 : index
    %379 = vector.load %arg3[%c568, %c0_119] : memref<1480x128xf32, #tpu.memory_space<vmem>>, vector<1x32xf32>
    %380 = vector.broadcast %379 : vector<1x32xf32> to vector<16x32xf32>
    %381 = arith.addf %378, %380 : vector<16x32xf32>
    %382 = vector.shape_cast %381 : vector<16x32xf32> to vector<2x8x32xf32>
    %c576 = arith.constant 576 : index
    %c0_120 = arith.constant 0 : index
    %383 = vector.load %arg3[%c576, %c0_120] : memref<1480x128xf32, #tpu.memory_space<vmem>>, vector<1x32xf32>
    %c584 = arith.constant 584 : index
    %c0_121 = arith.constant 0 : index
    %384 = vector.load %arg3[%c584, %c0_121] : memref<1480x128xf32, #tpu.memory_space<vmem>>, vector<1x32xf32>
    %cst_122 = arith.constant dense<0.000000e+00> : vector<2x32xf32>
    %385 = vector.multi_reduction <add>, %382, %cst_122 [1] : vector<2x8x32xf32> to vector<2x32xf32>
    %cst_123 = arith.constant dense<0.000000e+00> : vector<2x8xf32>
    %386 = tpu.matmul %385, %316, %cst_123 {dimension_numbers = #tpu.dot_dimension_numbers<[1], [0], [0], [1], [0, 0, 1, 1], [], []>} : vector<2x32xf32>, vector<32x8xf32>, vector<2x8xf32> -> vector<2x8xf32>
    %387 = arith.mulf %382, %382 : vector<2x8x32xf32>
    %cst_124 = arith.constant dense<0.000000e+00> : vector<2x32xf32>
    %388 = vector.multi_reduction <add>, %387, %cst_124 [1] : vector<2x8x32xf32> to vector<2x32xf32>
    %cst_125 = arith.constant dense<0.000000e+00> : vector<2x8xf32>
    %389 = tpu.matmul %388, %316, %cst_125 {dimension_numbers = #tpu.dot_dimension_numbers<[1], [0], [0], [1], [0, 0, 1, 1], [], []>} : vector<2x32xf32>, vector<32x8xf32>, vector<2x8xf32> -> vector<2x8xf32>
    %cst_126 = arith.constant 3.200000e+01 : f32
    %390 = vector.broadcast %cst_126 : f32 to vector<2x8xf32>
    %391 = arith.divf %386, %390 : vector<2x8xf32>
    %cst_127 = arith.constant 3.200000e+01 : f32
    %392 = vector.broadcast %cst_127 : f32 to vector<2x8xf32>
    %393 = arith.divf %389, %392 : vector<2x8xf32>
    %394 = arith.mulf %391, %391 : vector<2x8xf32>
    %395 = arith.subf %393, %394 : vector<2x8xf32>
    %cst_128 = arith.constant 0.000000e+00 : f32
    %396 = vector.broadcast %cst_128 : f32 to vector<2x8xf32>
    %397 = arith.maximumf %395, %396 : vector<2x8xf32>
    %cst_129 = arith.constant 9.99999974E-6 : f32
    %398 = vector.broadcast %cst_129 : f32 to vector<2x8xf32>
    %399 = arith.addf %397, %398 : vector<2x8xf32>
    %400 = math.rsqrt %399 : vector<2x8xf32>
    %cst_130 = arith.constant dense<0.000000e+00> : vector<2x32xf32>
    %401 = tpu.matmul %391, %317, %cst_130 {dimension_numbers = #tpu.dot_dimension_numbers<[1], [0], [0], [1], [0, 0, 1, 1], [], []>} : vector<2x8xf32>, vector<8x32xf32>, vector<2x32xf32> -> vector<2x32xf32>
    %cst_131 = arith.constant dense<0.000000e+00> : vector<2x32xf32>
    %402 = tpu.matmul %400, %317, %cst_131 {dimension_numbers = #tpu.dot_dimension_numbers<[1], [0], [0], [1], [0, 0, 1, 1], [], []>} : vector<2x8xf32>, vector<8x32xf32>, vector<2x32xf32> -> vector<2x32xf32>
    %403 = vector.shape_cast %401 : vector<2x32xf32> to vector<2x1x32xf32>
    %404 = vector.broadcast %403 : vector<2x1x32xf32> to vector<2x8x32xf32>
    %405 = arith.subf %382, %404 : vector<2x8x32xf32>
    %406 = vector.shape_cast %402 : vector<2x32xf32> to vector<2x1x32xf32>
    %407 = vector.broadcast %406 : vector<2x1x32xf32> to vector<2x8x32xf32>
    %408 = arith.mulf %405, %407 : vector<2x8x32xf32>
    %409 = vector.shape_cast %383 : vector<1x32xf32> to vector<1x1x32xf32>
    %410 = vector.broadcast %409 : vector<1x1x32xf32> to vector<2x8x32xf32>
    %411 = arith.mulf %408, %410 : vector<2x8x32xf32>
    %412 = vector.shape_cast %384 : vector<1x32xf32> to vector<1x1x32xf32>
    %413 = vector.broadcast %412 : vector<1x1x32xf32> to vector<2x8x32xf32>
    %414 = arith.addf %411, %413 : vector<2x8x32xf32>
    %cst_132 = arith.constant 0.000000e+00 : f32
    %415 = vector.broadcast %cst_132 : f32 to vector<2x8x32xf32>
    %416 = arith.maximumf %414, %415 : vector<2x8x32xf32>
    %417 = math.absf %414 : vector<2x8x32xf32>
    %cst_133 = arith.constant 0.000000e+00 : f32
    %418 = vector.broadcast %cst_133 : f32 to vector<2x8x32xf32>
    %419 = arith.subf %418, %417 : vector<2x8x32xf32>
    %420 = math.exp %419 : vector<2x8x32xf32>
    %cst_134 = arith.constant 1.000000e+00 : f32
    %421 = vector.broadcast %cst_134 : f32 to vector<2x8x32xf32>
    %422 = arith.addf %421, %420 : vector<2x8x32xf32>
    %423 = math.log %422 : vector<2x8x32xf32>
    %424 = arith.addf %416, %423 : vector<2x8x32xf32>
    %425 = math.tanh %424 : vector<2x8x32xf32>
    %426 = arith.mulf %414, %425 : vector<2x8x32xf32>
    %427 = arith.addf %426, %314 : vector<2x8x32xf32>
    %428 = vector.extract_strided_slice %20 {offsets = [0, 128], sizes = [2, 32], strides = [1, 1]} : vector<2x320xf32> to vector<2x32xf32>
    %429 = vector.extract_strided_slice %20 {offsets = [0, 160], sizes = [2, 32], strides = [1, 1]} : vector<2x320xf32> to vector<2x32xf32>
    %cst_135 = arith.constant 0.000000e+00 : f32
    %430 = vector.broadcast %cst_135 : f32 to vector<2x1x32xf32>
    %431 = tpu.concatenate %430, %427, %430 in 1 : vector<2x1x32xf32>, vector<2x8x32xf32>, vector<2x1x32xf32> -> vector<2x10x32xf32>
    %432 = vector.extract_strided_slice %431 {offsets = [0, 0, 0], sizes = [2, 8, 32], strides = [1, 1, 1]} : vector<2x10x32xf32> to vector<2x8x32xf32>
    %433 = vector.extract_strided_slice %431 {offsets = [0, 1, 0], sizes = [2, 8, 32], strides = [1, 1, 1]} : vector<2x10x32xf32> to vector<2x8x32xf32>
    %434 = vector.extract_strided_slice %431 {offsets = [0, 2, 0], sizes = [2, 8, 32], strides = [1, 1, 1]} : vector<2x10x32xf32> to vector<2x8x32xf32>
    %435 = tpu.concatenate %432, %433, %434 in 2 : vector<2x8x32xf32>, vector<2x8x32xf32>, vector<2x8x32xf32> -> vector<2x8x96xf32>
    %436 = vector.shape_cast %435 : vector<2x8x96xf32> to vector<16x96xf32>
    %c632 = arith.constant 632 : index
    %c0_136 = arith.constant 0 : index
    %437 = vector.load %arg3[%c632, %c0_136] : memref<1480x128xf32, #tpu.memory_space<vmem>>, vector<96x32xf32>
    %438 = arith.truncf %436 : vector<16x96xf32> to vector<16x96xbf16>
    %439 = arith.truncf %437 : vector<96x32xf32> to vector<96x32xbf16>
    %cst_137 = arith.constant dense<0.000000e+00> : vector<16x32xf32>
    %440 = tpu.matmul %438, %439, %cst_137 {dimension_numbers = #tpu.dot_dimension_numbers<[1], [0], [0], [1], [0, 0, 1, 1], [], []>} : vector<16x96xbf16>, vector<96x32xbf16>, vector<16x32xf32> -> vector<16x32xf32>
    %c728 = arith.constant 728 : index
    %c0_138 = arith.constant 0 : index
    %441 = vector.load %arg3[%c728, %c0_138] : memref<1480x128xf32, #tpu.memory_space<vmem>>, vector<1x32xf32>
    %442 = vector.broadcast %441 : vector<1x32xf32> to vector<16x32xf32>
    %443 = arith.addf %440, %442 : vector<16x32xf32>
    %444 = vector.shape_cast %443 : vector<16x32xf32> to vector<2x8x32xf32>
    %c592_139 = arith.constant 592 : index
    %c0_140 = arith.constant 0 : index
    %445 = vector.load %arg3[%c592_139, %c0_140] : memref<1480x128xf32, #tpu.memory_space<vmem>>, vector<32x8xf32>
    %c624_141 = arith.constant 624 : index
    %c0_142 = arith.constant 0 : index
    %446 = vector.load %arg3[%c624_141, %c0_142] : memref<1480x128xf32, #tpu.memory_space<vmem>>, vector<8x32xf32>
    %c736 = arith.constant 736 : index
    %c0_143 = arith.constant 0 : index
    %447 = vector.load %arg3[%c736, %c0_143] : memref<1480x128xf32, #tpu.memory_space<vmem>>, vector<1x32xf32>
    %c744 = arith.constant 744 : index
    %c0_144 = arith.constant 0 : index
    %448 = vector.load %arg3[%c744, %c0_144] : memref<1480x128xf32, #tpu.memory_space<vmem>>, vector<1x32xf32>
    %cst_145 = arith.constant dense<0.000000e+00> : vector<2x32xf32>
    %449 = vector.multi_reduction <add>, %444, %cst_145 [1] : vector<2x8x32xf32> to vector<2x32xf32>
    %cst_146 = arith.constant dense<0.000000e+00> : vector<2x8xf32>
    %450 = tpu.matmul %449, %445, %cst_146 {dimension_numbers = #tpu.dot_dimension_numbers<[1], [0], [0], [1], [0, 0, 1, 1], [], []>} : vector<2x32xf32>, vector<32x8xf32>, vector<2x8xf32> -> vector<2x8xf32>
    %451 = arith.mulf %444, %444 : vector<2x8x32xf32>
    %cst_147 = arith.constant dense<0.000000e+00> : vector<2x32xf32>
    %452 = vector.multi_reduction <add>, %451, %cst_147 [1] : vector<2x8x32xf32> to vector<2x32xf32>
    %cst_148 = arith.constant dense<0.000000e+00> : vector<2x8xf32>
    %453 = tpu.matmul %452, %445, %cst_148 {dimension_numbers = #tpu.dot_dimension_numbers<[1], [0], [0], [1], [0, 0, 1, 1], [], []>} : vector<2x32xf32>, vector<32x8xf32>, vector<2x8xf32> -> vector<2x8xf32>
    %cst_149 = arith.constant 3.200000e+01 : f32
    %454 = vector.broadcast %cst_149 : f32 to vector<2x8xf32>
    %455 = arith.divf %450, %454 : vector<2x8xf32>
    %cst_150 = arith.constant 3.200000e+01 : f32
    %456 = vector.broadcast %cst_150 : f32 to vector<2x8xf32>
    %457 = arith.divf %453, %456 : vector<2x8xf32>
    %458 = arith.mulf %455, %455 : vector<2x8xf32>
    %459 = arith.subf %457, %458 : vector<2x8xf32>
    %cst_151 = arith.constant 0.000000e+00 : f32
    %460 = vector.broadcast %cst_151 : f32 to vector<2x8xf32>
    %461 = arith.maximumf %459, %460 : vector<2x8xf32>
    %cst_152 = arith.constant 9.99999974E-6 : f32
    %462 = vector.broadcast %cst_152 : f32 to vector<2x8xf32>
    %463 = arith.addf %461, %462 : vector<2x8xf32>
    %464 = math.rsqrt %463 : vector<2x8xf32>
    %cst_153 = arith.constant dense<0.000000e+00> : vector<2x32xf32>
    %465 = tpu.matmul %455, %446, %cst_153 {dimension_numbers = #tpu.dot_dimension_numbers<[1], [0], [0], [1], [0, 0, 1, 1], [], []>} : vector<2x8xf32>, vector<8x32xf32>, vector<2x32xf32> -> vector<2x32xf32>
    %cst_154 = arith.constant dense<0.000000e+00> : vector<2x32xf32>
    %466 = tpu.matmul %464, %446, %cst_154 {dimension_numbers = #tpu.dot_dimension_numbers<[1], [0], [0], [1], [0, 0, 1, 1], [], []>} : vector<2x8xf32>, vector<8x32xf32>, vector<2x32xf32> -> vector<2x32xf32>
    %467 = vector.shape_cast %465 : vector<2x32xf32> to vector<2x1x32xf32>
    %468 = vector.broadcast %467 : vector<2x1x32xf32> to vector<2x8x32xf32>
    %469 = arith.subf %444, %468 : vector<2x8x32xf32>
    %470 = vector.shape_cast %466 : vector<2x32xf32> to vector<2x1x32xf32>
    %471 = vector.broadcast %470 : vector<2x1x32xf32> to vector<2x8x32xf32>
    %472 = arith.mulf %469, %471 : vector<2x8x32xf32>
    %473 = vector.shape_cast %447 : vector<1x32xf32> to vector<1x1x32xf32>
    %474 = vector.broadcast %473 : vector<1x1x32xf32> to vector<2x8x32xf32>
    %475 = arith.mulf %472, %474 : vector<2x8x32xf32>
    %476 = vector.shape_cast %448 : vector<1x32xf32> to vector<1x1x32xf32>
    %477 = vector.broadcast %476 : vector<1x1x32xf32> to vector<2x8x32xf32>
    %478 = arith.addf %475, %477 : vector<2x8x32xf32>
    %cst_155 = arith.constant 0.000000e+00 : f32
    %479 = vector.broadcast %cst_155 : f32 to vector<2x8x32xf32>
    %480 = arith.maximumf %478, %479 : vector<2x8x32xf32>
    %481 = math.absf %478 : vector<2x8x32xf32>
    %cst_156 = arith.constant 0.000000e+00 : f32
    %482 = vector.broadcast %cst_156 : f32 to vector<2x8x32xf32>
    %483 = arith.subf %482, %481 : vector<2x8x32xf32>
    %484 = math.exp %483 : vector<2x8x32xf32>
    %cst_157 = arith.constant 1.000000e+00 : f32
    %485 = vector.broadcast %cst_157 : f32 to vector<2x8x32xf32>
    %486 = arith.addf %485, %484 : vector<2x8x32xf32>
    %487 = math.log %486 : vector<2x8x32xf32>
    %488 = arith.addf %480, %487 : vector<2x8x32xf32>
    %489 = math.tanh %488 : vector<2x8x32xf32>
    %490 = arith.mulf %478, %489 : vector<2x8x32xf32>
    %491 = vector.shape_cast %428 : vector<2x32xf32> to vector<2x1x32xf32>
    %492 = vector.broadcast %491 : vector<2x1x32xf32> to vector<2x8x32xf32>
    %493 = arith.mulf %492, %490 : vector<2x8x32xf32>
    %494 = vector.shape_cast %429 : vector<2x32xf32> to vector<2x1x32xf32>
    %495 = vector.broadcast %494 : vector<2x1x32xf32> to vector<2x8x32xf32>
    %496 = arith.addf %493, %495 : vector<2x8x32xf32>
    %cst_158 = arith.constant 0.000000e+00 : f32
    %497 = vector.broadcast %cst_158 : f32 to vector<2x1x32xf32>
    %498 = tpu.concatenate %497, %496, %497 in 1 : vector<2x1x32xf32>, vector<2x8x32xf32>, vector<2x1x32xf32> -> vector<2x10x32xf32>
    %499 = vector.extract_strided_slice %498 {offsets = [0, 0, 0], sizes = [2, 8, 32], strides = [1, 1, 1]} : vector<2x10x32xf32> to vector<2x8x32xf32>
    %500 = vector.extract_strided_slice %498 {offsets = [0, 1, 0], sizes = [2, 8, 32], strides = [1, 1, 1]} : vector<2x10x32xf32> to vector<2x8x32xf32>
    %501 = vector.extract_strided_slice %498 {offsets = [0, 2, 0], sizes = [2, 8, 32], strides = [1, 1, 1]} : vector<2x10x32xf32> to vector<2x8x32xf32>
    %502 = tpu.concatenate %499, %500, %501 in 2 : vector<2x8x32xf32>, vector<2x8x32xf32>, vector<2x8x32xf32> -> vector<2x8x96xf32>
    %503 = vector.shape_cast %502 : vector<2x8x96xf32> to vector<16x96xf32>
    %c752 = arith.constant 752 : index
    %c0_159 = arith.constant 0 : index
    %504 = vector.load %arg3[%c752, %c0_159] : memref<1480x128xf32, #tpu.memory_space<vmem>>, vector<96x32xf32>
    %505 = arith.truncf %503 : vector<16x96xf32> to vector<16x96xbf16>
    %506 = arith.truncf %504 : vector<96x32xf32> to vector<96x32xbf16>
    %cst_160 = arith.constant dense<0.000000e+00> : vector<16x32xf32>
    %507 = tpu.matmul %505, %506, %cst_160 {dimension_numbers = #tpu.dot_dimension_numbers<[1], [0], [0], [1], [0, 0, 1, 1], [], []>} : vector<16x96xbf16>, vector<96x32xbf16>, vector<16x32xf32> -> vector<16x32xf32>
    %c848 = arith.constant 848 : index
    %c0_161 = arith.constant 0 : index
    %508 = vector.load %arg3[%c848, %c0_161] : memref<1480x128xf32, #tpu.memory_space<vmem>>, vector<1x32xf32>
    %509 = vector.broadcast %508 : vector<1x32xf32> to vector<16x32xf32>
    %510 = arith.addf %507, %509 : vector<16x32xf32>
    %511 = vector.shape_cast %510 : vector<16x32xf32> to vector<2x8x32xf32>
    %c856 = arith.constant 856 : index
    %c0_162 = arith.constant 0 : index
    %512 = vector.load %arg3[%c856, %c0_162] : memref<1480x128xf32, #tpu.memory_space<vmem>>, vector<1x32xf32>
    %c864 = arith.constant 864 : index
    %c0_163 = arith.constant 0 : index
    %513 = vector.load %arg3[%c864, %c0_163] : memref<1480x128xf32, #tpu.memory_space<vmem>>, vector<1x32xf32>
    %cst_164 = arith.constant dense<0.000000e+00> : vector<2x32xf32>
    %514 = vector.multi_reduction <add>, %511, %cst_164 [1] : vector<2x8x32xf32> to vector<2x32xf32>
    %cst_165 = arith.constant dense<0.000000e+00> : vector<2x8xf32>
    %515 = tpu.matmul %514, %445, %cst_165 {dimension_numbers = #tpu.dot_dimension_numbers<[1], [0], [0], [1], [0, 0, 1, 1], [], []>} : vector<2x32xf32>, vector<32x8xf32>, vector<2x8xf32> -> vector<2x8xf32>
    %516 = arith.mulf %511, %511 : vector<2x8x32xf32>
    %cst_166 = arith.constant dense<0.000000e+00> : vector<2x32xf32>
    %517 = vector.multi_reduction <add>, %516, %cst_166 [1] : vector<2x8x32xf32> to vector<2x32xf32>
    %cst_167 = arith.constant dense<0.000000e+00> : vector<2x8xf32>
    %518 = tpu.matmul %517, %445, %cst_167 {dimension_numbers = #tpu.dot_dimension_numbers<[1], [0], [0], [1], [0, 0, 1, 1], [], []>} : vector<2x32xf32>, vector<32x8xf32>, vector<2x8xf32> -> vector<2x8xf32>
    %cst_168 = arith.constant 3.200000e+01 : f32
    %519 = vector.broadcast %cst_168 : f32 to vector<2x8xf32>
    %520 = arith.divf %515, %519 : vector<2x8xf32>
    %cst_169 = arith.constant 3.200000e+01 : f32
    %521 = vector.broadcast %cst_169 : f32 to vector<2x8xf32>
    %522 = arith.divf %518, %521 : vector<2x8xf32>
    %523 = arith.mulf %520, %520 : vector<2x8xf32>
    %524 = arith.subf %522, %523 : vector<2x8xf32>
    %cst_170 = arith.constant 0.000000e+00 : f32
    %525 = vector.broadcast %cst_170 : f32 to vector<2x8xf32>
    %526 = arith.maximumf %524, %525 : vector<2x8xf32>
    %cst_171 = arith.constant 9.99999974E-6 : f32
    %527 = vector.broadcast %cst_171 : f32 to vector<2x8xf32>
    %528 = arith.addf %526, %527 : vector<2x8xf32>
    %529 = math.rsqrt %528 : vector<2x8xf32>
    %cst_172 = arith.constant dense<0.000000e+00> : vector<2x32xf32>
    %530 = tpu.matmul %520, %446, %cst_172 {dimension_numbers = #tpu.dot_dimension_numbers<[1], [0], [0], [1], [0, 0, 1, 1], [], []>} : vector<2x8xf32>, vector<8x32xf32>, vector<2x32xf32> -> vector<2x32xf32>
    %cst_173 = arith.constant dense<0.000000e+00> : vector<2x32xf32>
    %531 = tpu.matmul %529, %446, %cst_173 {dimension_numbers = #tpu.dot_dimension_numbers<[1], [0], [0], [1], [0, 0, 1, 1], [], []>} : vector<2x8xf32>, vector<8x32xf32>, vector<2x32xf32> -> vector<2x32xf32>
    %532 = vector.shape_cast %530 : vector<2x32xf32> to vector<2x1x32xf32>
    %533 = vector.broadcast %532 : vector<2x1x32xf32> to vector<2x8x32xf32>
    %534 = arith.subf %511, %533 : vector<2x8x32xf32>
    %535 = vector.shape_cast %531 : vector<2x32xf32> to vector<2x1x32xf32>
    %536 = vector.broadcast %535 : vector<2x1x32xf32> to vector<2x8x32xf32>
    %537 = arith.mulf %534, %536 : vector<2x8x32xf32>
    %538 = vector.shape_cast %512 : vector<1x32xf32> to vector<1x1x32xf32>
    %539 = vector.broadcast %538 : vector<1x1x32xf32> to vector<2x8x32xf32>
    %540 = arith.mulf %537, %539 : vector<2x8x32xf32>
    %541 = vector.shape_cast %513 : vector<1x32xf32> to vector<1x1x32xf32>
    %542 = vector.broadcast %541 : vector<1x1x32xf32> to vector<2x8x32xf32>
    %543 = arith.addf %540, %542 : vector<2x8x32xf32>
    %cst_174 = arith.constant 0.000000e+00 : f32
    %544 = vector.broadcast %cst_174 : f32 to vector<2x8x32xf32>
    %545 = arith.maximumf %543, %544 : vector<2x8x32xf32>
    %546 = math.absf %543 : vector<2x8x32xf32>
    %cst_175 = arith.constant 0.000000e+00 : f32
    %547 = vector.broadcast %cst_175 : f32 to vector<2x8x32xf32>
    %548 = arith.subf %547, %546 : vector<2x8x32xf32>
    %549 = math.exp %548 : vector<2x8x32xf32>
    %cst_176 = arith.constant 1.000000e+00 : f32
    %550 = vector.broadcast %cst_176 : f32 to vector<2x8x32xf32>
    %551 = arith.addf %550, %549 : vector<2x8x32xf32>
    %552 = math.log %551 : vector<2x8x32xf32>
    %553 = arith.addf %545, %552 : vector<2x8x32xf32>
    %554 = math.tanh %553 : vector<2x8x32xf32>
    %555 = arith.mulf %543, %554 : vector<2x8x32xf32>
    %556 = arith.addf %555, %427 : vector<2x8x32xf32>
    %557 = vector.extract_strided_slice %20 {offsets = [0, 192], sizes = [2, 32], strides = [1, 1]} : vector<2x320xf32> to vector<2x32xf32>
    %558 = vector.extract_strided_slice %20 {offsets = [0, 224], sizes = [2, 32], strides = [1, 1]} : vector<2x320xf32> to vector<2x32xf32>
    %cst_177 = arith.constant 0.000000e+00 : f32
    %559 = vector.broadcast %cst_177 : f32 to vector<2x1x32xf32>
    %560 = tpu.concatenate %559, %556, %559 in 1 : vector<2x1x32xf32>, vector<2x8x32xf32>, vector<2x1x32xf32> -> vector<2x10x32xf32>
    %561 = vector.extract_strided_slice %560 {offsets = [0, 0, 0], sizes = [2, 8, 32], strides = [1, 1, 1]} : vector<2x10x32xf32> to vector<2x8x32xf32>
    %562 = vector.extract_strided_slice %560 {offsets = [0, 1, 0], sizes = [2, 8, 32], strides = [1, 1, 1]} : vector<2x10x32xf32> to vector<2x8x32xf32>
    %563 = vector.extract_strided_slice %560 {offsets = [0, 2, 0], sizes = [2, 8, 32], strides = [1, 1, 1]} : vector<2x10x32xf32> to vector<2x8x32xf32>
    %564 = tpu.concatenate %561, %562, %563 in 2 : vector<2x8x32xf32>, vector<2x8x32xf32>, vector<2x8x32xf32> -> vector<2x8x96xf32>
    %565 = vector.shape_cast %564 : vector<2x8x96xf32> to vector<16x96xf32>
    %c872 = arith.constant 872 : index
    %c0_178 = arith.constant 0 : index
    %566 = vector.load %arg3[%c872, %c0_178] : memref<1480x128xf32, #tpu.memory_space<vmem>>, vector<96x32xf32>
    %567 = arith.truncf %565 : vector<16x96xf32> to vector<16x96xbf16>
    %568 = arith.truncf %566 : vector<96x32xf32> to vector<96x32xbf16>
    %cst_179 = arith.constant dense<0.000000e+00> : vector<16x32xf32>
    %569 = tpu.matmul %567, %568, %cst_179 {dimension_numbers = #tpu.dot_dimension_numbers<[1], [0], [0], [1], [0, 0, 1, 1], [], []>} : vector<16x96xbf16>, vector<96x32xbf16>, vector<16x32xf32> -> vector<16x32xf32>
    %c968 = arith.constant 968 : index
    %c0_180 = arith.constant 0 : index
    %570 = vector.load %arg3[%c968, %c0_180] : memref<1480x128xf32, #tpu.memory_space<vmem>>, vector<1x32xf32>
    %571 = vector.broadcast %570 : vector<1x32xf32> to vector<16x32xf32>
    %572 = arith.addf %569, %571 : vector<16x32xf32>
    %573 = vector.shape_cast %572 : vector<16x32xf32> to vector<2x8x32xf32>
    %c592_181 = arith.constant 592 : index
    %c0_182 = arith.constant 0 : index
    %574 = vector.load %arg3[%c592_181, %c0_182] : memref<1480x128xf32, #tpu.memory_space<vmem>>, vector<32x8xf32>
    %c624_183 = arith.constant 624 : index
    %c0_184 = arith.constant 0 : index
    %575 = vector.load %arg3[%c624_183, %c0_184] : memref<1480x128xf32, #tpu.memory_space<vmem>>, vector<8x32xf32>
    %c976 = arith.constant 976 : index
    %c0_185 = arith.constant 0 : index
    %576 = vector.load %arg3[%c976, %c0_185] : memref<1480x128xf32, #tpu.memory_space<vmem>>, vector<1x32xf32>
    %c984 = arith.constant 984 : index
    %c0_186 = arith.constant 0 : index
    %577 = vector.load %arg3[%c984, %c0_186] : memref<1480x128xf32, #tpu.memory_space<vmem>>, vector<1x32xf32>
    %cst_187 = arith.constant dense<0.000000e+00> : vector<2x32xf32>
    %578 = vector.multi_reduction <add>, %573, %cst_187 [1] : vector<2x8x32xf32> to vector<2x32xf32>
    %cst_188 = arith.constant dense<0.000000e+00> : vector<2x8xf32>
    %579 = tpu.matmul %578, %574, %cst_188 {dimension_numbers = #tpu.dot_dimension_numbers<[1], [0], [0], [1], [0, 0, 1, 1], [], []>} : vector<2x32xf32>, vector<32x8xf32>, vector<2x8xf32> -> vector<2x8xf32>
    %580 = arith.mulf %573, %573 : vector<2x8x32xf32>
    %cst_189 = arith.constant dense<0.000000e+00> : vector<2x32xf32>
    %581 = vector.multi_reduction <add>, %580, %cst_189 [1] : vector<2x8x32xf32> to vector<2x32xf32>
    %cst_190 = arith.constant dense<0.000000e+00> : vector<2x8xf32>
    %582 = tpu.matmul %581, %574, %cst_190 {dimension_numbers = #tpu.dot_dimension_numbers<[1], [0], [0], [1], [0, 0, 1, 1], [], []>} : vector<2x32xf32>, vector<32x8xf32>, vector<2x8xf32> -> vector<2x8xf32>
    %cst_191 = arith.constant 3.200000e+01 : f32
    %583 = vector.broadcast %cst_191 : f32 to vector<2x8xf32>
    %584 = arith.divf %579, %583 : vector<2x8xf32>
    %cst_192 = arith.constant 3.200000e+01 : f32
    %585 = vector.broadcast %cst_192 : f32 to vector<2x8xf32>
    %586 = arith.divf %582, %585 : vector<2x8xf32>
    %587 = arith.mulf %584, %584 : vector<2x8xf32>
    %588 = arith.subf %586, %587 : vector<2x8xf32>
    %cst_193 = arith.constant 0.000000e+00 : f32
    %589 = vector.broadcast %cst_193 : f32 to vector<2x8xf32>
    %590 = arith.maximumf %588, %589 : vector<2x8xf32>
    %cst_194 = arith.constant 9.99999974E-6 : f32
    %591 = vector.broadcast %cst_194 : f32 to vector<2x8xf32>
    %592 = arith.addf %590, %591 : vector<2x8xf32>
    %593 = math.rsqrt %592 : vector<2x8xf32>
    %cst_195 = arith.constant dense<0.000000e+00> : vector<2x32xf32>
    %594 = tpu.matmul %584, %575, %cst_195 {dimension_numbers = #tpu.dot_dimension_numbers<[1], [0], [0], [1], [0, 0, 1, 1], [], []>} : vector<2x8xf32>, vector<8x32xf32>, vector<2x32xf32> -> vector<2x32xf32>
    %cst_196 = arith.constant dense<0.000000e+00> : vector<2x32xf32>
    %595 = tpu.matmul %593, %575, %cst_196 {dimension_numbers = #tpu.dot_dimension_numbers<[1], [0], [0], [1], [0, 0, 1, 1], [], []>} : vector<2x8xf32>, vector<8x32xf32>, vector<2x32xf32> -> vector<2x32xf32>
    %596 = vector.shape_cast %594 : vector<2x32xf32> to vector<2x1x32xf32>
    %597 = vector.broadcast %596 : vector<2x1x32xf32> to vector<2x8x32xf32>
    %598 = arith.subf %573, %597 : vector<2x8x32xf32>
    %599 = vector.shape_cast %595 : vector<2x32xf32> to vector<2x1x32xf32>
    %600 = vector.broadcast %599 : vector<2x1x32xf32> to vector<2x8x32xf32>
    %601 = arith.mulf %598, %600 : vector<2x8x32xf32>
    %602 = vector.shape_cast %576 : vector<1x32xf32> to vector<1x1x32xf32>
    %603 = vector.broadcast %602 : vector<1x1x32xf32> to vector<2x8x32xf32>
    %604 = arith.mulf %601, %603 : vector<2x8x32xf32>
    %605 = vector.shape_cast %577 : vector<1x32xf32> to vector<1x1x32xf32>
    %606 = vector.broadcast %605 : vector<1x1x32xf32> to vector<2x8x32xf32>
    %607 = arith.addf %604, %606 : vector<2x8x32xf32>
    %cst_197 = arith.constant 0.000000e+00 : f32
    %608 = vector.broadcast %cst_197 : f32 to vector<2x8x32xf32>
    %609 = arith.maximumf %607, %608 : vector<2x8x32xf32>
    %610 = math.absf %607 : vector<2x8x32xf32>
    %cst_198 = arith.constant 0.000000e+00 : f32
    %611 = vector.broadcast %cst_198 : f32 to vector<2x8x32xf32>
    %612 = arith.subf %611, %610 : vector<2x8x32xf32>
    %613 = math.exp %612 : vector<2x8x32xf32>
    %cst_199 = arith.constant 1.000000e+00 : f32
    %614 = vector.broadcast %cst_199 : f32 to vector<2x8x32xf32>
    %615 = arith.addf %614, %613 : vector<2x8x32xf32>
    %616 = math.log %615 : vector<2x8x32xf32>
    %617 = arith.addf %609, %616 : vector<2x8x32xf32>
    %618 = math.tanh %617 : vector<2x8x32xf32>
    %619 = arith.mulf %607, %618 : vector<2x8x32xf32>
    %620 = vector.shape_cast %557 : vector<2x32xf32> to vector<2x1x32xf32>
    %621 = vector.broadcast %620 : vector<2x1x32xf32> to vector<2x8x32xf32>
    %622 = arith.mulf %621, %619 : vector<2x8x32xf32>
    %623 = vector.shape_cast %558 : vector<2x32xf32> to vector<2x1x32xf32>
    %624 = vector.broadcast %623 : vector<2x1x32xf32> to vector<2x8x32xf32>
    %625 = arith.addf %622, %624 : vector<2x8x32xf32>
    %cst_200 = arith.constant 0.000000e+00 : f32
    %626 = vector.broadcast %cst_200 : f32 to vector<2x1x32xf32>
    %627 = tpu.concatenate %626, %625, %626 in 1 : vector<2x1x32xf32>, vector<2x8x32xf32>, vector<2x1x32xf32> -> vector<2x10x32xf32>
    %628 = vector.extract_strided_slice %627 {offsets = [0, 0, 0], sizes = [2, 8, 32], strides = [1, 1, 1]} : vector<2x10x32xf32> to vector<2x8x32xf32>
    %629 = vector.extract_strided_slice %627 {offsets = [0, 1, 0], sizes = [2, 8, 32], strides = [1, 1, 1]} : vector<2x10x32xf32> to vector<2x8x32xf32>
    %630 = vector.extract_strided_slice %627 {offsets = [0, 2, 0], sizes = [2, 8, 32], strides = [1, 1, 1]} : vector<2x10x32xf32> to vector<2x8x32xf32>
    %631 = tpu.concatenate %628, %629, %630 in 2 : vector<2x8x32xf32>, vector<2x8x32xf32>, vector<2x8x32xf32> -> vector<2x8x96xf32>
    %632 = vector.shape_cast %631 : vector<2x8x96xf32> to vector<16x96xf32>
    %c992 = arith.constant 992 : index
    %c0_201 = arith.constant 0 : index
    %633 = vector.load %arg3[%c992, %c0_201] : memref<1480x128xf32, #tpu.memory_space<vmem>>, vector<96x32xf32>
    %634 = arith.truncf %632 : vector<16x96xf32> to vector<16x96xbf16>
    %635 = arith.truncf %633 : vector<96x32xf32> to vector<96x32xbf16>
    %cst_202 = arith.constant dense<0.000000e+00> : vector<16x32xf32>
    %636 = tpu.matmul %634, %635, %cst_202 {dimension_numbers = #tpu.dot_dimension_numbers<[1], [0], [0], [1], [0, 0, 1, 1], [], []>} : vector<16x96xbf16>, vector<96x32xbf16>, vector<16x32xf32> -> vector<16x32xf32>
    %c1088 = arith.constant 1088 : index
    %c0_203 = arith.constant 0 : index
    %637 = vector.load %arg3[%c1088, %c0_203] : memref<1480x128xf32, #tpu.memory_space<vmem>>, vector<1x32xf32>
    %638 = vector.broadcast %637 : vector<1x32xf32> to vector<16x32xf32>
    %639 = arith.addf %636, %638 : vector<16x32xf32>
    %640 = vector.shape_cast %639 : vector<16x32xf32> to vector<2x8x32xf32>
    %c1096 = arith.constant 1096 : index
    %c0_204 = arith.constant 0 : index
    %641 = vector.load %arg3[%c1096, %c0_204] : memref<1480x128xf32, #tpu.memory_space<vmem>>, vector<1x32xf32>
    %c1104 = arith.constant 1104 : index
    %c0_205 = arith.constant 0 : index
    %642 = vector.load %arg3[%c1104, %c0_205] : memref<1480x128xf32, #tpu.memory_space<vmem>>, vector<1x32xf32>
    %cst_206 = arith.constant dense<0.000000e+00> : vector<2x32xf32>
    %643 = vector.multi_reduction <add>, %640, %cst_206 [1] : vector<2x8x32xf32> to vector<2x32xf32>
    %cst_207 = arith.constant dense<0.000000e+00> : vector<2x8xf32>
    %644 = tpu.matmul %643, %574, %cst_207 {dimension_numbers = #tpu.dot_dimension_numbers<[1], [0], [0], [1], [0, 0, 1, 1], [], []>} : vector<2x32xf32>, vector<32x8xf32>, vector<2x8xf32> -> vector<2x8xf32>
    %645 = arith.mulf %640, %640 : vector<2x8x32xf32>
    %cst_208 = arith.constant dense<0.000000e+00> : vector<2x32xf32>
    %646 = vector.multi_reduction <add>, %645, %cst_208 [1] : vector<2x8x32xf32> to vector<2x32xf32>
    %cst_209 = arith.constant dense<0.000000e+00> : vector<2x8xf32>
    %647 = tpu.matmul %646, %574, %cst_209 {dimension_numbers = #tpu.dot_dimension_numbers<[1], [0], [0], [1], [0, 0, 1, 1], [], []>} : vector<2x32xf32>, vector<32x8xf32>, vector<2x8xf32> -> vector<2x8xf32>
    %cst_210 = arith.constant 3.200000e+01 : f32
    %648 = vector.broadcast %cst_210 : f32 to vector<2x8xf32>
    %649 = arith.divf %644, %648 : vector<2x8xf32>
    %cst_211 = arith.constant 3.200000e+01 : f32
    %650 = vector.broadcast %cst_211 : f32 to vector<2x8xf32>
    %651 = arith.divf %647, %650 : vector<2x8xf32>
    %652 = arith.mulf %649, %649 : vector<2x8xf32>
    %653 = arith.subf %651, %652 : vector<2x8xf32>
    %cst_212 = arith.constant 0.000000e+00 : f32
    %654 = vector.broadcast %cst_212 : f32 to vector<2x8xf32>
    %655 = arith.maximumf %653, %654 : vector<2x8xf32>
    %cst_213 = arith.constant 9.99999974E-6 : f32
    %656 = vector.broadcast %cst_213 : f32 to vector<2x8xf32>
    %657 = arith.addf %655, %656 : vector<2x8xf32>
    %658 = math.rsqrt %657 : vector<2x8xf32>
    %cst_214 = arith.constant dense<0.000000e+00> : vector<2x32xf32>
    %659 = tpu.matmul %649, %575, %cst_214 {dimension_numbers = #tpu.dot_dimension_numbers<[1], [0], [0], [1], [0, 0, 1, 1], [], []>} : vector<2x8xf32>, vector<8x32xf32>, vector<2x32xf32> -> vector<2x32xf32>
    %cst_215 = arith.constant dense<0.000000e+00> : vector<2x32xf32>
    %660 = tpu.matmul %658, %575, %cst_215 {dimension_numbers = #tpu.dot_dimension_numbers<[1], [0], [0], [1], [0, 0, 1, 1], [], []>} : vector<2x8xf32>, vector<8x32xf32>, vector<2x32xf32> -> vector<2x32xf32>
    %661 = vector.shape_cast %659 : vector<2x32xf32> to vector<2x1x32xf32>
    %662 = vector.broadcast %661 : vector<2x1x32xf32> to vector<2x8x32xf32>
    %663 = arith.subf %640, %662 : vector<2x8x32xf32>
    %664 = vector.shape_cast %660 : vector<2x32xf32> to vector<2x1x32xf32>
    %665 = vector.broadcast %664 : vector<2x1x32xf32> to vector<2x8x32xf32>
    %666 = arith.mulf %663, %665 : vector<2x8x32xf32>
    %667 = vector.shape_cast %641 : vector<1x32xf32> to vector<1x1x32xf32>
    %668 = vector.broadcast %667 : vector<1x1x32xf32> to vector<2x8x32xf32>
    %669 = arith.mulf %666, %668 : vector<2x8x32xf32>
    %670 = vector.shape_cast %642 : vector<1x32xf32> to vector<1x1x32xf32>
    %671 = vector.broadcast %670 : vector<1x1x32xf32> to vector<2x8x32xf32>
    %672 = arith.addf %669, %671 : vector<2x8x32xf32>
    %cst_216 = arith.constant 0.000000e+00 : f32
    %673 = vector.broadcast %cst_216 : f32 to vector<2x8x32xf32>
    %674 = arith.maximumf %672, %673 : vector<2x8x32xf32>
    %675 = math.absf %672 : vector<2x8x32xf32>
    %cst_217 = arith.constant 0.000000e+00 : f32
    %676 = vector.broadcast %cst_217 : f32 to vector<2x8x32xf32>
    %677 = arith.subf %676, %675 : vector<2x8x32xf32>
    %678 = math.exp %677 : vector<2x8x32xf32>
    %cst_218 = arith.constant 1.000000e+00 : f32
    %679 = vector.broadcast %cst_218 : f32 to vector<2x8x32xf32>
    %680 = arith.addf %679, %678 : vector<2x8x32xf32>
    %681 = math.log %680 : vector<2x8x32xf32>
    %682 = arith.addf %674, %681 : vector<2x8x32xf32>
    %683 = math.tanh %682 : vector<2x8x32xf32>
    %684 = arith.mulf %672, %683 : vector<2x8x32xf32>
    %685 = arith.addf %684, %556 : vector<2x8x32xf32>
    %686 = vector.extract_strided_slice %20 {offsets = [0, 256], sizes = [2, 32], strides = [1, 1]} : vector<2x320xf32> to vector<2x32xf32>
    %687 = vector.extract_strided_slice %20 {offsets = [0, 288], sizes = [2, 32], strides = [1, 1]} : vector<2x320xf32> to vector<2x32xf32>
    %cst_219 = arith.constant 0.000000e+00 : f32
    %688 = vector.broadcast %cst_219 : f32 to vector<2x1x32xf32>
    %689 = tpu.concatenate %688, %685, %688 in 1 : vector<2x1x32xf32>, vector<2x8x32xf32>, vector<2x1x32xf32> -> vector<2x10x32xf32>
    %690 = vector.extract_strided_slice %689 {offsets = [0, 0, 0], sizes = [2, 8, 32], strides = [1, 1, 1]} : vector<2x10x32xf32> to vector<2x8x32xf32>
    %691 = vector.extract_strided_slice %689 {offsets = [0, 1, 0], sizes = [2, 8, 32], strides = [1, 1, 1]} : vector<2x10x32xf32> to vector<2x8x32xf32>
    %692 = vector.extract_strided_slice %689 {offsets = [0, 2, 0], sizes = [2, 8, 32], strides = [1, 1, 1]} : vector<2x10x32xf32> to vector<2x8x32xf32>
    %693 = tpu.concatenate %690, %691, %692 in 2 : vector<2x8x32xf32>, vector<2x8x32xf32>, vector<2x8x32xf32> -> vector<2x8x96xf32>
    %694 = vector.shape_cast %693 : vector<2x8x96xf32> to vector<16x96xf32>
    %c1112 = arith.constant 1112 : index
    %c0_220 = arith.constant 0 : index
    %695 = vector.load %arg3[%c1112, %c0_220] : memref<1480x128xf32, #tpu.memory_space<vmem>>, vector<96x32xf32>
    %696 = arith.truncf %694 : vector<16x96xf32> to vector<16x96xbf16>
    %697 = arith.truncf %695 : vector<96x32xf32> to vector<96x32xbf16>
    %cst_221 = arith.constant dense<0.000000e+00> : vector<16x32xf32>
    %698 = tpu.matmul %696, %697, %cst_221 {dimension_numbers = #tpu.dot_dimension_numbers<[1], [0], [0], [1], [0, 0, 1, 1], [], []>} : vector<16x96xbf16>, vector<96x32xbf16>, vector<16x32xf32> -> vector<16x32xf32>
    %c1208 = arith.constant 1208 : index
    %c0_222 = arith.constant 0 : index
    %699 = vector.load %arg3[%c1208, %c0_222] : memref<1480x128xf32, #tpu.memory_space<vmem>>, vector<1x32xf32>
    %700 = vector.broadcast %699 : vector<1x32xf32> to vector<16x32xf32>
    %701 = arith.addf %698, %700 : vector<16x32xf32>
    %702 = vector.shape_cast %701 : vector<16x32xf32> to vector<2x8x32xf32>
    %c592_223 = arith.constant 592 : index
    %c0_224 = arith.constant 0 : index
    %703 = vector.load %arg3[%c592_223, %c0_224] : memref<1480x128xf32, #tpu.memory_space<vmem>>, vector<32x8xf32>
    %c624_225 = arith.constant 624 : index
    %c0_226 = arith.constant 0 : index
    %704 = vector.load %arg3[%c624_225, %c0_226] : memref<1480x128xf32, #tpu.memory_space<vmem>>, vector<8x32xf32>
    %c1216 = arith.constant 1216 : index
    %c0_227 = arith.constant 0 : index
    %705 = vector.load %arg3[%c1216, %c0_227] : memref<1480x128xf32, #tpu.memory_space<vmem>>, vector<1x32xf32>
    %c1224 = arith.constant 1224 : index
    %c0_228 = arith.constant 0 : index
    %706 = vector.load %arg3[%c1224, %c0_228] : memref<1480x128xf32, #tpu.memory_space<vmem>>, vector<1x32xf32>
    %cst_229 = arith.constant dense<0.000000e+00> : vector<2x32xf32>
    %707 = vector.multi_reduction <add>, %702, %cst_229 [1] : vector<2x8x32xf32> to vector<2x32xf32>
    %cst_230 = arith.constant dense<0.000000e+00> : vector<2x8xf32>
    %708 = tpu.matmul %707, %703, %cst_230 {dimension_numbers = #tpu.dot_dimension_numbers<[1], [0], [0], [1], [0, 0, 1, 1], [], []>} : vector<2x32xf32>, vector<32x8xf32>, vector<2x8xf32> -> vector<2x8xf32>
    %709 = arith.mulf %702, %702 : vector<2x8x32xf32>
    %cst_231 = arith.constant dense<0.000000e+00> : vector<2x32xf32>
    %710 = vector.multi_reduction <add>, %709, %cst_231 [1] : vector<2x8x32xf32> to vector<2x32xf32>
    %cst_232 = arith.constant dense<0.000000e+00> : vector<2x8xf32>
    %711 = tpu.matmul %710, %703, %cst_232 {dimension_numbers = #tpu.dot_dimension_numbers<[1], [0], [0], [1], [0, 0, 1, 1], [], []>} : vector<2x32xf32>, vector<32x8xf32>, vector<2x8xf32> -> vector<2x8xf32>
    %cst_233 = arith.constant 3.200000e+01 : f32
    %712 = vector.broadcast %cst_233 : f32 to vector<2x8xf32>
    %713 = arith.divf %708, %712 : vector<2x8xf32>
    %cst_234 = arith.constant 3.200000e+01 : f32
    %714 = vector.broadcast %cst_234 : f32 to vector<2x8xf32>
    %715 = arith.divf %711, %714 : vector<2x8xf32>
    %716 = arith.mulf %713, %713 : vector<2x8xf32>
    %717 = arith.subf %715, %716 : vector<2x8xf32>
    %cst_235 = arith.constant 0.000000e+00 : f32
    %718 = vector.broadcast %cst_235 : f32 to vector<2x8xf32>
    %719 = arith.maximumf %717, %718 : vector<2x8xf32>
    %cst_236 = arith.constant 9.99999974E-6 : f32
    %720 = vector.broadcast %cst_236 : f32 to vector<2x8xf32>
    %721 = arith.addf %719, %720 : vector<2x8xf32>
    %722 = math.rsqrt %721 : vector<2x8xf32>
    %cst_237 = arith.constant dense<0.000000e+00> : vector<2x32xf32>
    %723 = tpu.matmul %713, %704, %cst_237 {dimension_numbers = #tpu.dot_dimension_numbers<[1], [0], [0], [1], [0, 0, 1, 1], [], []>} : vector<2x8xf32>, vector<8x32xf32>, vector<2x32xf32> -> vector<2x32xf32>
    %cst_238 = arith.constant dense<0.000000e+00> : vector<2x32xf32>
    %724 = tpu.matmul %722, %704, %cst_238 {dimension_numbers = #tpu.dot_dimension_numbers<[1], [0], [0], [1], [0, 0, 1, 1], [], []>} : vector<2x8xf32>, vector<8x32xf32>, vector<2x32xf32> -> vector<2x32xf32>
    %725 = vector.shape_cast %723 : vector<2x32xf32> to vector<2x1x32xf32>
    %726 = vector.broadcast %725 : vector<2x1x32xf32> to vector<2x8x32xf32>
    %727 = arith.subf %702, %726 : vector<2x8x32xf32>
    %728 = vector.shape_cast %724 : vector<2x32xf32> to vector<2x1x32xf32>
    %729 = vector.broadcast %728 : vector<2x1x32xf32> to vector<2x8x32xf32>
    %730 = arith.mulf %727, %729 : vector<2x8x32xf32>
    %731 = vector.shape_cast %705 : vector<1x32xf32> to vector<1x1x32xf32>
    %732 = vector.broadcast %731 : vector<1x1x32xf32> to vector<2x8x32xf32>
    %733 = arith.mulf %730, %732 : vector<2x8x32xf32>
    %734 = vector.shape_cast %706 : vector<1x32xf32> to vector<1x1x32xf32>
    %735 = vector.broadcast %734 : vector<1x1x32xf32> to vector<2x8x32xf32>
    %736 = arith.addf %733, %735 : vector<2x8x32xf32>
    %cst_239 = arith.constant 0.000000e+00 : f32
    %737 = vector.broadcast %cst_239 : f32 to vector<2x8x32xf32>
    %738 = arith.maximumf %736, %737 : vector<2x8x32xf32>
    %739 = math.absf %736 : vector<2x8x32xf32>
    %cst_240 = arith.constant 0.000000e+00 : f32
    %740 = vector.broadcast %cst_240 : f32 to vector<2x8x32xf32>
    %741 = arith.subf %740, %739 : vector<2x8x32xf32>
    %742 = math.exp %741 : vector<2x8x32xf32>
    %cst_241 = arith.constant 1.000000e+00 : f32
    %743 = vector.broadcast %cst_241 : f32 to vector<2x8x32xf32>
    %744 = arith.addf %743, %742 : vector<2x8x32xf32>
    %745 = math.log %744 : vector<2x8x32xf32>
    %746 = arith.addf %738, %745 : vector<2x8x32xf32>
    %747 = math.tanh %746 : vector<2x8x32xf32>
    %748 = arith.mulf %736, %747 : vector<2x8x32xf32>
    %749 = vector.shape_cast %686 : vector<2x32xf32> to vector<2x1x32xf32>
    %750 = vector.broadcast %749 : vector<2x1x32xf32> to vector<2x8x32xf32>
    %751 = arith.mulf %750, %748 : vector<2x8x32xf32>
    %752 = vector.shape_cast %687 : vector<2x32xf32> to vector<2x1x32xf32>
    %753 = vector.broadcast %752 : vector<2x1x32xf32> to vector<2x8x32xf32>
    %754 = arith.addf %751, %753 : vector<2x8x32xf32>
    %cst_242 = arith.constant 0.000000e+00 : f32
    %755 = vector.broadcast %cst_242 : f32 to vector<2x1x32xf32>
    %756 = tpu.concatenate %755, %754, %755 in 1 : vector<2x1x32xf32>, vector<2x8x32xf32>, vector<2x1x32xf32> -> vector<2x10x32xf32>
    %757 = vector.extract_strided_slice %756 {offsets = [0, 0, 0], sizes = [2, 8, 32], strides = [1, 1, 1]} : vector<2x10x32xf32> to vector<2x8x32xf32>
    %758 = vector.extract_strided_slice %756 {offsets = [0, 1, 0], sizes = [2, 8, 32], strides = [1, 1, 1]} : vector<2x10x32xf32> to vector<2x8x32xf32>
    %759 = vector.extract_strided_slice %756 {offsets = [0, 2, 0], sizes = [2, 8, 32], strides = [1, 1, 1]} : vector<2x10x32xf32> to vector<2x8x32xf32>
    %760 = tpu.concatenate %757, %758, %759 in 2 : vector<2x8x32xf32>, vector<2x8x32xf32>, vector<2x8x32xf32> -> vector<2x8x96xf32>
    %761 = vector.shape_cast %760 : vector<2x8x96xf32> to vector<16x96xf32>
    %c1232 = arith.constant 1232 : index
    %c0_243 = arith.constant 0 : index
    %762 = vector.load %arg3[%c1232, %c0_243] : memref<1480x128xf32, #tpu.memory_space<vmem>>, vector<96x32xf32>
    %763 = arith.truncf %761 : vector<16x96xf32> to vector<16x96xbf16>
    %764 = arith.truncf %762 : vector<96x32xf32> to vector<96x32xbf16>
    %cst_244 = arith.constant dense<0.000000e+00> : vector<16x32xf32>
    %765 = tpu.matmul %763, %764, %cst_244 {dimension_numbers = #tpu.dot_dimension_numbers<[1], [0], [0], [1], [0, 0, 1, 1], [], []>} : vector<16x96xbf16>, vector<96x32xbf16>, vector<16x32xf32> -> vector<16x32xf32>
    %c1328 = arith.constant 1328 : index
    %c0_245 = arith.constant 0 : index
    %766 = vector.load %arg3[%c1328, %c0_245] : memref<1480x128xf32, #tpu.memory_space<vmem>>, vector<1x32xf32>
    %767 = vector.broadcast %766 : vector<1x32xf32> to vector<16x32xf32>
    %768 = arith.addf %765, %767 : vector<16x32xf32>
    %769 = vector.shape_cast %768 : vector<16x32xf32> to vector<2x8x32xf32>
    %c1336 = arith.constant 1336 : index
    %c0_246 = arith.constant 0 : index
    %770 = vector.load %arg3[%c1336, %c0_246] : memref<1480x128xf32, #tpu.memory_space<vmem>>, vector<1x32xf32>
    %c1344 = arith.constant 1344 : index
    %c0_247 = arith.constant 0 : index
    %771 = vector.load %arg3[%c1344, %c0_247] : memref<1480x128xf32, #tpu.memory_space<vmem>>, vector<1x32xf32>
    %cst_248 = arith.constant dense<0.000000e+00> : vector<2x32xf32>
    %772 = vector.multi_reduction <add>, %769, %cst_248 [1] : vector<2x8x32xf32> to vector<2x32xf32>
    %cst_249 = arith.constant dense<0.000000e+00> : vector<2x8xf32>
    %773 = tpu.matmul %772, %703, %cst_249 {dimension_numbers = #tpu.dot_dimension_numbers<[1], [0], [0], [1], [0, 0, 1, 1], [], []>} : vector<2x32xf32>, vector<32x8xf32>, vector<2x8xf32> -> vector<2x8xf32>
    %774 = arith.mulf %769, %769 : vector<2x8x32xf32>
    %cst_250 = arith.constant dense<0.000000e+00> : vector<2x32xf32>
    %775 = vector.multi_reduction <add>, %774, %cst_250 [1] : vector<2x8x32xf32> to vector<2x32xf32>
    %cst_251 = arith.constant dense<0.000000e+00> : vector<2x8xf32>
    %776 = tpu.matmul %775, %703, %cst_251 {dimension_numbers = #tpu.dot_dimension_numbers<[1], [0], [0], [1], [0, 0, 1, 1], [], []>} : vector<2x32xf32>, vector<32x8xf32>, vector<2x8xf32> -> vector<2x8xf32>
    %cst_252 = arith.constant 3.200000e+01 : f32
    %777 = vector.broadcast %cst_252 : f32 to vector<2x8xf32>
    %778 = arith.divf %773, %777 : vector<2x8xf32>
    %cst_253 = arith.constant 3.200000e+01 : f32
    %779 = vector.broadcast %cst_253 : f32 to vector<2x8xf32>
    %780 = arith.divf %776, %779 : vector<2x8xf32>
    %781 = arith.mulf %778, %778 : vector<2x8xf32>
    %782 = arith.subf %780, %781 : vector<2x8xf32>
    %cst_254 = arith.constant 0.000000e+00 : f32
    %783 = vector.broadcast %cst_254 : f32 to vector<2x8xf32>
    %784 = arith.maximumf %782, %783 : vector<2x8xf32>
    %cst_255 = arith.constant 9.99999974E-6 : f32
    %785 = vector.broadcast %cst_255 : f32 to vector<2x8xf32>
    %786 = arith.addf %784, %785 : vector<2x8xf32>
    %787 = math.rsqrt %786 : vector<2x8xf32>
    %cst_256 = arith.constant dense<0.000000e+00> : vector<2x32xf32>
    %788 = tpu.matmul %778, %704, %cst_256 {dimension_numbers = #tpu.dot_dimension_numbers<[1], [0], [0], [1], [0, 0, 1, 1], [], []>} : vector<2x8xf32>, vector<8x32xf32>, vector<2x32xf32> -> vector<2x32xf32>
    %cst_257 = arith.constant dense<0.000000e+00> : vector<2x32xf32>
    %789 = tpu.matmul %787, %704, %cst_257 {dimension_numbers = #tpu.dot_dimension_numbers<[1], [0], [0], [1], [0, 0, 1, 1], [], []>} : vector<2x8xf32>, vector<8x32xf32>, vector<2x32xf32> -> vector<2x32xf32>
    %790 = vector.shape_cast %788 : vector<2x32xf32> to vector<2x1x32xf32>
    %791 = vector.broadcast %790 : vector<2x1x32xf32> to vector<2x8x32xf32>
    %792 = arith.subf %769, %791 : vector<2x8x32xf32>
    %793 = vector.shape_cast %789 : vector<2x32xf32> to vector<2x1x32xf32>
    %794 = vector.broadcast %793 : vector<2x1x32xf32> to vector<2x8x32xf32>
    %795 = arith.mulf %792, %794 : vector<2x8x32xf32>
    %796 = vector.shape_cast %770 : vector<1x32xf32> to vector<1x1x32xf32>
    %797 = vector.broadcast %796 : vector<1x1x32xf32> to vector<2x8x32xf32>
    %798 = arith.mulf %795, %797 : vector<2x8x32xf32>
    %799 = vector.shape_cast %771 : vector<1x32xf32> to vector<1x1x32xf32>
    %800 = vector.broadcast %799 : vector<1x1x32xf32> to vector<2x8x32xf32>
    %801 = arith.addf %798, %800 : vector<2x8x32xf32>
    %cst_258 = arith.constant 0.000000e+00 : f32
    %802 = vector.broadcast %cst_258 : f32 to vector<2x8x32xf32>
    %803 = arith.maximumf %801, %802 : vector<2x8x32xf32>
    %804 = math.absf %801 : vector<2x8x32xf32>
    %cst_259 = arith.constant 0.000000e+00 : f32
    %805 = vector.broadcast %cst_259 : f32 to vector<2x8x32xf32>
    %806 = arith.subf %805, %804 : vector<2x8x32xf32>
    %807 = math.exp %806 : vector<2x8x32xf32>
    %cst_260 = arith.constant 1.000000e+00 : f32
    %808 = vector.broadcast %cst_260 : f32 to vector<2x8x32xf32>
    %809 = arith.addf %808, %807 : vector<2x8x32xf32>
    %810 = math.log %809 : vector<2x8x32xf32>
    %811 = arith.addf %803, %810 : vector<2x8x32xf32>
    %812 = math.tanh %811 : vector<2x8x32xf32>
    %813 = arith.mulf %801, %812 : vector<2x8x32xf32>
    %814 = arith.addf %813, %685 : vector<2x8x32xf32>
    %c1352 = arith.constant 1352 : index
    %c0_261 = arith.constant 0 : index
    %815 = vector.load %arg3[%c1352, %c0_261] : memref<1480x128xf32, #tpu.memory_space<vmem>>, vector<1x32xf32>
    %c1360 = arith.constant 1360 : index
    %c0_262 = arith.constant 0 : index
    %816 = vector.load %arg3[%c1360, %c0_262] : memref<1480x128xf32, #tpu.memory_space<vmem>>, vector<1x32xf32>
    %cst_263 = arith.constant dense<0.000000e+00> : vector<2x8xf32>
    %817 = vector.multi_reduction <add>, %814, %cst_263 [2] : vector<2x8x32xf32> to vector<2x8xf32>
    %818 = vector.shape_cast %817 : vector<2x8xf32> to vector<2x8x1xf32>
    %cst_264 = arith.constant 3.200000e+01 : f32
    %819 = vector.broadcast %cst_264 : f32 to vector<2x8x1xf32>
    %820 = arith.divf %818, %819 : vector<2x8x1xf32>
    %821 = vector.broadcast %820 : vector<2x8x1xf32> to vector<2x8x32xf32>
    %822 = arith.subf %814, %821 : vector<2x8x32xf32>
    %823 = arith.mulf %822, %822 : vector<2x8x32xf32>
    %cst_265 = arith.constant dense<0.000000e+00> : vector<2x8xf32>
    %824 = vector.multi_reduction <add>, %823, %cst_265 [2] : vector<2x8x32xf32> to vector<2x8xf32>
    %825 = vector.shape_cast %824 : vector<2x8xf32> to vector<2x8x1xf32>
    %cst_266 = arith.constant 3.200000e+01 : f32
    %826 = vector.broadcast %cst_266 : f32 to vector<2x8x1xf32>
    %827 = arith.divf %825, %826 : vector<2x8x1xf32>
    %828 = vector.broadcast %820 : vector<2x8x1xf32> to vector<2x8x32xf32>
    %829 = arith.subf %814, %828 : vector<2x8x32xf32>
    %cst_267 = arith.constant 9.99999974E-6 : f32
    %830 = vector.broadcast %cst_267 : f32 to vector<2x8x1xf32>
    %831 = arith.addf %827, %830 : vector<2x8x1xf32>
    %832 = math.rsqrt %831 : vector<2x8x1xf32>
    %833 = vector.broadcast %832 : vector<2x8x1xf32> to vector<2x8x32xf32>
    %834 = arith.mulf %829, %833 : vector<2x8x32xf32>
    %835 = vector.shape_cast %815 : vector<1x32xf32> to vector<1x1x32xf32>
    %836 = vector.broadcast %835 : vector<1x1x32xf32> to vector<2x8x32xf32>
    %837 = arith.mulf %834, %836 : vector<2x8x32xf32>
    %838 = vector.shape_cast %816 : vector<1x32xf32> to vector<1x1x32xf32>
    %839 = vector.broadcast %838 : vector<1x1x32xf32> to vector<2x8x32xf32>
    %840 = arith.addf %837, %839 : vector<2x8x32xf32>
    %841 = vector.shape_cast %840 : vector<2x8x32xf32> to vector<16x32xf32>
    %c1368 = arith.constant 1368 : index
    %c0_268 = arith.constant 0 : index
    %842 = vector.load %arg3[%c1368, %c0_268] : memref<1480x128xf32, #tpu.memory_space<vmem>>, vector<32x8xf32>
    %843 = arith.truncf %841 : vector<16x32xf32> to vector<16x32xbf16>
    %844 = arith.truncf %842 : vector<32x8xf32> to vector<32x8xbf16>
    %cst_269 = arith.constant dense<0.000000e+00> : vector<16x8xf32>
    %845 = tpu.matmul %843, %844, %cst_269 {dimension_numbers = #tpu.dot_dimension_numbers<[1], [0], [0], [1], [0, 0, 1, 1], [], []>} : vector<16x32xbf16>, vector<32x8xbf16>, vector<16x8xf32> -> vector<16x8xf32>
    %c1400 = arith.constant 1400 : index
    %c0_270 = arith.constant 0 : index
    %846 = vector.load %arg3[%c1400, %c0_270] : memref<1480x128xf32, #tpu.memory_space<vmem>>, vector<1x8xf32>
    %847 = vector.broadcast %846 : vector<1x8xf32> to vector<16x8xf32>
    %848 = arith.addf %845, %847 : vector<16x8xf32>
    %cst_271 = arith.constant 5.000000e-01 : f32
    %849 = vector.broadcast %cst_271 : f32 to vector<16x8xf32>
    %850 = arith.mulf %849, %848 : vector<16x8xf32>
    %cst_272 = arith.constant 4.471500e-02 : f32
    %851 = vector.broadcast %cst_272 : f32 to vector<16x8xf32>
    %852 = arith.mulf %851, %848 : vector<16x8xf32>
    %853 = arith.mulf %852, %848 : vector<16x8xf32>
    %854 = arith.mulf %853, %848 : vector<16x8xf32>
    %855 = arith.addf %848, %854 : vector<16x8xf32>
    %cst_273 = arith.constant 0.797884583 : f32
    %856 = vector.broadcast %cst_273 : f32 to vector<16x8xf32>
    %857 = arith.mulf %856, %855 : vector<16x8xf32>
    %858 = math.tanh %857 : vector<16x8xf32>
    %cst_274 = arith.constant 1.000000e+00 : f32
    %859 = vector.broadcast %cst_274 : f32 to vector<16x8xf32>
    %860 = arith.addf %859, %858 : vector<16x8xf32>
    %861 = arith.mulf %850, %860 : vector<16x8xf32>
    %c1408 = arith.constant 1408 : index
    %c0_275 = arith.constant 0 : index
    %862 = vector.load %arg3[%c1408, %c0_275] : memref<1480x128xf32, #tpu.memory_space<vmem>>, vector<8x1xf32>
    %863 = arith.truncf %861 : vector<16x8xf32> to vector<16x8xbf16>
    %864 = arith.truncf %862 : vector<8x1xf32> to vector<8x1xbf16>
    %cst_276 = arith.constant dense<0.000000e+00> : vector<16x1xf32>
    %865 = tpu.matmul %863, %864, %cst_276 {dimension_numbers = #tpu.dot_dimension_numbers<[1], [0], [0], [1], [0, 0, 1, 1], [], []>} : vector<16x8xbf16>, vector<8x1xbf16>, vector<16x1xf32> -> vector<16x1xf32>
    %c1416 = arith.constant 1416 : index
    %c0_277 = arith.constant 0 : index
    %866 = vector.load %arg3[%c1416, %c0_277] : memref<1480x128xf32, #tpu.memory_space<vmem>>, vector<1x1xf32>
    %867 = vector.broadcast %866 : vector<1x1xf32> to vector<16x1xf32>
    %868 = arith.addf %865, %867 : vector<16x1xf32>
    %869 = vector.shape_cast %868 : vector<16x1xf32> to vector<2x8x1xf32>
    %cst_278 = arith.constant dense<0xFF800000> : vector<2x1xf32>
    %870 = vector.multi_reduction <maximumf>, %869, %cst_278 [1] : vector<2x8x1xf32> to vector<2x1xf32>
    %871 = vector.shape_cast %870 : vector<2x1xf32> to vector<2x1x1xf32>
    %872 = vector.broadcast %871 : vector<2x1x1xf32> to vector<2x8x1xf32>
    %873 = arith.subf %869, %872 : vector<2x8x1xf32>
    %874 = math.exp %873 : vector<2x8x1xf32>
    %cst_279 = arith.constant dense<0.000000e+00> : vector<2x1xf32>
    %875 = vector.multi_reduction <add>, %874, %cst_279 [1] : vector<2x8x1xf32> to vector<2x1xf32>
    %876 = vector.shape_cast %875 : vector<2x1xf32> to vector<2x1x1xf32>
    %877 = vector.broadcast %876 : vector<2x1x1xf32> to vector<2x8x1xf32>
    %878 = arith.divf %874, %877 : vector<2x8x1xf32>
    %879 = vector.broadcast %878 : vector<2x8x1xf32> to vector<2x8x32xf32>
    %880 = arith.mulf %879, %814 : vector<2x8x32xf32>
    %cst_280 = arith.constant dense<0.000000e+00> : vector<2x32xf32>
    %881 = vector.multi_reduction <add>, %880, %cst_280 [1] : vector<2x8x32xf32> to vector<2x32xf32>
    %c1424 = arith.constant 1424 : index
    %c0_281 = arith.constant 0 : index
    %882 = vector.load %arg3[%c1424, %c0_281] : memref<1480x128xf32, #tpu.memory_space<vmem>>, vector<32x8xf32>
    %883 = arith.truncf %881 : vector<2x32xf32> to vector<2x32xbf16>
    %884 = arith.truncf %882 : vector<32x8xf32> to vector<32x8xbf16>
    %cst_282 = arith.constant dense<0.000000e+00> : vector<2x8xf32>
    %885 = tpu.matmul %883, %884, %cst_282 {dimension_numbers = #tpu.dot_dimension_numbers<[1], [0], [0], [1], [0, 0, 1, 1], [], []>} : vector<2x32xbf16>, vector<32x8xbf16>, vector<2x8xf32> -> vector<2x8xf32>
    %c1456 = arith.constant 1456 : index
    %c0_283 = arith.constant 0 : index
    %886 = vector.load %arg3[%c1456, %c0_283] : memref<1480x128xf32, #tpu.memory_space<vmem>>, vector<1x8xf32>
    %887 = vector.broadcast %886 : vector<1x8xf32> to vector<2x8xf32>
    %888 = arith.addf %885, %887 : vector<2x8xf32>
    %cst_284 = arith.constant 0.000000e+00 : f32
    %889 = vector.broadcast %cst_284 : f32 to vector<2x8xf32>
    %890 = arith.maximumf %888, %889 : vector<2x8xf32>
    %891 = math.absf %888 : vector<2x8xf32>
    %cst_285 = arith.constant 0.000000e+00 : f32
    %892 = vector.broadcast %cst_285 : f32 to vector<2x8xf32>
    %893 = arith.subf %892, %891 : vector<2x8xf32>
    %894 = math.exp %893 : vector<2x8xf32>
    %cst_286 = arith.constant 1.000000e+00 : f32
    %895 = vector.broadcast %cst_286 : f32 to vector<2x8xf32>
    %896 = arith.addf %895, %894 : vector<2x8xf32>
    %897 = math.log %896 : vector<2x8xf32>
    %898 = arith.addf %890, %897 : vector<2x8xf32>
    %899 = math.tanh %898 : vector<2x8xf32>
    %900 = arith.mulf %888, %899 : vector<2x8xf32>
    %c1464 = arith.constant 1464 : index
    %c0_287 = arith.constant 0 : index
    %901 = vector.load %arg3[%c1464, %c0_287] : memref<1480x128xf32, #tpu.memory_space<vmem>>, vector<8x1xf32>
    %902 = arith.truncf %900 : vector<2x8xf32> to vector<2x8xbf16>
    %903 = arith.truncf %901 : vector<8x1xf32> to vector<8x1xbf16>
    %cst_288 = arith.constant dense<0.000000e+00> : vector<2x1xf32>
    %904 = tpu.matmul %902, %903, %cst_288 {dimension_numbers = #tpu.dot_dimension_numbers<[1], [0], [0], [1], [0, 0, 1, 1], [], []>} : vector<2x8xbf16>, vector<8x1xbf16>, vector<2x1xf32> -> vector<2x1xf32>
    %c1472 = arith.constant 1472 : index
    %c0_289 = arith.constant 0 : index
    %905 = vector.load %arg3[%c1472, %c0_289] : memref<1480x128xf32, #tpu.memory_space<vmem>>, vector<1x1xf32>
    %906 = vector.broadcast %905 : vector<1x1xf32> to vector<2x1xf32>
    %907 = arith.addf %904, %906 : vector<2x1xf32>
    %c0_290 = arith.constant 0 : index
    %c0_291 = arith.constant 0 : index
    %908 = vector.load %arg5[%c0_290, %c0_291] : memref<2x1xf32, #tpu.memory_space<vmem>>, vector<2x1xf32>
    tpu.vector_store %arg5[%c0_290, %c0_291], %907 {strides = array<i32>} : memref<2x1xf32, #tpu.memory_space<vmem>>, vector<2x1xf32>,
    return
  }
  func.func @transform_0(%arg0: i32) -> (i32, i32, i32) {
    %c0_i32 = arith.constant 0 : i32
    %c0_i32_0 = arith.constant 0 : i32
    %c0_i32_1 = arith.constant 0 : i32
    return %arg0, %c0_i32, %c0_i32_0 : i32, i32, i32
  }
  func.func @transform_1(%arg0: i32) -> (i32, i32) {
    %c0_i32 = arith.constant 0 : i32
    %c0_i32_0 = arith.constant 0 : i32
    return %arg0, %c0_i32 : i32, i32
  }
  func.func @transform_2(%arg0: i32) -> (i32, i32) {
    %c0_i32 = arith.constant 0 : i32
    %c0_i32_0 = arith.constant 0 : i32
    %c0_i32_1 = arith.constant 0 : i32
    return %c0_i32, %c0_i32_0 : i32, i32
  }
  func.func @transform_3(%arg0: i32) -> (i32, i32) {
    %c0_i32 = arith.constant 0 : i32
    %c0_i32_0 = arith.constant 0 : i32
    %c0_i32_1 = arith.constant 0 : i32
    return %c0_i32, %c0_i32_0 : i32, i32
  }
  func.func @transform_4(%arg0: i32) -> (i32, i32) {
    %c0_i32 = arith.constant 0 : i32
    %c0_i32_0 = arith.constant 0 : i32
    return %arg0, %c0_i32 : i32, i32
  }
}

</mosaic_0001>

<llo_original>
// kernel: _lambda_.1
$region0: #{_lambda_.1}
  #allocation0 [shape = 'u32[]', space=smem, size = 0x4, offset = 0x4, fixed_abs, tag = 'smem constant byte address 0x4 - core index']
  #allocation1 [shape = 'u32[144,128]{1,0:T(1,128)}', space=vmem, size = 0x12000, scoped, tag = 'internal scratch']
  %s0 = inlined_call_operand.vmem [shape: f32[2,8,4], index: 0, kind: input, shape index: {}]
  %s1 = inlined_call_operand.vmem [shape: f32[2,16], index: 1, kind: input, shape index: {}]
  %s2 = inlined_call_operand.hbm [shape: f32[1480,128], index: 2, kind: input, shape index: {}]
  %s3 = inlined_call_operand.hbm [shape: f32[24,384], index: 3, kind: input, shape index: {}]
  %s4 = inlined_call_operand.vmem [shape: f32[2,1], index: 4, kind: output, shape index: {}]
  %s5 = sld [smem:[#allocation0]]
  $region34: #{_lambda_.1} parent=0
    _
  %s7 = ssub.s32 1, %s5
  %s8 = scalar_select 0, %s7, %s5
  $region1: #{_lambda_.1} parent=0
    #allocation2 [shape = 'u8[757760]{0}', space=vmem, size = 0xb9000, scoped, tag = 'input window, operand 2, single buffered']
    #allocation3 [shape = 's32[1]{0}', space=sflag, size = 0x4, scoped, tag = 'scoped memory for _lambda_.1']
    #allocation4 [shape = 'u8[36864]{0}', space=vmem, size = 0x9000, scoped, tag = 'input window, operand 3, single buffered']
    #allocation5 [shape = 's32[1]{0}', space=sflag, size = 0x4, scoped, tag = 'scoped memory for _lambda_.1']
    %9 = vsyncpa [#allocation3], 0
    %10 = vsyncpa [#allocation5], 0
    // Predicated region
    $region2: #{_lambda_.1} parent=1 // pred_check
      _
    $region3: #{_lambda_.1} parent=1 // pred_check_branch
      %12 = sbr.rel (0) target = $region5
    $region4: #{_lambda_.1} parent=1 // pred_region
      _
    $region5: #{_lambda_.1} parent=1 // pred_fallthru
      _
    // Predicated region
    $region6: #{_lambda_.1} parent=1 // pred_check
      _
    $region7: #{_lambda_.1} parent=1 // pred_check_branch
      %14 = sbr.rel (0) target = $region9
    $region8: #{_lambda_.1} parent=1 // pred_region
      _
    $region9: #{_lambda_.1} parent=1 // pred_fallthru
      _
    // Predicated region
    $region10: #{_lambda_.1} parent=1 // pred_check
      _
    $region11: #{_lambda_.1} parent=1 // pred_check_branch
      %16 = sbr.rel (0) target = $region13
    $region12: #{_lambda_.1} parent=1 // pred_region
      %s18 = ssub.s32 23680, 23680
      %19 = vsyncadd [#allocation3], %s18
      %s20 = sshll.u32 [#allocation2], 4
      %s21 = int_to_ptr.vmem [resolvable:$true] %s20
      %26 = dma.hbm_to_vmem [thread:$0]  %s2, 23680, %s21, [#allocation3], 128, 128, 8
    $region13: #{_lambda_.1} parent=1 // pred_fallthru
      _
    // Predicated region
    $region14: #{_lambda_.1} parent=1 // pred_check
      _
    $region15: #{_lambda_.1} parent=1 // pred_check_branch
      %28 = sbr.rel (0) target = $region17
    $region16: #{_lambda_.1} parent=1 // pred_region
      %s30 = ssub.s32 1152, 1152
      %31 = vsyncadd [#allocation5], %s30
      %s32 = sshll.u32 [#allocation4], 4
      %s33 = int_to_ptr.vmem [resolvable:$true] %s32
      %38 = dma.hbm_to_vmem [thread:$0]  %s3, 1152, %s33, [#allocation5], 384, 384, 24
    $region17: #{_lambda_.1} parent=1 // pred_fallthru
      _
    // Predicated region
    $region18: #{_lambda_.1} parent=1 // pred_check
      _
    $region19: #{_lambda_.1} parent=1 // pred_check_branch
      %40 = sbr.rel (0) target = $region21
    $region20: #{_lambda_.1} parent=1 // pred_region
      %41 = dma.done [#allocation3], 23680
    $region21: #{_lambda_.1} parent=1 // pred_fallthru
      _
    // Predicated region
    $region22: #{_lambda_.1} parent=1 // pred_check
      _
    $region23: #{_lambda_.1} parent=1 // pred_check_branch
      %43 = sbr.rel (0) target = $region25
    $region24: #{_lambda_.1} parent=1 // pred_region
      %44 = dma.done [#allocation5], 1152
    $region25: #{_lambda_.1} parent=1 // pred_fallthru
      _
    %v46 = vld [vmem:[%s0] sm:$0xff]
    %v47 = vld [vmem:[%s0 + $0x8] sm:$0xff]
    %v48 = vld [vmem:[%s1] sm:$0x3]
    %v49 = vmax.f32 %v48, 0.0
    %v50 = vand.u32 2147483647, %v48
    %v51 = vsub.f32 0.0, %v50
    %v52 = vmul.f32 %v51, 1.442695
    %v53 = vpow.pop %v52
    %v54 = vadd.f32 %v53, 1.0
    %v55 = vlog2.pop %v54
    %v56 = vmul.f32 %v55, 0.6931472
    %v57 = vadd.f32 %v49, %v56
    %v58 = vtanh.pop %v57
    %v59 = vmul.f32 %v48, %v58
    %v60 = vld [vmem:[#allocation4] sm:$0xff]
    %v61 = vld [vmem:[#allocation4 + $0x8] sm:$0xff]
    %v62 = vld [vmem:[#allocation4 + $0x10] sm:$0xff]
    %v63 = vld [vmem:[#allocation4 + $0x18] sm:$0xff]
    %v64 = vld [vmem:[#allocation4 + $0x20] sm:$0xff]
    %v65 = vld [vmem:[#allocation4 + $0x28] sm:$0xff]
    %s66 = scalar_lea.vmem [#allocation4], 48
    %v67 = vld [vmem:[%s66] ss:$8 sm:$0x7]
    %v68 = vpack.c.bf16 %v59, %v59
    %v69 = vpack.c.bf16 %v63, %v60
    %v70 = vpack.c.bf16 %v64, %v61
    %v71 = vpack.c.bf16 %v65, %v62
    %v73 = vlaneseq
    %v74 = vshrl.u32 %v73, 7
    %v75 = vsub.s32 0, %v74
    %v76 = vrot.slane %v67, %v75
    %v77 = vlaneseq
    %v78 = vshrl.u32 %v77, 7
    %v79 = vsub.s32 1, %v78
    %v80 = vrot.slane %v67, %v79
    %v81 = vlaneseq
    %v82 = vshrl.u32 %v81, 7
    %v83 = vsub.s32 2, %v82
    %v84 = vrot.slane %v67, %v83
    %vm88 = vcmask 130048
    %v90 = vsel %vm88, %v68, 0
    %92 = vmatprep.subr.bf16.mxu0 %v70
    %93 = vmatpush1.bf16.msra.mxu0 %v69
    %94 = vmatprep.subr.bf16.mxu0 0
    %95 = vmatpush1.bf16.msra.mxu0 0
    %96 = vmatprep.subr.bf16.mxu0 0
    %97 = vmatpush1.bf16.msra.mxu0 0
    %98 = vmatprep.subr.bf16.mxu0 0
    %99 = vmatpush1.bf16.msra.mxu0 0
    %100 = vmatprep.subr.bf16.mxu0 0
    %101 = vmatpush1.bf16.msra.mxu0 0
    %102 = vmatprep.subr.bf16.mxu0 0
    %103 = vmatpush1.bf16.msra.mxu0 0
    %104 = vmatprep.subr.bf16.mxu0 0
    %105 = vmatpush1.bf16.msra.mxu0 0
    %106 = vmatprep.subr.bf16.mxu0 0
    %107 = vmatpush1.bf16.msra.mxu0 0
    %108 = vmatprep.subr.bf16.mxu0 0
    %109 = vmatpush1.bf16.msra.mxu0 0
    %110 = vmatprep.subr.bf16.mxu0 0
    %111 = vmatpush1.bf16.msra.mxu0 0
    %112 = vmatprep.subr.bf16.mxu0 0
    %113 = vmatpush1.bf16.msra.mxu0 0
    %114 = vmatprep.subr.bf16.mxu0 0
    %115 = vmatpush1.bf16.msra.mxu0 0
    %116 = vmatprep.subr.bf16.mxu0 0
    %117 = vmatpush1.bf16.msra.mxu0 0
    %118 = vmatprep.subr.bf16.mxu0 0
    %119 = vmatpush1.bf16.msra.mxu0 0
    %120 = vmatprep.subr.bf16.mxu0 0
    %121 = vmatpush1.bf16.msra.mxu0 0
    %122 = vmatprep.subr.bf16.mxu0 0
    %123 = vmatpush1.bf16.msra.mxu0 0
    %124 = vmatprep.mubr.bf16.mxu0 0
    %125 = vmatmul.mubr.bf16.gmra.mrb[0].mxu0 %v90
    %v126 = vpop.f32.mrb[0].mxu0
    %v127 = vadd.f32 %v76, %v126
    %v128 = vpop.f32.mrb[0].mxu0
    %v129 = vadd.f32 %v80, %v128
    %v130 = vpop.f32.mrb[0].mxu0
    %v131 = vpop.f32.mrb[0].mxu0
    %132 = vdwg.mxu0
    %133 = vmatprep.subr.bf16.mxu0 0
    %134 = vmatpush1.bf16.msra.mxu0 %v71
    %135 = vmatprep.subr.bf16.mxu0 0
    %136 = vmatpush1.bf16.msra.mxu0 0
    %137 = vmatprep.subr.bf16.mxu0 0
    %138 = vmatpush1.bf16.msra.mxu0 0
    %139 = vmatprep.subr.bf16.mxu0 0
    %140 = vmatpush1.bf16.msra.mxu0 0
    %141 = vmatprep.subr.bf16.mxu0 0
    %142 = vmatpush1.bf16.msra.mxu0 0
    %143 = vmatprep.subr.bf16.mxu0 0
    %144 = vmatpush1.bf16.msra.mxu0 0
    %145 = vmatprep.subr.bf16.mxu0 0
    %146 = vmatpush1.bf16.msra.mxu0 0
    %147 = vmatprep.subr.bf16.mxu0 0
    %148 = vmatpush1.bf16.msra.mxu0 0
    %149 = vmatprep.subr.bf16.mxu0 0
    %150 = vmatpush1.bf16.msra.mxu0 0
    %151 = vmatprep.subr.bf16.mxu0 0
    %152 = vmatpush1.bf16.msra.mxu0 0
    %153 = vmatprep.subr.bf16.mxu0 0
    %154 = vmatpush1.bf16.msra.mxu0 0
    %155 = vmatprep.subr.bf16.mxu0 0
    %156 = vmatpush1.bf16.msra.mxu0 0
    %157 = vmatprep.subr.bf16.mxu0 0
    %158 = vmatpush1.bf16.msra.mxu0 0
    %159 = vmatprep.subr.bf16.mxu0 0
    %160 = vmatpush1.bf16.msra.mxu0 0
    %161 = vmatprep.subr.bf16.mxu0 0
    %162 = vmatpush1.bf16.msra.mxu0 0
    %163 = vmatprep.subr.bf16.mxu0 0
    %164 = vmatpush1.bf16.msra.mxu0 0
    %165 = vmatprep.mubr.bf16.mxu0 0
    %166 = vmatmul.mubr.bf16.gmra.mrb[0].mxu0 %v90
    %v167 = vpop.f32.mrb[0].mxu0
    %v168 = vadd.f32 %v84, %v167
    %v169 = vpop.f32.mrb[0].mxu0
    %v170 = vpop.f32.mrb[0].mxu0
    %v171 = vpop.f32.mrb[0].mxu0
    %172 = vdwg.mxu0
    %v175 = vrot.slane %v46, 6
    %v176 = vrot.slane %v47, 6
    %vm179 = vcmask 1041408
    %v180 = vsel %vm179, 0.0, %v175
    %v181 = vsel %vm179, 0.0, %v176
    %v182 = vsel %vm179, %v175, 0.0
    %v183 = vsel %vm179, %v176, 0.0
    %vm188 = vcmask 1046528
    %v189 = vrot.slane %v180, 1
    %v190 = vrot.slane %v182, 1
    %v191 = vsel %vm188, %v189, %v190
    %v192 = vrot.slane %v181, 1
    %v193 = vrot.slane %v183, 1
    %v194 = vsel %vm188, %v192, %v193
    %195 = vrot.lane.b32.xlu0 %v191, 4
    %v196 = vpop.permute.xlu0 %195
    %197 = vrot.lane.b32.xlu0 %v194, 4
    %v198 = vpop.permute.xlu0 %197
    %vm201 = vcmask 1045504
    %v202 = vrot.slane %v180, 2
    %v203 = vrot.slane %v182, 2
    %v204 = vsel %vm201, %v202, %v203
    %v205 = vrot.slane %v181, 2
    %v206 = vrot.slane %v183, 2
    %v207 = vsel %vm201, %v205, %v206
    %208 = vrot.lane.b32.xlu0 %v204, 8
    %v209 = vpop.permute.xlu0 %208
    %210 = vrot.lane.b32.xlu0 %v207, 8
    %v211 = vpop.permute.xlu0 %210
    %vm214 = vcmask 1044480
    %v215 = vrot.slane %v180, 3
    %v216 = vrot.slane %v182, 3
    %v217 = vsel %vm214, %v215, %v216
    %v218 = vrot.slane %v181, 3
    %v219 = vrot.slane %v183, 3
    %v220 = vsel %vm214, %v218, %v219
    %221 = vrot.lane.b32.xlu0 %v217, 12
    %v222 = vpop.permute.xlu0 %221
    %223 = vrot.lane.b32.xlu0 %v220, 12
    %v224 = vpop.permute.xlu0 %223
    %vm227 = vcmask 1043456
    %v228 = vrot.slane %v180, 4
    %v229 = vrot.slane %v182, 4
    %v230 = vsel %vm227, %v228, %v229
    %v231 = vrot.slane %v181, 4
    %v232 = vrot.slane %v183, 4
    %v233 = vsel %vm227, %v231, %v232
    %234 = vrot.lane.b32.xlu0 %v230, 16
    %v235 = vpop.permute.xlu0 %234
    %236 = vrot.lane.b32.xlu0 %v233, 16
    %v237 = vpop.permute.xlu0 %236
    %vm240 = vcmask 31744
    %v241 = vsel %vm240, %v180, %v196
    %v242 = vsel %vm240, %v181, %v198
    %vm243 = vcmask 64512
    %v244 = vsel %vm243, %v241, %v209
    %v245 = vsel %vm243, %v242, %v211
    %vm246 = vcmask 97280
    %v247 = vsel %vm246, %v244, %v222
    %v248 = vsel %vm246, %v245, %v224
    %v249 = vsel %vm88, %v247, %v235
    %v250 = vsel %vm88, %v248, %v237
    %v251 = vld [vmem:[#allocation2] sm:$0xff]
    %v252 = vld [vmem:[#allocation2 + $0x8] sm:$0xff]
    %v253 = vld [vmem:[#allocation2 + $0x10] sm:$0xf]
    %v254 = vpack.c.bf16 %v250, %v249
    %v255 = vpack.c.bf16 %v252, %v251
    %v256 = vpack.c.bf16 %v253, %v253
    %vm257 = vcmask 162816
    %v259 = vsel %vm257, %v254, 0
    %v262 = vsel %vm179, %v256, 0
    %264 = vmatprep.subr.bf16.mxu0 0
    %265 = vmatpush1.bf16.msra.mxu0 %v255
    %266 = vmatprep.subr.bf16.mxu0 0
    %267 = vmatpush1.bf16.msra.mxu0 %v262
    %268 = vmatprep.subr.bf16.mxu0 0
    %269 = vmatpush1.bf16.msra.mxu0 0
    %270 = vmatprep.subr.bf16.mxu0 0
    %271 = vmatpush1.bf16.msra.mxu0 0
    %272 = vmatprep.subr.bf16.mxu0 0
    %273 = vmatpush1.bf16.msra.mxu0 0
    %274 = vmatprep.subr.bf16.mxu0 0
    %275 = vmatpush1.bf16.msra.mxu0 0
    %276 = vmatprep.subr.bf16.mxu0 0
    %277 = vmatpush1.bf16.msra.mxu0 0
    %278 = vmatprep.subr.bf16.mxu0 0
    %279 = vmatpush1.bf16.msra.mxu0 0
    %280 = vmatprep.subr.bf16.mxu0 0
    %281 = vmatpush1.bf16.msra.mxu0 0
    %282 = vmatprep.subr.bf16.mxu0 0
    %283 = vmatpush1.bf16.msra.mxu0 0
    %284 = vmatprep.subr.bf16.mxu0 0
    %285 = vmatpush1.bf16.msra.mxu0 0
    %286 = vmatprep.subr.bf16.mxu0 0
    %287 = vmatpush1.bf16.msra.mxu0 0
    %288 = vmatprep.subr.bf16.mxu0 0
    %289 = vmatpush1.bf16.msra.mxu0 0
    %290 = vmatprep.subr.bf16.mxu0 0
    %291 = vmatpush1.bf16.msra.mxu0 0
    %292 = vmatprep.subr.bf16.mxu0 0
    %293 = vmatpush1.bf16.msra.mxu0 0
    %294 = vmatprep.subr.bf16.mxu0 0
    %295 = vmatpush1.bf16.msra.mxu0 0
    %296 = vmatprep.mubr.bf16.mxu0 0
    %297 = vmatmul.mubr.bf16.gmra.mrb[0].mxu0 %v259
    %v298 = vpop.f32.mrb[0].mxu0
    %v299 = vadd.f32 0.0, %v298
    %v300 = vpop.f32.mrb[0].mxu0
    %v301 = vpop.f32.mrb[0].mxu0
    %v302 = vadd.f32 0.0, %v301
    %v303 = vpop.f32.mrb[0].mxu0
    %304 = vdwg.mxu0
    %v305 = vld [vmem:[#allocation2 + $0x18] sm:$0x1]
    %v306 = vlaneseq
    %v307 = vshrl.u32 %v306, 7
    %v308 = vsub.s32 0, %v307
    %v309 = vrot.slane %v305, %v308
    %v310 = vadd.f32 %v299, %v309
    %v311 = vadd.f32 %v302, %v309
    %v312 = vld [vmem:[#allocation2 + $0x30] sm:$0x1]
    %v313 = vlaneseq
    %v314 = vshrl.u32 %v313, 7
    %v315 = vsub.s32 0, %v314
    %v316 = vrot.slane %v312, %v315
    %318 = vrot.lane.b32.xlu0 %v316, 16
    %v319 = vpop.permute.xlu0 %318
    %v321 = vadd.f32 %v299, %v319
    %v322 = vadd.f32 %v302, %v319
    %v323 = vld [vmem:[#allocation2 + $0xa0] sm:$0xff]
    %v324 = vld [vmem:[#allocation2 + $0xa8] sm:$0xff]
    %v325 = vld [vmem:[#allocation2 + $0xb0] sm:$0xff]
    %v326 = vld [vmem:[#allocation2 + $0x20] sm:$0x1]
    %v327 = vld [vmem:[#allocation2 + $0x28] sm:$0x1]
    %v328 = vsel %vm88, %v310, 0.0
    %v329 = vrot.slane %v328, 4
    %v330 = vadd.f32 %v328, %v329
    %v331 = vrot.slane %v330, 2
    %v332 = vadd.f32 %v330, %v331
    %v333 = vrot.slane %v332, 1
    %v334 = vadd.f32 %v332, %v333
    %v335 = vsel %vm88, %v311, 0.0
    %v336 = vrot.slane %v335, 4
    %v337 = vadd.f32 %v335, %v336
    %v338 = vrot.slane %v337, 2
    %v339 = vadd.f32 %v337, %v338
    %v340 = vrot.slane %v339, 1
    %v341 = vadd.f32 %v339, %v340
    %vm344 = vcmask 1041409
    %v345 = vsel %vm344, %v341, %v334
    %v346 = vsel %vm88, %v345, 0
    %348 = vmatprep.subr.mxu0 0.0
    %349 = vmatpush1.msra.mxu0 %v323
    %350 = vmatprep.subr.mxu0 0.0
    %351 = vmatpush1.msra.mxu0 %v324
    %352 = vmatprep.subr.mxu0 0.0
    %353 = vmatpush1.msra.mxu0 0.0
    %354 = vmatprep.subr.mxu0 0.0
    %355 = vmatpush1.msra.mxu0 0.0
    %356 = vmatprep.subr.mxu0 0.0
    %357 = vmatpush1.msra.mxu0 0.0
    %358 = vmatprep.subr.mxu0 0.0
    %359 = vmatpush1.msra.mxu0 0.0
    %360 = vmatprep.subr.mxu0 0.0
    %361 = vmatpush1.msra.mxu0 0.0
    %362 = vmatprep.subr.mxu0 0.0
    %363 = vmatpush1.msra.mxu0 0.0
    %364 = vmatprep.subr.mxu0 0.0
    %365 = vmatpush1.msra.mxu0 0.0
    %366 = vmatprep.subr.mxu0 0.0
    %367 = vmatpush1.msra.mxu0 0.0
    %368 = vmatprep.subr.mxu0 0.0
    %369 = vmatpush1.msra.mxu0 0.0
    %370 = vmatprep.subr.mxu0 0.0
    %371 = vmatpush1.msra.mxu0 0.0
    %372 = vmatprep.subr.mxu0 0.0
    %373 = vmatpush1.msra.mxu0 0.0
    %374 = vmatprep.subr.mxu0 0.0
    %375 = vmatpush1.msra.mxu0 0.0
    %376 = vmatprep.subr.mxu0 0.0
    %377 = vmatpush1.msra.mxu0 0.0
    %378 = vmatprep.subr.mxu0 0.0
    %379 = vmatpush1.msra.mxu0 0.0
    %380 = vmatprep.subr.mxu0 0.0
    %381 = vmatpush1.msra.mxu0 0.0
    %382 = vmatprep.subr.mxu0 0.0
    %383 = vmatpush1.msra.mxu0 0.0
    %384 = vmatprep.subr.mxu0 0.0
    %385 = vmatpush1.msra.mxu0 0.0
    %386 = vmatprep.subr.mxu0 0.0
    %387 = vmatpush1.msra.mxu0 0.0
    %388 = vmatprep.subr.mxu0 0.0
    %389 = vmatpush1.msra.mxu0 0.0
    %390 = vmatprep.subr.mxu0 0.0
    %391 = vmatpush1.msra.mxu0 0.0
    %392 = vmatprep.subr.mxu0 0.0
    %393 = vmatpush1.msra.mxu0 0.0
    %394 = vmatprep.subr.mxu0 0.0
    %395 = vmatpush1.msra.mxu0 0.0
    %396 = vmatprep.subr.mxu0 0.0
    %397 = vmatpush1.msra.mxu0 0.0
    %398 = vmatprep.subr.mxu0 0.0
    %399 = vmatpush1.msra.mxu0 0.0
    %400 = vmatprep.subr.mxu0 0.0
    %401 = vmatpush1.msra.mxu0 0.0
    %402 = vmatprep.subr.mxu0 0.0
    %403 = vmatpush1.msra.mxu0 0.0
    %404 = vmatprep.subr.mxu0 0.0
    %405 = vmatpush1.msra.mxu0 0.0
    %406 = vmatprep.subr.mxu0 0.0
    %407 = vmatpush1.msra.mxu0 0.0
    %408 = vmatprep.subr.mxu0 0.0
    %409 = vmatpush1.msra.mxu0 0.0
    %410 = vmatprep.subr.mxu0 0.0
    %411 = vmatpush1.msra.mxu0 0.0
    %412 = vmatprep.mubr.f32.mxu0 0.0
    %413 = vmatmul.mubr.f32.gmra.mrb[0].mxu0 %v346
    %v414 = vpop.f32.mrb[0].mxu0
    %v415 = vadd.f32 0.0, %v414
    %v416 = vpop.f32.mrb[0].mxu0
    %417 = vdwg.mxu0
    %v418 = vmul.f32 %v310, %v310
    %v419 = vmul.f32 %v311, %v311
    %v420 = vsel %vm88, %v418, 0.0
    %v421 = vrot.slane %v420, 4
    %v422 = vadd.f32 %v420, %v421
    %v423 = vrot.slane %v422, 2
    %v424 = vadd.f32 %v422, %v423
    %v425 = vrot.slane %v424, 1
    %v426 = vadd.f32 %v424, %v425
    %v427 = vsel %vm88, %v419, 0.0
    %v428 = vrot.slane %v427, 4
    %v429 = vadd.f32 %v427, %v428
    %v430 = vrot.slane %v429, 2
    %v431 = vadd.f32 %v429, %v430
    %v432 = vrot.slane %v431, 1
    %v433 = vadd.f32 %v431, %v432
    %v436 = vsel %vm344, %v433, %v426
    %v437 = vsel %vm88, %v436, 0
    %439 = vmatprep.subr.mxu0 0.0
    %440 = vmatpush1.msra.mxu0 %v323
    %441 = vmatprep.subr.mxu0 0.0
    %442 = vmatpush1.msra.mxu0 %v324
    %443 = vmatprep.subr.mxu0 0.0
    %444 = vmatpush1.msra.mxu0 0.0
    %445 = vmatprep.subr.mxu0 0.0
    %446 = vmatpush1.msra.mxu0 0.0
    %447 = vmatprep.subr.mxu0 0.0
    %448 = vmatpush1.msra.mxu0 0.0
    %449 = vmatprep.subr.mxu0 0.0
    %450 = vmatpush1.msra.mxu0 0.0
    %451 = vmatprep.subr.mxu0 0.0
    %452 = vmatpush1.msra.mxu0 0.0
    %453 = vmatprep.subr.mxu0 0.0
    %454 = vmatpush1.msra.mxu0 0.0
    %455 = vmatprep.subr.mxu0 0.0
    %456 = vmatpush1.msra.mxu0 0.0
    %457 = vmatprep.subr.mxu0 0.0
    %458 = vmatpush1.msra.mxu0 0.0
    %459 = vmatprep.subr.mxu0 0.0
    %460 = vmatpush1.msra.mxu0 0.0
    %461 = vmatprep.subr.mxu0 0.0
    %462 = vmatpush1.msra.mxu0 0.0
    %463 = vmatprep.subr.mxu0 0.0
    %464 = vmatpush1.msra.mxu0 0.0
    %465 = vmatprep.subr.mxu0 0.0
    %466 = vmatpush1.msra.mxu0 0.0
    %467 = vmatprep.subr.mxu0 0.0
    %468 = vmatpush1.msra.mxu0 0.0
    %469 = vmatprep.subr.mxu0 0.0
    %470 = vmatpush1.msra.mxu0 0.0
    %471 = vmatprep.subr.mxu0 0.0
    %472 = vmatpush1.msra.mxu0 0.0
    %473 = vmatprep.subr.mxu0 0.0
    %474 = vmatpush1.msra.mxu0 0.0
    %475 = vmatprep.subr.mxu0 0.0
    %476 = vmatpush1.msra.mxu0 0.0
    %477 = vmatprep.subr.mxu0 0.0
    %478 = vmatpush1.msra.mxu0 0.0
    %479 = vmatprep.subr.mxu0 0.0
    %480 = vmatpush1.msra.mxu0 0.0
    %481 = vmatprep.subr.mxu0 0.0
    %482 = vmatpush1.msra.mxu0 0.0
    %483 = vmatprep.subr.mxu0 0.0
    %484 = vmatpush1.msra.mxu0 0.0
    %485 = vmatprep.subr.mxu0 0.0
    %486 = vmatpush1.msra.mxu0 0.0
    %487 = vmatprep.subr.mxu0 0.0
    %488 = vmatpush1.msra.mxu0 0.0
    %489 = vmatprep.subr.mxu0 0.0
    %490 = vmatpush1.msra.mxu0 0.0
    %491 = vmatprep.subr.mxu0 0.0
    %492 = vmatpush1.msra.mxu0 0.0
    %493 = vmatprep.subr.mxu0 0.0
    %494 = vmatpush1.msra.mxu0 0.0
    %495 = vmatprep.subr.mxu0 0.0
    %496 = vmatpush1.msra.mxu0 0.0
    %497 = vmatprep.subr.mxu0 0.0
    %498 = vmatpush1.msra.mxu0 0.0
    %499 = vmatprep.subr.mxu0 0.0
    %500 = vmatpush1.msra.mxu0 0.0
    %501 = vmatprep.subr.mxu0 0.0
    %502 = vmatpush1.msra.mxu0 0.0
    %503 = vmatprep.mubr.f32.mxu0 0.0
    %504 = vmatmul.mubr.f32.gmra.mrb[0].mxu0 %v437
    %v505 = vpop.f32.mrb[0].mxu0
    %v506 = vadd.f32 0.0, %v505
    %v507 = vpop.f32.mrb[0].mxu0
    %508 = vdwg.mxu0
    %v509 = vrcp.pop 16.0
    %v510 = vmul.f32 %v415, %v509
    %v511 = vmul.f32 %v506, %v509
    %v512 = vmul.f32 %v510, %v510
    %v513 = vsub.f32 %v511, %v512
    %v514 = vmax.f32 %v513, 0.0
    %v515 = vadd.f32 %v514, 1e-05
    %v516 = vrsqrt.pop %v515
    %v518 = vsel %vm243, %v510, 0
    %520 = vmatprep.subr.mxu0 0.0
    %521 = vmatpush1.msra.mxu0 %v325
    %522 = vmatprep.subr.mxu0 0.0
    %523 = vmatpush1.msra.mxu0 0.0
    %524 = vmatprep.subr.mxu0 0.0
    %525 = vmatpush1.msra.mxu0 0.0
    %526 = vmatprep.subr.mxu0 0.0
    %527 = vmatpush1.msra.mxu0 0.0
    %528 = vmatprep.subr.mxu0 0.0
    %529 = vmatpush1.msra.mxu0 0.0
    %530 = vmatprep.subr.mxu0 0.0
    %531 = vmatpush1.msra.mxu0 0.0
    %532 = vmatprep.subr.mxu0 0.0
    %533 = vmatpush1.msra.mxu0 0.0
    %534 = vmatprep.subr.mxu0 0.0
    %535 = vmatpush1.msra.mxu0 0.0
    %536 = vmatprep.subr.mxu0 0.0
    %537 = vmatpush1.msra.mxu0 0.0
    %538 = vmatprep.subr.mxu0 0.0
    %539 = vmatpush1.msra.mxu0 0.0
    %540 = vmatprep.subr.mxu0 0.0
    %541 = vmatpush1.msra.mxu0 0.0
    %542 = vmatprep.subr.mxu0 0.0
    %543 = vmatpush1.msra.mxu0 0.0
    %544 = vmatprep.subr.mxu0 0.0
    %545 = vmatpush1.msra.mxu0 0.0
    %546 = vmatprep.subr.mxu0 0.0
    %547 = vmatpush1.msra.mxu0 0.0
    %548 = vmatprep.subr.mxu0 0.0
    %549 = vmatpush1.msra.mxu0 0.0
    %550 = vmatprep.subr.mxu0 0.0
    %551 = vmatpush1.msra.mxu0 0.0
    %552 = vmatprep.subr.mxu0 0.0
    %553 = vmatpush1.msra.mxu0 0.0
    %554 = vmatprep.subr.mxu0 0.0
    %555 = vmatpush1.msra.mxu0 0.0
    %556 = vmatprep.subr.mxu0 0.0
    %557 = vmatpush1.msra.mxu0 0.0
    %558 = vmatprep.subr.mxu0 0.0
    %559 = vmatpush1.msra.mxu0 0.0
    %560 = vmatprep.subr.mxu0 0.0
    %561 = vmatpush1.msra.mxu0 0.0
    %562 = vmatprep.subr.mxu0 0.0
    %563 = vmatpush1.msra.mxu0 0.0
    %564 = vmatprep.subr.mxu0 0.0
    %565 = vmatpush1.msra.mxu0 0.0
    %566 = vmatprep.subr.mxu0 0.0
    %567 = vmatpush1.msra.mxu0 0.0
    %568 = vmatprep.subr.mxu0 0.0
    %569 = vmatpush1.msra.mxu0 0.0
    %570 = vmatprep.subr.mxu0 0.0
    %571 = vmatpush1.msra.mxu0 0.0
    %572 = vmatprep.subr.mxu0 0.0
    %573 = vmatpush1.msra.mxu0 0.0
    %574 = vmatprep.subr.mxu0 0.0
    %575 = vmatpush1.msra.mxu0 0.0
    %576 = vmatprep.subr.mxu0 0.0
    %577 = vmatpush1.msra.mxu0 0.0
    %578 = vmatprep.subr.mxu0 0.0
    %579 = vmatpush1.msra.mxu0 0.0
    %580 = vmatprep.subr.mxu0 0.0
    %581 = vmatpush1.msra.mxu0 0.0
    %582 = vmatprep.subr.mxu0 0.0
    %583 = vmatpush1.msra.mxu0 0.0
    %584 = vmatprep.mubr.f32.mxu0 0.0
    %585 = vmatmul.mubr.f32.gmra.mrb[0].mxu0 %v518
    %v586 = vpop.f32.mrb[0].mxu0
    %v587 = vadd.f32 0.0, %v586
    %v588 = vpop.f32.mrb[0].mxu0
    %589 = vdwg.mxu0
    %v591 = vsel %vm243, %v516, 0
    %593 = vmatprep.subr.mxu0 0.0
    %594 = vmatpush1.msra.mxu0 %v325
    %595 = vmatprep.subr.mxu0 0.0
    %596 = vmatpush1.msra.mxu0 0.0
    %597 = vmatprep.subr.mxu0 0.0
    %598 = vmatpush1.msra.mxu0 0.0
    %599 = vmatprep.subr.mxu0 0.0
    %600 = vmatpush1.msra.mxu0 0.0
    %601 = vmatprep.subr.mxu0 0.0
    %602 = vmatpush1.msra.mxu0 0.0
    %603 = vmatprep.subr.mxu0 0.0
    %604 = vmatpush1.msra.mxu0 0.0
    %605 = vmatprep.subr.mxu0 0.0
    %606 = vmatpush1.msra.mxu0 0.0
    %607 = vmatprep.subr.mxu0 0.0
    %608 = vmatpush1.msra.mxu0 0.0
    %609 = vmatprep.subr.mxu0 0.0
    %610 = vmatpush1.msra.mxu0 0.0
    %611 = vmatprep.subr.mxu0 0.0
    %612 = vmatpush1.msra.mxu0 0.0
    %613 = vmatprep.subr.mxu0 0.0
    %614 = vmatpush1.msra.mxu0 0.0
    %615 = vmatprep.subr.mxu0 0.0
    %616 = vmatpush1.msra.mxu0 0.0
    %617 = vmatprep.subr.mxu0 0.0
    %618 = vmatpush1.msra.mxu0 0.0
    %619 = vmatprep.subr.mxu0 0.0
    %620 = vmatpush1.msra.mxu0 0.0
    %621 = vmatprep.subr.mxu0 0.0
    %622 = vmatpush1.msra.mxu0 0.0
    %623 = vmatprep.subr.mxu0 0.0
    %624 = vmatpush1.msra.mxu0 0.0
    %625 = vmatprep.subr.mxu0 0.0
    %626 = vmatpush1.msra.mxu0 0.0
    %627 = vmatprep.subr.mxu0 0.0
    %628 = vmatpush1.msra.mxu0 0.0
    %629 = vmatprep.subr.mxu0 0.0
    %630 = vmatpush1.msra.mxu0 0.0
    %631 = vmatprep.subr.mxu0 0.0
    %632 = vmatpush1.msra.mxu0 0.0
    %633 = vmatprep.subr.mxu0 0.0
    %634 = vmatpush1.msra.mxu0 0.0
    %635 = vmatprep.subr.mxu0 0.0
    %636 = vmatpush1.msra.mxu0 0.0
    %637 = vmatprep.subr.mxu0 0.0
    %638 = vmatpush1.msra.mxu0 0.0
    %639 = vmatprep.subr.mxu0 0.0
    %640 = vmatpush1.msra.mxu0 0.0
    %641 = vmatprep.subr.mxu0 0.0
    %642 = vmatpush1.msra.mxu0 0.0
    %643 = vmatprep.subr.mxu0 0.0
    %644 = vmatpush1.msra.mxu0 0.0
    %645 = vmatprep.subr.mxu0 0.0
    %646 = vmatpush1.msra.mxu0 0.0
    %647 = vmatprep.subr.mxu0 0.0
    %648 = vmatpush1.msra.mxu0 0.0
    %649 = vmatprep.subr.mxu0 0.0
    %650 = vmatpush1.msra.mxu0 0.0
    %651 = vmatprep.subr.mxu0 0.0
    %652 = vmatpush1.msra.mxu0 0.0
    %653 = vmatprep.subr.mxu0 0.0
    %654 = vmatpush1.msra.mxu0 0.0
    %655 = vmatprep.subr.mxu0 0.0
    %656 = vmatpush1.msra.mxu0 0.0
    %657 = vmatprep.mubr.f32.mxu0 0.0
    %658 = vmatmul.mubr.f32.gmra.mrb[0].mxu0 %v591
    %v659 = vpop.f32.mrb[0].mxu0
    %v660 = vadd.f32 0.0, %v659
    %v661 = vpop.f32.mrb[0].mxu0
    %662 = vdwg.mxu0
    %v665 = vunpack.c.l.s4 1966171168
    %v666 = vunpack.c.0.s8 %v665
    %v667 = vlaneseq
    %v668 = vshrl.u32 %v667, 7
    %v669 = vsub.s32 %v666, %v668
    %v670 = vrot.slane %v587, %v669
    %v671 = vcombine.high %v670, %v670
    %v673 = vunpack.c.l.s4 1966171168
    %v674 = vunpack.c.0.s8 %v673
    %v675 = vlaneseq
    %v676 = vshrl.u32 %v675, 7
    %v677 = vsub.s32 %v674, %v676
    %v678 = vrot.slane %v670, %v677
    %v680 = vunpack.c.l.s4 1966171168
    %v681 = vunpack.c.0.s8 %v680
    %v682 = vlaneseq
    %v683 = vshrl.u32 %v682, 7
    %v684 = vsub.s32 %v681, %v683
    %v685 = vrot.slane %v671, %v684
    %v686 = vlaneseq
    %v687 = vshrl.u32 %v686, 7
    %v688 = vsub.s32 0, %v687
    %v689 = vrot.slane %v678, %v688
    %v690 = vlaneseq
    %v691 = vshrl.u32 %v690, 7
    %v692 = vsub.s32 0, %v691
    %v693 = vrot.slane %v685, %v692
    %v696 = vsub.f32 %v310, %v689
    %v697 = vsub.f32 %v311, %v693
    %v700 = vunpack.c.l.s4 1966171168
    %v701 = vunpack.c.0.s8 %v700
    %v702 = vlaneseq
    %v703 = vshrl.u32 %v702, 7
    %v704 = vsub.s32 %v701, %v703
    %v705 = vrot.slane %v660, %v704
    %v706 = vcombine.high %v705, %v705
    %v708 = vunpack.c.l.s4 1966171168
    %v709 = vunpack.c.0.s8 %v708
    %v710 = vlaneseq
    %v711 = vshrl.u32 %v710, 7
    %v712 = vsub.s32 %v709, %v711
    %v713 = vrot.slane %v705, %v712
    %v715 = vunpack.c.l.s4 1966171168
    %v716 = vunpack.c.0.s8 %v715
    %v717 = vlaneseq
    %v718 = vshrl.u32 %v717, 7
    %v719 = vsub.s32 %v716, %v718
    %v720 = vrot.slane %v706, %v719
    %v721 = vlaneseq
    %v722 = vshrl.u32 %v721, 7
    %v723 = vsub.s32 0, %v722
    %v724 = vrot.slane %v713, %v723
    %v725 = vlaneseq
    %v726 = vshrl.u32 %v725, 7
    %v727 = vsub.s32 0, %v726
    %v728 = vrot.slane %v720, %v727
    %v731 = vmul.f32 %v696, %v724
    %v732 = vmul.f32 %v697, %v728
    %v733 = vlaneseq
    %v734 = vshrl.u32 %v733, 7
    %v735 = vsub.s32 0, %v734
    %v736 = vrot.slane %v326, %v735
    %v737 = vmul.f32 %v731, %v736
    %v738 = vmul.f32 %v732, %v736
    %v739 = vlaneseq
    %v740 = vshrl.u32 %v739, 7
    %v741 = vsub.s32 0, %v740
    %v742 = vrot.slane %v327, %v741
    %v743 = vadd.f32 %v737, %v742
    %v744 = vadd.f32 %v738, %v742
    %v745 = vmax.f32 %v743, 0.0
    %v746 = vmax.f32 %v744, 0.0
    %v747 = vand.u32 2147483647, %v743
    %v748 = vand.u32 2147483647, %v744
    %v749 = vsub.f32 0.0, %v747
    %v750 = vsub.f32 0.0, %v748
    %v751 = vmul.f32 %v749, 1.442695
    %v752 = vpow.pop %v751
    %v753 = vmul.f32 %v750, 1.442695
    %v754 = vpow.pop %v753
    %v755 = vadd.f32 %v752, 1.0
    %v756 = vadd.f32 %v754, 1.0
    %v757 = vlog2.pop %v755
    %v758 = vmul.f32 %v757, 0.6931472
    %v759 = vlog2.pop %v756
    %v760 = vmul.f32 %v759, 0.6931472
    %v761 = vadd.f32 %v745, %v758
    %v762 = vadd.f32 %v746, %v760
    %v763 = vtanh.pop %v761
    %v764 = vtanh.pop %v762
    %v765 = vmul.f32 %v743, %v763
    %v766 = vmul.f32 %v744, %v764
    %v769 = vunpack.c.l.s4 1966171168
    %v770 = vunpack.c.0.s8 %v769
    %v771 = vlaneseq
    %v772 = vshrl.u32 %v771, 7
    %v773 = vsub.s32 %v770, %v772
    %v774 = vrot.slane %v127, %v773
    %v775 = vcombine.high %v774, %v774
    %v777 = vunpack.c.l.s4 1966171168
    %v778 = vunpack.c.0.s8 %v777
    %v779 = vlaneseq
    %v780 = vshrl.u32 %v779, 7
    %v781 = vsub.s32 %v778, %v780
    %v782 = vrot.slane %v774, %v781
    %v784 = vunpack.c.l.s4 1966171168
    %v785 = vunpack.c.0.s8 %v784
    %v786 = vlaneseq
    %v787 = vshrl.u32 %v786, 7
    %v788 = vsub.s32 %v785, %v787
    %v789 = vrot.slane %v775, %v788
    %v790 = vlaneseq
    %v791 = vshrl.u32 %v790, 7
    %v792 = vsub.s32 0, %v791
    %v793 = vrot.slane %v782, %v792
    %v794 = vlaneseq
    %v795 = vshrl.u32 %v794, 7
    %v796 = vsub.s32 0, %v795
    %v797 = vrot.slane %v789, %v796
    %v800 = vmul.f32 %v793, %v765
    %v801 = vmul.f32 %v797, %v766
    %802 = vrot.lane.b32.xlu0 %v793, 112
    %v803 = vpop.permute.xlu0 %802
    %804 = vrot.lane.b32.xlu0 %v797, 112
    %v805 = vpop.permute.xlu0 %804
    %v808 = vadd.f32 %v800, %v803
    %v809 = vadd.f32 %v801, %v805
    %v812 = vrot.slane %v808, 6
    %v813 = vrot.slane %v809, 6
    %v816 = vsel %vm179, 0.0, %v812
    %v817 = vsel %vm179, 0.0, %v813
    %v818 = vsel %vm179, %v812, 0.0
    %v819 = vsel %vm179, %v813, 0.0
    %v824 = vrot.slane %v816, 1
    %v825 = vrot.slane %v818, 1
    %v826 = vsel %vm188, %v824, %v825
    %v827 = vrot.slane %v817, 1
    %v828 = vrot.slane %v819, 1
    %v829 = vsel %vm188, %v827, %v828
    %830 = vrot.lane.b32.xlu0 %v826, 16
    %v831 = vpop.permute.xlu0 %830
    %832 = vrot.lane.b32.xlu0 %v829, 16
    %v833 = vpop.permute.xlu0 %832
    %v836 = vrot.slane %v816, 2
    %v837 = vrot.slane %v818, 2
    %v838 = vsel %vm201, %v836, %v837
    %v839 = vrot.slane %v817, 2
    %v840 = vrot.slane %v819, 2
    %v841 = vsel %vm201, %v839, %v840
    %842 = vrot.lane.b32.xlu0 %v838, 32
    %v843 = vpop.permute.xlu0 %842
    %844 = vrot.lane.b32.xlu0 %v841, 32
    %v845 = vpop.permute.xlu0 %844
    %v848 = vrot.slane %v816, 3
    %v849 = vrot.slane %v818, 3
    %v850 = vsel %vm214, %v848, %v849
    %v851 = vrot.slane %v817, 3
    %v852 = vrot.slane %v819, 3
    %v853 = vsel %vm214, %v851, %v852
    %854 = vrot.lane.b32.xlu0 %v850, 48
    %v855 = vpop.permute.xlu0 %854
    %856 = vrot.lane.b32.xlu0 %v853, 48
    %v857 = vpop.permute.xlu0 %856
    %v860 = vrot.slane %v816, 4
    %v861 = vrot.slane %v818, 4
    %v862 = vsel %vm227, %v860, %v861
    %v863 = vrot.slane %v817, 4
    %v864 = vrot.slane %v819, 4
    %v865 = vsel %vm227, %v863, %v864
    %866 = vrot.lane.b32.xlu0 %v862, 64
    %v867 = vpop.permute.xlu0 %866
    %868 = vrot.lane.b32.xlu0 %v865, 64
    %v869 = vpop.permute.xlu0 %868
    %v872 = vsel %vm88, %v816, %v831
    %v873 = vsel %vm88, %v817, %v833
    %vm874 = vcmask 261120
    %v875 = vsel %vm874, %v872, %v843
    %v876 = vsel %vm874, %v873, %v845
    %vm877 = vcmask 392192
    %v878 = vsel %vm877, %v875, %v855
    %v879 = vsel %vm877, %v876, %v857
    %vm880 = vcmask 523264
    %v881 = vsel %vm880, %v878, %v867
    %v882 = vsel %vm880, %v879, %v869
    %v883 = vld [vmem:[#allocation2 + $0x38] sm:$0xff]
    %v884 = vld [vmem:[#allocation2 + $0x40] sm:$0xff]
    %v885 = vld [vmem:[#allocation2 + $0x48] sm:$0xff]
    %v886 = vld [vmem:[#allocation2 + $0x50] sm:$0xff]
    %v887 = vld [vmem:[#allocation2 + $0x58] sm:$0xff]
    %v888 = vld [vmem:[#allocation2 + $0x60] sm:$0xff]
    %v889 = vld [vmem:[#allocation2 + $0x68] sm:$0xff]
    %v890 = vld [vmem:[#allocation2 + $0x70] sm:$0xff]
    %v891 = vld [vmem:[#allocation2 + $0x78] sm:$0xff]
    %v892 = vld [vmem:[#allocation2 + $0x80] sm:$0xff]
    %v893 = vpack.c.bf16 %v882, %v881
    %v894 = vpack.c.bf16 %v884, %v883
    %v895 = vpack.c.bf16 %v886, %v885
    %v896 = vpack.c.bf16 %v888, %v887
    %v897 = vpack.c.bf16 %v890, %v889
    %v898 = vpack.c.bf16 %v892, %v891
    %v899 = vld [vmem:[#allocation2 + $0x88] sm:$0x1]
    %v900 = vlaneseq
    %v901 = vshrl.u32 %v900, 7
    %v902 = vsub.s32 0, %v901
    %v903 = vrot.slane %v899, %v902
    %vm904 = vcmask 654336
    %v906 = vsel %vm904, %v893, 0
    %908 = vmatprep.subr.bf16.mxu0 0
    %909 = vmatpush1.bf16.msra.mxu0 %v894
    %910 = vmatprep.subr.bf16.mxu0 0
    %911 = vmatpush1.bf16.msra.mxu0 %v895
    %912 = vmatprep.subr.bf16.mxu0 0
    %913 = vmatpush1.bf16.msra.mxu0 %v896
    %914 = vmatprep.subr.bf16.mxu0 0
    %915 = vmatpush1.bf16.msra.mxu0 %v897
    %916 = vmatprep.subr.bf16.mxu0 0
    %917 = vmatpush1.bf16.msra.mxu0 %v898
    %918 = vmatprep.subr.bf16.mxu0 0
    %919 = vmatpush1.bf16.msra.mxu0 0
    %920 = vmatprep.subr.bf16.mxu0 0
    %921 = vmatpush1.bf16.msra.mxu0 0
    %922 = vmatprep.subr.bf16.mxu0 0
    %923 = vmatpush1.bf16.msra.mxu0 0
    %924 = vmatprep.subr.bf16.mxu0 0
    %925 = vmatpush1.bf16.msra.mxu0 0
    %926 = vmatprep.subr.bf16.mxu0 0
    %927 = vmatpush1.bf16.msra.mxu0 0
    %928 = vmatprep.subr.bf16.mxu0 0
    %929 = vmatpush1.bf16.msra.mxu0 0
    %930 = vmatprep.subr.bf16.mxu0 0
    %931 = vmatpush1.bf16.msra.mxu0 0
    %932 = vmatprep.subr.bf16.mxu0 0
    %933 = vmatpush1.bf16.msra.mxu0 0
    %934 = vmatprep.subr.bf16.mxu0 0
    %935 = vmatpush1.bf16.msra.mxu0 0
    %936 = vmatprep.subr.bf16.mxu0 0
    %937 = vmatpush1.bf16.msra.mxu0 0
    %938 = vmatprep.subr.bf16.mxu0 0
    %939 = vmatpush1.bf16.msra.mxu0 0
    %940 = vmatprep.mubr.bf16.mxu0 0
    %941 = vmatmul.mubr.bf16.gmra.mrb[0].mxu0 %v906
    %v942 = vpop.f32.mrb[0].mxu0
    %v943 = vadd.f32 %v903, %v942
    %v944 = vpop.f32.mrb[0].mxu0
    %v945 = vpop.f32.mrb[0].mxu0
    %v946 = vadd.f32 %v903, %v945
    %v947 = vpop.f32.mrb[0].mxu0
    %948 = vdwg.mxu0
    %v949 = vld [vmem:[#allocation2 + $0x90] sm:$0x1]
    %v950 = vld [vmem:[#allocation2 + $0x98] sm:$0x1]
    %v951 = vsel %vm88, %v943, 0.0
    %v952 = vrot.slane %v951, 4
    %v953 = vadd.f32 %v951, %v952
    %v954 = vrot.slane %v953, 2
    %v955 = vadd.f32 %v953, %v954
    %v956 = vrot.slane %v955, 1
    %v957 = vadd.f32 %v955, %v956
    %v958 = vsel %vm88, %v946, 0.0
    %v959 = vrot.slane %v958, 4
    %v960 = vadd.f32 %v958, %v959
    %v961 = vrot.slane %v960, 2
    %v962 = vadd.f32 %v960, %v961
    %v963 = vrot.slane %v962, 1
    %v964 = vadd.f32 %v962, %v963
    %v967 = vsel %vm344, %v964, %v957
    %v968 = vsel %vm88, %v967, 0
    %970 = vmatprep.subr.mxu0 0.0
    %971 = vmatpush1.msra.mxu0 %v323
    %972 = vmatprep.subr.mxu0 0.0
    %973 = vmatpush1.msra.mxu0 %v324
    %974 = vmatprep.subr.mxu0 0.0
    %975 = vmatpush1.msra.mxu0 0.0
    %976 = vmatprep.subr.mxu0 0.0
    %977 = vmatpush1.msra.mxu0 0.0
    %978 = vmatprep.subr.mxu0 0.0
    %979 = vmatpush1.msra.mxu0 0.0
    %980 = vmatprep.subr.mxu0 0.0
    %981 = vmatpush1.msra.mxu0 0.0
    %982 = vmatprep.subr.mxu0 0.0
    %983 = vmatpush1.msra.mxu0 0.0
    %984 = vmatprep.subr.mxu0 0.0
    %985 = vmatpush1.msra.mxu0 0.0
    %986 = vmatprep.subr.mxu0 0.0
    %987 = vmatpush1.msra.mxu0 0.0
    %988 = vmatprep.subr.mxu0 0.0
    %989 = vmatpush1.msra.mxu0 0.0
    %990 = vmatprep.subr.mxu0 0.0
    %991 = vmatpush1.msra.mxu0 0.0
    %992 = vmatprep.subr.mxu0 0.0
    %993 = vmatpush1.msra.mxu0 0.0
    %994 = vmatprep.subr.mxu0 0.0
    %995 = vmatpush1.msra.mxu0 0.0
    %996 = vmatprep.subr.mxu0 0.0
    %997 = vmatpush1.msra.mxu0 0.0
    %998 = vmatprep.subr.mxu0 0.0
    %999 = vmatpush1.msra.mxu0 0.0
    %1000 = vmatprep.subr.mxu0 0.0
    %1001 = vmatpush1.msra.mxu0 0.0
    %1002 = vmatprep.subr.mxu0 0.0
    %1003 = vmatpush1.msra.mxu0 0.0
    %1004 = vmatprep.subr.mxu0 0.0
    %1005 = vmatpush1.msra.mxu0 0.0
    %1006 = vmatprep.subr.mxu0 0.0
    %1007 = vmatpush1.msra.mxu0 0.0
    %1008 = vmatprep.subr.mxu0 0.0
    %1009 = vmatpush1.msra.mxu0 0.0
    %1010 = vmatprep.subr.mxu0 0.0
    %1011 = vmatpush1.msra.mxu0 0.0
    %1012 = vmatprep.subr.mxu0 0.0
    %1013 = vmatpush1.msra.mxu0 0.0
    %1014 = vmatprep.subr.mxu0 0.0
    %1015 = vmatpush1.msra.mxu0 0.0
    %1016 = vmatprep.subr.mxu0 0.0
    %1017 = vmatpush1.msra.mxu0 0.0
    %1018 = vmatprep.subr.mxu0 0.0
    %1019 = vmatpush1.msra.mxu0 0.0
    %1020 = vmatprep.subr.mxu0 0.0
    %1021 = vmatpush1.msra.mxu0 0.0
    %1022 = vmatprep.subr.mxu0 0.0
    %1023 = vmatpush1.msra.mxu0 0.0
    %1024 = vmatprep.subr.mxu0 0.0
    %1025 = vmatpush1.msra.mxu0 0.0
    %1026 = vmatprep.subr.mxu0 0.0
    %1027 = vmatpush1.msra.mxu0 0.0
    %1028 = vmatprep.subr.mxu0 0.0
    %1029 = vmatpush1.msra.mxu0 0.0
    %1030 = vmatprep.subr.mxu0 0.0
    %1031 = vmatpush1.msra.mxu0 0.0
    %1032 = vmatprep.subr.mxu0 0.0
    %1033 = vmatpush1.msra.mxu0 0.0
    %1034 = vmatprep.mubr.f32.mxu0 0.0
    %1035 = vmatmul.mubr.f32.gmra.mrb[0].mxu0 %v968
    %v1036 = vpop.f32.mrb[0].mxu0
    %v1037 = vadd.f32 0.0, %v1036
    %v1038 = vpop.f32.mrb[0].mxu0
    %1039 = vdwg.mxu0
    %v1040 = vmul.f32 %v943, %v943
    %v1041 = vmul.f32 %v946, %v946
    %v1042 = vsel %vm88, %v1040, 0.0
    %v1043 = vrot.slane %v1042, 4
    %v1044 = vadd.f32 %v1042, %v1043
    %v1045 = vrot.slane %v1044, 2
    %v1046 = vadd.f32 %v1044, %v1045
    %v1047 = vrot.slane %v1046, 1
    %v1048 = vadd.f32 %v1046, %v1047
    %v1049 = vsel %vm88, %v1041, 0.0
    %v1050 = vrot.slane %v1049, 4
    %v1051 = vadd.f32 %v1049, %v1050
    %v1052 = vrot.slane %v1051, 2
    %v1053 = vadd.f32 %v1051, %v1052
    %v1054 = vrot.slane %v1053, 1
    %v1055 = vadd.f32 %v1053, %v1054
    %v1058 = vsel %vm344, %v1055, %v1048
    %v1059 = vsel %vm88, %v1058, 0
    %1061 = vmatprep.subr.mxu0 0.0
    %1062 = vmatpush1.msra.mxu0 %v323
    %1063 = vmatprep.subr.mxu0 0.0
    %1064 = vmatpush1.msra.mxu0 %v324
    %1065 = vmatprep.subr.mxu0 0.0
    %1066 = vmatpush1.msra.mxu0 0.0
    %1067 = vmatprep.subr.mxu0 0.0
    %1068 = vmatpush1.msra.mxu0 0.0
    %1069 = vmatprep.subr.mxu0 0.0
    %1070 = vmatpush1.msra.mxu0 0.0
    %1071 = vmatprep.subr.mxu0 0.0
    %1072 = vmatpush1.msra.mxu0 0.0
    %1073 = vmatprep.subr.mxu0 0.0
    %1074 = vmatpush1.msra.mxu0 0.0
    %1075 = vmatprep.subr.mxu0 0.0
    %1076 = vmatpush1.msra.mxu0 0.0
    %1077 = vmatprep.subr.mxu0 0.0
    %1078 = vmatpush1.msra.mxu0 0.0
    %1079 = vmatprep.subr.mxu0 0.0
    %1080 = vmatpush1.msra.mxu0 0.0
    %1081 = vmatprep.subr.mxu0 0.0
    %1082 = vmatpush1.msra.mxu0 0.0
    %1083 = vmatprep.subr.mxu0 0.0
    %1084 = vmatpush1.msra.mxu0 0.0
    %1085 = vmatprep.subr.mxu0 0.0
    %1086 = vmatpush1.msra.mxu0 0.0
    %1087 = vmatprep.subr.mxu0 0.0
    %1088 = vmatpush1.msra.mxu0 0.0
    %1089 = vmatprep.subr.mxu0 0.0
    %1090 = vmatpush1.msra.mxu0 0.0
    %1091 = vmatprep.subr.mxu0 0.0
    %1092 = vmatpush1.msra.mxu0 0.0
    %1093 = vmatprep.subr.mxu0 0.0
    %1094 = vmatpush1.msra.mxu0 0.0
    %1095 = vmatprep.subr.mxu0 0.0
    %1096 = vmatpush1.msra.mxu0 0.0
    %1097 = vmatprep.subr.mxu0 0.0
    %1098 = vmatpush1.msra.mxu0 0.0
    %1099 = vmatprep.subr.mxu0 0.0
    %1100 = vmatpush1.msra.mxu0 0.0
    %1101 = vmatprep.subr.mxu0 0.0
    %1102 = vmatpush1.msra.mxu0 0.0
    %1103 = vmatprep.subr.mxu0 0.0
    %1104 = vmatpush1.msra.mxu0 0.0
    %1105 = vmatprep.subr.mxu0 0.0
    %1106 = vmatpush1.msra.mxu0 0.0
    %1107 = vmatprep.subr.mxu0 0.0
    %1108 = vmatpush1.msra.mxu0 0.0
    %1109 = vmatprep.subr.mxu0 0.0
    %1110 = vmatpush1.msra.mxu0 0.0
    %1111 = vmatprep.subr.mxu0 0.0
    %1112 = vmatpush1.msra.mxu0 0.0
    %1113 = vmatprep.subr.mxu0 0.0
    %1114 = vmatpush1.msra.mxu0 0.0
    %1115 = vmatprep.subr.mxu0 0.0
    %1116 = vmatpush1.msra.mxu0 0.0
    %1117 = vmatprep.subr.mxu0 0.0
    %1118 = vmatpush1.msra.mxu0 0.0
    %1119 = vmatprep.subr.mxu0 0.0
    %1120 = vmatpush1.msra.mxu0 0.0
    %1121 = vmatprep.subr.mxu0 0.0
    %1122 = vmatpush1.msra.mxu0 0.0
    %1123 = vmatprep.subr.mxu0 0.0
    %1124 = vmatpush1.msra.mxu0 0.0
    %1125 = vmatprep.mubr.f32.mxu0 0.0
    %1126 = vmatmul.mubr.f32.gmra.mrb[0].mxu0 %v1059
    %v1127 = vpop.f32.mrb[0].mxu0
    %v1128 = vadd.f32 0.0, %v1127
    %v1129 = vpop.f32.mrb[0].mxu0
    %1130 = vdwg.mxu0
    %v1131 = vmul.f32 %v1037, %v509
    %v1132 = vmul.f32 %v1128, %v509
    %v1133 = vmul.f32 %v1131, %v1131
    %v1134 = vsub.f32 %v1132, %v1133
    %v1135 = vmax.f32 %v1134, 0.0
    %v1136 = vadd.f32 %v1135, 1e-05
    %v1137 = vrsqrt.pop %v1136
    %v1139 = vsel %vm243, %v1131, 0
    %1141 = vmatprep.subr.mxu0 0.0
    %1142 = vmatpush1.msra.mxu0 %v325
    %1143 = vmatprep.subr.mxu0 0.0
    %1144 = vmatpush1.msra.mxu0 0.0
    %1145 = vmatprep.subr.mxu0 0.0
    %1146 = vmatpush1.msra.mxu0 0.0
    %1147 = vmatprep.subr.mxu0 0.0
    %1148 = vmatpush1.msra.mxu0 0.0
    %1149 = vmatprep.subr.mxu0 0.0
    %1150 = vmatpush1.msra.mxu0 0.0
    %1151 = vmatprep.subr.mxu0 0.0
    %1152 = vmatpush1.msra.mxu0 0.0
    %1153 = vmatprep.subr.mxu0 0.0
    %1154 = vmatpush1.msra.mxu0 0.0
    %1155 = vmatprep.subr.mxu0 0.0
    %1156 = vmatpush1.msra.mxu0 0.0
    %1157 = vmatprep.subr.mxu0 0.0
    %1158 = vmatpush1.msra.mxu0 0.0
    %1159 = vmatprep.subr.mxu0 0.0
    %1160 = vmatpush1.msra.mxu0 0.0
    %1161 = vmatprep.subr.mxu0 0.0
    %1162 = vmatpush1.msra.mxu0 0.0
    %1163 = vmatprep.subr.mxu0 0.0
    %1164 = vmatpush1.msra.mxu0 0.0
    %1165 = vmatprep.subr.mxu0 0.0
    %1166 = vmatpush1.msra.mxu0 0.0
    %1167 = vmatprep.subr.mxu0 0.0
    %1168 = vmatpush1.msra.mxu0 0.0
    %1169 = vmatprep.subr.mxu0 0.0
    %1170 = vmatpush1.msra.mxu0 0.0
    %1171 = vmatprep.subr.mxu0 0.0
    %1172 = vmatpush1.msra.mxu0 0.0
    %1173 = vmatprep.subr.mxu0 0.0
    %1174 = vmatpush1.msra.mxu0 0.0
    %1175 = vmatprep.subr.mxu0 0.0
    %1176 = vmatpush1.msra.mxu0 0.0
    %1177 = vmatprep.subr.mxu0 0.0
    %1178 = vmatpush1.msra.mxu0 0.0
    %1179 = vmatprep.subr.mxu0 0.0
    %1180 = vmatpush1.msra.mxu0 0.0
    %1181 = vmatprep.subr.mxu0 0.0
    %1182 = vmatpush1.msra.mxu0 0.0
    %1183 = vmatprep.subr.mxu0 0.0
    %1184 = vmatpush1.msra.mxu0 0.0
    %1185 = vmatprep.subr.mxu0 0.0
    %1186 = vmatpush1.msra.mxu0 0.0
    %1187 = vmatprep.subr.mxu0 0.0
    %1188 = vmatpush1.msra.mxu0 0.0
    %1189 = vmatprep.subr.mxu0 0.0
    %1190 = vmatpush1.msra.mxu0 0.0
    %1191 = vmatprep.subr.mxu0 0.0
    %1192 = vmatpush1.msra.mxu0 0.0
    %1193 = vmatprep.subr.mxu0 0.0
    %1194 = vmatpush1.msra.mxu0 0.0
    %1195 = vmatprep.subr.mxu0 0.0
    %1196 = vmatpush1.msra.mxu0 0.0
    %1197 = vmatprep.subr.mxu0 0.0
    %1198 = vmatpush1.msra.mxu0 0.0
    %1199 = vmatprep.subr.mxu0 0.0
    %1200 = vmatpush1.msra.mxu0 0.0
    %1201 = vmatprep.subr.mxu0 0.0
    %1202 = vmatpush1.msra.mxu0 0.0
    %1203 = vmatprep.subr.mxu0 0.0
    %1204 = vmatpush1.msra.mxu0 0.0
    %1205 = vmatprep.mubr.f32.mxu0 0.0
    %1206 = vmatmul.mubr.f32.gmra.mrb[0].mxu0 %v1139
    %v1207 = vpop.f32.mrb[0].mxu0
    %v1208 = vadd.f32 0.0, %v1207
    %v1209 = vpop.f32.mrb[0].mxu0
    %1210 = vdwg.mxu0
    %v1212 = vsel %vm243, %v1137, 0
    %1214 = vmatprep.subr.mxu0 0.0
    %1215 = vmatpush1.msra.mxu0 %v325
    %1216 = vmatprep.subr.mxu0 0.0
    %1217 = vmatpush1.msra.mxu0 0.0
    %1218 = vmatprep.subr.mxu0 0.0
    %1219 = vmatpush1.msra.mxu0 0.0
    %1220 = vmatprep.subr.mxu0 0.0
    %1221 = vmatpush1.msra.mxu0 0.0
    %1222 = vmatprep.subr.mxu0 0.0
    %1223 = vmatpush1.msra.mxu0 0.0
    %1224 = vmatprep.subr.mxu0 0.0
    %1225 = vmatpush1.msra.mxu0 0.0
    %1226 = vmatprep.subr.mxu0 0.0
    %1227 = vmatpush1.msra.mxu0 0.0
    %1228 = vmatprep.subr.mxu0 0.0
    %1229 = vmatpush1.msra.mxu0 0.0
    %1230 = vmatprep.subr.mxu0 0.0
    %1231 = vmatpush1.msra.mxu0 0.0
    %1232 = vmatprep.subr.mxu0 0.0
    %1233 = vmatpush1.msra.mxu0 0.0
    %1234 = vmatprep.subr.mxu0 0.0
    %1235 = vmatpush1.msra.mxu0 0.0
    %1236 = vmatprep.subr.mxu0 0.0
    %1237 = vmatpush1.msra.mxu0 0.0
    %1238 = vmatprep.subr.mxu0 0.0
    %1239 = vmatpush1.msra.mxu0 0.0
    %1240 = vmatprep.subr.mxu0 0.0
    %1241 = vmatpush1.msra.mxu0 0.0
    %1242 = vmatprep.subr.mxu0 0.0
    %1243 = vmatpush1.msra.mxu0 0.0
    %1244 = vmatprep.subr.mxu0 0.0
    %1245 = vmatpush1.msra.mxu0 0.0
    %1246 = vmatprep.subr.mxu0 0.0
    %1247 = vmatpush1.msra.mxu0 0.0
    %1248 = vmatprep.subr.mxu0 0.0
    %1249 = vmatpush1.msra.mxu0 0.0
    %1250 = vmatprep.subr.mxu0 0.0
    %1251 = vmatpush1.msra.mxu0 0.0
    %1252 = vmatprep.subr.mxu0 0.0
    %1253 = vmatpush1.msra.mxu0 0.0
    %1254 = vmatprep.subr.mxu0 0.0
    %1255 = vmatpush1.msra.mxu0 0.0
    %1256 = vmatprep.subr.mxu0 0.0
    %1257 = vmatpush1.msra.mxu0 0.0
    %1258 = vmatprep.subr.mxu0 0.0
    %1259 = vmatpush1.msra.mxu0 0.0
    %1260 = vmatprep.subr.mxu0 0.0
    %1261 = vmatpush1.msra.mxu0 0.0
    %1262 = vmatprep.subr.mxu0 0.0
    %1263 = vmatpush1.msra.mxu0 0.0
    %1264 = vmatprep.subr.mxu0 0.0
    %1265 = vmatpush1.msra.mxu0 0.0
    %1266 = vmatprep.subr.mxu0 0.0
    %1267 = vmatpush1.msra.mxu0 0.0
    %1268 = vmatprep.subr.mxu0 0.0
    %1269 = vmatpush1.msra.mxu0 0.0
    %1270 = vmatprep.subr.mxu0 0.0
    %1271 = vmatpush1.msra.mxu0 0.0
    %1272 = vmatprep.subr.mxu0 0.0
    %1273 = vmatpush1.msra.mxu0 0.0
    %1274 = vmatprep.subr.mxu0 0.0
    %1275 = vmatpush1.msra.mxu0 0.0
    %1276 = vmatprep.subr.mxu0 0.0
    %1277 = vmatpush1.msra.mxu0 0.0
    %1278 = vmatprep.mubr.f32.mxu0 0.0
    %1279 = vmatmul.mubr.f32.gmra.mrb[0].mxu0 %v1212
    %v1280 = vpop.f32.mrb[0].mxu0
    %v1281 = vadd.f32 0.0, %v1280
    %v1282 = vpop.f32.mrb[0].mxu0
    %1283 = vdwg.mxu0
    %v1286 = vunpack.c.l.s4 1966171168
    %v1287 = vunpack.c.0.s8 %v1286
    %v1288 = vlaneseq
    %v1289 = vshrl.u32 %v1288, 7
    %v1290 = vsub.s32 %v1287, %v1289
    %v1291 = vrot.slane %v1208, %v1290
    %v1292 = vcombine.high %v1291, %v1291
    %v1294 = vunpack.c.l.s4 1966171168
    %v1295 = vunpack.c.0.s8 %v1294
    %v1296 = vlaneseq
    %v1297 = vshrl.u32 %v1296, 7
    %v1298 = vsub.s32 %v1295, %v1297
    %v1299 = vrot.slane %v1291, %v1298
    %v1301 = vunpack.c.l.s4 1966171168
    %v1302 = vunpack.c.0.s8 %v1301
    %v1303 = vlaneseq
    %v1304 = vshrl.u32 %v1303, 7
    %v1305 = vsub.s32 %v1302, %v1304
    %v1306 = vrot.slane %v1292, %v1305
    %v1307 = vlaneseq
    %v1308 = vshrl.u32 %v1307, 7
    %v1309 = vsub.s32 0, %v1308
    %v1310 = vrot.slane %v1299, %v1309
    %v1311 = vlaneseq
    %v1312 = vshrl.u32 %v1311, 7
    %v1313 = vsub.s32 0, %v1312
    %v1314 = vrot.slane %v1306, %v1313
    %v1317 = vsub.f32 %v943, %v1310
    %v1318 = vsub.f32 %v946, %v1314
    %v1321 = vunpack.c.l.s4 1966171168
    %v1322 = vunpack.c.0.s8 %v1321
    %v1323 = vlaneseq
    %v1324 = vshrl.u32 %v1323, 7
    %v1325 = vsub.s32 %v1322, %v1324
    %v1326 = vrot.slane %v1281, %v1325
    %v1327 = vcombine.high %v1326, %v1326
    %v1329 = vunpack.c.l.s4 1966171168
    %v1330 = vunpack.c.0.s8 %v1329
    %v1331 = vlaneseq
    %v1332 = vshrl.u32 %v1331, 7
    %v1333 = vsub.s32 %v1330, %v1332
    %v1334 = vrot.slane %v1326, %v1333
    %v1336 = vunpack.c.l.s4 1966171168
    %v1337 = vunpack.c.0.s8 %v1336
    %v1338 = vlaneseq
    %v1339 = vshrl.u32 %v1338, 7
    %v1340 = vsub.s32 %v1337, %v1339
    %v1341 = vrot.slane %v1327, %v1340
    %v1342 = vlaneseq
    %v1343 = vshrl.u32 %v1342, 7
    %v1344 = vsub.s32 0, %v1343
    %v1345 = vrot.slane %v1334, %v1344
    %v1346 = vlaneseq
    %v1347 = vshrl.u32 %v1346, 7
    %v1348 = vsub.s32 0, %v1347
    %v1349 = vrot.slane %v1341, %v1348
    %v1352 = vmul.f32 %v1317, %v1345
    %v1353 = vmul.f32 %v1318, %v1349
    %v1354 = vlaneseq
    %v1355 = vshrl.u32 %v1354, 7
    %v1356 = vsub.s32 0, %v1355
    %v1357 = vrot.slane %v949, %v1356
    %v1358 = vmul.f32 %v1352, %v1357
    %v1359 = vmul.f32 %v1353, %v1357
    %v1360 = vlaneseq
    %v1361 = vshrl.u32 %v1360, 7
    %v1362 = vsub.s32 0, %v1361
    %v1363 = vrot.slane %v950, %v1362
    %v1364 = vadd.f32 %v1358, %v1363
    %v1365 = vadd.f32 %v1359, %v1363
    %v1366 = vmax.f32 %v1364, 0.0
    %v1367 = vmax.f32 %v1365, 0.0
    %v1368 = vand.u32 2147483647, %v1364
    %v1369 = vand.u32 2147483647, %v1365
    %v1370 = vsub.f32 0.0, %v1368
    %v1371 = vsub.f32 0.0, %v1369
    %v1372 = vmul.f32 %v1370, 1.442695
    %v1373 = vpow.pop %v1372
    %v1374 = vmul.f32 %v1371, 1.442695
    %v1375 = vpow.pop %v1374
    %v1376 = vadd.f32 %v1373, 1.0
    %v1377 = vadd.f32 %v1375, 1.0
    %v1378 = vlog2.pop %v1376
    %v1379 = vmul.f32 %v1378, 0.6931472
    %v1380 = vlog2.pop %v1377
    %v1381 = vmul.f32 %v1380, 0.6931472
    %v1382 = vadd.f32 %v1366, %v1379
    %v1383 = vadd.f32 %v1367, %v1381
    %v1384 = vtanh.pop %v1382
    %v1385 = vtanh.pop %v1383
    %v1386 = vmul.f32 %v1364, %v1384
    %v1387 = vmul.f32 %v1365, %v1385
    %1390 = vrot.lane.b32.xlu0 %v321, 112
    %v1391 = vpop.permute.xlu0 %1390
    %1392 = vrot.lane.b32.xlu0 %v322, 112
    %v1393 = vpop.permute.xlu0 %1392
    %v1396 = vadd.f32 %v1386, %v1391
    %v1397 = vadd.f32 %v1387, %v1393
    %v1400 = vrot.slane %v1396, 6
    %v1401 = vrot.slane %v1397, 6
    %v1404 = vsel %vm179, 0.0, %v1400
    %v1405 = vsel %vm179, 0.0, %v1401
    %v1406 = vsel %vm179, %v1400, 0.0
    %v1407 = vsel %vm179, %v1401, 0.0
    %v1412 = vrot.slane %v1404, 1
    %v1413 = vrot.slane %v1406, 1
    %v1414 = vsel %vm188, %v1412, %v1413
    %v1415 = vrot.slane %v1405, 1
    %v1416 = vrot.slane %v1407, 1
    %v1417 = vsel %vm188, %v1415, %v1416
    %1418 = vrot.lane.b32.xlu0 %v1414, 16
    %v1419 = vpop.permute.xlu0 %1418
    %1420 = vrot.lane.b32.xlu0 %v1417, 16
    %v1421 = vpop.permute.xlu0 %1420
    %v1424 = vrot.slane %v1404, 2
    %v1425 = vrot.slane %v1406, 2
    %v1426 = vsel %vm201, %v1424, %v1425
    %v1427 = vrot.slane %v1405, 2
    %v1428 = vrot.slane %v1407, 2
    %v1429 = vsel %vm201, %v1427, %v1428
    %1430 = vrot.lane.b32.xlu0 %v1426, 32
    %v1431 = vpop.permute.xlu0 %1430
    %1432 = vrot.lane.b32.xlu0 %v1429, 32
    %v1433 = vpop.permute.xlu0 %1432
    %v1436 = vrot.slane %v1404, 3
    %v1437 = vrot.slane %v1406, 3
    %v1438 = vsel %vm214, %v1436, %v1437
    %v1439 = vrot.slane %v1405, 3
    %v1440 = vrot.slane %v1407, 3
    %v1441 = vsel %vm214, %v1439, %v1440
    %1442 = vrot.lane.b32.xlu0 %v1438, 48
    %v1443 = vpop.permute.xlu0 %1442
    %1444 = vrot.lane.b32.xlu0 %v1441, 48
    %v1445 = vpop.permute.xlu0 %1444
    %v1448 = vrot.slane %v1404, 4
    %v1449 = vrot.slane %v1406, 4
    %v1450 = vsel %vm227, %v1448, %v1449
    %v1451 = vrot.slane %v1405, 4
    %v1452 = vrot.slane %v1407, 4
    %v1453 = vsel %vm227, %v1451, %v1452
    %1454 = vrot.lane.b32.xlu0 %v1450, 64
    %v1455 = vpop.permute.xlu0 %1454
    %1456 = vrot.lane.b32.xlu0 %v1453, 64
    %v1457 = vpop.permute.xlu0 %1456
    %v1460 = vsel %vm88, %v1404, %v1419
    %v1461 = vsel %vm88, %v1405, %v1421
    %v1462 = vsel %vm874, %v1460, %v1431
    %v1463 = vsel %vm874, %v1461, %v1433
    %v1464 = vsel %vm877, %v1462, %v1443
    %v1465 = vsel %vm877, %v1463, %v1445
    %v1466 = vsel %vm880, %v1464, %v1455
    %v1467 = vsel %vm880, %v1465, %v1457
    %v1468 = vld [vmem:[#allocation2 + $0xb8] sm:$0xff]
    %v1469 = vld [vmem:[#allocation2 + $0xc0] sm:$0xff]
    %v1470 = vld [vmem:[#allocation2 + $0xc8] sm:$0xff]
    %v1471 = vld [vmem:[#allocation2 + $0xd0] sm:$0xff]
    %v1472 = vld [vmem:[#allocation2 + $0xd8] sm:$0xff]
    %v1473 = vld [vmem:[#allocation2 + $0xe0] sm:$0xff]
    %v1474 = vld [vmem:[#allocation2 + $0xe8] sm:$0xff]
    %v1475 = vld [vmem:[#allocation2 + $0xf0] sm:$0xff]
    %v1476 = vld [vmem:[#allocation2 + $0xf8] sm:$0xff]
    %v1477 = vld [vmem:[#allocation2 + $0x100] sm:$0xff]
    %v1478 = vpack.c.bf16 %v1467, %v1466
    %v1479 = vpack.c.bf16 %v1469, %v1468
    %v1480 = vpack.c.bf16 %v1471, %v1470
    %v1481 = vpack.c.bf16 %v1473, %v1472
    %v1482 = vpack.c.bf16 %v1475, %v1474
    %v1483 = vpack.c.bf16 %v1477, %v1476
    %v1484 = vld [vmem:[#allocation2 + $0x108] sm:$0x1]
    %v1485 = vlaneseq
    %v1486 = vshrl.u32 %v1485, 7
    %v1487 = vsub.s32 0, %v1486
    %v1488 = vrot.slane %v1484, %v1487
    %v1490 = vsel %vm904, %v1478, 0
    %1492 = vmatprep.subr.bf16.mxu0 0
    %1493 = vmatpush1.bf16.msra.mxu0 %v1479
    %1494 = vmatprep.subr.bf16.mxu0 0
    %1495 = vmatpush1.bf16.msra.mxu0 %v1480
    %1496 = vmatprep.subr.bf16.mxu0 0
    %1497 = vmatpush1.bf16.msra.mxu0 %v1481
    %1498 = vmatprep.subr.bf16.mxu0 0
    %1499 = vmatpush1.bf16.msra.mxu0 %v1482
    %1500 = vmatprep.subr.bf16.mxu0 0
    %1501 = vmatpush1.bf16.msra.mxu0 %v1483
    %1502 = vmatprep.subr.bf16.mxu0 0
    %1503 = vmatpush1.bf16.msra.mxu0 0
    %1504 = vmatprep.subr.bf16.mxu0 0
    %1505 = vmatpush1.bf16.msra.mxu0 0
    %1506 = vmatprep.subr.bf16.mxu0 0
    %1507 = vmatpush1.bf16.msra.mxu0 0
    %1508 = vmatprep.subr.bf16.mxu0 0
    %1509 = vmatpush1.bf16.msra.mxu0 0
    %1510 = vmatprep.subr.bf16.mxu0 0
    %1511 = vmatpush1.bf16.msra.mxu0 0
    %1512 = vmatprep.subr.bf16.mxu0 0
    %1513 = vmatpush1.bf16.msra.mxu0 0
    %1514 = vmatprep.subr.bf16.mxu0 0
    %1515 = vmatpush1.bf16.msra.mxu0 0
    %1516 = vmatprep.subr.bf16.mxu0 0
    %1517 = vmatpush1.bf16.msra.mxu0 0
    %1518 = vmatprep.subr.bf16.mxu0 0
    %1519 = vmatpush1.bf16.msra.mxu0 0
    %1520 = vmatprep.subr.bf16.mxu0 0
    %1521 = vmatpush1.bf16.msra.mxu0 0
    %1522 = vmatprep.subr.bf16.mxu0 0
    %1523 = vmatpush1.bf16.msra.mxu0 0
    %1524 = vmatprep.mubr.bf16.mxu0 0
    %1525 = vmatmul.mubr.bf16.gmra.mrb[0].mxu0 %v1490
    %v1526 = vpop.f32.mrb[0].mxu0
    %v1527 = vadd.f32 %v1488, %v1526
    %v1528 = vpop.f32.mrb[0].mxu0
    %v1529 = vpop.f32.mrb[0].mxu0
    %v1530 = vadd.f32 %v1488, %v1529
    %v1531 = vpop.f32.mrb[0].mxu0
    %1532 = vdwg.mxu0
    %v1533 = vld [vmem:[#allocation2 + $0x110] sm:$0x1]
    %v1534 = vld [vmem:[#allocation2 + $0x118] sm:$0x1]
    %v1535 = vsel %vm88, %v1527, 0.0
    %v1536 = vrot.slane %v1535, 4
    %v1537 = vadd.f32 %v1535, %v1536
    %v1538 = vrot.slane %v1537, 2
    %v1539 = vadd.f32 %v1537, %v1538
    %v1540 = vrot.slane %v1539, 1
    %v1541 = vadd.f32 %v1539, %v1540
    %v1542 = vsel %vm88, %v1530, 0.0
    %v1543 = vrot.slane %v1542, 4
    %v1544 = vadd.f32 %v1542, %v1543
    %v1545 = vrot.slane %v1544, 2
    %v1546 = vadd.f32 %v1544, %v1545
    %v1547 = vrot.slane %v1546, 1
    %v1548 = vadd.f32 %v1546, %v1547
    %v1551 = vsel %vm344, %v1548, %v1541
    %v1552 = vsel %vm88, %v1551, 0
    %1554 = vmatprep.subr.mxu0 0.0
    %1555 = vmatpush1.msra.mxu0 %v323
    %1556 = vmatprep.subr.mxu0 0.0
    %1557 = vmatpush1.msra.mxu0 %v324
    %1558 = vmatprep.subr.mxu0 0.0
    %1559 = vmatpush1.msra.mxu0 0.0
    %1560 = vmatprep.subr.mxu0 0.0
    %1561 = vmatpush1.msra.mxu0 0.0
    %1562 = vmatprep.subr.mxu0 0.0
    %1563 = vmatpush1.msra.mxu0 0.0
    %1564 = vmatprep.subr.mxu0 0.0
    %1565 = vmatpush1.msra.mxu0 0.0
    %1566 = vmatprep.subr.mxu0 0.0
    %1567 = vmatpush1.msra.mxu0 0.0
    %1568 = vmatprep.subr.mxu0 0.0
    %1569 = vmatpush1.msra.mxu0 0.0
    %1570 = vmatprep.subr.mxu0 0.0
    %1571 = vmatpush1.msra.mxu0 0.0
    %1572 = vmatprep.subr.mxu0 0.0
    %1573 = vmatpush1.msra.mxu0 0.0
    %1574 = vmatprep.subr.mxu0 0.0
    %1575 = vmatpush1.msra.mxu0 0.0
    %1576 = vmatprep.subr.mxu0 0.0
    %1577 = vmatpush1.msra.mxu0 0.0
    %1578 = vmatprep.subr.mxu0 0.0
    %1579 = vmatpush1.msra.mxu0 0.0
    %1580 = vmatprep.subr.mxu0 0.0
    %1581 = vmatpush1.msra.mxu0 0.0
    %1582 = vmatprep.subr.mxu0 0.0
    %1583 = vmatpush1.msra.mxu0 0.0
    %1584 = vmatprep.subr.mxu0 0.0
    %1585 = vmatpush1.msra.mxu0 0.0
    %1586 = vmatprep.subr.mxu0 0.0
    %1587 = vmatpush1.msra.mxu0 0.0
    %1588 = vmatprep.subr.mxu0 0.0
    %1589 = vmatpush1.msra.mxu0 0.0
    %1590 = vmatprep.subr.mxu0 0.0
    %1591 = vmatpush1.msra.mxu0 0.0
    %1592 = vmatprep.subr.mxu0 0.0
    %1593 = vmatpush1.msra.mxu0 0.0
    %1594 = vmatprep.subr.mxu0 0.0
    %1595 = vmatpush1.msra.mxu0 0.0
    %1596 = vmatprep.subr.mxu0 0.0
    %1597 = vmatpush1.msra.mxu0 0.0
    %1598 = vmatprep.subr.mxu0 0.0
    %1599 = vmatpush1.msra.mxu0 0.0
    %1600 = vmatprep.subr.mxu0 0.0
    %1601 = vmatpush1.msra.mxu0 0.0
    %1602 = vmatprep.subr.mxu0 0.0
    %1603 = vmatpush1.msra.mxu0 0.0
    %1604 = vmatprep.subr.mxu0 0.0
    %1605 = vmatpush1.msra.mxu0 0.0
    %1606 = vmatprep.subr.mxu0 0.0
    %1607 = vmatpush1.msra.mxu0 0.0
    %1608 = vmatprep.subr.mxu0 0.0
    %1609 = vmatpush1.msra.mxu0 0.0
    %1610 = vmatprep.subr.mxu0 0.0
    %1611 = vmatpush1.msra.mxu0 0.0
    %1612 = vmatprep.subr.mxu0 0.0
    %1613 = vmatpush1.msra.mxu0 0.0
    %1614 = vmatprep.subr.mxu0 0.0
    %1615 = vmatpush1.msra.mxu0 0.0
    %1616 = vmatprep.subr.mxu0 0.0
    %1617 = vmatpush1.msra.mxu0 0.0
    %1618 = vmatprep.mubr.f32.mxu0 0.0
    %1619 = vmatmul.mubr.f32.gmra.mrb[0].mxu0 %v1552
    %v1620 = vpop.f32.mrb[0].mxu0
    %v1621 = vadd.f32 0.0, %v1620
    %v1622 = vpop.f32.mrb[0].mxu0
    %1623 = vdwg.mxu0
    %v1624 = vmul.f32 %v1527, %v1527
    %v1625 = vmul.f32 %v1530, %v1530
    %v1626 = vsel %vm88, %v1624, 0.0
    %v1627 = vrot.slane %v1626, 4
    %v1628 = vadd.f32 %v1626, %v1627
    %v1629 = vrot.slane %v1628, 2
    %v1630 = vadd.f32 %v1628, %v1629
    %v1631 = vrot.slane %v1630, 1
    %v1632 = vadd.f32 %v1630, %v1631
    %v1633 = vsel %vm88, %v1625, 0.0
    %v1634 = vrot.slane %v1633, 4
    %v1635 = vadd.f32 %v1633, %v1634
    %v1636 = vrot.slane %v1635, 2
    %v1637 = vadd.f32 %v1635, %v1636
    %v1638 = vrot.slane %v1637, 1
    %v1639 = vadd.f32 %v1637, %v1638
    %v1642 = vsel %vm344, %v1639, %v1632
    %v1643 = vsel %vm88, %v1642, 0
    %1645 = vmatprep.subr.mxu0 0.0
    %1646 = vmatpush1.msra.mxu0 %v323
    %1647 = vmatprep.subr.mxu0 0.0
    %1648 = vmatpush1.msra.mxu0 %v324
    %1649 = vmatprep.subr.mxu0 0.0
    %1650 = vmatpush1.msra.mxu0 0.0
    %1651 = vmatprep.subr.mxu0 0.0
    %1652 = vmatpush1.msra.mxu0 0.0
    %1653 = vmatprep.subr.mxu0 0.0
    %1654 = vmatpush1.msra.mxu0 0.0
    %1655 = vmatprep.subr.mxu0 0.0
    %1656 = vmatpush1.msra.mxu0 0.0
    %1657 = vmatprep.subr.mxu0 0.0
    %1658 = vmatpush1.msra.mxu0 0.0
    %1659 = vmatprep.subr.mxu0 0.0
    %1660 = vmatpush1.msra.mxu0 0.0
    %1661 = vmatprep.subr.mxu0 0.0
    %1662 = vmatpush1.msra.mxu0 0.0
    %1663 = vmatprep.subr.mxu0 0.0
    %1664 = vmatpush1.msra.mxu0 0.0
    %1665 = vmatprep.subr.mxu0 0.0
    %1666 = vmatpush1.msra.mxu0 0.0
    %1667 = vmatprep.subr.mxu0 0.0
    %1668 = vmatpush1.msra.mxu0 0.0
    %1669 = vmatprep.subr.mxu0 0.0
    %1670 = vmatpush1.msra.mxu0 0.0
    %1671 = vmatprep.subr.mxu0 0.0
    %1672 = vmatpush1.msra.mxu0 0.0
    %1673 = vmatprep.subr.mxu0 0.0
    %1674 = vmatpush1.msra.mxu0 0.0
    %1675 = vmatprep.subr.mxu0 0.0
    %1676 = vmatpush1.msra.mxu0 0.0
    %1677 = vmatprep.subr.mxu0 0.0
    %1678 = vmatpush1.msra.mxu0 0.0
    %1679 = vmatprep.subr.mxu0 0.0
    %1680 = vmatpush1.msra.mxu0 0.0
    %1681 = vmatprep.subr.mxu0 0.0
    %1682 = vmatpush1.msra.mxu0 0.0
    %1683 = vmatprep.subr.mxu0 0.0
    %1684 = vmatpush1.msra.mxu0 0.0
    %1685 = vmatprep.subr.mxu0 0.0
    %1686 = vmatpush1.msra.mxu0 0.0
    %1687 = vmatprep.subr.mxu0 0.0
    %1688 = vmatpush1.msra.mxu0 0.0
    %1689 = vmatprep.subr.mxu0 0.0
    %1690 = vmatpush1.msra.mxu0 0.0
    %1691 = vmatprep.subr.mxu0 0.0
    %1692 = vmatpush1.msra.mxu0 0.0
    %1693 = vmatprep.subr.mxu0 0.0
    %1694 = vmatpush1.msra.mxu0 0.0
    %1695 = vmatprep.subr.mxu0 0.0
    %1696 = vmatpush1.msra.mxu0 0.0
    %1697 = vmatprep.subr.mxu0 0.0
    %1698 = vmatpush1.msra.mxu0 0.0
    %1699 = vmatprep.subr.mxu0 0.0
    %1700 = vmatpush1.msra.mxu0 0.0
    %1701 = vmatprep.subr.mxu0 0.0
    %1702 = vmatpush1.msra.mxu0 0.0
    %1703 = vmatprep.subr.mxu0 0.0
    %1704 = vmatpush1.msra.mxu0 0.0
    %1705 = vmatprep.subr.mxu0 0.0
    %1706 = vmatpush1.msra.mxu0 0.0
    %1707 = vmatprep.subr.mxu0 0.0
    %1708 = vmatpush1.msra.mxu0 0.0
    %1709 = vmatprep.mubr.f32.mxu0 0.0
    %1710 = vmatmul.mubr.f32.gmra.mrb[0].mxu0 %v1643
    %v1711 = vpop.f32.mrb[0].mxu0
    %v1712 = vadd.f32 0.0, %v1711
    %v1713 = vpop.f32.mrb[0].mxu0
    %1714 = vdwg.mxu0
    %v1715 = vmul.f32 %v1621, %v509
    %v1716 = vmul.f32 %v1712, %v509
    %v1717 = vmul.f32 %v1715, %v1715
    %v1718 = vsub.f32 %v1716, %v1717
    %v1719 = vmax.f32 %v1718, 0.0
    %v1720 = vadd.f32 %v1719, 1e-05
    %v1721 = vrsqrt.pop %v1720
    %v1723 = vsel %vm243, %v1715, 0
    %1725 = vmatprep.subr.mxu0 0.0
    %1726 = vmatpush1.msra.mxu0 %v325
    %1727 = vmatprep.subr.mxu0 0.0
    %1728 = vmatpush1.msra.mxu0 0.0
    %1729 = vmatprep.subr.mxu0 0.0
    %1730 = vmatpush1.msra.mxu0 0.0
    %1731 = vmatprep.subr.mxu0 0.0
    %1732 = vmatpush1.msra.mxu0 0.0
    %1733 = vmatprep.subr.mxu0 0.0
    %1734 = vmatpush1.msra.mxu0 0.0
    %1735 = vmatprep.subr.mxu0 0.0
    %1736 = vmatpush1.msra.mxu0 0.0
    %1737 = vmatprep.subr.mxu0 0.0
    %1738 = vmatpush1.msra.mxu0 0.0
    %1739 = vmatprep.subr.mxu0 0.0
    %1740 = vmatpush1.msra.mxu0 0.0
    %1741 = vmatprep.subr.mxu0 0.0
    %1742 = vmatpush1.msra.mxu0 0.0
    %1743 = vmatprep.subr.mxu0 0.0
    %1744 = vmatpush1.msra.mxu0 0.0
    %1745 = vmatprep.subr.mxu0 0.0
    %1746 = vmatpush1.msra.mxu0 0.0
    %1747 = vmatprep.subr.mxu0 0.0
    %1748 = vmatpush1.msra.mxu0 0.0
    %1749 = vmatprep.subr.mxu0 0.0
    %1750 = vmatpush1.msra.mxu0 0.0
    %1751 = vmatprep.subr.mxu0 0.0
    %1752 = vmatpush1.msra.mxu0 0.0
    %1753 = vmatprep.subr.mxu0 0.0
    %1754 = vmatpush1.msra.mxu0 0.0
    %1755 = vmatprep.subr.mxu0 0.0
    %1756 = vmatpush1.msra.mxu0 0.0
    %1757 = vmatprep.subr.mxu0 0.0
    %1758 = vmatpush1.msra.mxu0 0.0
    %1759 = vmatprep.subr.mxu0 0.0
    %1760 = vmatpush1.msra.mxu0 0.0
    %1761 = vmatprep.subr.mxu0 0.0
    %1762 = vmatpush1.msra.mxu0 0.0
    %1763 = vmatprep.subr.mxu0 0.0
    %1764 = vmatpush1.msra.mxu0 0.0
    %1765 = vmatprep.subr.mxu0 0.0
    %1766 = vmatpush1.msra.mxu0 0.0
    %1767 = vmatprep.subr.mxu0 0.0
    %1768 = vmatpush1.msra.mxu0 0.0
    %1769 = vmatprep.subr.mxu0 0.0
    %1770 = vmatpush1.msra.mxu0 0.0
    %1771 = vmatprep.subr.mxu0 0.0
    %1772 = vmatpush1.msra.mxu0 0.0
    %1773 = vmatprep.subr.mxu0 0.0
    %1774 = vmatpush1.msra.mxu0 0.0
    %1775 = vmatprep.subr.mxu0 0.0
    %1776 = vmatpush1.msra.mxu0 0.0
    %1777 = vmatprep.subr.mxu0 0.0
    %1778 = vmatpush1.msra.mxu0 0.0
    %1779 = vmatprep.subr.mxu0 0.0
    %1780 = vmatpush1.msra.mxu0 0.0
    %1781 = vmatprep.subr.mxu0 0.0
    %1782 = vmatpush1.msra.mxu0 0.0
    %1783 = vmatprep.subr.mxu0 0.0
    %1784 = vmatpush1.msra.mxu0 0.0
    %1785 = vmatprep.subr.mxu0 0.0
    %1786 = vmatpush1.msra.mxu0 0.0
    %1787 = vmatprep.subr.mxu0 0.0
    %1788 = vmatpush1.msra.mxu0 0.0
    %1789 = vmatprep.mubr.f32.mxu0 0.0
    %1790 = vmatmul.mubr.f32.gmra.mrb[0].mxu0 %v1723
    %v1791 = vpop.f32.mrb[0].mxu0
    %v1792 = vadd.f32 0.0, %v1791
    %v1793 = vpop.f32.mrb[0].mxu0
    %1794 = vdwg.mxu0
    %v1796 = vsel %vm243, %v1721, 0
    %1798 = vmatprep.subr.mxu0 0.0
    %1799 = vmatpush1.msra.mxu0 %v325
    %1800 = vmatprep.subr.mxu0 0.0
    %1801 = vmatpush1.msra.mxu0 0.0
    %1802 = vmatprep.subr.mxu0 0.0
    %1803 = vmatpush1.msra.mxu0 0.0
    %1804 = vmatprep.subr.mxu0 0.0
    %1805 = vmatpush1.msra.mxu0 0.0
    %1806 = vmatprep.subr.mxu0 0.0
    %1807 = vmatpush1.msra.mxu0 0.0
    %1808 = vmatprep.subr.mxu0 0.0
    %1809 = vmatpush1.msra.mxu0 0.0
    %1810 = vmatprep.subr.mxu0 0.0
    %1811 = vmatpush1.msra.mxu0 0.0
    %1812 = vmatprep.subr.mxu0 0.0
    %1813 = vmatpush1.msra.mxu0 0.0
    %1814 = vmatprep.subr.mxu0 0.0
    %1815 = vmatpush1.msra.mxu0 0.0
    %1816 = vmatprep.subr.mxu0 0.0
    %1817 = vmatpush1.msra.mxu0 0.0
    %1818 = vmatprep.subr.mxu0 0.0
    %1819 = vmatpush1.msra.mxu0 0.0
    %1820 = vmatprep.subr.mxu0 0.0
    %1821 = vmatpush1.msra.mxu0 0.0
    %1822 = vmatprep.subr.mxu0 0.0
    %1823 = vmatpush1.msra.mxu0 0.0
    %1824 = vmatprep.subr.mxu0 0.0
    %1825 = vmatpush1.msra.mxu0 0.0
    %1826 = vmatprep.subr.mxu0 0.0
    %1827 = vmatpush1.msra.mxu0 0.0
    %1828 = vmatprep.subr.mxu0 0.0
    %1829 = vmatpush1.msra.mxu0 0.0
    %1830 = vmatprep.subr.mxu0 0.0
    %1831 = vmatpush1.msra.mxu0 0.0
    %1832 = vmatprep.subr.mxu0 0.0
    %1833 = vmatpush1.msra.mxu0 0.0
    %1834 = vmatprep.subr.mxu0 0.0
    %1835 = vmatpush1.msra.mxu0 0.0
    %1836 = vmatprep.subr.mxu0 0.0
    %1837 = vmatpush1.msra.mxu0 0.0
    %1838 = vmatprep.subr.mxu0 0.0
    %1839 = vmatpush1.msra.mxu0 0.0
    %1840 = vmatprep.subr.mxu0 0.0
    %1841 = vmatpush1.msra.mxu0 0.0
    %1842 = vmatprep.subr.mxu0 0.0
    %1843 = vmatpush1.msra.mxu0 0.0
    %1844 = vmatprep.subr.mxu0 0.0
    %1845 = vmatpush1.msra.mxu0 0.0
    %1846 = vmatprep.subr.mxu0 0.0
    %1847 = vmatpush1.msra.mxu0 0.0
    %1848 = vmatprep.subr.mxu0 0.0
    %1849 = vmatpush1.msra.mxu0 0.0
    %1850 = vmatprep.subr.mxu0 0.0
    %1851 = vmatpush1.msra.mxu0 0.0
    %1852 = vmatprep.subr.mxu0 0.0
    %1853 = vmatpush1.msra.mxu0 0.0
    %1854 = vmatprep.subr.mxu0 0.0
    %1855 = vmatpush1.msra.mxu0 0.0
    %1856 = vmatprep.subr.mxu0 0.0
    %1857 = vmatpush1.msra.mxu0 0.0
    %1858 = vmatprep.subr.mxu0 0.0
    %1859 = vmatpush1.msra.mxu0 0.0
    %1860 = vmatprep.subr.mxu0 0.0
    %1861 = vmatpush1.msra.mxu0 0.0
    %1862 = vmatprep.mubr.f32.mxu0 0.0
    %1863 = vmatmul.mubr.f32.gmra.mrb[0].mxu0 %v1796
    %v1864 = vpop.f32.mrb[0].mxu0
    %v1865 = vadd.f32 0.0, %v1864
    %v1866 = vpop.f32.mrb[0].mxu0
    %1867 = vdwg.mxu0
    %v1870 = vunpack.c.l.s4 1966171168
    %v1871 = vunpack.c.0.s8 %v1870
    %v1872 = vlaneseq
    %v1873 = vshrl.u32 %v1872, 7
    %v1874 = vsub.s32 %v1871, %v1873
    %v1875 = vrot.slane %v1792, %v1874
    %v1876 = vcombine.high %v1875, %v1875
    %v1878 = vunpack.c.l.s4 1966171168
    %v1879 = vunpack.c.0.s8 %v1878
    %v1880 = vlaneseq
    %v1881 = vshrl.u32 %v1880, 7
    %v1882 = vsub.s32 %v1879, %v1881
    %v1883 = vrot.slane %v1875, %v1882
    %v1885 = vunpack.c.l.s4 1966171168
    %v1886 = vunpack.c.0.s8 %v1885
    %v1887 = vlaneseq
    %v1888 = vshrl.u32 %v1887, 7
    %v1889 = vsub.s32 %v1886, %v1888
    %v1890 = vrot.slane %v1876, %v1889
    %v1891 = vlaneseq
    %v1892 = vshrl.u32 %v1891, 7
    %v1893 = vsub.s32 0, %v1892
    %v1894 = vrot.slane %v1883, %v1893
    %v1895 = vlaneseq
    %v1896 = vshrl.u32 %v1895, 7
    %v1897 = vsub.s32 0, %v1896
    %v1898 = vrot.slane %v1890, %v1897
    %v1901 = vsub.f32 %v1527, %v1894
    %v1902 = vsub.f32 %v1530, %v1898
    %v1905 = vunpack.c.l.s4 1966171168
    %v1906 = vunpack.c.0.s8 %v1905
    %v1907 = vlaneseq
    %v1908 = vshrl.u32 %v1907, 7
    %v1909 = vsub.s32 %v1906, %v1908
    %v1910 = vrot.slane %v1865, %v1909
    %v1911 = vcombine.high %v1910, %v1910
    %v1913 = vunpack.c.l.s4 1966171168
    %v1914 = vunpack.c.0.s8 %v1913
    %v1915 = vlaneseq
    %v1916 = vshrl.u32 %v1915, 7
    %v1917 = vsub.s32 %v1914, %v1916
    %v1918 = vrot.slane %v1910, %v1917
    %v1920 = vunpack.c.l.s4 1966171168
    %v1921 = vunpack.c.0.s8 %v1920
    %v1922 = vlaneseq
    %v1923 = vshrl.u32 %v1922, 7
    %v1924 = vsub.s32 %v1921, %v1923
    %v1925 = vrot.slane %v1911, %v1924
    %v1926 = vlaneseq
    %v1927 = vshrl.u32 %v1926, 7
    %v1928 = vsub.s32 0, %v1927
    %v1929 = vrot.slane %v1918, %v1928
    %v1930 = vlaneseq
    %v1931 = vshrl.u32 %v1930, 7
    %v1932 = vsub.s32 0, %v1931
    %v1933 = vrot.slane %v1925, %v1932
    %v1936 = vmul.f32 %v1901, %v1929
    %v1937 = vmul.f32 %v1902, %v1933
    %v1938 = vlaneseq
    %v1939 = vshrl.u32 %v1938, 7
    %v1940 = vsub.s32 0, %v1939
    %v1941 = vrot.slane %v1533, %v1940
    %v1942 = vmul.f32 %v1936, %v1941
    %v1943 = vmul.f32 %v1937, %v1941
    %v1944 = vlaneseq
    %v1945 = vshrl.u32 %v1944, 7
    %v1946 = vsub.s32 0, %v1945
    %v1947 = vrot.slane %v1534, %v1946
    %v1948 = vadd.f32 %v1942, %v1947
    %v1949 = vadd.f32 %v1943, %v1947
    %v1950 = vmax.f32 %v1948, 0.0
    %v1951 = vmax.f32 %v1949, 0.0
    %v1952 = vand.u32 2147483647, %v1948
    %v1953 = vand.u32 2147483647, %v1949
    %v1954 = vsub.f32 0.0, %v1952
    %v1955 = vsub.f32 0.0, %v1953
    %v1956 = vmul.f32 %v1954, 1.442695
    %v1957 = vpow.pop %v1956
    %v1958 = vmul.f32 %v1955, 1.442695
    %v1959 = vpow.pop %v1958
    %v1960 = vadd.f32 %v1957, 1.0
    %v1961 = vadd.f32 %v1959, 1.0
    %v1962 = vlog2.pop %v1960
    %v1963 = vmul.f32 %v1962, 0.6931472
    %v1964 = vlog2.pop %v1961
    %v1965 = vmul.f32 %v1964, 0.6931472
    %v1966 = vadd.f32 %v1950, %v1963
    %v1967 = vadd.f32 %v1951, %v1965
    %v1968 = vtanh.pop %v1966
    %v1969 = vtanh.pop %v1967
    %v1970 = vmul.f32 %v1948, %v1968
    %v1971 = vmul.f32 %v1949, %v1969
    %1974 = vrot.lane.b32.xlu0 %v1970, 32
    %v1975 = vpop.permute.xlu0 %1974
    %1976 = vrot.lane.b32.xlu0 %v1971, 32
    %v1977 = vpop.permute.xlu0 %1976
    %v1980 = vmul.f32 %v793, %v1975
    %v1981 = vmul.f32 %v797, %v1977
    %v1982 = vadd.f32 %v1980, %v803
    %v1983 = vadd.f32 %v1981, %v805
    %v1986 = vrot.slane %v1982, 6
    %v1987 = vrot.slane %v1983, 6
    %1988 = vrot.lane.b32.xlu0 %v1986, 96
    %v1989 = vpop.permute.xlu0 %1988
    %1990 = vrot.lane.b32.xlu0 %v1987, 96
    %v1991 = vpop.permute.xlu0 %1990
    %v1994 = vsel %vm179, 0.0, %v1989
    %v1995 = vsel %vm179, 0.0, %v1991
    %v1996 = vsel %vm179, %v1989, 0.0
    %v1997 = vsel %vm179, %v1991, 0.0
    %v2002 = vrot.slane %v1994, 1
    %v2003 = vrot.slane %v1996, 1
    %v2004 = vsel %vm188, %v2002, %v2003
    %v2005 = vrot.slane %v1995, 1
    %v2006 = vrot.slane %v1997, 1
    %v2007 = vsel %vm188, %v2005, %v2006
    %2008 = vrot.lane.b32.xlu0 %v2004, 16
    %v2009 = vpop.permute.xlu0 %2008
    %2010 = vrot.lane.b32.xlu0 %v2007, 16
    %v2011 = vpop.permute.xlu0 %2010
    %v2014 = vrot.slane %v1994, 2
    %v2015 = vrot.slane %v1996, 2
    %v2016 = vsel %vm201, %v2014, %v2015
    %v2017 = vrot.slane %v1995, 2
    %v2018 = vrot.slane %v1997, 2
    %v2019 = vsel %vm201, %v2017, %v2018
    %2020 = vrot.lane.b32.xlu0 %v2016, 32
    %v2021 = vpop.permute.xlu0 %2020
    %2022 = vrot.lane.b32.xlu0 %v2019, 32
    %v2023 = vpop.permute.xlu0 %2022
    %v2026 = vrot.slane %v1994, 3
    %v2027 = vrot.slane %v1996, 3
    %v2028 = vsel %vm214, %v2026, %v2027
    %v2029 = vrot.slane %v1995, 3
    %v2030 = vrot.slane %v1997, 3
    %v2031 = vsel %vm214, %v2029, %v2030
    %2032 = vrot.lane.b32.xlu0 %v2028, 48
    %v2033 = vpop.permute.xlu0 %2032
    %2034 = vrot.lane.b32.xlu0 %v2031, 48
    %v2035 = vpop.permute.xlu0 %2034
    %v2038 = vrot.slane %v1994, 4
    %v2039 = vrot.slane %v1996, 4
    %v2040 = vsel %vm227, %v2038, %v2039
    %v2041 = vrot.slane %v1995, 4
    %v2042 = vrot.slane %v1997, 4
    %v2043 = vsel %vm227, %v2041, %v2042
    %2044 = vrot.lane.b32.xlu0 %v2040, 64
    %v2045 = vpop.permute.xlu0 %2044
    %2046 = vrot.lane.b32.xlu0 %v2043, 64
    %v2047 = vpop.permute.xlu0 %2046
    %v2050 = vsel %vm88, %v1994, %v2009
    %v2051 = vsel %vm88, %v1995, %v2011
    %v2052 = vsel %vm874, %v2050, %v2021
    %v2053 = vsel %vm874, %v2051, %v2023
    %v2054 = vsel %vm877, %v2052, %v2033
    %v2055 = vsel %vm877, %v2053, %v2035
    %v2056 = vsel %vm880, %v2054, %v2045
    %v2057 = vsel %vm880, %v2055, %v2047
    %v2058 = vld [vmem:[#allocation2 + $0x120] sm:$0xff]
    %v2059 = vld [vmem:[#allocation2 + $0x128] sm:$0xff]
    %v2060 = vld [vmem:[#allocation2 + $0x130] sm:$0xff]
    %v2061 = vld [vmem:[#allocation2 + $0x138] sm:$0xff]
    %v2062 = vld [vmem:[#allocation2 + $0x140] sm:$0xff]
    %v2063 = vld [vmem:[#allocation2 + $0x148] sm:$0xff]
    %v2064 = vld [vmem:[#allocation2 + $0x150] sm:$0xff]
    %v2065 = vld [vmem:[#allocation2 + $0x158] sm:$0xff]
    %v2066 = vld [vmem:[#allocation2 + $0x160] sm:$0xff]
    %v2067 = vld [vmem:[#allocation2 + $0x168] sm:$0xff]
    %v2068 = vpack.c.bf16 %v2057, %v2056
    %v2069 = vpack.c.bf16 %v2059, %v2058
    %v2070 = vpack.c.bf16 %v2061, %v2060
    %v2071 = vpack.c.bf16 %v2063, %v2062
    %v2072 = vpack.c.bf16 %v2065, %v2064
    %v2073 = vpack.c.bf16 %v2067, %v2066
    %v2074 = vld [vmem:[#allocation2 + $0x170] sm:$0x1]
    %v2075 = vlaneseq
    %v2076 = vshrl.u32 %v2075, 7
    %v2077 = vsub.s32 0, %v2076
    %v2078 = vrot.slane %v2074, %v2077
    %v2080 = vsel %vm904, %v2068, 0
    %2082 = vmatprep.subr.bf16.mxu0 0
    %2083 = vmatpush1.bf16.msra.mxu0 %v2069
    %2084 = vmatprep.subr.bf16.mxu0 0
    %2085 = vmatpush1.bf16.msra.mxu0 %v2070
    %2086 = vmatprep.subr.bf16.mxu0 0
    %2087 = vmatpush1.bf16.msra.mxu0 %v2071
    %2088 = vmatprep.subr.bf16.mxu0 0
    %2089 = vmatpush1.bf16.msra.mxu0 %v2072
    %2090 = vmatprep.subr.bf16.mxu0 0
    %2091 = vmatpush1.bf16.msra.mxu0 %v2073
    %2092 = vmatprep.subr.bf16.mxu0 0
    %2093 = vmatpush1.bf16.msra.mxu0 0
    %2094 = vmatprep.subr.bf16.mxu0 0
    %2095 = vmatpush1.bf16.msra.mxu0 0
    %2096 = vmatprep.subr.bf16.mxu0 0
    %2097 = vmatpush1.bf16.msra.mxu0 0
    %2098 = vmatprep.subr.bf16.mxu0 0
    %2099 = vmatpush1.bf16.msra.mxu0 0
    %2100 = vmatprep.subr.bf16.mxu0 0
    %2101 = vmatpush1.bf16.msra.mxu0 0
    %2102 = vmatprep.subr.bf16.mxu0 0
    %2103 = vmatpush1.bf16.msra.mxu0 0
    %2104 = vmatprep.subr.bf16.mxu0 0
    %2105 = vmatpush1.bf16.msra.mxu0 0
    %2106 = vmatprep.subr.bf16.mxu0 0
    %2107 = vmatpush1.bf16.msra.mxu0 0
    %2108 = vmatprep.subr.bf16.mxu0 0
    %2109 = vmatpush1.bf16.msra.mxu0 0
    %2110 = vmatprep.subr.bf16.mxu0 0
    %2111 = vmatpush1.bf16.msra.mxu0 0
    %2112 = vmatprep.subr.bf16.mxu0 0
    %2113 = vmatpush1.bf16.msra.mxu0 0
    %2114 = vmatprep.mubr.bf16.mxu0 0
    %2115 = vmatmul.mubr.bf16.gmra.mrb[0].mxu0 %v2080
    %v2116 = vpop.f32.mrb[0].mxu0
    %v2117 = vadd.f32 %v2078, %v2116
    %v2118 = vpop.f32.mrb[0].mxu0
    %v2119 = vpop.f32.mrb[0].mxu0
    %v2120 = vadd.f32 %v2078, %v2119
    %v2121 = vpop.f32.mrb[0].mxu0
    %2122 = vdwg.mxu0
    %v2123 = vld [vmem:[#allocation2 + $0x178] sm:$0x1]
    %v2124 = vld [vmem:[#allocation2 + $0x180] sm:$0x1]
    %v2125 = vsel %vm88, %v2117, 0.0
    %v2126 = vrot.slane %v2125, 4
    %v2127 = vadd.f32 %v2125, %v2126
    %v2128 = vrot.slane %v2127, 2
    %v2129 = vadd.f32 %v2127, %v2128
    %v2130 = vrot.slane %v2129, 1
    %v2131 = vadd.f32 %v2129, %v2130
    %v2132 = vsel %vm88, %v2120, 0.0
    %v2133 = vrot.slane %v2132, 4
    %v2134 = vadd.f32 %v2132, %v2133
    %v2135 = vrot.slane %v2134, 2
    %v2136 = vadd.f32 %v2134, %v2135
    %v2137 = vrot.slane %v2136, 1
    %v2138 = vadd.f32 %v2136, %v2137
    %v2141 = vsel %vm344, %v2138, %v2131
    %v2142 = vsel %vm88, %v2141, 0
    %2144 = vmatprep.subr.mxu0 0.0
    %2145 = vmatpush1.msra.mxu0 %v323
    %2146 = vmatprep.subr.mxu0 0.0
    %2147 = vmatpush1.msra.mxu0 %v324
    %2148 = vmatprep.subr.mxu0 0.0
    %2149 = vmatpush1.msra.mxu0 0.0
    %2150 = vmatprep.subr.mxu0 0.0
    %2151 = vmatpush1.msra.mxu0 0.0
    %2152 = vmatprep.subr.mxu0 0.0
    %2153 = vmatpush1.msra.mxu0 0.0
    %2154 = vmatprep.subr.mxu0 0.0
    %2155 = vmatpush1.msra.mxu0 0.0
    %2156 = vmatprep.subr.mxu0 0.0
    %2157 = vmatpush1.msra.mxu0 0.0
    %2158 = vmatprep.subr.mxu0 0.0
    %2159 = vmatpush1.msra.mxu0 0.0
    %2160 = vmatprep.subr.mxu0 0.0
    %2161 = vmatpush1.msra.mxu0 0.0
    %2162 = vmatprep.subr.mxu0 0.0
    %2163 = vmatpush1.msra.mxu0 0.0
    %2164 = vmatprep.subr.mxu0 0.0
    %2165 = vmatpush1.msra.mxu0 0.0
    %2166 = vmatprep.subr.mxu0 0.0
    %2167 = vmatpush1.msra.mxu0 0.0
    %2168 = vmatprep.subr.mxu0 0.0
    %2169 = vmatpush1.msra.mxu0 0.0
    %2170 = vmatprep.subr.mxu0 0.0
    %2171 = vmatpush1.msra.mxu0 0.0
    %2172 = vmatprep.subr.mxu0 0.0
    %2173 = vmatpush1.msra.mxu0 0.0
    %2174 = vmatprep.subr.mxu0 0.0
    %2175 = vmatpush1.msra.mxu0 0.0
    %2176 = vmatprep.subr.mxu0 0.0
    %2177 = vmatpush1.msra.mxu0 0.0
    %2178 = vmatprep.subr.mxu0 0.0
    %2179 = vmatpush1.msra.mxu0 0.0
    %2180 = vmatprep.subr.mxu0 0.0
    %2181 = vmatpush1.msra.mxu0 0.0
    %2182 = vmatprep.subr.mxu0 0.0
    %2183 = vmatpush1.msra.mxu0 0.0
    %2184 = vmatprep.subr.mxu0 0.0
    %2185 = vmatpush1.msra.mxu0 0.0
    %2186 = vmatprep.subr.mxu0 0.0
    %2187 = vmatpush1.msra.mxu0 0.0
    %2188 = vmatprep.subr.mxu0 0.0
    %2189 = vmatpush1.msra.mxu0 0.0
    %2190 = vmatprep.subr.mxu0 0.0
    %2191 = vmatpush1.msra.mxu0 0.0
    %2192 = vmatprep.subr.mxu0 0.0
    %2193 = vmatpush1.msra.mxu0 0.0
    %2194 = vmatprep.subr.mxu0 0.0
    %2195 = vmatpush1.msra.mxu0 0.0
    %2196 = vmatprep.subr.mxu0 0.0
    %2197 = vmatpush1.msra.mxu0 0.0
    %2198 = vmatprep.subr.mxu0 0.0
    %2199 = vmatpush1.msra.mxu0 0.0
    %2200 = vmatprep.subr.mxu0 0.0
    %2201 = vmatpush1.msra.mxu0 0.0
    %2202 = vmatprep.subr.mxu0 0.0
    %2203 = vmatpush1.msra.mxu0 0.0
    %2204 = vmatprep.subr.mxu0 0.0
    %2205 = vmatpush1.msra.mxu0 0.0
    %2206 = vmatprep.subr.mxu0 0.0
    %2207 = vmatpush1.msra.mxu0 0.0
    %2208 = vmatprep.mubr.f32.mxu0 0.0
    %2209 = vmatmul.mubr.f32.gmra.mrb[0].mxu0 %v2142
    %v2210 = vpop.f32.mrb[0].mxu0
    %v2211 = vadd.f32 0.0, %v2210
    %v2212 = vpop.f32.mrb[0].mxu0
    %2213 = vdwg.mxu0
    %v2214 = vmul.f32 %v2117, %v2117
    %v2215 = vmul.f32 %v2120, %v2120
    %v2216 = vsel %vm88, %v2214, 0.0
    %v2217 = vrot.slane %v2216, 4
    %v2218 = vadd.f32 %v2216, %v2217
    %v2219 = vrot.slane %v2218, 2
    %v2220 = vadd.f32 %v2218, %v2219
    %v2221 = vrot.slane %v2220, 1
    %v2222 = vadd.f32 %v2220, %v2221
    %v2223 = vsel %vm88, %v2215, 0.0
    %v2224 = vrot.slane %v2223, 4
    %v2225 = vadd.f32 %v2223, %v2224
    %v2226 = vrot.slane %v2225, 2
    %v2227 = vadd.f32 %v2225, %v2226
    %v2228 = vrot.slane %v2227, 1
    %v2229 = vadd.f32 %v2227, %v2228
    %v2232 = vsel %vm344, %v2229, %v2222
    %v2233 = vsel %vm88, %v2232, 0
    %2235 = vmatprep.subr.mxu0 0.0
    %2236 = vmatpush1.msra.mxu0 %v323
    %2237 = vmatprep.subr.mxu0 0.0
    %2238 = vmatpush1.msra.mxu0 %v324
    %2239 = vmatprep.subr.mxu0 0.0
    %2240 = vmatpush1.msra.mxu0 0.0
    %2241 = vmatprep.subr.mxu0 0.0
    %2242 = vmatpush1.msra.mxu0 0.0
    %2243 = vmatprep.subr.mxu0 0.0
    %2244 = vmatpush1.msra.mxu0 0.0
    %2245 = vmatprep.subr.mxu0 0.0
    %2246 = vmatpush1.msra.mxu0 0.0
    %2247 = vmatprep.subr.mxu0 0.0
    %2248 = vmatpush1.msra.mxu0 0.0
    %2249 = vmatprep.subr.mxu0 0.0
    %2250 = vmatpush1.msra.mxu0 0.0
    %2251 = vmatprep.subr.mxu0 0.0
    %2252 = vmatpush1.msra.mxu0 0.0
    %2253 = vmatprep.subr.mxu0 0.0
    %2254 = vmatpush1.msra.mxu0 0.0
    %2255 = vmatprep.subr.mxu0 0.0
    %2256 = vmatpush1.msra.mxu0 0.0
    %2257 = vmatprep.subr.mxu0 0.0
    %2258 = vmatpush1.msra.mxu0 0.0
    %2259 = vmatprep.subr.mxu0 0.0
    %2260 = vmatpush1.msra.mxu0 0.0
    %2261 = vmatprep.subr.mxu0 0.0
    %2262 = vmatpush1.msra.mxu0 0.0
    %2263 = vmatprep.subr.mxu0 0.0
    %2264 = vmatpush1.msra.mxu0 0.0
    %2265 = vmatprep.subr.mxu0 0.0
    %2266 = vmatpush1.msra.mxu0 0.0
    %2267 = vmatprep.subr.mxu0 0.0
    %2268 = vmatpush1.msra.mxu0 0.0
    %2269 = vmatprep.subr.mxu0 0.0
    %2270 = vmatpush1.msra.mxu0 0.0
    %2271 = vmatprep.subr.mxu0 0.0
    %2272 = vmatpush1.msra.mxu0 0.0
    %2273 = vmatprep.subr.mxu0 0.0
    %2274 = vmatpush1.msra.mxu0 0.0
    %2275 = vmatprep.subr.mxu0 0.0
    %2276 = vmatpush1.msra.mxu0 0.0
    %2277 = vmatprep.subr.mxu0 0.0
    %2278 = vmatpush1.msra.mxu0 0.0
    %2279 = vmatprep.subr.mxu0 0.0
    %2280 = vmatpush1.msra.mxu0 0.0
    %2281 = vmatprep.subr.mxu0 0.0
    %2282 = vmatpush1.msra.mxu0 0.0
    %2283 = vmatprep.subr.mxu0 0.0
    %2284 = vmatpush1.msra.mxu0 0.0
    %2285 = vmatprep.subr.mxu0 0.0
    %2286 = vmatpush1.msra.mxu0 0.0
    %2287 = vmatprep.subr.mxu0 0.0
    %2288 = vmatpush1.msra.mxu0 0.0
    %2289 = vmatprep.subr.mxu0 0.0
    %2290 = vmatpush1.msra.mxu0 0.0
    %2291 = vmatprep.subr.mxu0 0.0
    %2292 = vmatpush1.msra.mxu0 0.0
    %2293 = vmatprep.subr.mxu0 0.0
    %2294 = vmatpush1.msra.mxu0 0.0
    %2295 = vmatprep.subr.mxu0 0.0
    %2296 = vmatpush1.msra.mxu0 0.0
    %2297 = vmatprep.subr.mxu0 0.0
    %2298 = vmatpush1.msra.mxu0 0.0
    %2299 = vmatprep.mubr.f32.mxu0 0.0
    %2300 = vmatmul.mubr.f32.gmra.mrb[0].mxu0 %v2233
    %v2301 = vpop.f32.mrb[0].mxu0
    %v2302 = vadd.f32 0.0, %v2301
    %v2303 = vpop.f32.mrb[0].mxu0
    %2304 = vdwg.mxu0
    %v2305 = vmul.f32 %v2211, %v509
    %v2306 = vmul.f32 %v2302, %v509
    %v2307 = vmul.f32 %v2305, %v2305
    %v2308 = vsub.f32 %v2306, %v2307
    %v2309 = vmax.f32 %v2308, 0.0
    %v2310 = vadd.f32 %v2309, 1e-05
    %v2311 = vrsqrt.pop %v2310
    %v2313 = vsel %vm243, %v2305, 0
    %2315 = vmatprep.subr.mxu0 0.0
    %2316 = vmatpush1.msra.mxu0 %v325
    %2317 = vmatprep.subr.mxu0 0.0
    %2318 = vmatpush1.msra.mxu0 0.0
    %2319 = vmatprep.subr.mxu0 0.0
    %2320 = vmatpush1.msra.mxu0 0.0
    %2321 = vmatprep.subr.mxu0 0.0
    %2322 = vmatpush1.msra.mxu0 0.0
    %2323 = vmatprep.subr.mxu0 0.0
    %2324 = vmatpush1.msra.mxu0 0.0
    %2325 = vmatprep.subr.mxu0 0.0
    %2326 = vmatpush1.msra.mxu0 0.0
    %2327 = vmatprep.subr.mxu0 0.0
    %2328 = vmatpush1.msra.mxu0 0.0
    %2329 = vmatprep.subr.mxu0 0.0
    %2330 = vmatpush1.msra.mxu0 0.0
    %2331 = vmatprep.subr.mxu0 0.0
    %2332 = vmatpush1.msra.mxu0 0.0
    %2333 = vmatprep.subr.mxu0 0.0
    %2334 = vmatpush1.msra.mxu0 0.0
    %2335 = vmatprep.subr.mxu0 0.0
    %2336 = vmatpush1.msra.mxu0 0.0
    %2337 = vmatprep.subr.mxu0 0.0
    %2338 = vmatpush1.msra.mxu0 0.0
    %2339 = vmatprep.subr.mxu0 0.0
    %2340 = vmatpush1.msra.mxu0 0.0
    %2341 = vmatprep.subr.mxu0 0.0
    %2342 = vmatpush1.msra.mxu0 0.0
    %2343 = vmatprep.subr.mxu0 0.0
    %2344 = vmatpush1.msra.mxu0 0.0
    %2345 = vmatprep.subr.mxu0 0.0
    %2346 = vmatpush1.msra.mxu0 0.0
    %2347 = vmatprep.subr.mxu0 0.0
    %2348 = vmatpush1.msra.mxu0 0.0
    %2349 = vmatprep.subr.mxu0 0.0
    %2350 = vmatpush1.msra.mxu0 0.0
    %2351 = vmatprep.subr.mxu0 0.0
    %2352 = vmatpush1.msra.mxu0 0.0
    %2353 = vmatprep.subr.mxu0 0.0
    %2354 = vmatpush1.msra.mxu0 0.0
    %2355 = vmatprep.subr.mxu0 0.0
    %2356 = vmatpush1.msra.mxu0 0.0
    %2357 = vmatprep.subr.mxu0 0.0
    %2358 = vmatpush1.msra.mxu0 0.0
    %2359 = vmatprep.subr.mxu0 0.0
    %2360 = vmatpush1.msra.mxu0 0.0
    %2361 = vmatprep.subr.mxu0 0.0
    %2362 = vmatpush1.msra.mxu0 0.0
    %2363 = vmatprep.subr.mxu0 0.0
    %2364 = vmatpush1.msra.mxu0 0.0
    %2365 = vmatprep.subr.mxu0 0.0
    %2366 = vmatpush1.msra.mxu0 0.0
    %2367 = vmatprep.subr.mxu0 0.0
    %2368 = vmatpush1.msra.mxu0 0.0
    %2369 = vmatprep.subr.mxu0 0.0
    %2370 = vmatpush1.msra.mxu0 0.0
    %2371 = vmatprep.subr.mxu0 0.0
    %2372 = vmatpush1.msra.mxu0 0.0
    %2373 = vmatprep.subr.mxu0 0.0
    %2374 = vmatpush1.msra.mxu0 0.0
    %2375 = vmatprep.subr.mxu0 0.0
    %2376 = vmatpush1.msra.mxu0 0.0
    %2377 = vmatprep.subr.mxu0 0.0
    %2378 = vmatpush1.msra.mxu0 0.0
    %2379 = vmatprep.mubr.f32.mxu0 0.0
    %2380 = vmatmul.mubr.f32.gmra.mrb[0].mxu0 %v2313
    %v2381 = vpop.f32.mrb[0].mxu0
    %v2382 = vadd.f32 0.0, %v2381
    %v2383 = vpop.f32.mrb[0].mxu0
    %2384 = vdwg.mxu0
    %v2386 = vsel %vm243, %v2311, 0
    %2388 = vmatprep.subr.mxu0 0.0
    %2389 = vmatpush1.msra.mxu0 %v325
    %2390 = vmatprep.subr.mxu0 0.0
    %2391 = vmatpush1.msra.mxu0 0.0
    %2392 = vmatprep.subr.mxu0 0.0
    %2393 = vmatpush1.msra.mxu0 0.0
    %2394 = vmatprep.subr.mxu0 0.0
    %2395 = vmatpush1.msra.mxu0 0.0
    %2396 = vmatprep.subr.mxu0 0.0
    %2397 = vmatpush1.msra.mxu0 0.0
    %2398 = vmatprep.subr.mxu0 0.0
    %2399 = vmatpush1.msra.mxu0 0.0
    %2400 = vmatprep.subr.mxu0 0.0
    %2401 = vmatpush1.msra.mxu0 0.0
    %2402 = vmatprep.subr.mxu0 0.0
    %2403 = vmatpush1.msra.mxu0 0.0
    %2404 = vmatprep.subr.mxu0 0.0
    %2405 = vmatpush1.msra.mxu0 0.0
    %2406 = vmatprep.subr.mxu0 0.0
    %2407 = vmatpush1.msra.mxu0 0.0
    %2408 = vmatprep.subr.mxu0 0.0
    %2409 = vmatpush1.msra.mxu0 0.0
    %2410 = vmatprep.subr.mxu0 0.0
    %2411 = vmatpush1.msra.mxu0 0.0
    %2412 = vmatprep.subr.mxu0 0.0
    %2413 = vmatpush1.msra.mxu0 0.0
    %2414 = vmatprep.subr.mxu0 0.0
    %2415 = vmatpush1.msra.mxu0 0.0
    %2416 = vmatprep.subr.mxu0 0.0
    %2417 = vmatpush1.msra.mxu0 0.0
    %2418 = vmatprep.subr.mxu0 0.0
    %2419 = vmatpush1.msra.mxu0 0.0
    %2420 = vmatprep.subr.mxu0 0.0
    %2421 = vmatpush1.msra.mxu0 0.0
    %2422 = vmatprep.subr.mxu0 0.0
    %2423 = vmatpush1.msra.mxu0 0.0
    %2424 = vmatprep.subr.mxu0 0.0
    %2425 = vmatpush1.msra.mxu0 0.0
    %2426 = vmatprep.subr.mxu0 0.0
    %2427 = vmatpush1.msra.mxu0 0.0
    %2428 = vmatprep.subr.mxu0 0.0
    %2429 = vmatpush1.msra.mxu0 0.0
    %2430 = vmatprep.subr.mxu0 0.0
    %2431 = vmatpush1.msra.mxu0 0.0
    %2432 = vmatprep.subr.mxu0 0.0
    %2433 = vmatpush1.msra.mxu0 0.0
    %2434 = vmatprep.subr.mxu0 0.0
    %2435 = vmatpush1.msra.mxu0 0.0
    %2436 = vmatprep.subr.mxu0 0.0
    %2437 = vmatpush1.msra.mxu0 0.0
    %2438 = vmatprep.subr.mxu0 0.0
    %2439 = vmatpush1.msra.mxu0 0.0
    %2440 = vmatprep.subr.mxu0 0.0
    %2441 = vmatpush1.msra.mxu0 0.0
    %2442 = vmatprep.subr.mxu0 0.0
    %2443 = vmatpush1.msra.mxu0 0.0
    %2444 = vmatprep.subr.mxu0 0.0
    %2445 = vmatpush1.msra.mxu0 0.0
    %2446 = vmatprep.subr.mxu0 0.0
    %2447 = vmatpush1.msra.mxu0 0.0
    %2448 = vmatprep.subr.mxu0 0.0
    %2449 = vmatpush1.msra.mxu0 0.0
    %2450 = vmatprep.subr.mxu0 0.0
    %2451 = vmatpush1.msra.mxu0 0.0
    %2452 = vmatprep.mubr.f32.mxu0 0.0
    %2453 = vmatmul.mubr.f32.gmra.mrb[0].mxu0 %v2386
    %v2454 = vpop.f32.mrb[0].mxu0
    %v2455 = vadd.f32 0.0, %v2454
    %v2456 = vpop.f32.mrb[0].mxu0
    %2457 = vdwg.mxu0
    %v2460 = vunpack.c.l.s4 1966171168
    %v2461 = vunpack.c.0.s8 %v2460
    %v2462 = vlaneseq
    %v2463 = vshrl.u32 %v2462, 7
    %v2464 = vsub.s32 %v2461, %v2463
    %v2465 = vrot.slane %v2382, %v2464
    %v2466 = vcombine.high %v2465, %v2465
    %v2468 = vunpack.c.l.s4 1966171168
    %v2469 = vunpack.c.0.s8 %v2468
    %v2470 = vlaneseq
    %v2471 = vshrl.u32 %v2470, 7
    %v2472 = vsub.s32 %v2469, %v2471
    %v2473 = vrot.slane %v2465, %v2472
    %v2475 = vunpack.c.l.s4 1966171168
    %v2476 = vunpack.c.0.s8 %v2475
    %v2477 = vlaneseq
    %v2478 = vshrl.u32 %v2477, 7
    %v2479 = vsub.s32 %v2476, %v2478
    %v2480 = vrot.slane %v2466, %v2479
    %v2481 = vlaneseq
    %v2482 = vshrl.u32 %v2481, 7
    %v2483 = vsub.s32 0, %v2482
    %v2484 = vrot.slane %v2473, %v2483
    %v2485 = vlaneseq
    %v2486 = vshrl.u32 %v2485, 7
    %v2487 = vsub.s32 0, %v2486
    %v2488 = vrot.slane %v2480, %v2487
    %v2491 = vsub.f32 %v2117, %v2484
    %v2492 = vsub.f32 %v2120, %v2488
    %v2495 = vunpack.c.l.s4 1966171168
    %v2496 = vunpack.c.0.s8 %v2495
    %v2497 = vlaneseq
    %v2498 = vshrl.u32 %v2497, 7
    %v2499 = vsub.s32 %v2496, %v2498
    %v2500 = vrot.slane %v2455, %v2499
    %v2501 = vcombine.high %v2500, %v2500
    %v2503 = vunpack.c.l.s4 1966171168
    %v2504 = vunpack.c.0.s8 %v2503
    %v2505 = vlaneseq
    %v2506 = vshrl.u32 %v2505, 7
    %v2507 = vsub.s32 %v2504, %v2506
    %v2508 = vrot.slane %v2500, %v2507
    %v2510 = vunpack.c.l.s4 1966171168
    %v2511 = vunpack.c.0.s8 %v2510
    %v2512 = vlaneseq
    %v2513 = vshrl.u32 %v2512, 7
    %v2514 = vsub.s32 %v2511, %v2513
    %v2515 = vrot.slane %v2501, %v2514
    %v2516 = vlaneseq
    %v2517 = vshrl.u32 %v2516, 7
    %v2518 = vsub.s32 0, %v2517
    %v2519 = vrot.slane %v2508, %v2518
    %v2520 = vlaneseq
    %v2521 = vshrl.u32 %v2520, 7
    %v2522 = vsub.s32 0, %v2521
    %v2523 = vrot.slane %v2515, %v2522
    %v2526 = vmul.f32 %v2491, %v2519
    %v2527 = vmul.f32 %v2492, %v2523
    %v2528 = vlaneseq
    %v2529 = vshrl.u32 %v2528, 7
    %v2530 = vsub.s32 0, %v2529
    %v2531 = vrot.slane %v2123, %v2530
    %v2532 = vmul.f32 %v2526, %v2531
    %v2533 = vmul.f32 %v2527, %v2531
    %v2534 = vlaneseq
    %v2535 = vshrl.u32 %v2534, 7
    %v2536 = vsub.s32 0, %v2535
    %v2537 = vrot.slane %v2124, %v2536
    %v2538 = vadd.f32 %v2532, %v2537
    %v2539 = vadd.f32 %v2533, %v2537
    %v2540 = vmax.f32 %v2538, 0.0
    %v2541 = vmax.f32 %v2539, 0.0
    %v2542 = vand.u32 2147483647, %v2538
    %v2543 = vand.u32 2147483647, %v2539
    %v2544 = vsub.f32 0.0, %v2542
    %v2545 = vsub.f32 0.0, %v2543
    %v2546 = vmul.f32 %v2544, 1.442695
    %v2547 = vpow.pop %v2546
    %v2548 = vmul.f32 %v2545, 1.442695
    %v2549 = vpow.pop %v2548
    %v2550 = vadd.f32 %v2547, 1.0
    %v2551 = vadd.f32 %v2549, 1.0
    %v2552 = vlog2.pop %v2550
    %v2553 = vmul.f32 %v2552, 0.6931472
    %v2554 = vlog2.pop %v2551
    %v2555 = vmul.f32 %v2554, 0.6931472
    %v2556 = vadd.f32 %v2540, %v2553
    %v2557 = vadd.f32 %v2541, %v2555
    %v2558 = vtanh.pop %v2556
    %v2559 = vtanh.pop %v2557
    %v2560 = vmul.f32 %v2538, %v2558
    %v2561 = vmul.f32 %v2539, %v2559
    %v2562 = vadd.f32 %v2560, %v1396
    %v2563 = vadd.f32 %v2561, %v1397
    %v2566 = vrot.slane %v2562, 7
    %v2567 = vrot.slane %v2563, 7
    %vm2570 = vcmask 1040384
    %v2571 = vsel %vm2570, 0.0, %v2566
    %v2572 = vsel %vm2570, 0.0, %v2567
    %v2573 = vsel %vm2570, %v2566, 0.0
    %v2574 = vsel %vm2570, %v2567, 0.0
    %v2579 = vrot.slane %v2571, 1
    %v2580 = vrot.slane %v2573, 1
    %v2581 = vsel %vm188, %v2579, %v2580
    %v2582 = vrot.slane %v2572, 1
    %v2583 = vrot.slane %v2574, 1
    %v2584 = vsel %vm188, %v2582, %v2583
    %2585 = vrot.lane.b32.xlu0 %v2581, 16
    %v2586 = vpop.permute.xlu0 %2585
    %2587 = vrot.lane.b32.xlu0 %v2584, 16
    %v2588 = vpop.permute.xlu0 %2587
    %v2591 = vrot.slane %v2571, 2
    %v2592 = vrot.slane %v2573, 2
    %v2593 = vsel %vm201, %v2591, %v2592
    %v2594 = vrot.slane %v2572, 2
    %v2595 = vrot.slane %v2574, 2
    %v2596 = vsel %vm201, %v2594, %v2595
    %2597 = vrot.lane.b32.xlu0 %v2593, 32
    %v2598 = vpop.permute.xlu0 %2597
    %2599 = vrot.lane.b32.xlu0 %v2596, 32
    %v2600 = vpop.permute.xlu0 %2599
    %v2603 = vsel %vm88, %v2571, %v2586
    %v2604 = vsel %vm88, %v2572, %v2588
    %v2605 = vsel %vm874, %v2603, %v2598
    %v2606 = vsel %vm874, %v2604, %v2600
    %v2607 = vld [vmem:[#allocation2 + $0x188] sm:$0xff]
    %v2608 = vld [vmem:[#allocation2 + $0x190] sm:$0xff]
    %v2609 = vld [vmem:[#allocation2 + $0x198] sm:$0xff]
    %v2610 = vld [vmem:[#allocation2 + $0x1a0] sm:$0xff]
    %v2611 = vld [vmem:[#allocation2 + $0x1a8] sm:$0xff]
    %v2612 = vld [vmem:[#allocation2 + $0x1b0] sm:$0xff]
    %v2613 = vpack.c.bf16 %v2606, %v2605
    %v2614 = vpack.c.bf16 %v2608, %v2607
    %v2615 = vpack.c.bf16 %v2610, %v2609
    %v2616 = vpack.c.bf16 %v2612, %v2611
    %v2618 = vsel %vm877, %v2613, 0
    %2620 = vmatprep.subr.bf16.mxu0 0
    %2621 = vmatpush1.bf16.msra.mxu0 %v2614
    %2622 = vmatprep.subr.bf16.mxu0 0
    %2623 = vmatpush1.bf16.msra.mxu0 %v2615
    %2624 = vmatprep.subr.bf16.mxu0 0
    %2625 = vmatpush1.bf16.msra.mxu0 %v2616
    %2626 = vmatprep.subr.bf16.mxu0 0
    %2627 = vmatpush1.bf16.msra.mxu0 0
    %2628 = vmatprep.subr.bf16.mxu0 0
    %2629 = vmatpush1.bf16.msra.mxu0 0
    %2630 = vmatprep.subr.bf16.mxu0 0
    %2631 = vmatpush1.bf16.msra.mxu0 0
    %2632 = vmatprep.subr.bf16.mxu0 0
    %2633 = vmatpush1.bf16.msra.mxu0 0
    %2634 = vmatprep.subr.bf16.mxu0 0
    %2635 = vmatpush1.bf16.msra.mxu0 0
    %2636 = vmatprep.subr.bf16.mxu0 0
    %2637 = vmatpush1.bf16.msra.mxu0 0
    %2638 = vmatprep.subr.bf16.mxu0 0
    %2639 = vmatpush1.bf16.msra.mxu0 0
    %2640 = vmatprep.subr.bf16.mxu0 0
    %2641 = vmatpush1.bf16.msra.mxu0 0
    %2642 = vmatprep.subr.bf16.mxu0 0
    %2643 = vmatpush1.bf16.msra.mxu0 0
    %2644 = vmatprep.subr.bf16.mxu0 0
    %2645 = vmatpush1.bf16.msra.mxu0 0
    %2646 = vmatprep.subr.bf16.mxu0 0
    %2647 = vmatpush1.bf16.msra.mxu0 0
    %2648 = vmatprep.subr.bf16.mxu0 0
    %2649 = vmatpush1.bf16.msra.mxu0 0
    %2650 = vmatprep.subr.bf16.mxu0 0
    %2651 = vmatpush1.bf16.msra.mxu0 0
    %2652 = vmatprep.mubr.bf16.mxu0 0
    %2653 = vmatmul.mubr.bf16.gmra.mrb[0].mxu0 %v2618
    %v2654 = vpop.f32.mrb[0].mxu0
    %v2655 = vadd.f32 0.0, %v2654
    %v2656 = vpop.f32.mrb[0].mxu0
    %v2657 = vpop.f32.mrb[0].mxu0
    %v2658 = vadd.f32 0.0, %v2657
    %v2659 = vpop.f32.mrb[0].mxu0
    %2660 = vdwg.mxu0
    %v2661 = vld [vmem:[#allocation2 + $0x1b8] sm:$0x1]
    %v2662 = vlaneseq
    %v2663 = vshrl.u32 %v2662, 7
    %v2664 = vsub.s32 0, %v2663
    %v2665 = vrot.slane %v2661, %v2664
    %v2666 = vadd.f32 %v2655, %v2665
    %v2667 = vadd.f32 %v2658, %v2665
    %v2668 = vld [vmem:[#allocation2 + $0x1d0] sm:$0x1]
    %v2669 = vlaneseq
    %v2670 = vshrl.u32 %v2669, 7
    %v2671 = vsub.s32 0, %v2670
    %v2672 = vrot.slane %v2668, %v2671
    %2674 = vrot.lane.b32.xlu0 %v2672, 32
    %v2675 = vpop.permute.xlu0 %2674
    %v2677 = vadd.f32 %v2655, %v2675
    %v2678 = vadd.f32 %v2658, %v2675
    %v2679 = vld [vmem:[#allocation2 + $0x250] sm:$0xff]
    %v2680 = vld [vmem:[#allocation2 + $0x258] sm:$0xff]
    %v2681 = vld [vmem:[#allocation2 + $0x260] sm:$0xff]
    %v2682 = vld [vmem:[#allocation2 + $0x268] sm:$0xff]
    %v2683 = vld [vmem:[#allocation2 + $0x270] sm:$0xff]
    %v2684 = vld [vmem:[#allocation2 + $0x1c0] sm:$0x1]
    %v2685 = vld [vmem:[#allocation2 + $0x1c8] sm:$0x1]
    %v2686 = vsel %vm874, %v2666, 0.0
    %v2687 = vrot.slane %v2686, 4
    %v2688 = vadd.f32 %v2686, %v2687
    %v2689 = vrot.slane %v2688, 2
    %v2690 = vadd.f32 %v2688, %v2689
    %v2691 = vrot.slane %v2690, 1
    %v2692 = vadd.f32 %v2690, %v2691
    %v2693 = vsel %vm874, %v2667, 0.0
    %v2694 = vrot.slane %v2693, 4
    %v2695 = vadd.f32 %v2693, %v2694
    %v2696 = vrot.slane %v2695, 2
    %v2697 = vadd.f32 %v2695, %v2696
    %v2698 = vrot.slane %v2697, 1
    %v2699 = vadd.f32 %v2697, %v2698
    %v2702 = vsel %vm344, %v2699, %v2692
    %v2703 = vsel %vm874, %v2702, 0
    %2705 = vmatprep.subr.mxu0 0.0
    %2706 = vmatpush1.msra.mxu0 %v2679
    %2707 = vmatprep.subr.mxu0 0.0
    %2708 = vmatpush1.msra.mxu0 %v2680
    %2709 = vmatprep.subr.mxu0 0.0
    %2710 = vmatpush1.msra.mxu0 %v2681
    %2711 = vmatprep.subr.mxu0 0.0
    %2712 = vmatpush1.msra.mxu0 %v2682
    %2713 = vmatprep.subr.mxu0 0.0
    %2714 = vmatpush1.msra.mxu0 0.0
    %2715 = vmatprep.subr.mxu0 0.0
    %2716 = vmatpush1.msra.mxu0 0.0
    %2717 = vmatprep.subr.mxu0 0.0
    %2718 = vmatpush1.msra.mxu0 0.0
    %2719 = vmatprep.subr.mxu0 0.0
    %2720 = vmatpush1.msra.mxu0 0.0
    %2721 = vmatprep.subr.mxu0 0.0
    %2722 = vmatpush1.msra.mxu0 0.0
    %2723 = vmatprep.subr.mxu0 0.0
    %2724 = vmatpush1.msra.mxu0 0.0
    %2725 = vmatprep.subr.mxu0 0.0
    %2726 = vmatpush1.msra.mxu0 0.0
    %2727 = vmatprep.subr.mxu0 0.0
    %2728 = vmatpush1.msra.mxu0 0.0
    %2729 = vmatprep.subr.mxu0 0.0
    %2730 = vmatpush1.msra.mxu0 0.0
    %2731 = vmatprep.subr.mxu0 0.0
    %2732 = vmatpush1.msra.mxu0 0.0
    %2733 = vmatprep.subr.mxu0 0.0
    %2734 = vmatpush1.msra.mxu0 0.0
    %2735 = vmatprep.subr.mxu0 0.0
    %2736 = vmatpush1.msra.mxu0 0.0
    %2737 = vmatprep.subr.mxu0 0.0
    %2738 = vmatpush1.msra.mxu0 0.0
    %2739 = vmatprep.subr.mxu0 0.0
    %2740 = vmatpush1.msra.mxu0 0.0
    %2741 = vmatprep.subr.mxu0 0.0
    %2742 = vmatpush1.msra.mxu0 0.0
    %2743 = vmatprep.subr.mxu0 0.0
    %2744 = vmatpush1.msra.mxu0 0.0
    %2745 = vmatprep.subr.mxu0 0.0
    %2746 = vmatpush1.msra.mxu0 0.0
    %2747 = vmatprep.subr.mxu0 0.0
    %2748 = vmatpush1.msra.mxu0 0.0
    %2749 = vmatprep.subr.mxu0 0.0
    %2750 = vmatpush1.msra.mxu0 0.0
    %2751 = vmatprep.subr.mxu0 0.0
    %2752 = vmatpush1.msra.mxu0 0.0
    %2753 = vmatprep.subr.mxu0 0.0
    %2754 = vmatpush1.msra.mxu0 0.0
    %2755 = vmatprep.subr.mxu0 0.0
    %2756 = vmatpush1.msra.mxu0 0.0
    %2757 = vmatprep.subr.mxu0 0.0
    %2758 = vmatpush1.msra.mxu0 0.0
    %2759 = vmatprep.subr.mxu0 0.0
    %2760 = vmatpush1.msra.mxu0 0.0
    %2761 = vmatprep.subr.mxu0 0.0
    %2762 = vmatpush1.msra.mxu0 0.0
    %2763 = vmatprep.subr.mxu0 0.0
    %2764 = vmatpush1.msra.mxu0 0.0
    %2765 = vmatprep.subr.mxu0 0.0
    %2766 = vmatpush1.msra.mxu0 0.0
    %2767 = vmatprep.subr.mxu0 0.0
    %2768 = vmatpush1.msra.mxu0 0.0
    %2769 = vmatprep.mubr.f32.mxu0 0.0
    %2770 = vmatmul.mubr.f32.gmra.mrb[0].mxu0 %v2703
    %v2771 = vpop.f32.mrb[0].mxu0
    %v2772 = vadd.f32 0.0, %v2771
    %v2773 = vpop.f32.mrb[0].mxu0
    %2774 = vdwg.mxu0
    %v2775 = vmul.f32 %v2666, %v2666
    %v2776 = vmul.f32 %v2667, %v2667
    %v2777 = vsel %vm874, %v2775, 0.0
    %v2778 = vrot.slane %v2777, 4
    %v2779 = vadd.f32 %v2777, %v2778
    %v2780 = vrot.slane %v2779, 2
    %v2781 = vadd.f32 %v2779, %v2780
    %v2782 = vrot.slane %v2781, 1
    %v2783 = vadd.f32 %v2781, %v2782
    %v2784 = vsel %vm874, %v2776, 0.0
    %v2785 = vrot.slane %v2784, 4
    %v2786 = vadd.f32 %v2784, %v2785
    %v2787 = vrot.slane %v2786, 2
    %v2788 = vadd.f32 %v2786, %v2787
    %v2789 = vrot.slane %v2788, 1
    %v2790 = vadd.f32 %v2788, %v2789
    %v2793 = vsel %vm344, %v2790, %v2783
    %v2794 = vsel %vm874, %v2793, 0
    %2796 = vmatprep.subr.mxu0 0.0
    %2797 = vmatpush1.msra.mxu0 %v2679
    %2798 = vmatprep.subr.mxu0 0.0
    %2799 = vmatpush1.msra.mxu0 %v2680
    %2800 = vmatprep.subr.mxu0 0.0
    %2801 = vmatpush1.msra.mxu0 %v2681
    %2802 = vmatprep.subr.mxu0 0.0
    %2803 = vmatpush1.msra.mxu0 %v2682
    %2804 = vmatprep.subr.mxu0 0.0
    %2805 = vmatpush1.msra.mxu0 0.0
    %2806 = vmatprep.subr.mxu0 0.0
    %2807 = vmatpush1.msra.mxu0 0.0
    %2808 = vmatprep.subr.mxu0 0.0
    %2809 = vmatpush1.msra.mxu0 0.0
    %2810 = vmatprep.subr.mxu0 0.0
    %2811 = vmatpush1.msra.mxu0 0.0
    %2812 = vmatprep.subr.mxu0 0.0
    %2813 = vmatpush1.msra.mxu0 0.0
    %2814 = vmatprep.subr.mxu0 0.0
    %2815 = vmatpush1.msra.mxu0 0.0
    %2816 = vmatprep.subr.mxu0 0.0
    %2817 = vmatpush1.msra.mxu0 0.0
    %2818 = vmatprep.subr.mxu0 0.0
    %2819 = vmatpush1.msra.mxu0 0.0
    %2820 = vmatprep.subr.mxu0 0.0
    %2821 = vmatpush1.msra.mxu0 0.0
    %2822 = vmatprep.subr.mxu0 0.0
    %2823 = vmatpush1.msra.mxu0 0.0
    %2824 = vmatprep.subr.mxu0 0.0
    %2825 = vmatpush1.msra.mxu0 0.0
    %2826 = vmatprep.subr.mxu0 0.0
    %2827 = vmatpush1.msra.mxu0 0.0
    %2828 = vmatprep.subr.mxu0 0.0
    %2829 = vmatpush1.msra.mxu0 0.0
    %2830 = vmatprep.subr.mxu0 0.0
    %2831 = vmatpush1.msra.mxu0 0.0
    %2832 = vmatprep.subr.mxu0 0.0
    %2833 = vmatpush1.msra.mxu0 0.0
    %2834 = vmatprep.subr.mxu0 0.0
    %2835 = vmatpush1.msra.mxu0 0.0
    %2836 = vmatprep.subr.mxu0 0.0
    %2837 = vmatpush1.msra.mxu0 0.0
    %2838 = vmatprep.subr.mxu0 0.0
    %2839 = vmatpush1.msra.mxu0 0.0
    %2840 = vmatprep.subr.mxu0 0.0
    %2841 = vmatpush1.msra.mxu0 0.0
    %2842 = vmatprep.subr.mxu0 0.0
    %2843 = vmatpush1.msra.mxu0 0.0
    %2844 = vmatprep.subr.mxu0 0.0
    %2845 = vmatpush1.msra.mxu0 0.0
    %2846 = vmatprep.subr.mxu0 0.0
    %2847 = vmatpush1.msra.mxu0 0.0
    %2848 = vmatprep.subr.mxu0 0.0
    %2849 = vmatpush1.msra.mxu0 0.0
    %2850 = vmatprep.subr.mxu0 0.0
    %2851 = vmatpush1.msra.mxu0 0.0
    %2852 = vmatprep.subr.mxu0 0.0
    %2853 = vmatpush1.msra.mxu0 0.0
    %2854 = vmatprep.subr.mxu0 0.0
    %2855 = vmatpush1.msra.mxu0 0.0
    %2856 = vmatprep.subr.mxu0 0.0
    %2857 = vmatpush1.msra.mxu0 0.0
    %2858 = vmatprep.subr.mxu0 0.0
    %2859 = vmatpush1.msra.mxu0 0.0
    %2860 = vmatprep.mubr.f32.mxu0 0.0
    %2861 = vmatmul.mubr.f32.gmra.mrb[0].mxu0 %v2794
    %v2862 = vpop.f32.mrb[0].mxu0
    %v2863 = vadd.f32 0.0, %v2862
    %v2864 = vpop.f32.mrb[0].mxu0
    %2865 = vdwg.mxu0
    %v2866 = vrcp.pop 32.0
    %v2867 = vmul.f32 %v2772, %v2866
    %v2868 = vmul.f32 %v2863, %v2866
    %v2869 = vmul.f32 %v2867, %v2867
    %v2870 = vsub.f32 %v2868, %v2869
    %v2871 = vmax.f32 %v2870, 0.0
    %v2872 = vadd.f32 %v2871, 1e-05
    %v2873 = vrsqrt.pop %v2872
    %v2875 = vsel %vm243, %v2867, 0
    %2877 = vmatprep.subr.mxu0 0.0
    %2878 = vmatpush1.msra.mxu0 %v2683
    %2879 = vmatprep.subr.mxu0 0.0
    %2880 = vmatpush1.msra.mxu0 0.0
    %2881 = vmatprep.subr.mxu0 0.0
    %2882 = vmatpush1.msra.mxu0 0.0
    %2883 = vmatprep.subr.mxu0 0.0
    %2884 = vmatpush1.msra.mxu0 0.0
    %2885 = vmatprep.subr.mxu0 0.0
    %2886 = vmatpush1.msra.mxu0 0.0
    %2887 = vmatprep.subr.mxu0 0.0
    %2888 = vmatpush1.msra.mxu0 0.0
    %2889 = vmatprep.subr.mxu0 0.0
    %2890 = vmatpush1.msra.mxu0 0.0
    %2891 = vmatprep.subr.mxu0 0.0
    %2892 = vmatpush1.msra.mxu0 0.0
    %2893 = vmatprep.subr.mxu0 0.0
    %2894 = vmatpush1.msra.mxu0 0.0
    %2895 = vmatprep.subr.mxu0 0.0
    %2896 = vmatpush1.msra.mxu0 0.0
    %2897 = vmatprep.subr.mxu0 0.0
    %2898 = vmatpush1.msra.mxu0 0.0
    %2899 = vmatprep.subr.mxu0 0.0
    %2900 = vmatpush1.msra.mxu0 0.0
    %2901 = vmatprep.subr.mxu0 0.0
    %2902 = vmatpush1.msra.mxu0 0.0
    %2903 = vmatprep.subr.mxu0 0.0
    %2904 = vmatpush1.msra.mxu0 0.0
    %2905 = vmatprep.subr.mxu0 0.0
    %2906 = vmatpush1.msra.mxu0 0.0
    %2907 = vmatprep.subr.mxu0 0.0
    %2908 = vmatpush1.msra.mxu0 0.0
    %2909 = vmatprep.subr.mxu0 0.0
    %2910 = vmatpush1.msra.mxu0 0.0
    %2911 = vmatprep.subr.mxu0 0.0
    %2912 = vmatpush1.msra.mxu0 0.0
    %2913 = vmatprep.subr.mxu0 0.0
    %2914 = vmatpush1.msra.mxu0 0.0
    %2915 = vmatprep.subr.mxu0 0.0
    %2916 = vmatpush1.msra.mxu0 0.0
    %2917 = vmatprep.subr.mxu0 0.0
    %2918 = vmatpush1.msra.mxu0 0.0
    %2919 = vmatprep.subr.mxu0 0.0
    %2920 = vmatpush1.msra.mxu0 0.0
    %2921 = vmatprep.subr.mxu0 0.0
    %2922 = vmatpush1.msra.mxu0 0.0
    %2923 = vmatprep.subr.mxu0 0.0
    %2924 = vmatpush1.msra.mxu0 0.0
    %2925 = vmatprep.subr.mxu0 0.0
    %2926 = vmatpush1.msra.mxu0 0.0
    %2927 = vmatprep.subr.mxu0 0.0
    %2928 = vmatpush1.msra.mxu0 0.0
    %2929 = vmatprep.subr.mxu0 0.0
    %2930 = vmatpush1.msra.mxu0 0.0
    %2931 = vmatprep.subr.mxu0 0.0
    %2932 = vmatpush1.msra.mxu0 0.0
    %2933 = vmatprep.subr.mxu0 0.0
    %2934 = vmatpush1.msra.mxu0 0.0
    %2935 = vmatprep.subr.mxu0 0.0
    %2936 = vmatpush1.msra.mxu0 0.0
    %2937 = vmatprep.subr.mxu0 0.0
    %2938 = vmatpush1.msra.mxu0 0.0
    %2939 = vmatprep.subr.mxu0 0.0
    %2940 = vmatpush1.msra.mxu0 0.0
    %2941 = vmatprep.mubr.f32.mxu0 0.0
    %2942 = vmatmul.mubr.f32.gmra.mrb[0].mxu0 %v2875
    %v2943 = vpop.f32.mrb[0].mxu0
    %v2944 = vadd.f32 0.0, %v2943
    %v2945 = vpop.f32.mrb[0].mxu0
    %2946 = vdwg.mxu0
    %v2948 = vsel %vm243, %v2873, 0
    %2950 = vmatprep.subr.mxu0 0.0
    %2951 = vmatpush1.msra.mxu0 %v2683
    %2952 = vmatprep.subr.mxu0 0.0
    %2953 = vmatpush1.msra.mxu0 0.0
    %2954 = vmatprep.subr.mxu0 0.0
    %2955 = vmatpush1.msra.mxu0 0.0
    %2956 = vmatprep.subr.mxu0 0.0
    %2957 = vmatpush1.msra.mxu0 0.0
    %2958 = vmatprep.subr.mxu0 0.0
    %2959 = vmatpush1.msra.mxu0 0.0
    %2960 = vmatprep.subr.mxu0 0.0
    %2961 = vmatpush1.msra.mxu0 0.0
    %2962 = vmatprep.subr.mxu0 0.0
    %2963 = vmatpush1.msra.mxu0 0.0
    %2964 = vmatprep.subr.mxu0 0.0
    %2965 = vmatpush1.msra.mxu0 0.0
    %2966 = vmatprep.subr.mxu0 0.0
    %2967 = vmatpush1.msra.mxu0 0.0
    %2968 = vmatprep.subr.mxu0 0.0
    %2969 = vmatpush1.msra.mxu0 0.0
    %2970 = vmatprep.subr.mxu0 0.0
    %2971 = vmatpush1.msra.mxu0 0.0
    %2972 = vmatprep.subr.mxu0 0.0
    %2973 = vmatpush1.msra.mxu0 0.0
    %2974 = vmatprep.subr.mxu0 0.0
    %2975 = vmatpush1.msra.mxu0 0.0
    %2976 = vmatprep.subr.mxu0 0.0
    %2977 = vmatpush1.msra.mxu0 0.0
    %2978 = vmatprep.subr.mxu0 0.0
    %2979 = vmatpush1.msra.mxu0 0.0
    %2980 = vmatprep.subr.mxu0 0.0
    %2981 = vmatpush1.msra.mxu0 0.0
    %2982 = vmatprep.subr.mxu0 0.0
    %2983 = vmatpush1.msra.mxu0 0.0
    %2984 = vmatprep.subr.mxu0 0.0
    %2985 = vmatpush1.msra.mxu0 0.0
    %2986 = vmatprep.subr.mxu0 0.0
    %2987 = vmatpush1.msra.mxu0 0.0
    %2988 = vmatprep.subr.mxu0 0.0
    %2989 = vmatpush1.msra.mxu0 0.0
    %2990 = vmatprep.subr.mxu0 0.0
    %2991 = vmatpush1.msra.mxu0 0.0
    %2992 = vmatprep.subr.mxu0 0.0
    %2993 = vmatpush1.msra.mxu0 0.0
    %2994 = vmatprep.subr.mxu0 0.0
    %2995 = vmatpush1.msra.mxu0 0.0
    %2996 = vmatprep.subr.mxu0 0.0
    %2997 = vmatpush1.msra.mxu0 0.0
    %2998 = vmatprep.subr.mxu0 0.0
    %2999 = vmatpush1.msra.mxu0 0.0
    %3000 = vmatprep.subr.mxu0 0.0
    %3001 = vmatpush1.msra.mxu0 0.0
    %3002 = vmatprep.subr.mxu0 0.0
    %3003 = vmatpush1.msra.mxu0 0.0
    %3004 = vmatprep.subr.mxu0 0.0
    %3005 = vmatpush1.msra.mxu0 0.0
    %3006 = vmatprep.subr.mxu0 0.0
    %3007 = vmatpush1.msra.mxu0 0.0
    %3008 = vmatprep.subr.mxu0 0.0
    %3009 = vmatpush1.msra.mxu0 0.0
    %3010 = vmatprep.subr.mxu0 0.0
    %3011 = vmatpush1.msra.mxu0 0.0
    %3012 = vmatprep.subr.mxu0 0.0
    %3013 = vmatpush1.msra.mxu0 0.0
    %3014 = vmatprep.mubr.f32.mxu0 0.0
    %3015 = vmatmul.mubr.f32.gmra.mrb[0].mxu0 %v2948
    %v3016 = vpop.f32.mrb[0].mxu0
    %v3017 = vadd.f32 0.0, %v3016
    %v3018 = vpop.f32.mrb[0].mxu0
    %3019 = vdwg.mxu0
    %v3022 = vunpack.c.l.s4 1966171168
    %v3023 = vunpack.c.0.s8 %v3022
    %v3024 = vlaneseq
    %v3025 = vshrl.u32 %v3024, 7
    %v3026 = vsub.s32 %v3023, %v3025
    %v3027 = vrot.slane %v2944, %v3026
    %v3028 = vcombine.high %v3027, %v3027
    %v3030 = vunpack.c.l.s4 1966171168
    %v3031 = vunpack.c.0.s8 %v3030
    %v3032 = vlaneseq
    %v3033 = vshrl.u32 %v3032, 7
    %v3034 = vsub.s32 %v3031, %v3033
    %v3035 = vrot.slane %v3027, %v3034
    %v3037 = vunpack.c.l.s4 1966171168
    %v3038 = vunpack.c.0.s8 %v3037
    %v3039 = vlaneseq
    %v3040 = vshrl.u32 %v3039, 7
    %v3041 = vsub.s32 %v3038, %v3040
    %v3042 = vrot.slane %v3028, %v3041
    %v3043 = vlaneseq
    %v3044 = vshrl.u32 %v3043, 7
    %v3045 = vsub.s32 0, %v3044
    %v3046 = vrot.slane %v3035, %v3045
    %v3047 = vlaneseq
    %v3048 = vshrl.u32 %v3047, 7
    %v3049 = vsub.s32 0, %v3048
    %v3050 = vrot.slane %v3042, %v3049
    %v3053 = vsub.f32 %v2666, %v3046
    %v3054 = vsub.f32 %v2667, %v3050
    %v3057 = vunpack.c.l.s4 1966171168
    %v3058 = vunpack.c.0.s8 %v3057
    %v3059 = vlaneseq
    %v3060 = vshrl.u32 %v3059, 7
    %v3061 = vsub.s32 %v3058, %v3060
    %v3062 = vrot.slane %v3017, %v3061
    %v3063 = vcombine.high %v3062, %v3062
    %v3065 = vunpack.c.l.s4 1966171168
    %v3066 = vunpack.c.0.s8 %v3065
    %v3067 = vlaneseq
    %v3068 = vshrl.u32 %v3067, 7
    %v3069 = vsub.s32 %v3066, %v3068
    %v3070 = vrot.slane %v3062, %v3069
    %v3072 = vunpack.c.l.s4 1966171168
    %v3073 = vunpack.c.0.s8 %v3072
    %v3074 = vlaneseq
    %v3075 = vshrl.u32 %v3074, 7
    %v3076 = vsub.s32 %v3073, %v3075
    %v3077 = vrot.slane %v3063, %v3076
    %v3078 = vlaneseq
    %v3079 = vshrl.u32 %v3078, 7
    %v3080 = vsub.s32 0, %v3079
    %v3081 = vrot.slane %v3070, %v3080
    %v3082 = vlaneseq
    %v3083 = vshrl.u32 %v3082, 7
    %v3084 = vsub.s32 0, %v3083
    %v3085 = vrot.slane %v3077, %v3084
    %v3088 = vmul.f32 %v3053, %v3081
    %v3089 = vmul.f32 %v3054, %v3085
    %v3090 = vlaneseq
    %v3091 = vshrl.u32 %v3090, 7
    %v3092 = vsub.s32 0, %v3091
    %v3093 = vrot.slane %v2684, %v3092
    %v3094 = vmul.f32 %v3088, %v3093
    %v3095 = vmul.f32 %v3089, %v3093
    %v3096 = vlaneseq
    %v3097 = vshrl.u32 %v3096, 7
    %v3098 = vsub.s32 0, %v3097
    %v3099 = vrot.slane %v2685, %v3098
    %v3100 = vadd.f32 %v3094, %v3099
    %v3101 = vadd.f32 %v3095, %v3099
    %v3102 = vmax.f32 %v3100, 0.0
    %v3103 = vmax.f32 %v3101, 0.0
    %v3104 = vand.u32 2147483647, %v3100
    %v3105 = vand.u32 2147483647, %v3101
    %v3106 = vsub.f32 0.0, %v3104
    %v3107 = vsub.f32 0.0, %v3105
    %v3108 = vmul.f32 %v3106, 1.442695
    %v3109 = vpow.pop %v3108
    %v3110 = vmul.f32 %v3107, 1.442695
    %v3111 = vpow.pop %v3110
    %v3112 = vadd.f32 %v3109, 1.0
    %v3113 = vadd.f32 %v3111, 1.0
    %v3114 = vlog2.pop %v3112
    %v3115 = vmul.f32 %v3114, 0.6931472
    %v3116 = vlog2.pop %v3113
    %v3117 = vmul.f32 %v3116, 0.6931472
    %v3118 = vadd.f32 %v3102, %v3115
    %v3119 = vadd.f32 %v3103, %v3117
    %v3120 = vtanh.pop %v3118
    %v3121 = vtanh.pop %v3119
    %v3122 = vmul.f32 %v3100, %v3120
    %v3123 = vmul.f32 %v3101, %v3121
    %3126 = vrot.lane.b32.xlu0 %v3122, 64
    %v3127 = vpop.permute.xlu0 %3126
    %3128 = vrot.lane.b32.xlu0 %v3123, 64
    %v3129 = vpop.permute.xlu0 %3128
    %v3132 = vmul.f32 %v793, %v3127
    %v3133 = vmul.f32 %v797, %v3129
    %3134 = vrot.lane.b32.xlu0 %v793, 96
    %v3135 = vpop.permute.xlu0 %3134
    %3136 = vrot.lane.b32.xlu0 %v797, 96
    %v3137 = vpop.permute.xlu0 %3136
    %v3140 = vadd.f32 %v3132, %v3135
    %v3141 = vadd.f32 %v3133, %v3137
    %v3144 = vrot.slane %v3140, 7
    %v3145 = vrot.slane %v3141, 7
    %3146 = vrot.lane.b32.xlu0 %v3144, 64
    %v3147 = vpop.permute.xlu0 %3146
    %3148 = vrot.lane.b32.xlu0 %v3145, 64
    %v3149 = vpop.permute.xlu0 %3148
    %v3152 = vsel %vm2570, 0.0, %v3147
    %v3153 = vsel %vm2570, 0.0, %v3149
    %v3154 = vsel %vm2570, %v3147, 0.0
    %v3155 = vsel %vm2570, %v3149, 0.0
    %v3160 = vrot.slane %v3152, 1
    %v3161 = vrot.slane %v3154, 1
    %v3162 = vsel %vm188, %v3160, %v3161
    %v3163 = vrot.slane %v3153, 1
    %v3164 = vrot.slane %v3155, 1
    %v3165 = vsel %vm188, %v3163, %v3164
    %3166 = vrot.lane.b32.xlu0 %v3162, 32
    %v3167 = vpop.permute.xlu0 %3166
    %3168 = vrot.lane.b32.xlu0 %v3165, 32
    %v3169 = vpop.permute.xlu0 %3168
    %v3172 = vrot.slane %v3152, 2
    %v3173 = vrot.slane %v3154, 2
    %v3174 = vsel %vm201, %v3172, %v3173
    %v3175 = vrot.slane %v3153, 2
    %v3176 = vrot.slane %v3155, 2
    %v3177 = vsel %vm201, %v3175, %v3176
    %3178 = vrot.lane.b32.xlu0 %v3174, 64
    %v3179 = vpop.permute.xlu0 %3178
    %3180 = vrot.lane.b32.xlu0 %v3177, 64
    %v3181 = vpop.permute.xlu0 %3180
    %v3184 = vsel %vm874, %v3152, %v3167
    %v3185 = vsel %vm874, %v3153, %v3169
    %v3186 = vsel %vm880, %v3184, %v3179
    %v3187 = vsel %vm880, %v3185, %v3181
    %v3188 = vld [vmem:[#allocation2 + $0x1d8] sm:$0xff]
    %v3189 = vld [vmem:[#allocation2 + $0x1e0] sm:$0xff]
    %v3190 = vld [vmem:[#allocation2 + $0x1e8] sm:$0xff]
    %v3191 = vld [vmem:[#allocation2 + $0x1f0] sm:$0xff]
    %v3192 = vld [vmem:[#allocation2 + $0x1f8] sm:$0xff]
    %v3193 = vld [vmem:[#allocation2 + $0x200] sm:$0xff]
    %v3194 = vld [vmem:[#allocation2 + $0x208] sm:$0xff]
    %v3195 = vld [vmem:[#allocation2 + $0x210] sm:$0xff]
    %v3196 = vld [vmem:[#allocation2 + $0x218] sm:$0xff]
    %v3197 = vld [vmem:[#allocation2 + $0x220] sm:$0xff]
    %v3198 = vld [vmem:[#allocation2 + $0x228] sm:$0xff]
    %v3199 = vld [vmem:[#allocation2 + $0x230] sm:$0xff]
    %v3200 = vpack.c.bf16 %v3187, %v3186
    %v3201 = vpack.c.bf16 %v3189, %v3188
    %v3202 = vpack.c.bf16 %v3191, %v3190
    %v3203 = vpack.c.bf16 %v3193, %v3192
    %v3204 = vpack.c.bf16 %v3195, %v3194
    %v3205 = vpack.c.bf16 %v3197, %v3196
    %v3206 = vpack.c.bf16 %v3199, %v3198
    %v3207 = vld [vmem:[#allocation2 + $0x238] sm:$0x1]
    %v3208 = vlaneseq
    %v3209 = vshrl.u32 %v3208, 7
    %v3210 = vsub.s32 0, %v3209
    %v3211 = vrot.slane %v3207, %v3210
    %vm3212 = vcmask 785408
    %v3214 = vsel %vm3212, %v3200, 0
    %3216 = vmatprep.subr.bf16.mxu0 0
    %3217 = vmatpush1.bf16.msra.mxu0 %v3201
    %3218 = vmatprep.subr.bf16.mxu0 0
    %3219 = vmatpush1.bf16.msra.mxu0 %v3202
    %3220 = vmatprep.subr.bf16.mxu0 0
    %3221 = vmatpush1.bf16.msra.mxu0 %v3203
    %3222 = vmatprep.subr.bf16.mxu0 0
    %3223 = vmatpush1.bf16.msra.mxu0 %v3204
    %3224 = vmatprep.subr.bf16.mxu0 0
    %3225 = vmatpush1.bf16.msra.mxu0 %v3205
    %3226 = vmatprep.subr.bf16.mxu0 0
    %3227 = vmatpush1.bf16.msra.mxu0 %v3206
    %3228 = vmatprep.subr.bf16.mxu0 0
    %3229 = vmatpush1.bf16.msra.mxu0 0
    %3230 = vmatprep.subr.bf16.mxu0 0
    %3231 = vmatpush1.bf16.msra.mxu0 0
    %3232 = vmatprep.subr.bf16.mxu0 0
    %3233 = vmatpush1.bf16.msra.mxu0 0
    %3234 = vmatprep.subr.bf16.mxu0 0
    %3235 = vmatpush1.bf16.msra.mxu0 0
    %3236 = vmatprep.subr.bf16.mxu0 0
    %3237 = vmatpush1.bf16.msra.mxu0 0
    %3238 = vmatprep.subr.bf16.mxu0 0
    %3239 = vmatpush1.bf16.msra.mxu0 0
    %3240 = vmatprep.subr.bf16.mxu0 0
    %3241 = vmatpush1.bf16.msra.mxu0 0
    %3242 = vmatprep.subr.bf16.mxu0 0
    %3243 = vmatpush1.bf16.msra.mxu0 0
    %3244 = vmatprep.subr.bf16.mxu0 0
    %3245 = vmatpush1.bf16.msra.mxu0 0
    %3246 = vmatprep.subr.bf16.mxu0 0
    %3247 = vmatpush1.bf16.msra.mxu0 0
    %3248 = vmatprep.mubr.bf16.mxu0 0
    %3249 = vmatmul.mubr.bf16.gmra.mrb[0].mxu0 %v3214
    %v3250 = vpop.f32.mrb[0].mxu0
    %v3251 = vadd.f32 %v3211, %v3250
    %v3252 = vpop.f32.mrb[0].mxu0
    %v3253 = vpop.f32.mrb[0].mxu0
    %v3254 = vadd.f32 %v3211, %v3253
    %v3255 = vpop.f32.mrb[0].mxu0
    %3256 = vdwg.mxu0
    %v3257 = vld [vmem:[#allocation2 + $0x240] sm:$0x1]
    %v3258 = vld [vmem:[#allocation2 + $0x248] sm:$0x1]
    %v3259 = vsel %vm874, %v3251, 0.0
    %v3260 = vrot.slane %v3259, 4
    %v3261 = vadd.f32 %v3259, %v3260
    %v3262 = vrot.slane %v3261, 2
    %v3263 = vadd.f32 %v3261, %v3262
    %v3264 = vrot.slane %v3263, 1
    %v3265 = vadd.f32 %v3263, %v3264
    %v3266 = vsel %vm874, %v3254, 0.0
    %v3267 = vrot.slane %v3266, 4
    %v3268 = vadd.f32 %v3266, %v3267
    %v3269 = vrot.slane %v3268, 2
    %v3270 = vadd.f32 %v3268, %v3269
    %v3271 = vrot.slane %v3270, 1
    %v3272 = vadd.f32 %v3270, %v3271
    %v3275 = vsel %vm344, %v3272, %v3265
    %v3276 = vsel %vm874, %v3275, 0
    %3278 = vmatprep.subr.mxu0 0.0
    %3279 = vmatpush1.msra.mxu0 %v2679
    %3280 = vmatprep.subr.mxu0 0.0
    %3281 = vmatpush1.msra.mxu0 %v2680
    %3282 = vmatprep.subr.mxu0 0.0
    %3283 = vmatpush1.msra.mxu0 %v2681
    %3284 = vmatprep.subr.mxu0 0.0
    %3285 = vmatpush1.msra.mxu0 %v2682
    %3286 = vmatprep.subr.mxu0 0.0
    %3287 = vmatpush1.msra.mxu0 0.0
    %3288 = vmatprep.subr.mxu0 0.0
    %3289 = vmatpush1.msra.mxu0 0.0
    %3290 = vmatprep.subr.mxu0 0.0
    %3291 = vmatpush1.msra.mxu0 0.0
    %3292 = vmatprep.subr.mxu0 0.0
    %3293 = vmatpush1.msra.mxu0 0.0
    %3294 = vmatprep.subr.mxu0 0.0
    %3295 = vmatpush1.msra.mxu0 0.0
    %3296 = vmatprep.subr.mxu0 0.0
    %3297 = vmatpush1.msra.mxu0 0.0
    %3298 = vmatprep.subr.mxu0 0.0
    %3299 = vmatpush1.msra.mxu0 0.0
    %3300 = vmatprep.subr.mxu0 0.0
    %3301 = vmatpush1.msra.mxu0 0.0
    %3302 = vmatprep.subr.mxu0 0.0
    %3303 = vmatpush1.msra.mxu0 0.0
    %3304 = vmatprep.subr.mxu0 0.0
    %3305 = vmatpush1.msra.mxu0 0.0
    %3306 = vmatprep.subr.mxu0 0.0
    %3307 = vmatpush1.msra.mxu0 0.0
    %3308 = vmatprep.subr.mxu0 0.0
    %3309 = vmatpush1.msra.mxu0 0.0
    %3310 = vmatprep.subr.mxu0 0.0
    %3311 = vmatpush1.msra.mxu0 0.0
    %3312 = vmatprep.subr.mxu0 0.0
    %3313 = vmatpush1.msra.mxu0 0.0
    %3314 = vmatprep.subr.mxu0 0.0
    %3315 = vmatpush1.msra.mxu0 0.0
    %3316 = vmatprep.subr.mxu0 0.0
    %3317 = vmatpush1.msra.mxu0 0.0
    %3318 = vmatprep.subr.mxu0 0.0
    %3319 = vmatpush1.msra.mxu0 0.0
    %3320 = vmatprep.subr.mxu0 0.0
    %3321 = vmatpush1.msra.mxu0 0.0
    %3322 = vmatprep.subr.mxu0 0.0
    %3323 = vmatpush1.msra.mxu0 0.0
    %3324 = vmatprep.subr.mxu0 0.0
    %3325 = vmatpush1.msra.mxu0 0.0
    %3326 = vmatprep.subr.mxu0 0.0
    %3327 = vmatpush1.msra.mxu0 0.0
    %3328 = vmatprep.subr.mxu0 0.0
    %3329 = vmatpush1.msra.mxu0 0.0
    %3330 = vmatprep.subr.mxu0 0.0
    %3331 = vmatpush1.msra.mxu0 0.0
    %3332 = vmatprep.subr.mxu0 0.0
    %3333 = vmatpush1.msra.mxu0 0.0
    %3334 = vmatprep.subr.mxu0 0.0
    %3335 = vmatpush1.msra.mxu0 0.0
    %3336 = vmatprep.subr.mxu0 0.0
    %3337 = vmatpush1.msra.mxu0 0.0
    %3338 = vmatprep.subr.mxu0 0.0
    %3339 = vmatpush1.msra.mxu0 0.0
    %3340 = vmatprep.subr.mxu0 0.0
    %3341 = vmatpush1.msra.mxu0 0.0
    %3342 = vmatprep.mubr.f32.mxu0 0.0
    %3343 = vmatmul.mubr.f32.gmra.mrb[0].mxu0 %v3276
    %v3344 = vpop.f32.mrb[0].mxu0
    %v3345 = vadd.f32 0.0, %v3344
    %v3346 = vpop.f32.mrb[0].mxu0
    %3347 = vdwg.mxu0
    %v3348 = vmul.f32 %v3251, %v3251
    %v3349 = vmul.f32 %v3254, %v3254
    %v3350 = vsel %vm874, %v3348, 0.0
    %v3351 = vrot.slane %v3350, 4
    %v3352 = vadd.f32 %v3350, %v3351
    %v3353 = vrot.slane %v3352, 2
    %v3354 = vadd.f32 %v3352, %v3353
    %v3355 = vrot.slane %v3354, 1
    %v3356 = vadd.f32 %v3354, %v3355
    %v3357 = vsel %vm874, %v3349, 0.0
    %v3358 = vrot.slane %v3357, 4
    %v3359 = vadd.f32 %v3357, %v3358
    %v3360 = vrot.slane %v3359, 2
    %v3361 = vadd.f32 %v3359, %v3360
    %v3362 = vrot.slane %v3361, 1
    %v3363 = vadd.f32 %v3361, %v3362
    %v3366 = vsel %vm344, %v3363, %v3356
    %v3367 = vsel %vm874, %v3366, 0
    %3369 = vmatprep.subr.mxu0 0.0
    %3370 = vmatpush1.msra.mxu0 %v2679
    %3371 = vmatprep.subr.mxu0 0.0
    %3372 = vmatpush1.msra.mxu0 %v2680
    %3373 = vmatprep.subr.mxu0 0.0
    %3374 = vmatpush1.msra.mxu0 %v2681
    %3375 = vmatprep.subr.mxu0 0.0
    %3376 = vmatpush1.msra.mxu0 %v2682
    %3377 = vmatprep.subr.mxu0 0.0
    %3378 = vmatpush1.msra.mxu0 0.0
    %3379 = vmatprep.subr.mxu0 0.0
    %3380 = vmatpush1.msra.mxu0 0.0
    %3381 = vmatprep.subr.mxu0 0.0
    %3382 = vmatpush1.msra.mxu0 0.0
    %3383 = vmatprep.subr.mxu0 0.0
    %3384 = vmatpush1.msra.mxu0 0.0
    %3385 = vmatprep.subr.mxu0 0.0
    %3386 = vmatpush1.msra.mxu0 0.0
    %3387 = vmatprep.subr.mxu0 0.0
    %3388 = vmatpush1.msra.mxu0 0.0
    %3389 = vmatprep.subr.mxu0 0.0
    %3390 = vmatpush1.msra.mxu0 0.0
    %3391 = vmatprep.subr.mxu0 0.0
    %3392 = vmatpush1.msra.mxu0 0.0
    %3393 = vmatprep.subr.mxu0 0.0
    %3394 = vmatpush1.msra.mxu0 0.0
    %3395 = vmatprep.subr.mxu0 0.0
    %3396 = vmatpush1.msra.mxu0 0.0
    %3397 = vmatprep.subr.mxu0 0.0
    %3398 = vmatpush1.msra.mxu0 0.0
    %3399 = vmatprep.subr.mxu0 0.0
    %3400 = vmatpush1.msra.mxu0 0.0
    %3401 = vmatprep.subr.mxu0 0.0
    %3402 = vmatpush1.msra.mxu0 0.0
    %3403 = vmatprep.subr.mxu0 0.0
    %3404 = vmatpush1.msra.mxu0 0.0
    %3405 = vmatprep.subr.mxu0 0.0
    %3406 = vmatpush1.msra.mxu0 0.0
    %3407 = vmatprep.subr.mxu0 0.0
    %3408 = vmatpush1.msra.mxu0 0.0
    %3409 = vmatprep.subr.mxu0 0.0
    %3410 = vmatpush1.msra.mxu0 0.0
    %3411 = vmatprep.subr.mxu0 0.0
    %3412 = vmatpush1.msra.mxu0 0.0
    %3413 = vmatprep.subr.mxu0 0.0
    %3414 = vmatpush1.msra.mxu0 0.0
    %3415 = vmatprep.subr.mxu0 0.0
    %3416 = vmatpush1.msra.mxu0 0.0
    %3417 = vmatprep.subr.mxu0 0.0
    %3418 = vmatpush1.msra.mxu0 0.0
    %3419 = vmatprep.subr.mxu0 0.0
    %3420 = vmatpush1.msra.mxu0 0.0
    %3421 = vmatprep.subr.mxu0 0.0
    %3422 = vmatpush1.msra.mxu0 0.0
    %3423 = vmatprep.subr.mxu0 0.0
    %3424 = vmatpush1.msra.mxu0 0.0
    %3425 = vmatprep.subr.mxu0 0.0
    %3426 = vmatpush1.msra.mxu0 0.0
    %3427 = vmatprep.subr.mxu0 0.0
    %3428 = vmatpush1.msra.mxu0 0.0
    %3429 = vmatprep.subr.mxu0 0.0
    %3430 = vmatpush1.msra.mxu0 0.0
    %3431 = vmatprep.subr.mxu0 0.0
    %3432 = vmatpush1.msra.mxu0 0.0
    %3433 = vmatprep.mubr.f32.mxu0 0.0
    %3434 = vmatmul.mubr.f32.gmra.mrb[0].mxu0 %v3367
    %v3435 = vpop.f32.mrb[0].mxu0
    %v3436 = vadd.f32 0.0, %v3435
    %v3437 = vpop.f32.mrb[0].mxu0
    %3438 = vdwg.mxu0
    %v3439 = vmul.f32 %v3345, %v2866
    %v3440 = vmul.f32 %v3436, %v2866
    %v3441 = vmul.f32 %v3439, %v3439
    %v3442 = vsub.f32 %v3440, %v3441
    %v3443 = vmax.f32 %v3442, 0.0
    %v3444 = vadd.f32 %v3443, 1e-05
    %v3445 = vrsqrt.pop %v3444
    %v3447 = vsel %vm243, %v3439, 0
    %3449 = vmatprep.subr.mxu0 0.0
    %3450 = vmatpush1.msra.mxu0 %v2683
    %3451 = vmatprep.subr.mxu0 0.0
    %3452 = vmatpush1.msra.mxu0 0.0
    %3453 = vmatprep.subr.mxu0 0.0
    %3454 = vmatpush1.msra.mxu0 0.0
    %3455 = vmatprep.subr.mxu0 0.0
    %3456 = vmatpush1.msra.mxu0 0.0
    %3457 = vmatprep.subr.mxu0 0.0
    %3458 = vmatpush1.msra.mxu0 0.0
    %3459 = vmatprep.subr.mxu0 0.0
    %3460 = vmatpush1.msra.mxu0 0.0
    %3461 = vmatprep.subr.mxu0 0.0
    %3462 = vmatpush1.msra.mxu0 0.0
    %3463 = vmatprep.subr.mxu0 0.0
    %3464 = vmatpush1.msra.mxu0 0.0
    %3465 = vmatprep.subr.mxu0 0.0
    %3466 = vmatpush1.msra.mxu0 0.0
    %3467 = vmatprep.subr.mxu0 0.0
    %3468 = vmatpush1.msra.mxu0 0.0
    %3469 = vmatprep.subr.mxu0 0.0
    %3470 = vmatpush1.msra.mxu0 0.0
    %3471 = vmatprep.subr.mxu0 0.0
    %3472 = vmatpush1.msra.mxu0 0.0
    %3473 = vmatprep.subr.mxu0 0.0
    %3474 = vmatpush1.msra.mxu0 0.0
    %3475 = vmatprep.subr.mxu0 0.0
    %3476 = vmatpush1.msra.mxu0 0.0
    %3477 = vmatprep.subr.mxu0 0.0
    %3478 = vmatpush1.msra.mxu0 0.0
    %3479 = vmatprep.subr.mxu0 0.0
    %3480 = vmatpush1.msra.mxu0 0.0
    %3481 = vmatprep.subr.mxu0 0.0
    %3482 = vmatpush1.msra.mxu0 0.0
    %3483 = vmatprep.subr.mxu0 0.0
    %3484 = vmatpush1.msra.mxu0 0.0
    %3485 = vmatprep.subr.mxu0 0.0
    %3486 = vmatpush1.msra.mxu0 0.0
    %3487 = vmatprep.subr.mxu0 0.0
    %3488 = vmatpush1.msra.mxu0 0.0
    %3489 = vmatprep.subr.mxu0 0.0
    %3490 = vmatpush1.msra.mxu0 0.0
    %3491 = vmatprep.subr.mxu0 0.0
    %3492 = vmatpush1.msra.mxu0 0.0
    %3493 = vmatprep.subr.mxu0 0.0
    %3494 = vmatpush1.msra.mxu0 0.0
    %3495 = vmatprep.subr.mxu0 0.0
    %3496 = vmatpush1.msra.mxu0 0.0
    %3497 = vmatprep.subr.mxu0 0.0
    %3498 = vmatpush1.msra.mxu0 0.0
    %3499 = vmatprep.subr.mxu0 0.0
    %3500 = vmatpush1.msra.mxu0 0.0
    %3501 = vmatprep.subr.mxu0 0.0
    %3502 = vmatpush1.msra.mxu0 0.0
    %3503 = vmatprep.subr.mxu0 0.0
    %3504 = vmatpush1.msra.mxu0 0.0
    %3505 = vmatprep.subr.mxu0 0.0
    %3506 = vmatpush1.msra.mxu0 0.0
    %3507 = vmatprep.subr.mxu0 0.0
    %3508 = vmatpush1.msra.mxu0 0.0
    %3509 = vmatprep.subr.mxu0 0.0
    %3510 = vmatpush1.msra.mxu0 0.0
    %3511 = vmatprep.subr.mxu0 0.0
    %3512 = vmatpush1.msra.mxu0 0.0
    %3513 = vmatprep.mubr.f32.mxu0 0.0
    %3514 = vmatmul.mubr.f32.gmra.mrb[0].mxu0 %v3447
    %v3515 = vpop.f32.mrb[0].mxu0
    %v3516 = vadd.f32 0.0, %v3515
    %v3517 = vpop.f32.mrb[0].mxu0
    %3518 = vdwg.mxu0
    %v3520 = vsel %vm243, %v3445, 0
    %3522 = vmatprep.subr.mxu0 0.0
    %3523 = vmatpush1.msra.mxu0 %v2683
    %3524 = vmatprep.subr.mxu0 0.0
    %3525 = vmatpush1.msra.mxu0 0.0
    %3526 = vmatprep.subr.mxu0 0.0
    %3527 = vmatpush1.msra.mxu0 0.0
    %3528 = vmatprep.subr.mxu0 0.0
    %3529 = vmatpush1.msra.mxu0 0.0
    %3530 = vmatprep.subr.mxu0 0.0
    %3531 = vmatpush1.msra.mxu0 0.0
    %3532 = vmatprep.subr.mxu0 0.0
    %3533 = vmatpush1.msra.mxu0 0.0
    %3534 = vmatprep.subr.mxu0 0.0
    %3535 = vmatpush1.msra.mxu0 0.0
    %3536 = vmatprep.subr.mxu0 0.0
    %3537 = vmatpush1.msra.mxu0 0.0
    %3538 = vmatprep.subr.mxu0 0.0
    %3539 = vmatpush1.msra.mxu0 0.0
    %3540 = vmatprep.subr.mxu0 0.0
    %3541 = vmatpush1.msra.mxu0 0.0
    %3542 = vmatprep.subr.mxu0 0.0
    %3543 = vmatpush1.msra.mxu0 0.0
    %3544 = vmatprep.subr.mxu0 0.0
    %3545 = vmatpush1.msra.mxu0 0.0
    %3546 = vmatprep.subr.mxu0 0.0
    %3547 = vmatpush1.msra.mxu0 0.0
    %3548 = vmatprep.subr.mxu0 0.0
    %3549 = vmatpush1.msra.mxu0 0.0
    %3550 = vmatprep.subr.mxu0 0.0
    %3551 = vmatpush1.msra.mxu0 0.0
    %3552 = vmatprep.subr.mxu0 0.0
    %3553 = vmatpush1.msra.mxu0 0.0
    %3554 = vmatprep.subr.mxu0 0.0
    %3555 = vmatpush1.msra.mxu0 0.0
    %3556 = vmatprep.subr.mxu0 0.0
    %3557 = vmatpush1.msra.mxu0 0.0
    %3558 = vmatprep.subr.mxu0 0.0
    %3559 = vmatpush1.msra.mxu0 0.0
    %3560 = vmatprep.subr.mxu0 0.0
    %3561 = vmatpush1.msra.mxu0 0.0
    %3562 = vmatprep.subr.mxu0 0.0
    %3563 = vmatpush1.msra.mxu0 0.0
    %3564 = vmatprep.subr.mxu0 0.0
    %3565 = vmatpush1.msra.mxu0 0.0
    %3566 = vmatprep.subr.mxu0 0.0
    %3567 = vmatpush1.msra.mxu0 0.0
    %3568 = vmatprep.subr.mxu0 0.0
    %3569 = vmatpush1.msra.mxu0 0.0
    %3570 = vmatprep.subr.mxu0 0.0
    %3571 = vmatpush1.msra.mxu0 0.0
    %3572 = vmatprep.subr.mxu0 0.0
    %3573 = vmatpush1.msra.mxu0 0.0
    %3574 = vmatprep.subr.mxu0 0.0
    %3575 = vmatpush1.msra.mxu0 0.0
    %3576 = vmatprep.subr.mxu0 0.0
    %3577 = vmatpush1.msra.mxu0 0.0
    %3578 = vmatprep.subr.mxu0 0.0
    %3579 = vmatpush1.msra.mxu0 0.0
    %3580 = vmatprep.subr.mxu0 0.0
    %3581 = vmatpush1.msra.mxu0 0.0
    %3582 = vmatprep.subr.mxu0 0.0
    %3583 = vmatpush1.msra.mxu0 0.0
    %3584 = vmatprep.subr.mxu0 0.0
    %3585 = vmatpush1.msra.mxu0 0.0
    %3586 = vmatprep.mubr.f32.mxu0 0.0
    %3587 = vmatmul.mubr.f32.gmra.mrb[0].mxu0 %v3520
    %v3588 = vpop.f32.mrb[0].mxu0
    %v3589 = vadd.f32 0.0, %v3588
    %v3590 = vpop.f32.mrb[0].mxu0
    %3591 = vdwg.mxu0
    %v3594 = vunpack.c.l.s4 1966171168
    %v3595 = vunpack.c.0.s8 %v3594
    %v3596 = vlaneseq
    %v3597 = vshrl.u32 %v3596, 7
    %v3598 = vsub.s32 %v3595, %v3597
    %v3599 = vrot.slane %v3516, %v3598
    %v3600 = vcombine.high %v3599, %v3599
    %v3602 = vunpack.c.l.s4 1966171168
    %v3603 = vunpack.c.0.s8 %v3602
    %v3604 = vlaneseq
    %v3605 = vshrl.u32 %v3604, 7
    %v3606 = vsub.s32 %v3603, %v3605
    %v3607 = vrot.slane %v3599, %v3606
    %v3609 = vunpack.c.l.s4 1966171168
    %v3610 = vunpack.c.0.s8 %v3609
    %v3611 = vlaneseq
    %v3612 = vshrl.u32 %v3611, 7
    %v3613 = vsub.s32 %v3610, %v3612
    %v3614 = vrot.slane %v3600, %v3613
    %v3615 = vlaneseq
    %v3616 = vshrl.u32 %v3615, 7
    %v3617 = vsub.s32 0, %v3616
    %v3618 = vrot.slane %v3607, %v3617
    %v3619 = vlaneseq
    %v3620 = vshrl.u32 %v3619, 7
    %v3621 = vsub.s32 0, %v3620
    %v3622 = vrot.slane %v3614, %v3621
    %v3625 = vsub.f32 %v3251, %v3618
    %v3626 = vsub.f32 %v3254, %v3622
    %v3629 = vunpack.c.l.s4 1966171168
    %v3630 = vunpack.c.0.s8 %v3629
    %v3631 = vlaneseq
    %v3632 = vshrl.u32 %v3631, 7
    %v3633 = vsub.s32 %v3630, %v3632
    %v3634 = vrot.slane %v3589, %v3633
    %v3635 = vcombine.high %v3634, %v3634
    %v3637 = vunpack.c.l.s4 1966171168
    %v3638 = vunpack.c.0.s8 %v3637
    %v3639 = vlaneseq
    %v3640 = vshrl.u32 %v3639, 7
    %v3641 = vsub.s32 %v3638, %v3640
    %v3642 = vrot.slane %v3634, %v3641
    %v3644 = vunpack.c.l.s4 1966171168
    %v3645 = vunpack.c.0.s8 %v3644
    %v3646 = vlaneseq
    %v3647 = vshrl.u32 %v3646, 7
    %v3648 = vsub.s32 %v3645, %v3647
    %v3649 = vrot.slane %v3635, %v3648
    %v3650 = vlaneseq
    %v3651 = vshrl.u32 %v3650, 7
    %v3652 = vsub.s32 0, %v3651
    %v3653 = vrot.slane %v3642, %v3652
    %v3654 = vlaneseq
    %v3655 = vshrl.u32 %v3654, 7
    %v3656 = vsub.s32 0, %v3655
    %v3657 = vrot.slane %v3649, %v3656
    %v3660 = vmul.f32 %v3625, %v3653
    %v3661 = vmul.f32 %v3626, %v3657
    %v3662 = vlaneseq
    %v3663 = vshrl.u32 %v3662, 7
    %v3664 = vsub.s32 0, %v3663
    %v3665 = vrot.slane %v3257, %v3664
    %v3666 = vmul.f32 %v3660, %v3665
    %v3667 = vmul.f32 %v3661, %v3665
    %v3668 = vlaneseq
    %v3669 = vshrl.u32 %v3668, 7
    %v3670 = vsub.s32 0, %v3669
    %v3671 = vrot.slane %v3258, %v3670
    %v3672 = vadd.f32 %v3666, %v3671
    %v3673 = vadd.f32 %v3667, %v3671
    %v3674 = vmax.f32 %v3672, 0.0
    %v3675 = vmax.f32 %v3673, 0.0
    %v3676 = vand.u32 2147483647, %v3672
    %v3677 = vand.u32 2147483647, %v3673
    %v3678 = vsub.f32 0.0, %v3676
    %v3679 = vsub.f32 0.0, %v3677
    %v3680 = vmul.f32 %v3678, 1.442695
    %v3681 = vpow.pop %v3680
    %v3682 = vmul.f32 %v3679, 1.442695
    %v3683 = vpow.pop %v3682
    %v3684 = vadd.f32 %v3681, 1.0
    %v3685 = vadd.f32 %v3683, 1.0
    %v3686 = vlog2.pop %v3684
    %v3687 = vmul.f32 %v3686, 0.6931472
    %v3688 = vlog2.pop %v3685
    %v3689 = vmul.f32 %v3688, 0.6931472
    %v3690 = vadd.f32 %v3674, %v3687
    %v3691 = vadd.f32 %v3675, %v3689
    %v3692 = vtanh.pop %v3690
    %v3693 = vtanh.pop %v3691
    %v3694 = vmul.f32 %v3672, %v3692
    %v3695 = vmul.f32 %v3673, %v3693
    %3698 = vrot.lane.b32.xlu0 %v2677, 96
    %v3699 = vpop.permute.xlu0 %3698
    %3700 = vrot.lane.b32.xlu0 %v2678, 96
    %v3701 = vpop.permute.xlu0 %3700
    %v3704 = vadd.f32 %v3694, %v3699
    %v3705 = vadd.f32 %v3695, %v3701
    %v3708 = vrot.slane %v3704, 7
    %v3709 = vrot.slane %v3705, 7
    %v3712 = vsel %vm2570, 0.0, %v3708
    %v3713 = vsel %vm2570, 0.0, %v3709
    %v3714 = vsel %vm2570, %v3708, 0.0
    %v3715 = vsel %vm2570, %v3709, 0.0
    %v3720 = vrot.slane %v3712, 1
    %v3721 = vrot.slane %v3714, 1
    %v3722 = vsel %vm188, %v3720, %v3721
    %v3723 = vrot.slane %v3713, 1
    %v3724 = vrot.slane %v3715, 1
    %v3725 = vsel %vm188, %v3723, %v3724
    %3726 = vrot.lane.b32.xlu0 %v3722, 32
    %v3727 = vpop.permute.xlu0 %3726
    %3728 = vrot.lane.b32.xlu0 %v3725, 32
    %v3729 = vpop.permute.xlu0 %3728
    %v3732 = vrot.slane %v3712, 2
    %v3733 = vrot.slane %v3714, 2
    %v3734 = vsel %vm201, %v3732, %v3733
    %v3735 = vrot.slane %v3713, 2
    %v3736 = vrot.slane %v3715, 2
    %v3737 = vsel %vm201, %v3735, %v3736
    %3738 = vrot.lane.b32.xlu0 %v3734, 64
    %v3739 = vpop.permute.xlu0 %3738
    %3740 = vrot.lane.b32.xlu0 %v3737, 64
    %v3741 = vpop.permute.xlu0 %3740
    %v3744 = vsel %vm874, %v3712, %v3727
    %v3745 = vsel %vm874, %v3713, %v3729
    %v3746 = vsel %vm880, %v3744, %v3739
    %v3747 = vsel %vm880, %v3745, %v3741
    %v3748 = vld [vmem:[#allocation2 + $0x278] sm:$0xff]
    %v3749 = vld [vmem:[#allocation2 + $0x280] sm:$0xff]
    %v3750 = vld [vmem:[#allocation2 + $0x288] sm:$0xff]
    %v3751 = vld [vmem:[#allocation2 + $0x290] sm:$0xff]
    %v3752 = vld [vmem:[#allocation2 + $0x298] sm:$0xff]
    %v3753 = vld [vmem:[#allocation2 + $0x2a0] sm:$0xff]
    %v3754 = vld [vmem:[#allocation2 + $0x2a8] sm:$0xff]
    %v3755 = vld [vmem:[#allocation2 + $0x2b0] sm:$0xff]
    %v3756 = vld [vmem:[#allocation2 + $0x2b8] sm:$0xff]
    %v3757 = vld [vmem:[#allocation2 + $0x2c0] sm:$0xff]
    %v3758 = vld [vmem:[#allocation2 + $0x2c8] sm:$0xff]
    %v3759 = vld [vmem:[#allocation2 + $0x2d0] sm:$0xff]
    %v3760 = vpack.c.bf16 %v3747, %v3746
    %v3761 = vpack.c.bf16 %v3749, %v3748
    %v3762 = vpack.c.bf16 %v3751, %v3750
    %v3763 = vpack.c.bf16 %v3753, %v3752
    %v3764 = vpack.c.bf16 %v3755, %v3754
    %v3765 = vpack.c.bf16 %v3757, %v3756
    %v3766 = vpack.c.bf16 %v3759, %v3758
    %v3767 = vld [vmem:[#allocation2 + $0x2d8] sm:$0x1]
    %v3768 = vlaneseq
    %v3769 = vshrl.u32 %v3768, 7
    %v3770 = vsub.s32 0, %v3769
    %v3771 = vrot.slane %v3767, %v3770
    %v3773 = vsel %vm3212, %v3760, 0
    %3775 = vmatprep.subr.bf16.mxu0 0
    %3776 = vmatpush1.bf16.msra.mxu0 %v3761
    %3777 = vmatprep.subr.bf16.mxu0 0
    %3778 = vmatpush1.bf16.msra.mxu0 %v3762
    %3779 = vmatprep.subr.bf16.mxu0 0
    %3780 = vmatpush1.bf16.msra.mxu0 %v3763
    %3781 = vmatprep.subr.bf16.mxu0 0
    %3782 = vmatpush1.bf16.msra.mxu0 %v3764
    %3783 = vmatprep.subr.bf16.mxu0 0
    %3784 = vmatpush1.bf16.msra.mxu0 %v3765
    %3785 = vmatprep.subr.bf16.mxu0 0
    %3786 = vmatpush1.bf16.msra.mxu0 %v3766
    %3787 = vmatprep.subr.bf16.mxu0 0
    %3788 = vmatpush1.bf16.msra.mxu0 0
    %3789 = vmatprep.subr.bf16.mxu0 0
    %3790 = vmatpush1.bf16.msra.mxu0 0
    %3791 = vmatprep.subr.bf16.mxu0 0
    %3792 = vmatpush1.bf16.msra.mxu0 0
    %3793 = vmatprep.subr.bf16.mxu0 0
    %3794 = vmatpush1.bf16.msra.mxu0 0
    %3795 = vmatprep.subr.bf16.mxu0 0
    %3796 = vmatpush1.bf16.msra.mxu0 0
    %3797 = vmatprep.subr.bf16.mxu0 0
    %3798 = vmatpush1.bf16.msra.mxu0 0
    %3799 = vmatprep.subr.bf16.mxu0 0
    %3800 = vmatpush1.bf16.msra.mxu0 0
    %3801 = vmatprep.subr.bf16.mxu0 0
    %3802 = vmatpush1.bf16.msra.mxu0 0
    %3803 = vmatprep.subr.bf16.mxu0 0
    %3804 = vmatpush1.bf16.msra.mxu0 0
    %3805 = vmatprep.subr.bf16.mxu0 0
    %3806 = vmatpush1.bf16.msra.mxu0 0
    %3807 = vmatprep.mubr.bf16.mxu0 0
    %3808 = vmatmul.mubr.bf16.gmra.mrb[0].mxu0 %v3773
    %v3809 = vpop.f32.mrb[0].mxu0
    %v3810 = vadd.f32 %v3771, %v3809
    %v3811 = vpop.f32.mrb[0].mxu0
    %v3812 = vpop.f32.mrb[0].mxu0
    %v3813 = vadd.f32 %v3771, %v3812
    %v3814 = vpop.f32.mrb[0].mxu0
    %3815 = vdwg.mxu0
    %v3816 = vld [vmem:[#allocation2 + $0x2e0] sm:$0x1]
    %v3817 = vld [vmem:[#allocation2 + $0x2e8] sm:$0x1]
    %v3818 = vsel %vm874, %v3810, 0.0
    %v3819 = vrot.slane %v3818, 4
    %v3820 = vadd.f32 %v3818, %v3819
    %v3821 = vrot.slane %v3820, 2
    %v3822 = vadd.f32 %v3820, %v3821
    %v3823 = vrot.slane %v3822, 1
    %v3824 = vadd.f32 %v3822, %v3823
    %v3825 = vsel %vm874, %v3813, 0.0
    %v3826 = vrot.slane %v3825, 4
    %v3827 = vadd.f32 %v3825, %v3826
    %v3828 = vrot.slane %v3827, 2
    %v3829 = vadd.f32 %v3827, %v3828
    %v3830 = vrot.slane %v3829, 1
    %v3831 = vadd.f32 %v3829, %v3830
    %v3834 = vsel %vm344, %v3831, %v3824
    %v3835 = vsel %vm874, %v3834, 0
    %3837 = vmatprep.subr.mxu0 0.0
    %3838 = vmatpush1.msra.mxu0 %v2679
    %3839 = vmatprep.subr.mxu0 0.0
    %3840 = vmatpush1.msra.mxu0 %v2680
    %3841 = vmatprep.subr.mxu0 0.0
    %3842 = vmatpush1.msra.mxu0 %v2681
    %3843 = vmatprep.subr.mxu0 0.0
    %3844 = vmatpush1.msra.mxu0 %v2682
    %3845 = vmatprep.subr.mxu0 0.0
    %3846 = vmatpush1.msra.mxu0 0.0
    %3847 = vmatprep.subr.mxu0 0.0
    %3848 = vmatpush1.msra.mxu0 0.0
    %3849 = vmatprep.subr.mxu0 0.0
    %3850 = vmatpush1.msra.mxu0 0.0
    %3851 = vmatprep.subr.mxu0 0.0
    %3852 = vmatpush1.msra.mxu0 0.0
    %3853 = vmatprep.subr.mxu0 0.0
    %3854 = vmatpush1.msra.mxu0 0.0
    %3855 = vmatprep.subr.mxu0 0.0
    %3856 = vmatpush1.msra.mxu0 0.0
    %3857 = vmatprep.subr.mxu0 0.0
    %3858 = vmatpush1.msra.mxu0 0.0
    %3859 = vmatprep.subr.mxu0 0.0
    %3860 = vmatpush1.msra.mxu0 0.0
    %3861 = vmatprep.subr.mxu0 0.0
    %3862 = vmatpush1.msra.mxu0 0.0
    %3863 = vmatprep.subr.mxu0 0.0
    %3864 = vmatpush1.msra.mxu0 0.0
    %3865 = vmatprep.subr.mxu0 0.0
    %3866 = vmatpush1.msra.mxu0 0.0
    %3867 = vmatprep.subr.mxu0 0.0
    %3868 = vmatpush1.msra.mxu0 0.0
    %3869 = vmatprep.subr.mxu0 0.0
    %3870 = vmatpush1.msra.mxu0 0.0
    %3871 = vmatprep.subr.mxu0 0.0
    %3872 = vmatpush1.msra.mxu0 0.0
    %3873 = vmatprep.subr.mxu0 0.0
    %3874 = vmatpush1.msra.mxu0 0.0
    %3875 = vmatprep.subr.mxu0 0.0
    %3876 = vmatpush1.msra.mxu0 0.0
    %3877 = vmatprep.subr.mxu0 0.0
    %3878 = vmatpush1.msra.mxu0 0.0
    %3879 = vmatprep.subr.mxu0 0.0
    %3880 = vmatpush1.msra.mxu0 0.0
    %3881 = vmatprep.subr.mxu0 0.0
    %3882 = vmatpush1.msra.mxu0 0.0
    %3883 = vmatprep.subr.mxu0 0.0
    %3884 = vmatpush1.msra.mxu0 0.0
    %3885 = vmatprep.subr.mxu0 0.0
    %3886 = vmatpush1.msra.mxu0 0.0
    %3887 = vmatprep.subr.mxu0 0.0
    %3888 = vmatpush1.msra.mxu0 0.0
    %3889 = vmatprep.subr.mxu0 0.0
    %3890 = vmatpush1.msra.mxu0 0.0
    %3891 = vmatprep.subr.mxu0 0.0
    %3892 = vmatpush1.msra.mxu0 0.0
    %3893 = vmatprep.subr.mxu0 0.0
    %3894 = vmatpush1.msra.mxu0 0.0
    %3895 = vmatprep.subr.mxu0 0.0
    %3896 = vmatpush1.msra.mxu0 0.0
    %3897 = vmatprep.subr.mxu0 0.0
    %3898 = vmatpush1.msra.mxu0 0.0
    %3899 = vmatprep.subr.mxu0 0.0
    %3900 = vmatpush1.msra.mxu0 0.0
    %3901 = vmatprep.mubr.f32.mxu0 0.0
    %3902 = vmatmul.mubr.f32.gmra.mrb[0].mxu0 %v3835
    %v3903 = vpop.f32.mrb[0].mxu0
    %v3904 = vadd.f32 0.0, %v3903
    %v3905 = vpop.f32.mrb[0].mxu0
    %3906 = vdwg.mxu0
    %v3907 = vmul.f32 %v3810, %v3810
    %v3908 = vmul.f32 %v3813, %v3813
    %v3909 = vsel %vm874, %v3907, 0.0
    %v3910 = vrot.slane %v3909, 4
    %v3911 = vadd.f32 %v3909, %v3910
    %v3912 = vrot.slane %v3911, 2
    %v3913 = vadd.f32 %v3911, %v3912
    %v3914 = vrot.slane %v3913, 1
    %v3915 = vadd.f32 %v3913, %v3914
    %v3916 = vsel %vm874, %v3908, 0.0
    %v3917 = vrot.slane %v3916, 4
    %v3918 = vadd.f32 %v3916, %v3917
    %v3919 = vrot.slane %v3918, 2
    %v3920 = vadd.f32 %v3918, %v3919
    %v3921 = vrot.slane %v3920, 1
    %v3922 = vadd.f32 %v3920, %v3921
    %v3925 = vsel %vm344, %v3922, %v3915
    %v3926 = vsel %vm874, %v3925, 0
    %3928 = vmatprep.subr.mxu0 0.0
    %3929 = vmatpush1.msra.mxu0 %v2679
    %3930 = vmatprep.subr.mxu0 0.0
    %3931 = vmatpush1.msra.mxu0 %v2680
    %3932 = vmatprep.subr.mxu0 0.0
    %3933 = vmatpush1.msra.mxu0 %v2681
    %3934 = vmatprep.subr.mxu0 0.0
    %3935 = vmatpush1.msra.mxu0 %v2682
    %3936 = vmatprep.subr.mxu0 0.0
    %3937 = vmatpush1.msra.mxu0 0.0
    %3938 = vmatprep.subr.mxu0 0.0
    %3939 = vmatpush1.msra.mxu0 0.0
    %3940 = vmatprep.subr.mxu0 0.0
    %3941 = vmatpush1.msra.mxu0 0.0
    %3942 = vmatprep.subr.mxu0 0.0
    %3943 = vmatpush1.msra.mxu0 0.0
    %3944 = vmatprep.subr.mxu0 0.0
    %3945 = vmatpush1.msra.mxu0 0.0
    %3946 = vmatprep.subr.mxu0 0.0
    %3947 = vmatpush1.msra.mxu0 0.0
    %3948 = vmatprep.subr.mxu0 0.0
    %3949 = vmatpush1.msra.mxu0 0.0
    %3950 = vmatprep.subr.mxu0 0.0
    %3951 = vmatpush1.msra.mxu0 0.0
    %3952 = vmatprep.subr.mxu0 0.0
    %3953 = vmatpush1.msra.mxu0 0.0
    %3954 = vmatprep.subr.mxu0 0.0
    %3955 = vmatpush1.msra.mxu0 0.0
    %3956 = vmatprep.subr.mxu0 0.0
    %3957 = vmatpush1.msra.mxu0 0.0
    %3958 = vmatprep.subr.mxu0 0.0
    %3959 = vmatpush1.msra.mxu0 0.0
    %3960 = vmatprep.subr.mxu0 0.0
    %3961 = vmatpush1.msra.mxu0 0.0
    %3962 = vmatprep.subr.mxu0 0.0
    %3963 = vmatpush1.msra.mxu0 0.0
    %3964 = vmatprep.subr.mxu0 0.0
    %3965 = vmatpush1.msra.mxu0 0.0
    %3966 = vmatprep.subr.mxu0 0.0
    %3967 = vmatpush1.msra.mxu0 0.0
    %3968 = vmatprep.subr.mxu0 0.0
    %3969 = vmatpush1.msra.mxu0 0.0
    %3970 = vmatprep.subr.mxu0 0.0
    %3971 = vmatpush1.msra.mxu0 0.0
    %3972 = vmatprep.subr.mxu0 0.0
    %3973 = vmatpush1.msra.mxu0 0.0
    %3974 = vmatprep.subr.mxu0 0.0
    %3975 = vmatpush1.msra.mxu0 0.0
    %3976 = vmatprep.subr.mxu0 0.0
    %3977 = vmatpush1.msra.mxu0 0.0
    %3978 = vmatprep.subr.mxu0 0.0
    %3979 = vmatpush1.msra.mxu0 0.0
    %3980 = vmatprep.subr.mxu0 0.0
    %3981 = vmatpush1.msra.mxu0 0.0
    %3982 = vmatprep.subr.mxu0 0.0
    %3983 = vmatpush1.msra.mxu0 0.0
    %3984 = vmatprep.subr.mxu0 0.0
    %3985 = vmatpush1.msra.mxu0 0.0
    %3986 = vmatprep.subr.mxu0 0.0
    %3987 = vmatpush1.msra.mxu0 0.0
    %3988 = vmatprep.subr.mxu0 0.0
    %3989 = vmatpush1.msra.mxu0 0.0
    %3990 = vmatprep.subr.mxu0 0.0
    %3991 = vmatpush1.msra.mxu0 0.0
    %3992 = vmatprep.mubr.f32.mxu0 0.0
    %3993 = vmatmul.mubr.f32.gmra.mrb[0].mxu0 %v3926
    %v3994 = vpop.f32.mrb[0].mxu0
    %v3995 = vadd.f32 0.0, %v3994
    %v3996 = vpop.f32.mrb[0].mxu0
    %3997 = vdwg.mxu0
    %v3998 = vmul.f32 %v3904, %v2866
    %v3999 = vmul.f32 %v3995, %v2866
    %v4000 = vmul.f32 %v3998, %v3998
    %v4001 = vsub.f32 %v3999, %v4000
    %v4002 = vmax.f32 %v4001, 0.0
    %v4003 = vadd.f32 %v4002, 1e-05
    %v4004 = vrsqrt.pop %v4003
    %v4006 = vsel %vm243, %v3998, 0
    %4008 = vmatprep.subr.mxu0 0.0
    %4009 = vmatpush1.msra.mxu0 %v2683
    %4010 = vmatprep.subr.mxu0 0.0
    %4011 = vmatpush1.msra.mxu0 0.0
    %4012 = vmatprep.subr.mxu0 0.0
    %4013 = vmatpush1.msra.mxu0 0.0
    %4014 = vmatprep.subr.mxu0 0.0
    %4015 = vmatpush1.msra.mxu0 0.0
    %4016 = vmatprep.subr.mxu0 0.0
    %4017 = vmatpush1.msra.mxu0 0.0
    %4018 = vmatprep.subr.mxu0 0.0
    %4019 = vmatpush1.msra.mxu0 0.0
    %4020 = vmatprep.subr.mxu0 0.0
    %4021 = vmatpush1.msra.mxu0 0.0
    %4022 = vmatprep.subr.mxu0 0.0
    %4023 = vmatpush1.msra.mxu0 0.0
    %4024 = vmatprep.subr.mxu0 0.0
    %4025 = vmatpush1.msra.mxu0 0.0
    %4026 = vmatprep.subr.mxu0 0.0
    %4027 = vmatpush1.msra.mxu0 0.0
    %4028 = vmatprep.subr.mxu0 0.0
    %4029 = vmatpush1.msra.mxu0 0.0
    %4030 = vmatprep.subr.mxu0 0.0
    %4031 = vmatpush1.msra.mxu0 0.0
    %4032 = vmatprep.subr.mxu0 0.0
    %4033 = vmatpush1.msra.mxu0 0.0
    %4034 = vmatprep.subr.mxu0 0.0
    %4035 = vmatpush1.msra.mxu0 0.0
    %4036 = vmatprep.subr.mxu0 0.0
    %4037 = vmatpush1.msra.mxu0 0.0
    %4038 = vmatprep.subr.mxu0 0.0
    %4039 = vmatpush1.msra.mxu0 0.0
    %4040 = vmatprep.subr.mxu0 0.0
    %4041 = vmatpush1.msra.mxu0 0.0
    %4042 = vmatprep.subr.mxu0 0.0
    %4043 = vmatpush1.msra.mxu0 0.0
    %4044 = vmatprep.subr.mxu0 0.0
    %4045 = vmatpush1.msra.mxu0 0.0
    %4046 = vmatprep.subr.mxu0 0.0
    %4047 = vmatpush1.msra.mxu0 0.0
    %4048 = vmatprep.subr.mxu0 0.0
    %4049 = vmatpush1.msra.mxu0 0.0
    %4050 = vmatprep.subr.mxu0 0.0
    %4051 = vmatpush1.msra.mxu0 0.0
    %4052 = vmatprep.subr.mxu0 0.0
    %4053 = vmatpush1.msra.mxu0 0.0
    %4054 = vmatprep.subr.mxu0 0.0
    %4055 = vmatpush1.msra.mxu0 0.0
    %4056 = vmatprep.subr.mxu0 0.0
    %4057 = vmatpush1.msra.mxu0 0.0
    %4058 = vmatprep.subr.mxu0 0.0
    %4059 = vmatpush1.msra.mxu0 0.0
    %4060 = vmatprep.subr.mxu0 0.0
    %4061 = vmatpush1.msra.mxu0 0.0
    %4062 = vmatprep.subr.mxu0 0.0
    %4063 = vmatpush1.msra.mxu0 0.0
    %4064 = vmatprep.subr.mxu0 0.0
    %4065 = vmatpush1.msra.mxu0 0.0
    %4066 = vmatprep.subr.mxu0 0.0
    %4067 = vmatpush1.msra.mxu0 0.0
    %4068 = vmatprep.subr.mxu0 0.0
    %4069 = vmatpush1.msra.mxu0 0.0
    %4070 = vmatprep.subr.mxu0 0.0
    %4071 = vmatpush1.msra.mxu0 0.0
    %4072 = vmatprep.mubr.f32.mxu0 0.0
    %4073 = vmatmul.mubr.f32.gmra.mrb[0].mxu0 %v4006
    %v4074 = vpop.f32.mrb[0].mxu0
    %v4075 = vadd.f32 0.0, %v4074
    %v4076 = vpop.f32.mrb[0].mxu0
    %4077 = vdwg.mxu0
    %v4079 = vsel %vm243, %v4004, 0
    %4081 = vmatprep.subr.mxu0 0.0
    %4082 = vmatpush1.msra.mxu0 %v2683
    %4083 = vmatprep.subr.mxu0 0.0
    %4084 = vmatpush1.msra.mxu0 0.0
    %4085 = vmatprep.subr.mxu0 0.0
    %4086 = vmatpush1.msra.mxu0 0.0
    %4087 = vmatprep.subr.mxu0 0.0
    %4088 = vmatpush1.msra.mxu0 0.0
    %4089 = vmatprep.subr.mxu0 0.0
    %4090 = vmatpush1.msra.mxu0 0.0
    %4091 = vmatprep.subr.mxu0 0.0
    %4092 = vmatpush1.msra.mxu0 0.0
    %4093 = vmatprep.subr.mxu0 0.0
    %4094 = vmatpush1.msra.mxu0 0.0
    %4095 = vmatprep.subr.mxu0 0.0
    %4096 = vmatpush1.msra.mxu0 0.0
    %4097 = vmatprep.subr.mxu0 0.0
    %4098 = vmatpush1.msra.mxu0 0.0
    %4099 = vmatprep.subr.mxu0 0.0
    %4100 = vmatpush1.msra.mxu0 0.0
    %4101 = vmatprep.subr.mxu0 0.0
    %4102 = vmatpush1.msra.mxu0 0.0
    %4103 = vmatprep.subr.mxu0 0.0
    %4104 = vmatpush1.msra.mxu0 0.0
    %4105 = vmatprep.subr.mxu0 0.0
    %4106 = vmatpush1.msra.mxu0 0.0
    %4107 = vmatprep.subr.mxu0 0.0
    %4108 = vmatpush1.msra.mxu0 0.0
    %4109 = vmatprep.subr.mxu0 0.0
    %4110 = vmatpush1.msra.mxu0 0.0
    %4111 = vmatprep.subr.mxu0 0.0
    %4112 = vmatpush1.msra.mxu0 0.0
    %4113 = vmatprep.subr.mxu0 0.0
    %4114 = vmatpush1.msra.mxu0 0.0
    %4115 = vmatprep.subr.mxu0 0.0
    %4116 = vmatpush1.msra.mxu0 0.0
    %4117 = vmatprep.subr.mxu0 0.0
    %4118 = vmatpush1.msra.mxu0 0.0
    %4119 = vmatprep.subr.mxu0 0.0
    %4120 = vmatpush1.msra.mxu0 0.0
    %4121 = vmatprep.subr.mxu0 0.0
    %4122 = vmatpush1.msra.mxu0 0.0
    %4123 = vmatprep.subr.mxu0 0.0
    %4124 = vmatpush1.msra.mxu0 0.0
    %4125 = vmatprep.subr.mxu0 0.0
    %4126 = vmatpush1.msra.mxu0 0.0
    %4127 = vmatprep.subr.mxu0 0.0
    %4128 = vmatpush1.msra.mxu0 0.0
    %4129 = vmatprep.subr.mxu0 0.0
    %4130 = vmatpush1.msra.mxu0 0.0
    %4131 = vmatprep.subr.mxu0 0.0
    %4132 = vmatpush1.msra.mxu0 0.0
    %4133 = vmatprep.subr.mxu0 0.0
    %4134 = vmatpush1.msra.mxu0 0.0
    %4135 = vmatprep.subr.mxu0 0.0
    %4136 = vmatpush1.msra.mxu0 0.0
    %4137 = vmatprep.subr.mxu0 0.0
    %4138 = vmatpush1.msra.mxu0 0.0
    %4139 = vmatprep.subr.mxu0 0.0
    %4140 = vmatpush1.msra.mxu0 0.0
    %4141 = vmatprep.subr.mxu0 0.0
    %4142 = vmatpush1.msra.mxu0 0.0
    %4143 = vmatprep.subr.mxu0 0.0
    %4144 = vmatpush1.msra.mxu0 0.0
    %4145 = vmatprep.mubr.f32.mxu0 0.0
    %4146 = vmatmul.mubr.f32.gmra.mrb[0].mxu0 %v4079
    %v4147 = vpop.f32.mrb[0].mxu0
    %v4148 = vadd.f32 0.0, %v4147
    %v4149 = vpop.f32.mrb[0].mxu0
    %4150 = vdwg.mxu0
    %v4153 = vunpack.c.l.s4 1966171168
    %v4154 = vunpack.c.0.s8 %v4153
    %v4155 = vlaneseq
    %v4156 = vshrl.u32 %v4155, 7
    %v4157 = vsub.s32 %v4154, %v4156
    %v4158 = vrot.slane %v4075, %v4157
    %v4159 = vcombine.high %v4158, %v4158
    %v4161 = vunpack.c.l.s4 1966171168
    %v4162 = vunpack.c.0.s8 %v4161
    %v4163 = vlaneseq
    %v4164 = vshrl.u32 %v4163, 7
    %v4165 = vsub.s32 %v4162, %v4164
    %v4166 = vrot.slane %v4158, %v4165
    %v4168 = vunpack.c.l.s4 1966171168
    %v4169 = vunpack.c.0.s8 %v4168
    %v4170 = vlaneseq
    %v4171 = vshrl.u32 %v4170, 7
    %v4172 = vsub.s32 %v4169, %v4171
    %v4173 = vrot.slane %v4159, %v4172
    %v4174 = vlaneseq
    %v4175 = vshrl.u32 %v4174, 7
    %v4176 = vsub.s32 0, %v4175
    %v4177 = vrot.slane %v4166, %v4176
    %v4178 = vlaneseq
    %v4179 = vshrl.u32 %v4178, 7
    %v4180 = vsub.s32 0, %v4179
    %v4181 = vrot.slane %v4173, %v4180
    %v4184 = vsub.f32 %v3810, %v4177
    %v4185 = vsub.f32 %v3813, %v4181
    %v4188 = vunpack.c.l.s4 1966171168
    %v4189 = vunpack.c.0.s8 %v4188
    %v4190 = vlaneseq
    %v4191 = vshrl.u32 %v4190, 7
    %v4192 = vsub.s32 %v4189, %v4191
    %v4193 = vrot.slane %v4148, %v4192
    %v4194 = vcombine.high %v4193, %v4193
    %v4196 = vunpack.c.l.s4 1966171168
    %v4197 = vunpack.c.0.s8 %v4196
    %v4198 = vlaneseq
    %v4199 = vshrl.u32 %v4198, 7
    %v4200 = vsub.s32 %v4197, %v4199
    %v4201 = vrot.slane %v4193, %v4200
    %v4203 = vunpack.c.l.s4 1966171168
    %v4204 = vunpack.c.0.s8 %v4203
    %v4205 = vlaneseq
    %v4206 = vshrl.u32 %v4205, 7
    %v4207 = vsub.s32 %v4204, %v4206
    %v4208 = vrot.slane %v4194, %v4207
    %v4209 = vlaneseq
    %v4210 = vshrl.u32 %v4209, 7
    %v4211 = vsub.s32 0, %v4210
    %v4212 = vrot.slane %v4201, %v4211
    %v4213 = vlaneseq
    %v4214 = vshrl.u32 %v4213, 7
    %v4215 = vsub.s32 0, %v4214
    %v4216 = vrot.slane %v4208, %v4215
    %v4219 = vmul.f32 %v4184, %v4212
    %v4220 = vmul.f32 %v4185, %v4216
    %v4221 = vlaneseq
    %v4222 = vshrl.u32 %v4221, 7
    %v4223 = vsub.s32 0, %v4222
    %v4224 = vrot.slane %v3816, %v4223
    %v4225 = vmul.f32 %v4219, %v4224
    %v4226 = vmul.f32 %v4220, %v4224
    %v4227 = vlaneseq
    %v4228 = vshrl.u32 %v4227, 7
    %v4229 = vsub.s32 0, %v4228
    %v4230 = vrot.slane %v3817, %v4229
    %v4231 = vadd.f32 %v4225, %v4230
    %v4232 = vadd.f32 %v4226, %v4230
    %v4233 = vmax.f32 %v4231, 0.0
    %v4234 = vmax.f32 %v4232, 0.0
    %v4235 = vand.u32 2147483647, %v4231
    %v4236 = vand.u32 2147483647, %v4232
    %v4237 = vsub.f32 0.0, %v4235
    %v4238 = vsub.f32 0.0, %v4236
    %v4239 = vmul.f32 %v4237, 1.442695
    %v4240 = vpow.pop %v4239
    %v4241 = vmul.f32 %v4238, 1.442695
    %v4242 = vpow.pop %v4241
    %v4243 = vadd.f32 %v4240, 1.0
    %v4244 = vadd.f32 %v4242, 1.0
    %v4245 = vlog2.pop %v4243
    %v4246 = vmul.f32 %v4245, 0.6931472
    %v4247 = vlog2.pop %v4244
    %v4248 = vmul.f32 %v4247, 0.6931472
    %v4249 = vadd.f32 %v4233, %v4246
    %v4250 = vadd.f32 %v4234, %v4248
    %v4251 = vtanh.pop %v4249
    %v4252 = vtanh.pop %v4250
    %v4253 = vmul.f32 %v4231, %v4251
    %v4254 = vmul.f32 %v4232, %v4252
    %v4257 = vunpack.c.l.s4 1966171168
    %v4258 = vunpack.c.0.s8 %v4257
    %v4259 = vlaneseq
    %v4260 = vshrl.u32 %v4259, 7
    %v4261 = vsub.s32 %v4258, %v4260
    %v4262 = vrot.slane %v129, %v4261
    %v4263 = vcombine.high %v4262, %v4262
    %v4265 = vunpack.c.l.s4 1966171168
    %v4266 = vunpack.c.0.s8 %v4265
    %v4267 = vlaneseq
    %v4268 = vshrl.u32 %v4267, 7
    %v4269 = vsub.s32 %v4266, %v4268
    %v4270 = vrot.slane %v4262, %v4269
    %v4272 = vunpack.c.l.s4 1966171168
    %v4273 = vunpack.c.0.s8 %v4272
    %v4274 = vlaneseq
    %v4275 = vshrl.u32 %v4274, 7
    %v4276 = vsub.s32 %v4273, %v4275
    %v4277 = vrot.slane %v4263, %v4276
    %v4278 = vlaneseq
    %v4279 = vshrl.u32 %v4278, 7
    %v4280 = vsub.s32 0, %v4279
    %v4281 = vrot.slane %v4270, %v4280
    %v4282 = vlaneseq
    %v4283 = vshrl.u32 %v4282, 7
    %v4284 = vsub.s32 0, %v4283
    %v4285 = vrot.slane %v4277, %v4284
    %v4288 = vmul.f32 %v4281, %v4253
    %v4289 = vmul.f32 %v4285, %v4254
    %4290 = vrot.lane.b32.xlu0 %v4281, 96
    %v4291 = vpop.permute.xlu0 %4290
    %4292 = vrot.lane.b32.xlu0 %v4285, 96
    %v4293 = vpop.permute.xlu0 %4292
    %v4296 = vadd.f32 %v4288, %v4291
    %v4297 = vadd.f32 %v4289, %v4293
    %v4300 = vrot.slane %v4296, 7
    %v4301 = vrot.slane %v4297, 7
    %v4304 = vsel %vm2570, 0.0, %v4300
    %v4305 = vsel %vm2570, 0.0, %v4301
    %v4306 = vsel %vm2570, %v4300, 0.0
    %v4307 = vsel %vm2570, %v4301, 0.0
    %v4312 = vrot.slane %v4304, 1
    %v4313 = vrot.slane %v4306, 1
    %v4314 = vsel %vm188, %v4312, %v4313
    %v4315 = vrot.slane %v4305, 1
    %v4316 = vrot.slane %v4307, 1
    %v4317 = vsel %vm188, %v4315, %v4316
    %4318 = vrot.lane.b32.xlu0 %v4314, 32
    %v4319 = vpop.permute.xlu0 %4318
    %4320 = vrot.lane.b32.xlu0 %v4317, 32
    %v4321 = vpop.permute.xlu0 %4320
    %v4324 = vrot.slane %v4304, 2
    %v4325 = vrot.slane %v4306, 2
    %v4326 = vsel %vm201, %v4324, %v4325
    %v4327 = vrot.slane %v4305, 2
    %v4328 = vrot.slane %v4307, 2
    %v4329 = vsel %vm201, %v4327, %v4328
    %4330 = vrot.lane.b32.xlu0 %v4326, 64
    %v4331 = vpop.permute.xlu0 %4330
    %4332 = vrot.lane.b32.xlu0 %v4329, 64
    %v4333 = vpop.permute.xlu0 %4332
    %v4336 = vsel %vm874, %v4304, %v4319
    %v4337 = vsel %vm874, %v4305, %v4321
    %v4338 = vsel %vm880, %v4336, %v4331
    %v4339 = vsel %vm880, %v4337, %v4333
    %v4340 = vld [vmem:[#allocation2 + $0x2f0] sm:$0xff]
    %v4341 = vld [vmem:[#allocation2 + $0x2f8] sm:$0xff]
    %v4342 = vld [vmem:[#allocation2 + $0x300] sm:$0xff]
    %v4343 = vld [vmem:[#allocation2 + $0x308] sm:$0xff]
    %v4344 = vld [vmem:[#allocation2 + $0x310] sm:$0xff]
    %v4345 = vld [vmem:[#allocation2 + $0x318] sm:$0xff]
    %v4346 = vld [vmem:[#allocation2 + $0x320] sm:$0xff]
    %v4347 = vld [vmem:[#allocation2 + $0x328] sm:$0xff]
    %v4348 = vld [vmem:[#allocation2 + $0x330] sm:$0xff]
    %v4349 = vld [vmem:[#allocation2 + $0x338] sm:$0xff]
    %v4350 = vld [vmem:[#allocation2 + $0x340] sm:$0xff]
    %v4351 = vld [vmem:[#allocation2 + $0x348] sm:$0xff]
    %v4352 = vpack.c.bf16 %v4339, %v4338
    %v4353 = vpack.c.bf16 %v4341, %v4340
    %v4354 = vpack.c.bf16 %v4343, %v4342
    %v4355 = vpack.c.bf16 %v4345, %v4344
    %v4356 = vpack.c.bf16 %v4347, %v4346
    %v4357 = vpack.c.bf16 %v4349, %v4348
    %v4358 = vpack.c.bf16 %v4351, %v4350
    %v4359 = vld [vmem:[#allocation2 + $0x350] sm:$0x1]
    %v4360 = vlaneseq
    %v4361 = vshrl.u32 %v4360, 7
    %v4362 = vsub.s32 0, %v4361
    %v4363 = vrot.slane %v4359, %v4362
    %v4365 = vsel %vm3212, %v4352, 0
    %4367 = vmatprep.subr.bf16.mxu0 0
    %4368 = vmatpush1.bf16.msra.mxu0 %v4353
    %4369 = vmatprep.subr.bf16.mxu0 0
    %4370 = vmatpush1.bf16.msra.mxu0 %v4354
    %4371 = vmatprep.subr.bf16.mxu0 0
    %4372 = vmatpush1.bf16.msra.mxu0 %v4355
    %4373 = vmatprep.subr.bf16.mxu0 0
    %4374 = vmatpush1.bf16.msra.mxu0 %v4356
    %4375 = vmatprep.subr.bf16.mxu0 0
    %4376 = vmatpush1.bf16.msra.mxu0 %v4357
    %4377 = vmatprep.subr.bf16.mxu0 0
    %4378 = vmatpush1.bf16.msra.mxu0 %v4358
    %4379 = vmatprep.subr.bf16.mxu0 0
    %4380 = vmatpush1.bf16.msra.mxu0 0
    %4381 = vmatprep.subr.bf16.mxu0 0
    %4382 = vmatpush1.bf16.msra.mxu0 0
    %4383 = vmatprep.subr.bf16.mxu0 0
    %4384 = vmatpush1.bf16.msra.mxu0 0
    %4385 = vmatprep.subr.bf16.mxu0 0
    %4386 = vmatpush1.bf16.msra.mxu0 0
    %4387 = vmatprep.subr.bf16.mxu0 0
    %4388 = vmatpush1.bf16.msra.mxu0 0
    %4389 = vmatprep.subr.bf16.mxu0 0
    %4390 = vmatpush1.bf16.msra.mxu0 0
    %4391 = vmatprep.subr.bf16.mxu0 0
    %4392 = vmatpush1.bf16.msra.mxu0 0
    %4393 = vmatprep.subr.bf16.mxu0 0
    %4394 = vmatpush1.bf16.msra.mxu0 0
    %4395 = vmatprep.subr.bf16.mxu0 0
    %4396 = vmatpush1.bf16.msra.mxu0 0
    %4397 = vmatprep.subr.bf16.mxu0 0
    %4398 = vmatpush1.bf16.msra.mxu0 0
    %4399 = vmatprep.mubr.bf16.mxu0 0
    %4400 = vmatmul.mubr.bf16.gmra.mrb[0].mxu0 %v4365
    %v4401 = vpop.f32.mrb[0].mxu0
    %v4402 = vadd.f32 %v4363, %v4401
    %v4403 = vpop.f32.mrb[0].mxu0
    %v4404 = vpop.f32.mrb[0].mxu0
    %v4405 = vadd.f32 %v4363, %v4404
    %v4406 = vpop.f32.mrb[0].mxu0
    %4407 = vdwg.mxu0
    %v4408 = vld [vmem:[#allocation2 + $0x358] sm:$0x1]
    %v4409 = vld [vmem:[#allocation2 + $0x360] sm:$0x1]
    %v4410 = vsel %vm874, %v4402, 0.0
    %v4411 = vrot.slane %v4410, 4
    %v4412 = vadd.f32 %v4410, %v4411
    %v4413 = vrot.slane %v4412, 2
    %v4414 = vadd.f32 %v4412, %v4413
    %v4415 = vrot.slane %v4414, 1
    %v4416 = vadd.f32 %v4414, %v4415
    %v4417 = vsel %vm874, %v4405, 0.0
    %v4418 = vrot.slane %v4417, 4
    %v4419 = vadd.f32 %v4417, %v4418
    %v4420 = vrot.slane %v4419, 2
    %v4421 = vadd.f32 %v4419, %v4420
    %v4422 = vrot.slane %v4421, 1
    %v4423 = vadd.f32 %v4421, %v4422
    %v4426 = vsel %vm344, %v4423, %v4416
    %v4427 = vsel %vm874, %v4426, 0
    %4429 = vmatprep.subr.mxu0 0.0
    %4430 = vmatpush1.msra.mxu0 %v2679
    %4431 = vmatprep.subr.mxu0 0.0
    %4432 = vmatpush1.msra.mxu0 %v2680
    %4433 = vmatprep.subr.mxu0 0.0
    %4434 = vmatpush1.msra.mxu0 %v2681
    %4435 = vmatprep.subr.mxu0 0.0
    %4436 = vmatpush1.msra.mxu0 %v2682
    %4437 = vmatprep.subr.mxu0 0.0
    %4438 = vmatpush1.msra.mxu0 0.0
    %4439 = vmatprep.subr.mxu0 0.0
    %4440 = vmatpush1.msra.mxu0 0.0
    %4441 = vmatprep.subr.mxu0 0.0
    %4442 = vmatpush1.msra.mxu0 0.0
    %4443 = vmatprep.subr.mxu0 0.0
    %4444 = vmatpush1.msra.mxu0 0.0
    %4445 = vmatprep.subr.mxu0 0.0
    %4446 = vmatpush1.msra.mxu0 0.0
    %4447 = vmatprep.subr.mxu0 0.0
    %4448 = vmatpush1.msra.mxu0 0.0
    %4449 = vmatprep.subr.mxu0 0.0
    %4450 = vmatpush1.msra.mxu0 0.0
    %4451 = vmatprep.subr.mxu0 0.0
    %4452 = vmatpush1.msra.mxu0 0.0
    %4453 = vmatprep.subr.mxu0 0.0
    %4454 = vmatpush1.msra.mxu0 0.0
    %4455 = vmatprep.subr.mxu0 0.0
    %4456 = vmatpush1.msra.mxu0 0.0
    %4457 = vmatprep.subr.mxu0 0.0
    %4458 = vmatpush1.msra.mxu0 0.0
    %4459 = vmatprep.subr.mxu0 0.0
    %4460 = vmatpush1.msra.mxu0 0.0
    %4461 = vmatprep.subr.mxu0 0.0
    %4462 = vmatpush1.msra.mxu0 0.0
    %4463 = vmatprep.subr.mxu0 0.0
    %4464 = vmatpush1.msra.mxu0 0.0
    %4465 = vmatprep.subr.mxu0 0.0
    %4466 = vmatpush1.msra.mxu0 0.0
    %4467 = vmatprep.subr.mxu0 0.0
    %4468 = vmatpush1.msra.mxu0 0.0
    %4469 = vmatprep.subr.mxu0 0.0
    %4470 = vmatpush1.msra.mxu0 0.0
    %4471 = vmatprep.subr.mxu0 0.0
    %4472 = vmatpush1.msra.mxu0 0.0
    %4473 = vmatprep.subr.mxu0 0.0
    %4474 = vmatpush1.msra.mxu0 0.0
    %4475 = vmatprep.subr.mxu0 0.0
    %4476 = vmatpush1.msra.mxu0 0.0
    %4477 = vmatprep.subr.mxu0 0.0
    %4478 = vmatpush1.msra.mxu0 0.0
    %4479 = vmatprep.subr.mxu0 0.0
    %4480 = vmatpush1.msra.mxu0 0.0
    %4481 = vmatprep.subr.mxu0 0.0
    %4482 = vmatpush1.msra.mxu0 0.0
    %4483 = vmatprep.subr.mxu0 0.0
    %4484 = vmatpush1.msra.mxu0 0.0
    %4485 = vmatprep.subr.mxu0 0.0
    %4486 = vmatpush1.msra.mxu0 0.0
    %4487 = vmatprep.subr.mxu0 0.0
    %4488 = vmatpush1.msra.mxu0 0.0
    %4489 = vmatprep.subr.mxu0 0.0
    %4490 = vmatpush1.msra.mxu0 0.0
    %4491 = vmatprep.subr.mxu0 0.0
    %4492 = vmatpush1.msra.mxu0 0.0
    %4493 = vmatprep.mubr.f32.mxu0 0.0
    %4494 = vmatmul.mubr.f32.gmra.mrb[0].mxu0 %v4427
    %v4495 = vpop.f32.mrb[0].mxu0
    %v4496 = vadd.f32 0.0, %v4495
    %v4497 = vpop.f32.mrb[0].mxu0
    %4498 = vdwg.mxu0
    %v4499 = vmul.f32 %v4402, %v4402
    %v4500 = vmul.f32 %v4405, %v4405
    %v4501 = vsel %vm874, %v4499, 0.0
    %v4502 = vrot.slane %v4501, 4
    %v4503 = vadd.f32 %v4501, %v4502
    %v4504 = vrot.slane %v4503, 2
    %v4505 = vadd.f32 %v4503, %v4504
    %v4506 = vrot.slane %v4505, 1
    %v4507 = vadd.f32 %v4505, %v4506
    %v4508 = vsel %vm874, %v4500, 0.0
    %v4509 = vrot.slane %v4508, 4
    %v4510 = vadd.f32 %v4508, %v4509
    %v4511 = vrot.slane %v4510, 2
    %v4512 = vadd.f32 %v4510, %v4511
    %v4513 = vrot.slane %v4512, 1
    %v4514 = vadd.f32 %v4512, %v4513
    %v4517 = vsel %vm344, %v4514, %v4507
    %v4518 = vsel %vm874, %v4517, 0
    %4520 = vmatprep.subr.mxu0 0.0
    %4521 = vmatpush1.msra.mxu0 %v2679
    %4522 = vmatprep.subr.mxu0 0.0
    %4523 = vmatpush1.msra.mxu0 %v2680
    %4524 = vmatprep.subr.mxu0 0.0
    %4525 = vmatpush1.msra.mxu0 %v2681
    %4526 = vmatprep.subr.mxu0 0.0
    %4527 = vmatpush1.msra.mxu0 %v2682
    %4528 = vmatprep.subr.mxu0 0.0
    %4529 = vmatpush1.msra.mxu0 0.0
    %4530 = vmatprep.subr.mxu0 0.0
    %4531 = vmatpush1.msra.mxu0 0.0
    %4532 = vmatprep.subr.mxu0 0.0
    %4533 = vmatpush1.msra.mxu0 0.0
    %4534 = vmatprep.subr.mxu0 0.0
    %4535 = vmatpush1.msra.mxu0 0.0
    %4536 = vmatprep.subr.mxu0 0.0
    %4537 = vmatpush1.msra.mxu0 0.0
    %4538 = vmatprep.subr.mxu0 0.0
    %4539 = vmatpush1.msra.mxu0 0.0
    %4540 = vmatprep.subr.mxu0 0.0
    %4541 = vmatpush1.msra.mxu0 0.0
    %4542 = vmatprep.subr.mxu0 0.0
    %4543 = vmatpush1.msra.mxu0 0.0
    %4544 = vmatprep.subr.mxu0 0.0
    %4545 = vmatpush1.msra.mxu0 0.0
    %4546 = vmatprep.subr.mxu0 0.0
    %4547 = vmatpush1.msra.mxu0 0.0
    %4548 = vmatprep.subr.mxu0 0.0
    %4549 = vmatpush1.msra.mxu0 0.0
    %4550 = vmatprep.subr.mxu0 0.0
    %4551 = vmatpush1.msra.mxu0 0.0
    %4552 = vmatprep.subr.mxu0 0.0
    %4553 = vmatpush1.msra.mxu0 0.0
    %4554 = vmatprep.subr.mxu0 0.0
    %4555 = vmatpush1.msra.mxu0 0.0
    %4556 = vmatprep.subr.mxu0 0.0
    %4557 = vmatpush1.msra.mxu0 0.0
    %4558 = vmatprep.subr.mxu0 0.0
    %4559 = vmatpush1.msra.mxu0 0.0
    %4560 = vmatprep.subr.mxu0 0.0
    %4561 = vmatpush1.msra.mxu0 0.0
    %4562 = vmatprep.subr.mxu0 0.0
    %4563 = vmatpush1.msra.mxu0 0.0
    %4564 = vmatprep.subr.mxu0 0.0
    %4565 = vmatpush1.msra.mxu0 0.0
    %4566 = vmatprep.subr.mxu0 0.0
    %4567 = vmatpush1.msra.mxu0 0.0
    %4568 = vmatprep.subr.mxu0 0.0
    %4569 = vmatpush1.msra.mxu0 0.0
    %4570 = vmatprep.subr.mxu0 0.0
    %4571 = vmatpush1.msra.mxu0 0.0
    %4572 = vmatprep.subr.mxu0 0.0
    %4573 = vmatpush1.msra.mxu0 0.0
    %4574 = vmatprep.subr.mxu0 0.0
    %4575 = vmatpush1.msra.mxu0 0.0
    %4576 = vmatprep.subr.mxu0 0.0
    %4577 = vmatpush1.msra.mxu0 0.0
    %4578 = vmatprep.subr.mxu0 0.0
    %4579 = vmatpush1.msra.mxu0 0.0
    %4580 = vmatprep.subr.mxu0 0.0
    %4581 = vmatpush1.msra.mxu0 0.0
    %4582 = vmatprep.subr.mxu0 0.0
    %4583 = vmatpush1.msra.mxu0 0.0
    %4584 = vmatprep.mubr.f32.mxu0 0.0
    %4585 = vmatmul.mubr.f32.gmra.mrb[0].mxu0 %v4518
    %v4586 = vpop.f32.mrb[0].mxu0
    %v4587 = vadd.f32 0.0, %v4586
    %v4588 = vpop.f32.mrb[0].mxu0
    %4589 = vdwg.mxu0
    %v4590 = vmul.f32 %v4496, %v2866
    %v4591 = vmul.f32 %v4587, %v2866
    %v4592 = vmul.f32 %v4590, %v4590
    %v4593 = vsub.f32 %v4591, %v4592
    %v4594 = vmax.f32 %v4593, 0.0
    %v4595 = vadd.f32 %v4594, 1e-05
    %v4596 = vrsqrt.pop %v4595
    %v4598 = vsel %vm243, %v4590, 0
    %4600 = vmatprep.subr.mxu0 0.0
    %4601 = vmatpush1.msra.mxu0 %v2683
    %4602 = vmatprep.subr.mxu0 0.0
    %4603 = vmatpush1.msra.mxu0 0.0
    %4604 = vmatprep.subr.mxu0 0.0
    %4605 = vmatpush1.msra.mxu0 0.0
    %4606 = vmatprep.subr.mxu0 0.0
    %4607 = vmatpush1.msra.mxu0 0.0
    %4608 = vmatprep.subr.mxu0 0.0
    %4609 = vmatpush1.msra.mxu0 0.0
    %4610 = vmatprep.subr.mxu0 0.0
    %4611 = vmatpush1.msra.mxu0 0.0
    %4612 = vmatprep.subr.mxu0 0.0
    %4613 = vmatpush1.msra.mxu0 0.0
    %4614 = vmatprep.subr.mxu0 0.0
    %4615 = vmatpush1.msra.mxu0 0.0
    %4616 = vmatprep.subr.mxu0 0.0
    %4617 = vmatpush1.msra.mxu0 0.0
    %4618 = vmatprep.subr.mxu0 0.0
    %4619 = vmatpush1.msra.mxu0 0.0
    %4620 = vmatprep.subr.mxu0 0.0
    %4621 = vmatpush1.msra.mxu0 0.0
    %4622 = vmatprep.subr.mxu0 0.0
    %4623 = vmatpush1.msra.mxu0 0.0
    %4624 = vmatprep.subr.mxu0 0.0
    %4625 = vmatpush1.msra.mxu0 0.0
    %4626 = vmatprep.subr.mxu0 0.0
    %4627 = vmatpush1.msra.mxu0 0.0
    %4628 = vmatprep.subr.mxu0 0.0
    %4629 = vmatpush1.msra.mxu0 0.0
    %4630 = vmatprep.subr.mxu0 0.0
    %4631 = vmatpush1.msra.mxu0 0.0
    %4632 = vmatprep.subr.mxu0 0.0
    %4633 = vmatpush1.msra.mxu0 0.0
    %4634 = vmatprep.subr.mxu0 0.0
    %4635 = vmatpush1.msra.mxu0 0.0
    %4636 = vmatprep.subr.mxu0 0.0
    %4637 = vmatpush1.msra.mxu0 0.0
    %4638 = vmatprep.subr.mxu0 0.0
    %4639 = vmatpush1.msra.mxu0 0.0
    %4640 = vmatprep.subr.mxu0 0.0
    %4641 = vmatpush1.msra.mxu0 0.0
    %4642 = vmatprep.subr.mxu0 0.0
    %4643 = vmatpush1.msra.mxu0 0.0
    %4644 = vmatprep.subr.mxu0 0.0
    %4645 = vmatpush1.msra.mxu0 0.0
    %4646 = vmatprep.subr.mxu0 0.0
    %4647 = vmatpush1.msra.mxu0 0.0
    %4648 = vmatprep.subr.mxu0 0.0
    %4649 = vmatpush1.msra.mxu0 0.0
    %4650 = vmatprep.subr.mxu0 0.0
    %4651 = vmatpush1.msra.mxu0 0.0
    %4652 = vmatprep.subr.mxu0 0.0
    %4653 = vmatpush1.msra.mxu0 0.0
    %4654 = vmatprep.subr.mxu0 0.0
    %4655 = vmatpush1.msra.mxu0 0.0
    %4656 = vmatprep.subr.mxu0 0.0
    %4657 = vmatpush1.msra.mxu0 0.0
    %4658 = vmatprep.subr.mxu0 0.0
    %4659 = vmatpush1.msra.mxu0 0.0
    %4660 = vmatprep.subr.mxu0 0.0
    %4661 = vmatpush1.msra.mxu0 0.0
    %4662 = vmatprep.subr.mxu0 0.0
    %4663 = vmatpush1.msra.mxu0 0.0
    %4664 = vmatprep.mubr.f32.mxu0 0.0
    %4665 = vmatmul.mubr.f32.gmra.mrb[0].mxu0 %v4598
    %v4666 = vpop.f32.mrb[0].mxu0
    %v4667 = vadd.f32 0.0, %v4666
    %v4668 = vpop.f32.mrb[0].mxu0
    %4669 = vdwg.mxu0
    %v4671 = vsel %vm243, %v4596, 0
    %4673 = vmatprep.subr.mxu0 0.0
    %4674 = vmatpush1.msra.mxu0 %v2683
    %4675 = vmatprep.subr.mxu0 0.0
    %4676 = vmatpush1.msra.mxu0 0.0
    %4677 = vmatprep.subr.mxu0 0.0
    %4678 = vmatpush1.msra.mxu0 0.0
    %4679 = vmatprep.subr.mxu0 0.0
    %4680 = vmatpush1.msra.mxu0 0.0
    %4681 = vmatprep.subr.mxu0 0.0
    %4682 = vmatpush1.msra.mxu0 0.0
    %4683 = vmatprep.subr.mxu0 0.0
    %4684 = vmatpush1.msra.mxu0 0.0
    %4685 = vmatprep.subr.mxu0 0.0
    %4686 = vmatpush1.msra.mxu0 0.0
    %4687 = vmatprep.subr.mxu0 0.0
    %4688 = vmatpush1.msra.mxu0 0.0
    %4689 = vmatprep.subr.mxu0 0.0
    %4690 = vmatpush1.msra.mxu0 0.0
    %4691 = vmatprep.subr.mxu0 0.0
    %4692 = vmatpush1.msra.mxu0 0.0
    %4693 = vmatprep.subr.mxu0 0.0
    %4694 = vmatpush1.msra.mxu0 0.0
    %4695 = vmatprep.subr.mxu0 0.0
    %4696 = vmatpush1.msra.mxu0 0.0
    %4697 = vmatprep.subr.mxu0 0.0
    %4698 = vmatpush1.msra.mxu0 0.0
    %4699 = vmatprep.subr.mxu0 0.0
    %4700 = vmatpush1.msra.mxu0 0.0
    %4701 = vmatprep.subr.mxu0 0.0
    %4702 = vmatpush1.msra.mxu0 0.0
    %4703 = vmatprep.subr.mxu0 0.0
    %4704 = vmatpush1.msra.mxu0 0.0
    %4705 = vmatprep.subr.mxu0 0.0
    %4706 = vmatpush1.msra.mxu0 0.0
    %4707 = vmatprep.subr.mxu0 0.0
    %4708 = vmatpush1.msra.mxu0 0.0
    %4709 = vmatprep.subr.mxu0 0.0
    %4710 = vmatpush1.msra.mxu0 0.0
    %4711 = vmatprep.subr.mxu0 0.0
    %4712 = vmatpush1.msra.mxu0 0.0
    %4713 = vmatprep.subr.mxu0 0.0
    %4714 = vmatpush1.msra.mxu0 0.0
    %4715 = vmatprep.subr.mxu0 0.0
    %4716 = vmatpush1.msra.mxu0 0.0
    %4717 = vmatprep.subr.mxu0 0.0
    %4718 = vmatpush1.msra.mxu0 0.0
    %4719 = vmatprep.subr.mxu0 0.0
    %4720 = vmatpush1.msra.mxu0 0.0
    %4721 = vmatprep.subr.mxu0 0.0
    %4722 = vmatpush1.msra.mxu0 0.0
    %4723 = vmatprep.subr.mxu0 0.0
    %4724 = vmatpush1.msra.mxu0 0.0
    %4725 = vmatprep.subr.mxu0 0.0
    %4726 = vmatpush1.msra.mxu0 0.0
    %4727 = vmatprep.subr.mxu0 0.0
    %4728 = vmatpush1.msra.mxu0 0.0
    %4729 = vmatprep.subr.mxu0 0.0
    %4730 = vmatpush1.msra.mxu0 0.0
    %4731 = vmatprep.subr.mxu0 0.0
    %4732 = vmatpush1.msra.mxu0 0.0
    %4733 = vmatprep.subr.mxu0 0.0
    %4734 = vmatpush1.msra.mxu0 0.0
    %4735 = vmatprep.subr.mxu0 0.0
    %4736 = vmatpush1.msra.mxu0 0.0
    %4737 = vmatprep.mubr.f32.mxu0 0.0
    %4738 = vmatmul.mubr.f32.gmra.mrb[0].mxu0 %v4671
    %v4739 = vpop.f32.mrb[0].mxu0
    %v4740 = vadd.f32 0.0, %v4739
    %v4741 = vpop.f32.mrb[0].mxu0
    %4742 = vdwg.mxu0
    %v4745 = vunpack.c.l.s4 1966171168
    %v4746 = vunpack.c.0.s8 %v4745
    %v4747 = vlaneseq
    %v4748 = vshrl.u32 %v4747, 7
    %v4749 = vsub.s32 %v4746, %v4748
    %v4750 = vrot.slane %v4667, %v4749
    %v4751 = vcombine.high %v4750, %v4750
    %v4753 = vunpack.c.l.s4 1966171168
    %v4754 = vunpack.c.0.s8 %v4753
    %v4755 = vlaneseq
    %v4756 = vshrl.u32 %v4755, 7
    %v4757 = vsub.s32 %v4754, %v4756
    %v4758 = vrot.slane %v4750, %v4757
    %v4760 = vunpack.c.l.s4 1966171168
    %v4761 = vunpack.c.0.s8 %v4760
    %v4762 = vlaneseq
    %v4763 = vshrl.u32 %v4762, 7
    %v4764 = vsub.s32 %v4761, %v4763
    %v4765 = vrot.slane %v4751, %v4764
    %v4766 = vlaneseq
    %v4767 = vshrl.u32 %v4766, 7
    %v4768 = vsub.s32 0, %v4767
    %v4769 = vrot.slane %v4758, %v4768
    %v4770 = vlaneseq
    %v4771 = vshrl.u32 %v4770, 7
    %v4772 = vsub.s32 0, %v4771
    %v4773 = vrot.slane %v4765, %v4772
    %v4776 = vsub.f32 %v4402, %v4769
    %v4777 = vsub.f32 %v4405, %v4773
    %v4780 = vunpack.c.l.s4 1966171168
    %v4781 = vunpack.c.0.s8 %v4780
    %v4782 = vlaneseq
    %v4783 = vshrl.u32 %v4782, 7
    %v4784 = vsub.s32 %v4781, %v4783
    %v4785 = vrot.slane %v4740, %v4784
    %v4786 = vcombine.high %v4785, %v4785
    %v4788 = vunpack.c.l.s4 1966171168
    %v4789 = vunpack.c.0.s8 %v4788
    %v4790 = vlaneseq
    %v4791 = vshrl.u32 %v4790, 7
    %v4792 = vsub.s32 %v4789, %v4791
    %v4793 = vrot.slane %v4785, %v4792
    %v4795 = vunpack.c.l.s4 1966171168
    %v4796 = vunpack.c.0.s8 %v4795
    %v4797 = vlaneseq
    %v4798 = vshrl.u32 %v4797, 7
    %v4799 = vsub.s32 %v4796, %v4798
    %v4800 = vrot.slane %v4786, %v4799
    %v4801 = vlaneseq
    %v4802 = vshrl.u32 %v4801, 7
    %v4803 = vsub.s32 0, %v4802
    %v4804 = vrot.slane %v4793, %v4803
    %v4805 = vlaneseq
    %v4806 = vshrl.u32 %v4805, 7
    %v4807 = vsub.s32 0, %v4806
    %v4808 = vrot.slane %v4800, %v4807
    %v4811 = vmul.f32 %v4776, %v4804
    %v4812 = vmul.f32 %v4777, %v4808
    %v4813 = vlaneseq
    %v4814 = vshrl.u32 %v4813, 7
    %v4815 = vsub.s32 0, %v4814
    %v4816 = vrot.slane %v4408, %v4815
    %v4817 = vmul.f32 %v4811, %v4816
    %v4818 = vmul.f32 %v4812, %v4816
    %v4819 = vlaneseq
    %v4820 = vshrl.u32 %v4819, 7
    %v4821 = vsub.s32 0, %v4820
    %v4822 = vrot.slane %v4409, %v4821
    %v4823 = vadd.f32 %v4817, %v4822
    %v4824 = vadd.f32 %v4818, %v4822
    %v4825 = vmax.f32 %v4823, 0.0
    %v4826 = vmax.f32 %v4824, 0.0
    %v4827 = vand.u32 2147483647, %v4823
    %v4828 = vand.u32 2147483647, %v4824
    %v4829 = vsub.f32 0.0, %v4827
    %v4830 = vsub.f32 0.0, %v4828
    %v4831 = vmul.f32 %v4829, 1.442695
    %v4832 = vpow.pop %v4831
    %v4833 = vmul.f32 %v4830, 1.442695
    %v4834 = vpow.pop %v4833
    %v4835 = vadd.f32 %v4832, 1.0
    %v4836 = vadd.f32 %v4834, 1.0
    %v4837 = vlog2.pop %v4835
    %v4838 = vmul.f32 %v4837, 0.6931472
    %v4839 = vlog2.pop %v4836
    %v4840 = vmul.f32 %v4839, 0.6931472
    %v4841 = vadd.f32 %v4825, %v4838
    %v4842 = vadd.f32 %v4826, %v4840
    %v4843 = vtanh.pop %v4841
    %v4844 = vtanh.pop %v4842
    %v4845 = vmul.f32 %v4823, %v4843
    %v4846 = vmul.f32 %v4824, %v4844
    %v4847 = vadd.f32 %v4845, %v3704
    %v4848 = vadd.f32 %v4846, %v3705
    %v4851 = vrot.slane %v4847, 7
    %v4852 = vrot.slane %v4848, 7
    %v4855 = vsel %vm2570, 0.0, %v4851
    %v4856 = vsel %vm2570, 0.0, %v4852
    %v4857 = vsel %vm2570, %v4851, 0.0
    %v4858 = vsel %vm2570, %v4852, 0.0
    %v4863 = vrot.slane %v4855, 1
    %v4864 = vrot.slane %v4857, 1
    %v4865 = vsel %vm188, %v4863, %v4864
    %v4866 = vrot.slane %v4856, 1
    %v4867 = vrot.slane %v4858, 1
    %v4868 = vsel %vm188, %v4866, %v4867
    %4869 = vrot.lane.b32.xlu0 %v4865, 32
    %v4870 = vpop.permute.xlu0 %4869
    %4871 = vrot.lane.b32.xlu0 %v4868, 32
    %v4872 = vpop.permute.xlu0 %4871
    %v4875 = vrot.slane %v4855, 2
    %v4876 = vrot.slane %v4857, 2
    %v4877 = vsel %vm201, %v4875, %v4876
    %v4878 = vrot.slane %v4856, 2
    %v4879 = vrot.slane %v4858, 2
    %v4880 = vsel %vm201, %v4878, %v4879
    %4881 = vrot.lane.b32.xlu0 %v4877, 64
    %v4882 = vpop.permute.xlu0 %4881
    %4883 = vrot.lane.b32.xlu0 %v4880, 64
    %v4884 = vpop.permute.xlu0 %4883
    %v4887 = vsel %vm874, %v4855, %v4870
    %v4888 = vsel %vm874, %v4856, %v4872
    %v4889 = vsel %vm880, %v4887, %v4882
    %v4890 = vsel %vm880, %v4888, %v4884
    %v4891 = vld [vmem:[#allocation2 + $0x368] sm:$0xff]
    %v4892 = vld [vmem:[#allocation2 + $0x370] sm:$0xff]
    %v4893 = vld [vmem:[#allocation2 + $0x378] sm:$0xff]
    %v4894 = vld [vmem:[#allocation2 + $0x380] sm:$0xff]
    %v4895 = vld [vmem:[#allocation2 + $0x388] sm:$0xff]
    %v4896 = vld [vmem:[#allocation2 + $0x390] sm:$0xff]
    %v4897 = vld [vmem:[#allocation2 + $0x398] sm:$0xff]
    %v4898 = vld [vmem:[#allocation2 + $0x3a0] sm:$0xff]
    %v4899 = vld [vmem:[#allocation2 + $0x3a8] sm:$0xff]
    %v4900 = vld [vmem:[#allocation2 + $0x3b0] sm:$0xff]
    %v4901 = vld [vmem:[#allocation2 + $0x3b8] sm:$0xff]
    %v4902 = vld [vmem:[#allocation2 + $0x3c0] sm:$0xff]
    %v4903 = vpack.c.bf16 %v4890, %v4889
    %v4904 = vpack.c.bf16 %v4892, %v4891
    %v4905 = vpack.c.bf16 %v4894, %v4893
    %v4906 = vpack.c.bf16 %v4896, %v4895
    %v4907 = vpack.c.bf16 %v4898, %v4897
    %v4908 = vpack.c.bf16 %v4900, %v4899
    %v4909 = vpack.c.bf16 %v4902, %v4901
    %v4910 = vld [vmem:[#allocation2 + $0x3c8] sm:$0x1]
    %v4911 = vlaneseq
    %v4912 = vshrl.u32 %v4911, 7
    %v4913 = vsub.s32 0, %v4912
    %v4914 = vrot.slane %v4910, %v4913
    %v4916 = vsel %vm3212, %v4903, 0
    %4918 = vmatprep.subr.bf16.mxu0 0
    %4919 = vmatpush1.bf16.msra.mxu0 %v4904
    %4920 = vmatprep.subr.bf16.mxu0 0
    %4921 = vmatpush1.bf16.msra.mxu0 %v4905
    %4922 = vmatprep.subr.bf16.mxu0 0
    %4923 = vmatpush1.bf16.msra.mxu0 %v4906
    %4924 = vmatprep.subr.bf16.mxu0 0
    %4925 = vmatpush1.bf16.msra.mxu0 %v4907
    %4926 = vmatprep.subr.bf16.mxu0 0
    %4927 = vmatpush1.bf16.msra.mxu0 %v4908
    %4928 = vmatprep.subr.bf16.mxu0 0
    %4929 = vmatpush1.bf16.msra.mxu0 %v4909
    %4930 = vmatprep.subr.bf16.mxu0 0
    %4931 = vmatpush1.bf16.msra.mxu0 0
    %4932 = vmatprep.subr.bf16.mxu0 0
    %4933 = vmatpush1.bf16.msra.mxu0 0
    %4934 = vmatprep.subr.bf16.mxu0 0
    %4935 = vmatpush1.bf16.msra.mxu0 0
    %4936 = vmatprep.subr.bf16.mxu0 0
    %4937 = vmatpush1.bf16.msra.mxu0 0
    %4938 = vmatprep.subr.bf16.mxu0 0
    %4939 = vmatpush1.bf16.msra.mxu0 0
    %4940 = vmatprep.subr.bf16.mxu0 0
    %4941 = vmatpush1.bf16.msra.mxu0 0
    %4942 = vmatprep.subr.bf16.mxu0 0
    %4943 = vmatpush1.bf16.msra.mxu0 0
    %4944 = vmatprep.subr.bf16.mxu0 0
    %4945 = vmatpush1.bf16.msra.mxu0 0
    %4946 = vmatprep.subr.bf16.mxu0 0
    %4947 = vmatpush1.bf16.msra.mxu0 0
    %4948 = vmatprep.subr.bf16.mxu0 0
    %4949 = vmatpush1.bf16.msra.mxu0 0
    %4950 = vmatprep.mubr.bf16.mxu0 0
    %4951 = vmatmul.mubr.bf16.gmra.mrb[0].mxu0 %v4916
    %v4952 = vpop.f32.mrb[0].mxu0
    %v4953 = vadd.f32 %v4914, %v4952
    %v4954 = vpop.f32.mrb[0].mxu0
    %v4955 = vpop.f32.mrb[0].mxu0
    %v4956 = vadd.f32 %v4914, %v4955
    %v4957 = vpop.f32.mrb[0].mxu0
    %4958 = vdwg.mxu0
    %v4959 = vld [vmem:[#allocation2 + $0x3d0] sm:$0x1]
    %v4960 = vld [vmem:[#allocation2 + $0x3d8] sm:$0x1]
    %v4961 = vsel %vm874, %v4953, 0.0
    %v4962 = vrot.slane %v4961, 4
    %v4963 = vadd.f32 %v4961, %v4962
    %v4964 = vrot.slane %v4963, 2
    %v4965 = vadd.f32 %v4963, %v4964
    %v4966 = vrot.slane %v4965, 1
    %v4967 = vadd.f32 %v4965, %v4966
    %v4968 = vsel %vm874, %v4956, 0.0
    %v4969 = vrot.slane %v4968, 4
    %v4970 = vadd.f32 %v4968, %v4969
    %v4971 = vrot.slane %v4970, 2
    %v4972 = vadd.f32 %v4970, %v4971
    %v4973 = vrot.slane %v4972, 1
    %v4974 = vadd.f32 %v4972, %v4973
    %v4977 = vsel %vm344, %v4974, %v4967
    %v4978 = vsel %vm874, %v4977, 0
    %4980 = vmatprep.subr.mxu0 0.0
    %4981 = vmatpush1.msra.mxu0 %v2679
    %4982 = vmatprep.subr.mxu0 0.0
    %4983 = vmatpush1.msra.mxu0 %v2680
    %4984 = vmatprep.subr.mxu0 0.0
    %4985 = vmatpush1.msra.mxu0 %v2681
    %4986 = vmatprep.subr.mxu0 0.0
    %4987 = vmatpush1.msra.mxu0 %v2682
    %4988 = vmatprep.subr.mxu0 0.0
    %4989 = vmatpush1.msra.mxu0 0.0
    %4990 = vmatprep.subr.mxu0 0.0
    %4991 = vmatpush1.msra.mxu0 0.0
    %4992 = vmatprep.subr.mxu0 0.0
    %4993 = vmatpush1.msra.mxu0 0.0
    %4994 = vmatprep.subr.mxu0 0.0
    %4995 = vmatpush1.msra.mxu0 0.0
    %4996 = vmatprep.subr.mxu0 0.0
    %4997 = vmatpush1.msra.mxu0 0.0
    %4998 = vmatprep.subr.mxu0 0.0
    %4999 = vmatpush1.msra.mxu0 0.0
    %5000 = vmatprep.subr.mxu0 0.0
    %5001 = vmatpush1.msra.mxu0 0.0
    %5002 = vmatprep.subr.mxu0 0.0
    %5003 = vmatpush1.msra.mxu0 0.0
    %5004 = vmatprep.subr.mxu0 0.0
    %5005 = vmatpush1.msra.mxu0 0.0
    %5006 = vmatprep.subr.mxu0 0.0
    %5007 = vmatpush1.msra.mxu0 0.0
    %5008 = vmatprep.subr.mxu0 0.0
    %5009 = vmatpush1.msra.mxu0 0.0
    %5010 = vmatprep.subr.mxu0 0.0
    %5011 = vmatpush1.msra.mxu0 0.0
    %5012 = vmatprep.subr.mxu0 0.0
    %5013 = vmatpush1.msra.mxu0 0.0
    %5014 = vmatprep.subr.mxu0 0.0
    %5015 = vmatpush1.msra.mxu0 0.0
    %5016 = vmatprep.subr.mxu0 0.0
    %5017 = vmatpush1.msra.mxu0 0.0
    %5018 = vmatprep.subr.mxu0 0.0
    %5019 = vmatpush1.msra.mxu0 0.0
    %5020 = vmatprep.subr.mxu0 0.0
    %5021 = vmatpush1.msra.mxu0 0.0
    %5022 = vmatprep.subr.mxu0 0.0
    %5023 = vmatpush1.msra.mxu0 0.0
    %5024 = vmatprep.subr.mxu0 0.0
    %5025 = vmatpush1.msra.mxu0 0.0
    %5026 = vmatprep.subr.mxu0 0.0
    %5027 = vmatpush1.msra.mxu0 0.0
    %5028 = vmatprep.subr.mxu0 0.0
    %5029 = vmatpush1.msra.mxu0 0.0
    %5030 = vmatprep.subr.mxu0 0.0
    %5031 = vmatpush1.msra.mxu0 0.0
    %5032 = vmatprep.subr.mxu0 0.0
    %5033 = vmatpush1.msra.mxu0 0.0
    %5034 = vmatprep.subr.mxu0 0.0
    %5035 = vmatpush1.msra.mxu0 0.0
    %5036 = vmatprep.subr.mxu0 0.0
    %5037 = vmatpush1.msra.mxu0 0.0
    %5038 = vmatprep.subr.mxu0 0.0
    %5039 = vmatpush1.msra.mxu0 0.0
    %5040 = vmatprep.subr.mxu0 0.0
    %5041 = vmatpush1.msra.mxu0 0.0
    %5042 = vmatprep.subr.mxu0 0.0
    %5043 = vmatpush1.msra.mxu0 0.0
    %5044 = vmatprep.mubr.f32.mxu0 0.0
    %5045 = vmatmul.mubr.f32.gmra.mrb[0].mxu0 %v4978
    %v5046 = vpop.f32.mrb[0].mxu0
    %v5047 = vadd.f32 0.0, %v5046
    %v5048 = vpop.f32.mrb[0].mxu0
    %5049 = vdwg.mxu0
    %v5050 = vmul.f32 %v4953, %v4953
    %v5051 = vmul.f32 %v4956, %v4956
    %v5052 = vsel %vm874, %v5050, 0.0
    %v5053 = vrot.slane %v5052, 4
    %v5054 = vadd.f32 %v5052, %v5053
    %v5055 = vrot.slane %v5054, 2
    %v5056 = vadd.f32 %v5054, %v5055
    %v5057 = vrot.slane %v5056, 1
    %v5058 = vadd.f32 %v5056, %v5057
    %v5059 = vsel %vm874, %v5051, 0.0
    %v5060 = vrot.slane %v5059, 4
    %v5061 = vadd.f32 %v5059, %v5060
    %v5062 = vrot.slane %v5061, 2
    %v5063 = vadd.f32 %v5061, %v5062
    %v5064 = vrot.slane %v5063, 1
    %v5065 = vadd.f32 %v5063, %v5064
    %v5068 = vsel %vm344, %v5065, %v5058
    %v5069 = vsel %vm874, %v5068, 0
    %5071 = vmatprep.subr.mxu0 0.0
    %5072 = vmatpush1.msra.mxu0 %v2679
    %5073 = vmatprep.subr.mxu0 0.0
    %5074 = vmatpush1.msra.mxu0 %v2680
    %5075 = vmatprep.subr.mxu0 0.0
    %5076 = vmatpush1.msra.mxu0 %v2681
    %5077 = vmatprep.subr.mxu0 0.0
    %5078 = vmatpush1.msra.mxu0 %v2682
    %5079 = vmatprep.subr.mxu0 0.0
    %5080 = vmatpush1.msra.mxu0 0.0
    %5081 = vmatprep.subr.mxu0 0.0
    %5082 = vmatpush1.msra.mxu0 0.0
    %5083 = vmatprep.subr.mxu0 0.0
    %5084 = vmatpush1.msra.mxu0 0.0
    %5085 = vmatprep.subr.mxu0 0.0
    %5086 = vmatpush1.msra.mxu0 0.0
    %5087 = vmatprep.subr.mxu0 0.0
    %5088 = vmatpush1.msra.mxu0 0.0
    %5089 = vmatprep.subr.mxu0 0.0
    %5090 = vmatpush1.msra.mxu0 0.0
    %5091 = vmatprep.subr.mxu0 0.0
    %5092 = vmatpush1.msra.mxu0 0.0
    %5093 = vmatprep.subr.mxu0 0.0
    %5094 = vmatpush1.msra.mxu0 0.0
    %5095 = vmatprep.subr.mxu0 0.0
    %5096 = vmatpush1.msra.mxu0 0.0
    %5097 = vmatprep.subr.mxu0 0.0
    %5098 = vmatpush1.msra.mxu0 0.0
    %5099 = vmatprep.subr.mxu0 0.0
    %5100 = vmatpush1.msra.mxu0 0.0
    %5101 = vmatprep.subr.mxu0 0.0
    %5102 = vmatpush1.msra.mxu0 0.0
    %5103 = vmatprep.subr.mxu0 0.0
    %5104 = vmatpush1.msra.mxu0 0.0
    %5105 = vmatprep.subr.mxu0 0.0
    %5106 = vmatpush1.msra.mxu0 0.0
    %5107 = vmatprep.subr.mxu0 0.0
    %5108 = vmatpush1.msra.mxu0 0.0
    %5109 = vmatprep.subr.mxu0 0.0
    %5110 = vmatpush1.msra.mxu0 0.0
    %5111 = vmatprep.subr.mxu0 0.0
    %5112 = vmatpush1.msra.mxu0 0.0
    %5113 = vmatprep.subr.mxu0 0.0
    %5114 = vmatpush1.msra.mxu0 0.0
    %5115 = vmatprep.subr.mxu0 0.0
    %5116 = vmatpush1.msra.mxu0 0.0
    %5117 = vmatprep.subr.mxu0 0.0
    %5118 = vmatpush1.msra.mxu0 0.0
    %5119 = vmatprep.subr.mxu0 0.0
    %5120 = vmatpush1.msra.mxu0 0.0
    %5121 = vmatprep.subr.mxu0 0.0
    %5122 = vmatpush1.msra.mxu0 0.0
    %5123 = vmatprep.subr.mxu0 0.0
    %5124 = vmatpush1.msra.mxu0 0.0
    %5125 = vmatprep.subr.mxu0 0.0
    %5126 = vmatpush1.msra.mxu0 0.0
    %5127 = vmatprep.subr.mxu0 0.0
    %5128 = vmatpush1.msra.mxu0 0.0
    %5129 = vmatprep.subr.mxu0 0.0
    %5130 = vmatpush1.msra.mxu0 0.0
    %5131 = vmatprep.subr.mxu0 0.0
    %5132 = vmatpush1.msra.mxu0 0.0
    %5133 = vmatprep.subr.mxu0 0.0
    %5134 = vmatpush1.msra.mxu0 0.0
    %5135 = vmatprep.mubr.f32.mxu0 0.0
    %5136 = vmatmul.mubr.f32.gmra.mrb[0].mxu0 %v5069
    %v5137 = vpop.f32.mrb[0].mxu0
    %v5138 = vadd.f32 0.0, %v5137
    %v5139 = vpop.f32.mrb[0].mxu0
    %5140 = vdwg.mxu0
    %v5141 = vmul.f32 %v5047, %v2866
    %v5142 = vmul.f32 %v5138, %v2866
    %v5143 = vmul.f32 %v5141, %v5141
    %v5144 = vsub.f32 %v5142, %v5143
    %v5145 = vmax.f32 %v5144, 0.0
    %v5146 = vadd.f32 %v5145, 1e-05
    %v5147 = vrsqrt.pop %v5146
    %v5149 = vsel %vm243, %v5141, 0
    %5151 = vmatprep.subr.mxu0 0.0
    %5152 = vmatpush1.msra.mxu0 %v2683
    %5153 = vmatprep.subr.mxu0 0.0
    %5154 = vmatpush1.msra.mxu0 0.0
    %5155 = vmatprep.subr.mxu0 0.0
    %5156 = vmatpush1.msra.mxu0 0.0
    %5157 = vmatprep.subr.mxu0 0.0
    %5158 = vmatpush1.msra.mxu0 0.0
    %5159 = vmatprep.subr.mxu0 0.0
    %5160 = vmatpush1.msra.mxu0 0.0
    %5161 = vmatprep.subr.mxu0 0.0
    %5162 = vmatpush1.msra.mxu0 0.0
    %5163 = vmatprep.subr.mxu0 0.0
    %5164 = vmatpush1.msra.mxu0 0.0
    %5165 = vmatprep.subr.mxu0 0.0
    %5166 = vmatpush1.msra.mxu0 0.0
    %5167 = vmatprep.subr.mxu0 0.0
    %5168 = vmatpush1.msra.mxu0 0.0
    %5169 = vmatprep.subr.mxu0 0.0
    %5170 = vmatpush1.msra.mxu0 0.0
    %5171 = vmatprep.subr.mxu0 0.0
    %5172 = vmatpush1.msra.mxu0 0.0
    %5173 = vmatprep.subr.mxu0 0.0
    %5174 = vmatpush1.msra.mxu0 0.0
    %5175 = vmatprep.subr.mxu0 0.0
    %5176 = vmatpush1.msra.mxu0 0.0
    %5177 = vmatprep.subr.mxu0 0.0
    %5178 = vmatpush1.msra.mxu0 0.0
    %5179 = vmatprep.subr.mxu0 0.0
    %5180 = vmatpush1.msra.mxu0 0.0
    %5181 = vmatprep.subr.mxu0 0.0
    %5182 = vmatpush1.msra.mxu0 0.0
    %5183 = vmatprep.subr.mxu0 0.0
    %5184 = vmatpush1.msra.mxu0 0.0
    %5185 = vmatprep.subr.mxu0 0.0
    %5186 = vmatpush1.msra.mxu0 0.0
    %5187 = vmatprep.subr.mxu0 0.0
    %5188 = vmatpush1.msra.mxu0 0.0
    %5189 = vmatprep.subr.mxu0 0.0
    %5190 = vmatpush1.msra.mxu0 0.0
    %5191 = vmatprep.subr.mxu0 0.0
    %5192 = vmatpush1.msra.mxu0 0.0
    %5193 = vmatprep.subr.mxu0 0.0
    %5194 = vmatpush1.msra.mxu0 0.0
    %5195 = vmatprep.subr.mxu0 0.0
    %5196 = vmatpush1.msra.mxu0 0.0
    %5197 = vmatprep.subr.mxu0 0.0
    %5198 = vmatpush1.msra.mxu0 0.0
    %5199 = vmatprep.subr.mxu0 0.0
    %5200 = vmatpush1.msra.mxu0 0.0
    %5201 = vmatprep.subr.mxu0 0.0
    %5202 = vmatpush1.msra.mxu0 0.0
    %5203 = vmatprep.subr.mxu0 0.0
    %5204 = vmatpush1.msra.mxu0 0.0
    %5205 = vmatprep.subr.mxu0 0.0
    %5206 = vmatpush1.msra.mxu0 0.0
    %5207 = vmatprep.subr.mxu0 0.0
    %5208 = vmatpush1.msra.mxu0 0.0
    %5209 = vmatprep.subr.mxu0 0.0
    %5210 = vmatpush1.msra.mxu0 0.0
    %5211 = vmatprep.subr.mxu0 0.0
    %5212 = vmatpush1.msra.mxu0 0.0
    %5213 = vmatprep.subr.mxu0 0.0
    %5214 = vmatpush1.msra.mxu0 0.0
    %5215 = vmatprep.mubr.f32.mxu0 0.0
    %5216 = vmatmul.mubr.f32.gmra.mrb[0].mxu0 %v5149
    %v5217 = vpop.f32.mrb[0].mxu0
    %v5218 = vadd.f32 0.0, %v5217
    %v5219 = vpop.f32.mrb[0].mxu0
    %5220 = vdwg.mxu0
    %v5222 = vsel %vm243, %v5147, 0
    %5224 = vmatprep.subr.mxu0 0.0
    %5225 = vmatpush1.msra.mxu0 %v2683
    %5226 = vmatprep.subr.mxu0 0.0
    %5227 = vmatpush1.msra.mxu0 0.0
    %5228 = vmatprep.subr.mxu0 0.0
    %5229 = vmatpush1.msra.mxu0 0.0
    %5230 = vmatprep.subr.mxu0 0.0
    %5231 = vmatpush1.msra.mxu0 0.0
    %5232 = vmatprep.subr.mxu0 0.0
    %5233 = vmatpush1.msra.mxu0 0.0
    %5234 = vmatprep.subr.mxu0 0.0
    %5235 = vmatpush1.msra.mxu0 0.0
    %5236 = vmatprep.subr.mxu0 0.0
    %5237 = vmatpush1.msra.mxu0 0.0
    %5238 = vmatprep.subr.mxu0 0.0
    %5239 = vmatpush1.msra.mxu0 0.0
    %5240 = vmatprep.subr.mxu0 0.0
    %5241 = vmatpush1.msra.mxu0 0.0
    %5242 = vmatprep.subr.mxu0 0.0
    %5243 = vmatpush1.msra.mxu0 0.0
    %5244 = vmatprep.subr.mxu0 0.0
    %5245 = vmatpush1.msra.mxu0 0.0
    %5246 = vmatprep.subr.mxu0 0.0
    %5247 = vmatpush1.msra.mxu0 0.0
    %5248 = vmatprep.subr.mxu0 0.0
    %5249 = vmatpush1.msra.mxu0 0.0
    %5250 = vmatprep.subr.mxu0 0.0
    %5251 = vmatpush1.msra.mxu0 0.0
    %5252 = vmatprep.subr.mxu0 0.0
    %5253 = vmatpush1.msra.mxu0 0.0
    %5254 = vmatprep.subr.mxu0 0.0
    %5255 = vmatpush1.msra.mxu0 0.0
    %5256 = vmatprep.subr.mxu0 0.0
    %5257 = vmatpush1.msra.mxu0 0.0
    %5258 = vmatprep.subr.mxu0 0.0
    %5259 = vmatpush1.msra.mxu0 0.0
    %5260 = vmatprep.subr.mxu0 0.0
    %5261 = vmatpush1.msra.mxu0 0.0
    %5262 = vmatprep.subr.mxu0 0.0
    %5263 = vmatpush1.msra.mxu0 0.0
    %5264 = vmatprep.subr.mxu0 0.0
    %5265 = vmatpush1.msra.mxu0 0.0
    %5266 = vmatprep.subr.mxu0 0.0
    %5267 = vmatpush1.msra.mxu0 0.0
    %5268 = vmatprep.subr.mxu0 0.0
    %5269 = vmatpush1.msra.mxu0 0.0
    %5270 = vmatprep.subr.mxu0 0.0
    %5271 = vmatpush1.msra.mxu0 0.0
    %5272 = vmatprep.subr.mxu0 0.0
    %5273 = vmatpush1.msra.mxu0 0.0
    %5274 = vmatprep.subr.mxu0 0.0
    %5275 = vmatpush1.msra.mxu0 0.0
    %5276 = vmatprep.subr.mxu0 0.0
    %5277 = vmatpush1.msra.mxu0 0.0
    %5278 = vmatprep.subr.mxu0 0.0
    %5279 = vmatpush1.msra.mxu0 0.0
    %5280 = vmatprep.subr.mxu0 0.0
    %5281 = vmatpush1.msra.mxu0 0.0
    %5282 = vmatprep.subr.mxu0 0.0
    %5283 = vmatpush1.msra.mxu0 0.0
    %5284 = vmatprep.subr.mxu0 0.0
    %5285 = vmatpush1.msra.mxu0 0.0
    %5286 = vmatprep.subr.mxu0 0.0
    %5287 = vmatpush1.msra.mxu0 0.0
    %5288 = vmatprep.mubr.f32.mxu0 0.0
    %5289 = vmatmul.mubr.f32.gmra.mrb[0].mxu0 %v5222
    %v5290 = vpop.f32.mrb[0].mxu0
    %v5291 = vadd.f32 0.0, %v5290
    %v5292 = vpop.f32.mrb[0].mxu0
    %5293 = vdwg.mxu0
    %v5296 = vunpack.c.l.s4 1966171168
    %v5297 = vunpack.c.0.s8 %v5296
    %v5298 = vlaneseq
    %v5299 = vshrl.u32 %v5298, 7
    %v5300 = vsub.s32 %v5297, %v5299
    %v5301 = vrot.slane %v5218, %v5300
    %v5302 = vcombine.high %v5301, %v5301
    %v5304 = vunpack.c.l.s4 1966171168
    %v5305 = vunpack.c.0.s8 %v5304
    %v5306 = vlaneseq
    %v5307 = vshrl.u32 %v5306, 7
    %v5308 = vsub.s32 %v5305, %v5307
    %v5309 = vrot.slane %v5301, %v5308
    %v5311 = vunpack.c.l.s4 1966171168
    %v5312 = vunpack.c.0.s8 %v5311
    %v5313 = vlaneseq
    %v5314 = vshrl.u32 %v5313, 7
    %v5315 = vsub.s32 %v5312, %v5314
    %v5316 = vrot.slane %v5302, %v5315
    %v5317 = vlaneseq
    %v5318 = vshrl.u32 %v5317, 7
    %v5319 = vsub.s32 0, %v5318
    %v5320 = vrot.slane %v5309, %v5319
    %v5321 = vlaneseq
    %v5322 = vshrl.u32 %v5321, 7
    %v5323 = vsub.s32 0, %v5322
    %v5324 = vrot.slane %v5316, %v5323
    %v5327 = vsub.f32 %v4953, %v5320
    %v5328 = vsub.f32 %v4956, %v5324
    %v5331 = vunpack.c.l.s4 1966171168
    %v5332 = vunpack.c.0.s8 %v5331
    %v5333 = vlaneseq
    %v5334 = vshrl.u32 %v5333, 7
    %v5335 = vsub.s32 %v5332, %v5334
    %v5336 = vrot.slane %v5291, %v5335
    %v5337 = vcombine.high %v5336, %v5336
    %v5339 = vunpack.c.l.s4 1966171168
    %v5340 = vunpack.c.0.s8 %v5339
    %v5341 = vlaneseq
    %v5342 = vshrl.u32 %v5341, 7
    %v5343 = vsub.s32 %v5340, %v5342
    %v5344 = vrot.slane %v5336, %v5343
    %v5346 = vunpack.c.l.s4 1966171168
    %v5347 = vunpack.c.0.s8 %v5346
    %v5348 = vlaneseq
    %v5349 = vshrl.u32 %v5348, 7
    %v5350 = vsub.s32 %v5347, %v5349
    %v5351 = vrot.slane %v5337, %v5350
    %v5352 = vlaneseq
    %v5353 = vshrl.u32 %v5352, 7
    %v5354 = vsub.s32 0, %v5353
    %v5355 = vrot.slane %v5344, %v5354
    %v5356 = vlaneseq
    %v5357 = vshrl.u32 %v5356, 7
    %v5358 = vsub.s32 0, %v5357
    %v5359 = vrot.slane %v5351, %v5358
    %v5362 = vmul.f32 %v5327, %v5355
    %v5363 = vmul.f32 %v5328, %v5359
    %v5364 = vlaneseq
    %v5365 = vshrl.u32 %v5364, 7
    %v5366 = vsub.s32 0, %v5365
    %v5367 = vrot.slane %v4959, %v5366
    %v5368 = vmul.f32 %v5362, %v5367
    %v5369 = vmul.f32 %v5363, %v5367
    %v5370 = vlaneseq
    %v5371 = vshrl.u32 %v5370, 7
    %v5372 = vsub.s32 0, %v5371
    %v5373 = vrot.slane %v4960, %v5372
    %v5374 = vadd.f32 %v5368, %v5373
    %v5375 = vadd.f32 %v5369, %v5373
    %v5376 = vmax.f32 %v5374, 0.0
    %v5377 = vmax.f32 %v5375, 0.0
    %v5378 = vand.u32 2147483647, %v5374
    %v5379 = vand.u32 2147483647, %v5375
    %v5380 = vsub.f32 0.0, %v5378
    %v5381 = vsub.f32 0.0, %v5379
    %v5382 = vmul.f32 %v5380, 1.442695
    %v5383 = vpow.pop %v5382
    %v5384 = vmul.f32 %v5381, 1.442695
    %v5385 = vpow.pop %v5384
    %v5386 = vadd.f32 %v5383, 1.0
    %v5387 = vadd.f32 %v5385, 1.0
    %v5388 = vlog2.pop %v5386
    %v5389 = vmul.f32 %v5388, 0.6931472
    %v5390 = vlog2.pop %v5387
    %v5391 = vmul.f32 %v5390, 0.6931472
    %v5392 = vadd.f32 %v5376, %v5389
    %v5393 = vadd.f32 %v5377, %v5391
    %v5394 = vtanh.pop %v5392
    %v5395 = vtanh.pop %v5393
    %v5396 = vmul.f32 %v5374, %v5394
    %v5397 = vmul.f32 %v5375, %v5395
    %5400 = vrot.lane.b32.xlu0 %v5396, 64
    %v5401 = vpop.permute.xlu0 %5400
    %5402 = vrot.lane.b32.xlu0 %v5397, 64
    %v5403 = vpop.permute.xlu0 %5402
    %v5406 = vmul.f32 %v4281, %v5401
    %v5407 = vmul.f32 %v4285, %v5403
    %v5408 = vadd.f32 %v5406, %v4291
    %v5409 = vadd.f32 %v5407, %v4293
    %v5412 = vrot.slane %v5408, 7
    %v5413 = vrot.slane %v5409, 7
    %5414 = vrot.lane.b32.xlu0 %v5412, 64
    %v5415 = vpop.permute.xlu0 %5414
    %5416 = vrot.lane.b32.xlu0 %v5413, 64
    %v5417 = vpop.permute.xlu0 %5416
    %v5420 = vsel %vm2570, 0.0, %v5415
    %v5421 = vsel %vm2570, 0.0, %v5417
    %v5422 = vsel %vm2570, %v5415, 0.0
    %v5423 = vsel %vm2570, %v5417, 0.0
    %v5428 = vrot.slane %v5420, 1
    %v5429 = vrot.slane %v5422, 1
    %v5430 = vsel %vm188, %v5428, %v5429
    %v5431 = vrot.slane %v5421, 1
    %v5432 = vrot.slane %v5423, 1
    %v5433 = vsel %vm188, %v5431, %v5432
    %5434 = vrot.lane.b32.xlu0 %v5430, 32
    %v5435 = vpop.permute.xlu0 %5434
    %5436 = vrot.lane.b32.xlu0 %v5433, 32
    %v5437 = vpop.permute.xlu0 %5436
    %v5440 = vrot.slane %v5420, 2
    %v5441 = vrot.slane %v5422, 2
    %v5442 = vsel %vm201, %v5440, %v5441
    %v5443 = vrot.slane %v5421, 2
    %v5444 = vrot.slane %v5423, 2
    %v5445 = vsel %vm201, %v5443, %v5444
    %5446 = vrot.lane.b32.xlu0 %v5442, 64
    %v5447 = vpop.permute.xlu0 %5446
    %5448 = vrot.lane.b32.xlu0 %v5445, 64
    %v5449 = vpop.permute.xlu0 %5448
    %v5452 = vsel %vm874, %v5420, %v5435
    %v5453 = vsel %vm874, %v5421, %v5437
    %v5454 = vsel %vm880, %v5452, %v5447
    %v5455 = vsel %vm880, %v5453, %v5449
    %v5456 = vld [vmem:[#allocation2 + $0x3e0] sm:$0xff]
    %v5457 = vld [vmem:[#allocation2 + $0x3e8] sm:$0xff]
    %v5458 = vld [vmem:[#allocation2 + $0x3f0] sm:$0xff]
    %v5459 = vld [vmem:[#allocation2 + $0x3f8] sm:$0xff]
    %v5460 = vld [vmem:[#allocation2 + $0x400] sm:$0xff]
    %v5461 = vld [vmem:[#allocation2 + $0x408] sm:$0xff]
    %v5462 = vld [vmem:[#allocation2 + $0x410] sm:$0xff]
    %v5463 = vld [vmem:[#allocation2 + $0x418] sm:$0xff]
    %v5464 = vld [vmem:[#allocation2 + $0x420] sm:$0xff]
    %v5465 = vld [vmem:[#allocation2 + $0x428] sm:$0xff]
    %v5466 = vld [vmem:[#allocation2 + $0x430] sm:$0xff]
    %v5467 = vld [vmem:[#allocation2 + $0x438] sm:$0xff]
    %v5468 = vpack.c.bf16 %v5455, %v5454
    %v5469 = vpack.c.bf16 %v5457, %v5456
    %v5470 = vpack.c.bf16 %v5459, %v5458
    %v5471 = vpack.c.bf16 %v5461, %v5460
    %v5472 = vpack.c.bf16 %v5463, %v5462
    %v5473 = vpack.c.bf16 %v5465, %v5464
    %v5474 = vpack.c.bf16 %v5467, %v5466
    %v5475 = vld [vmem:[#allocation2 + $0x440] sm:$0x1]
    %v5476 = vlaneseq
    %v5477 = vshrl.u32 %v5476, 7
    %v5478 = vsub.s32 0, %v5477
    %v5479 = vrot.slane %v5475, %v5478
    %v5481 = vsel %vm3212, %v5468, 0
    %5483 = vmatprep.subr.bf16.mxu0 0
    %5484 = vmatpush1.bf16.msra.mxu0 %v5469
    %5485 = vmatprep.subr.bf16.mxu0 0
    %5486 = vmatpush1.bf16.msra.mxu0 %v5470
    %5487 = vmatprep.subr.bf16.mxu0 0
    %5488 = vmatpush1.bf16.msra.mxu0 %v5471
    %5489 = vmatprep.subr.bf16.mxu0 0
    %5490 = vmatpush1.bf16.msra.mxu0 %v5472
    %5491 = vmatprep.subr.bf16.mxu0 0
    %5492 = vmatpush1.bf16.msra.mxu0 %v5473
    %5493 = vmatprep.subr.bf16.mxu0 0
    %5494 = vmatpush1.bf16.msra.mxu0 %v5474
    %5495 = vmatprep.subr.bf16.mxu0 0
    %5496 = vmatpush1.bf16.msra.mxu0 0
    %5497 = vmatprep.subr.bf16.mxu0 0
    %5498 = vmatpush1.bf16.msra.mxu0 0
    %5499 = vmatprep.subr.bf16.mxu0 0
    %5500 = vmatpush1.bf16.msra.mxu0 0
    %5501 = vmatprep.subr.bf16.mxu0 0
    %5502 = vmatpush1.bf16.msra.mxu0 0
    %5503 = vmatprep.subr.bf16.mxu0 0
    %5504 = vmatpush1.bf16.msra.mxu0 0
    %5505 = vmatprep.subr.bf16.mxu0 0
    %5506 = vmatpush1.bf16.msra.mxu0 0
    %5507 = vmatprep.subr.bf16.mxu0 0
    %5508 = vmatpush1.bf16.msra.mxu0 0
    %5509 = vmatprep.subr.bf16.mxu0 0
    %5510 = vmatpush1.bf16.msra.mxu0 0
    %5511 = vmatprep.subr.bf16.mxu0 0
    %5512 = vmatpush1.bf16.msra.mxu0 0
    %5513 = vmatprep.subr.bf16.mxu0 0
    %5514 = vmatpush1.bf16.msra.mxu0 0
    %5515 = vmatprep.mubr.bf16.mxu0 0
    %5516 = vmatmul.mubr.bf16.gmra.mrb[0].mxu0 %v5481
    %v5517 = vpop.f32.mrb[0].mxu0
    %v5518 = vadd.f32 %v5479, %v5517
    %v5519 = vpop.f32.mrb[0].mxu0
    %v5520 = vpop.f32.mrb[0].mxu0
    %v5521 = vadd.f32 %v5479, %v5520
    %v5522 = vpop.f32.mrb[0].mxu0
    %5523 = vdwg.mxu0
    %v5524 = vld [vmem:[#allocation2 + $0x448] sm:$0x1]
    %v5525 = vld [vmem:[#allocation2 + $0x450] sm:$0x1]
    %v5526 = vsel %vm874, %v5518, 0.0
    %v5527 = vrot.slane %v5526, 4
    %v5528 = vadd.f32 %v5526, %v5527
    %v5529 = vrot.slane %v5528, 2
    %v5530 = vadd.f32 %v5528, %v5529
    %v5531 = vrot.slane %v5530, 1
    %v5532 = vadd.f32 %v5530, %v5531
    %v5533 = vsel %vm874, %v5521, 0.0
    %v5534 = vrot.slane %v5533, 4
    %v5535 = vadd.f32 %v5533, %v5534
    %v5536 = vrot.slane %v5535, 2
    %v5537 = vadd.f32 %v5535, %v5536
    %v5538 = vrot.slane %v5537, 1
    %v5539 = vadd.f32 %v5537, %v5538
    %v5542 = vsel %vm344, %v5539, %v5532
    %v5543 = vsel %vm874, %v5542, 0
    %5545 = vmatprep.subr.mxu0 0.0
    %5546 = vmatpush1.msra.mxu0 %v2679
    %5547 = vmatprep.subr.mxu0 0.0
    %5548 = vmatpush1.msra.mxu0 %v2680
    %5549 = vmatprep.subr.mxu0 0.0
    %5550 = vmatpush1.msra.mxu0 %v2681
    %5551 = vmatprep.subr.mxu0 0.0
    %5552 = vmatpush1.msra.mxu0 %v2682
    %5553 = vmatprep.subr.mxu0 0.0
    %5554 = vmatpush1.msra.mxu0 0.0
    %5555 = vmatprep.subr.mxu0 0.0
    %5556 = vmatpush1.msra.mxu0 0.0
    %5557 = vmatprep.subr.mxu0 0.0
    %5558 = vmatpush1.msra.mxu0 0.0
    %5559 = vmatprep.subr.mxu0 0.0
    %5560 = vmatpush1.msra.mxu0 0.0
    %5561 = vmatprep.subr.mxu0 0.0
    %5562 = vmatpush1.msra.mxu0 0.0
    %5563 = vmatprep.subr.mxu0 0.0
    %5564 = vmatpush1.msra.mxu0 0.0
    %5565 = vmatprep.subr.mxu0 0.0
    %5566 = vmatpush1.msra.mxu0 0.0
    %5567 = vmatprep.subr.mxu0 0.0
    %5568 = vmatpush1.msra.mxu0 0.0
    %5569 = vmatprep.subr.mxu0 0.0
    %5570 = vmatpush1.msra.mxu0 0.0
    %5571 = vmatprep.subr.mxu0 0.0
    %5572 = vmatpush1.msra.mxu0 0.0
    %5573 = vmatprep.subr.mxu0 0.0
    %5574 = vmatpush1.msra.mxu0 0.0
    %5575 = vmatprep.subr.mxu0 0.0
    %5576 = vmatpush1.msra.mxu0 0.0
    %5577 = vmatprep.subr.mxu0 0.0
    %5578 = vmatpush1.msra.mxu0 0.0
    %5579 = vmatprep.subr.mxu0 0.0
    %5580 = vmatpush1.msra.mxu0 0.0
    %5581 = vmatprep.subr.mxu0 0.0
    %5582 = vmatpush1.msra.mxu0 0.0
    %5583 = vmatprep.subr.mxu0 0.0
    %5584 = vmatpush1.msra.mxu0 0.0
    %5585 = vmatprep.subr.mxu0 0.0
    %5586 = vmatpush1.msra.mxu0 0.0
    %5587 = vmatprep.subr.mxu0 0.0
    %5588 = vmatpush1.msra.mxu0 0.0
    %5589 = vmatprep.subr.mxu0 0.0
    %5590 = vmatpush1.msra.mxu0 0.0
    %5591 = vmatprep.subr.mxu0 0.0
    %5592 = vmatpush1.msra.mxu0 0.0
    %5593 = vmatprep.subr.mxu0 0.0
    %5594 = vmatpush1.msra.mxu0 0.0
    %5595 = vmatprep.subr.mxu0 0.0
    %5596 = vmatpush1.msra.mxu0 0.0
    %5597 = vmatprep.subr.mxu0 0.0
    %5598 = vmatpush1.msra.mxu0 0.0
    %5599 = vmatprep.subr.mxu0 0.0
    %5600 = vmatpush1.msra.mxu0 0.0
    %5601 = vmatprep.subr.mxu0 0.0
    %5602 = vmatpush1.msra.mxu0 0.0
    %5603 = vmatprep.subr.mxu0 0.0
    %5604 = vmatpush1.msra.mxu0 0.0
    %5605 = vmatprep.subr.mxu0 0.0
    %5606 = vmatpush1.msra.mxu0 0.0
    %5607 = vmatprep.subr.mxu0 0.0
    %5608 = vmatpush1.msra.mxu0 0.0
    %5609 = vmatprep.mubr.f32.mxu0 0.0
    %5610 = vmatmul.mubr.f32.gmra.mrb[0].mxu0 %v5543
    %v5611 = vpop.f32.mrb[0].mxu0
    %v5612 = vadd.f32 0.0, %v5611
    %v5613 = vpop.f32.mrb[0].mxu0
    %5614 = vdwg.mxu0
    %v5615 = vmul.f32 %v5518, %v5518
    %v5616 = vmul.f32 %v5521, %v5521
    %v5617 = vsel %vm874, %v5615, 0.0
    %v5618 = vrot.slane %v5617, 4
    %v5619 = vadd.f32 %v5617, %v5618
    %v5620 = vrot.slane %v5619, 2
    %v5621 = vadd.f32 %v5619, %v5620
    %v5622 = vrot.slane %v5621, 1
    %v5623 = vadd.f32 %v5621, %v5622
    %v5624 = vsel %vm874, %v5616, 0.0
    %v5625 = vrot.slane %v5624, 4
    %v5626 = vadd.f32 %v5624, %v5625
    %v5627 = vrot.slane %v5626, 2
    %v5628 = vadd.f32 %v5626, %v5627
    %v5629 = vrot.slane %v5628, 1
    %v5630 = vadd.f32 %v5628, %v5629
    %v5633 = vsel %vm344, %v5630, %v5623
    %v5634 = vsel %vm874, %v5633, 0
    %5636 = vmatprep.subr.mxu0 0.0
    %5637 = vmatpush1.msra.mxu0 %v2679
    %5638 = vmatprep.subr.mxu0 0.0
    %5639 = vmatpush1.msra.mxu0 %v2680
    %5640 = vmatprep.subr.mxu0 0.0
    %5641 = vmatpush1.msra.mxu0 %v2681
    %5642 = vmatprep.subr.mxu0 0.0
    %5643 = vmatpush1.msra.mxu0 %v2682
    %5644 = vmatprep.subr.mxu0 0.0
    %5645 = vmatpush1.msra.mxu0 0.0
    %5646 = vmatprep.subr.mxu0 0.0
    %5647 = vmatpush1.msra.mxu0 0.0
    %5648 = vmatprep.subr.mxu0 0.0
    %5649 = vmatpush1.msra.mxu0 0.0
    %5650 = vmatprep.subr.mxu0 0.0
    %5651 = vmatpush1.msra.mxu0 0.0
    %5652 = vmatprep.subr.mxu0 0.0
    %5653 = vmatpush1.msra.mxu0 0.0
    %5654 = vmatprep.subr.mxu0 0.0
    %5655 = vmatpush1.msra.mxu0 0.0
    %5656 = vmatprep.subr.mxu0 0.0
    %5657 = vmatpush1.msra.mxu0 0.0
    %5658 = vmatprep.subr.mxu0 0.0
    %5659 = vmatpush1.msra.mxu0 0.0
    %5660 = vmatprep.subr.mxu0 0.0
    %5661 = vmatpush1.msra.mxu0 0.0
    %5662 = vmatprep.subr.mxu0 0.0
    %5663 = vmatpush1.msra.mxu0 0.0
    %5664 = vmatprep.subr.mxu0 0.0
    %5665 = vmatpush1.msra.mxu0 0.0
    %5666 = vmatprep.subr.mxu0 0.0
    %5667 = vmatpush1.msra.mxu0 0.0
    %5668 = vmatprep.subr.mxu0 0.0
    %5669 = vmatpush1.msra.mxu0 0.0
    %5670 = vmatprep.subr.mxu0 0.0
    %5671 = vmatpush1.msra.mxu0 0.0
    %5672 = vmatprep.subr.mxu0 0.0
    %5673 = vmatpush1.msra.mxu0 0.0
    %5674 = vmatprep.subr.mxu0 0.0
    %5675 = vmatpush1.msra.mxu0 0.0
    %5676 = vmatprep.subr.mxu0 0.0
    %5677 = vmatpush1.msra.mxu0 0.0
    %5678 = vmatprep.subr.mxu0 0.0
    %5679 = vmatpush1.msra.mxu0 0.0
    %5680 = vmatprep.subr.mxu0 0.0
    %5681 = vmatpush1.msra.mxu0 0.0
    %5682 = vmatprep.subr.mxu0 0.0
    %5683 = vmatpush1.msra.mxu0 0.0
    %5684 = vmatprep.subr.mxu0 0.0
    %5685 = vmatpush1.msra.mxu0 0.0
    %5686 = vmatprep.subr.mxu0 0.0
    %5687 = vmatpush1.msra.mxu0 0.0
    %5688 = vmatprep.subr.mxu0 0.0
    %5689 = vmatpush1.msra.mxu0 0.0
    %5690 = vmatprep.subr.mxu0 0.0
    %5691 = vmatpush1.msra.mxu0 0.0
    %5692 = vmatprep.subr.mxu0 0.0
    %5693 = vmatpush1.msra.mxu0 0.0
    %5694 = vmatprep.subr.mxu0 0.0
    %5695 = vmatpush1.msra.mxu0 0.0
    %5696 = vmatprep.subr.mxu0 0.0
    %5697 = vmatpush1.msra.mxu0 0.0
    %5698 = vmatprep.subr.mxu0 0.0
    %5699 = vmatpush1.msra.mxu0 0.0
    %5700 = vmatprep.mubr.f32.mxu0 0.0
    %5701 = vmatmul.mubr.f32.gmra.mrb[0].mxu0 %v5634
    %v5702 = vpop.f32.mrb[0].mxu0
    %v5703 = vadd.f32 0.0, %v5702
    %v5704 = vpop.f32.mrb[0].mxu0
    %5705 = vdwg.mxu0
    %v5706 = vmul.f32 %v5612, %v2866
    %v5707 = vmul.f32 %v5703, %v2866
    %v5708 = vmul.f32 %v5706, %v5706
    %v5709 = vsub.f32 %v5707, %v5708
    %v5710 = vmax.f32 %v5709, 0.0
    %v5711 = vadd.f32 %v5710, 1e-05
    %v5712 = vrsqrt.pop %v5711
    %v5714 = vsel %vm243, %v5706, 0
    %5716 = vmatprep.subr.mxu0 0.0
    %5717 = vmatpush1.msra.mxu0 %v2683
    %5718 = vmatprep.subr.mxu0 0.0
    %5719 = vmatpush1.msra.mxu0 0.0
    %5720 = vmatprep.subr.mxu0 0.0
    %5721 = vmatpush1.msra.mxu0 0.0
    %5722 = vmatprep.subr.mxu0 0.0
    %5723 = vmatpush1.msra.mxu0 0.0
    %5724 = vmatprep.subr.mxu0 0.0
    %5725 = vmatpush1.msra.mxu0 0.0
    %5726 = vmatprep.subr.mxu0 0.0
    %5727 = vmatpush1.msra.mxu0 0.0
    %5728 = vmatprep.subr.mxu0 0.0
    %5729 = vmatpush1.msra.mxu0 0.0
    %5730 = vmatprep.subr.mxu0 0.0
    %5731 = vmatpush1.msra.mxu0 0.0
    %5732 = vmatprep.subr.mxu0 0.0
    %5733 = vmatpush1.msra.mxu0 0.0
    %5734 = vmatprep.subr.mxu0 0.0
    %5735 = vmatpush1.msra.mxu0 0.0
    %5736 = vmatprep.subr.mxu0 0.0
    %5737 = vmatpush1.msra.mxu0 0.0
    %5738 = vmatprep.subr.mxu0 0.0
    %5739 = vmatpush1.msra.mxu0 0.0
    %5740 = vmatprep.subr.mxu0 0.0
    %5741 = vmatpush1.msra.mxu0 0.0
    %5742 = vmatprep.subr.mxu0 0.0
    %5743 = vmatpush1.msra.mxu0 0.0
    %5744 = vmatprep.subr.mxu0 0.0
    %5745 = vmatpush1.msra.mxu0 0.0
    %5746 = vmatprep.subr.mxu0 0.0
    %5747 = vmatpush1.msra.mxu0 0.0
    %5748 = vmatprep.subr.mxu0 0.0
    %5749 = vmatpush1.msra.mxu0 0.0
    %5750 = vmatprep.subr.mxu0 0.0
    %5751 = vmatpush1.msra.mxu0 0.0
    %5752 = vmatprep.subr.mxu0 0.0
    %5753 = vmatpush1.msra.mxu0 0.0
    %5754 = vmatprep.subr.mxu0 0.0
    %5755 = vmatpush1.msra.mxu0 0.0
    %5756 = vmatprep.subr.mxu0 0.0
    %5757 = vmatpush1.msra.mxu0 0.0
    %5758 = vmatprep.subr.mxu0 0.0
    %5759 = vmatpush1.msra.mxu0 0.0
    %5760 = vmatprep.subr.mxu0 0.0
    %5761 = vmatpush1.msra.mxu0 0.0
    %5762 = vmatprep.subr.mxu0 0.0
    %5763 = vmatpush1.msra.mxu0 0.0
    %5764 = vmatprep.subr.mxu0 0.0
    %5765 = vmatpush1.msra.mxu0 0.0
    %5766 = vmatprep.subr.mxu0 0.0
    %5767 = vmatpush1.msra.mxu0 0.0
    %5768 = vmatprep.subr.mxu0 0.0
    %5769 = vmatpush1.msra.mxu0 0.0
    %5770 = vmatprep.subr.mxu0 0.0
    %5771 = vmatpush1.msra.mxu0 0.0
    %5772 = vmatprep.subr.mxu0 0.0
    %5773 = vmatpush1.msra.mxu0 0.0
    %5774 = vmatprep.subr.mxu0 0.0
    %5775 = vmatpush1.msra.mxu0 0.0
    %5776 = vmatprep.subr.mxu0 0.0
    %5777 = vmatpush1.msra.mxu0 0.0
    %5778 = vmatprep.subr.mxu0 0.0
    %5779 = vmatpush1.msra.mxu0 0.0
    %5780 = vmatprep.mubr.f32.mxu0 0.0
    %5781 = vmatmul.mubr.f32.gmra.mrb[0].mxu0 %v5714
    %v5782 = vpop.f32.mrb[0].mxu0
    %v5783 = vadd.f32 0.0, %v5782
    %v5784 = vpop.f32.mrb[0].mxu0
    %5785 = vdwg.mxu0
    %v5787 = vsel %vm243, %v5712, 0
    %5789 = vmatprep.subr.mxu0 0.0
    %5790 = vmatpush1.msra.mxu0 %v2683
    %5791 = vmatprep.subr.mxu0 0.0
    %5792 = vmatpush1.msra.mxu0 0.0
    %5793 = vmatprep.subr.mxu0 0.0
    %5794 = vmatpush1.msra.mxu0 0.0
    %5795 = vmatprep.subr.mxu0 0.0
    %5796 = vmatpush1.msra.mxu0 0.0
    %5797 = vmatprep.subr.mxu0 0.0
    %5798 = vmatpush1.msra.mxu0 0.0
    %5799 = vmatprep.subr.mxu0 0.0
    %5800 = vmatpush1.msra.mxu0 0.0
    %5801 = vmatprep.subr.mxu0 0.0
    %5802 = vmatpush1.msra.mxu0 0.0
    %5803 = vmatprep.subr.mxu0 0.0
    %5804 = vmatpush1.msra.mxu0 0.0
    %5805 = vmatprep.subr.mxu0 0.0
    %5806 = vmatpush1.msra.mxu0 0.0
    %5807 = vmatprep.subr.mxu0 0.0
    %5808 = vmatpush1.msra.mxu0 0.0
    %5809 = vmatprep.subr.mxu0 0.0
    %5810 = vmatpush1.msra.mxu0 0.0
    %5811 = vmatprep.subr.mxu0 0.0
    %5812 = vmatpush1.msra.mxu0 0.0
    %5813 = vmatprep.subr.mxu0 0.0
    %5814 = vmatpush1.msra.mxu0 0.0
    %5815 = vmatprep.subr.mxu0 0.0
    %5816 = vmatpush1.msra.mxu0 0.0
    %5817 = vmatprep.subr.mxu0 0.0
    %5818 = vmatpush1.msra.mxu0 0.0
    %5819 = vmatprep.subr.mxu0 0.0
    %5820 = vmatpush1.msra.mxu0 0.0
    %5821 = vmatprep.subr.mxu0 0.0
    %5822 = vmatpush1.msra.mxu0 0.0
    %5823 = vmatprep.subr.mxu0 0.0
    %5824 = vmatpush1.msra.mxu0 0.0
    %5825 = vmatprep.subr.mxu0 0.0
    %5826 = vmatpush1.msra.mxu0 0.0
    %5827 = vmatprep.subr.mxu0 0.0
    %5828 = vmatpush1.msra.mxu0 0.0
    %5829 = vmatprep.subr.mxu0 0.0
    %5830 = vmatpush1.msra.mxu0 0.0
    %5831 = vmatprep.subr.mxu0 0.0
    %5832 = vmatpush1.msra.mxu0 0.0
    %5833 = vmatprep.subr.mxu0 0.0
    %5834 = vmatpush1.msra.mxu0 0.0
    %5835 = vmatprep.subr.mxu0 0.0
    %5836 = vmatpush1.msra.mxu0 0.0
    %5837 = vmatprep.subr.mxu0 0.0
    %5838 = vmatpush1.msra.mxu0 0.0
    %5839 = vmatprep.subr.mxu0 0.0
    %5840 = vmatpush1.msra.mxu0 0.0
    %5841 = vmatprep.subr.mxu0 0.0
    %5842 = vmatpush1.msra.mxu0 0.0
    %5843 = vmatprep.subr.mxu0 0.0
    %5844 = vmatpush1.msra.mxu0 0.0
    %5845 = vmatprep.subr.mxu0 0.0
    %5846 = vmatpush1.msra.mxu0 0.0
    %5847 = vmatprep.subr.mxu0 0.0
    %5848 = vmatpush1.msra.mxu0 0.0
    %5849 = vmatprep.subr.mxu0 0.0
    %5850 = vmatpush1.msra.mxu0 0.0
    %5851 = vmatprep.subr.mxu0 0.0
    %5852 = vmatpush1.msra.mxu0 0.0
    %5853 = vmatprep.mubr.f32.mxu0 0.0
    %5854 = vmatmul.mubr.f32.gmra.mrb[0].mxu0 %v5787
    %v5855 = vpop.f32.mrb[0].mxu0
    %v5856 = vadd.f32 0.0, %v5855
    %v5857 = vpop.f32.mrb[0].mxu0
    %5858 = vdwg.mxu0
    %v5861 = vunpack.c.l.s4 1966171168
    %v5862 = vunpack.c.0.s8 %v5861
    %v5863 = vlaneseq
    %v5864 = vshrl.u32 %v5863, 7
    %v5865 = vsub.s32 %v5862, %v5864
    %v5866 = vrot.slane %v5783, %v5865
    %v5867 = vcombine.high %v5866, %v5866
    %v5869 = vunpack.c.l.s4 1966171168
    %v5870 = vunpack.c.0.s8 %v5869
    %v5871 = vlaneseq
    %v5872 = vshrl.u32 %v5871, 7
    %v5873 = vsub.s32 %v5870, %v5872
    %v5874 = vrot.slane %v5866, %v5873
    %v5876 = vunpack.c.l.s4 1966171168
    %v5877 = vunpack.c.0.s8 %v5876
    %v5878 = vlaneseq
    %v5879 = vshrl.u32 %v5878, 7
    %v5880 = vsub.s32 %v5877, %v5879
    %v5881 = vrot.slane %v5867, %v5880
    %v5882 = vlaneseq
    %v5883 = vshrl.u32 %v5882, 7
    %v5884 = vsub.s32 0, %v5883
    %v5885 = vrot.slane %v5874, %v5884
    %v5886 = vlaneseq
    %v5887 = vshrl.u32 %v5886, 7
    %v5888 = vsub.s32 0, %v5887
    %v5889 = vrot.slane %v5881, %v5888
    %v5892 = vsub.f32 %v5518, %v5885
    %v5893 = vsub.f32 %v5521, %v5889
    %v5896 = vunpack.c.l.s4 1966171168
    %v5897 = vunpack.c.0.s8 %v5896
    %v5898 = vlaneseq
    %v5899 = vshrl.u32 %v5898, 7
    %v5900 = vsub.s32 %v5897, %v5899
    %v5901 = vrot.slane %v5856, %v5900
    %v5902 = vcombine.high %v5901, %v5901
    %v5904 = vunpack.c.l.s4 1966171168
    %v5905 = vunpack.c.0.s8 %v5904
    %v5906 = vlaneseq
    %v5907 = vshrl.u32 %v5906, 7
    %v5908 = vsub.s32 %v5905, %v5907
    %v5909 = vrot.slane %v5901, %v5908
    %v5911 = vunpack.c.l.s4 1966171168
    %v5912 = vunpack.c.0.s8 %v5911
    %v5913 = vlaneseq
    %v5914 = vshrl.u32 %v5913, 7
    %v5915 = vsub.s32 %v5912, %v5914
    %v5916 = vrot.slane %v5902, %v5915
    %v5917 = vlaneseq
    %v5918 = vshrl.u32 %v5917, 7
    %v5919 = vsub.s32 0, %v5918
    %v5920 = vrot.slane %v5909, %v5919
    %v5921 = vlaneseq
    %v5922 = vshrl.u32 %v5921, 7
    %v5923 = vsub.s32 0, %v5922
    %v5924 = vrot.slane %v5916, %v5923
    %v5927 = vmul.f32 %v5892, %v5920
    %v5928 = vmul.f32 %v5893, %v5924
    %v5929 = vlaneseq
    %v5930 = vshrl.u32 %v5929, 7
    %v5931 = vsub.s32 0, %v5930
    %v5932 = vrot.slane %v5524, %v5931
    %v5933 = vmul.f32 %v5927, %v5932
    %v5934 = vmul.f32 %v5928, %v5932
    %v5935 = vlaneseq
    %v5936 = vshrl.u32 %v5935, 7
    %v5937 = vsub.s32 0, %v5936
    %v5938 = vrot.slane %v5525, %v5937
    %v5939 = vadd.f32 %v5933, %v5938
    %v5940 = vadd.f32 %v5934, %v5938
    %v5941 = vmax.f32 %v5939, 0.0
    %v5942 = vmax.f32 %v5940, 0.0
    %v5943 = vand.u32 2147483647, %v5939
    %v5944 = vand.u32 2147483647, %v5940
    %v5945 = vsub.f32 0.0, %v5943
    %v5946 = vsub.f32 0.0, %v5944
    %v5947 = vmul.f32 %v5945, 1.442695
    %v5948 = vpow.pop %v5947
    %v5949 = vmul.f32 %v5946, 1.442695
    %v5950 = vpow.pop %v5949
    %v5951 = vadd.f32 %v5948, 1.0
    %v5952 = vadd.f32 %v5950, 1.0
    %v5953 = vlog2.pop %v5951
    %v5954 = vmul.f32 %v5953, 0.6931472
    %v5955 = vlog2.pop %v5952
    %v5956 = vmul.f32 %v5955, 0.6931472
    %v5957 = vadd.f32 %v5941, %v5954
    %v5958 = vadd.f32 %v5942, %v5956
    %v5959 = vtanh.pop %v5957
    %v5960 = vtanh.pop %v5958
    %v5961 = vmul.f32 %v5939, %v5959
    %v5962 = vmul.f32 %v5940, %v5960
    %v5963 = vadd.f32 %v5961, %v4847
    %v5964 = vadd.f32 %v5962, %v4848
    %v5967 = vrot.slane %v5963, 7
    %v5968 = vrot.slane %v5964, 7
    %v5971 = vsel %vm2570, 0.0, %v5967
    %v5972 = vsel %vm2570, 0.0, %v5968
    %v5973 = vsel %vm2570, %v5967, 0.0
    %v5974 = vsel %vm2570, %v5968, 0.0
    %v5979 = vrot.slane %v5971, 1
    %v5980 = vrot.slane %v5973, 1
    %v5981 = vsel %vm188, %v5979, %v5980
    %v5982 = vrot.slane %v5972, 1
    %v5983 = vrot.slane %v5974, 1
    %v5984 = vsel %vm188, %v5982, %v5983
    %5985 = vrot.lane.b32.xlu0 %v5981, 32
    %v5986 = vpop.permute.xlu0 %5985
    %5987 = vrot.lane.b32.xlu0 %v5984, 32
    %v5988 = vpop.permute.xlu0 %5987
    %v5991 = vrot.slane %v5971, 2
    %v5992 = vrot.slane %v5973, 2
    %v5993 = vsel %vm201, %v5991, %v5992
    %v5994 = vrot.slane %v5972, 2
    %v5995 = vrot.slane %v5974, 2
    %v5996 = vsel %vm201, %v5994, %v5995
    %5997 = vrot.lane.b32.xlu0 %v5993, 64
    %v5998 = vpop.permute.xlu0 %5997
    %5999 = vrot.lane.b32.xlu0 %v5996, 64
    %v6000 = vpop.permute.xlu0 %5999
    %v6003 = vsel %vm874, %v5971, %v5986
    %v6004 = vsel %vm874, %v5972, %v5988
    %v6005 = vsel %vm880, %v6003, %v5998
    %v6006 = vsel %vm880, %v6004, %v6000
    %v6007 = vld [vmem:[#allocation2 + $0x458] sm:$0xff]
    %v6008 = vld [vmem:[#allocation2 + $0x460] sm:$0xff]
    %v6009 = vld [vmem:[#allocation2 + $0x468] sm:$0xff]
    %v6010 = vld [vmem:[#allocation2 + $0x470] sm:$0xff]
    %v6011 = vld [vmem:[#allocation2 + $0x478] sm:$0xff]
    %v6012 = vld [vmem:[#allocation2 + $0x480] sm:$0xff]
    %v6013 = vld [vmem:[#allocation2 + $0x488] sm:$0xff]
    %v6014 = vld [vmem:[#allocation2 + $0x490] sm:$0xff]
    %v6015 = vld [vmem:[#allocation2 + $0x498] sm:$0xff]
    %v6016 = vld [vmem:[#allocation2 + $0x4a0] sm:$0xff]
    %v6017 = vld [vmem:[#allocation2 + $0x4a8] sm:$0xff]
    %v6018 = vld [vmem:[#allocation2 + $0x4b0] sm:$0xff]
    %v6019 = vpack.c.bf16 %v6006, %v6005
    %v6020 = vpack.c.bf16 %v6008, %v6007
    %v6021 = vpack.c.bf16 %v6010, %v6009
    %v6022 = vpack.c.bf16 %v6012, %v6011
    %v6023 = vpack.c.bf16 %v6014, %v6013
    %v6024 = vpack.c.bf16 %v6016, %v6015
    %v6025 = vpack.c.bf16 %v6018, %v6017
    %v6026 = vld [vmem:[#allocation2 + $0x4b8] sm:$0x1]
    %v6027 = vlaneseq
    %v6028 = vshrl.u32 %v6027, 7
    %v6029 = vsub.s32 0, %v6028
    %v6030 = vrot.slane %v6026, %v6029
    %v6032 = vsel %vm3212, %v6019, 0
    %6034 = vmatprep.subr.bf16.mxu0 0
    %6035 = vmatpush1.bf16.msra.mxu0 %v6020
    %6036 = vmatprep.subr.bf16.mxu0 0
    %6037 = vmatpush1.bf16.msra.mxu0 %v6021
    %6038 = vmatprep.subr.bf16.mxu0 0
    %6039 = vmatpush1.bf16.msra.mxu0 %v6022
    %6040 = vmatprep.subr.bf16.mxu0 0
    %6041 = vmatpush1.bf16.msra.mxu0 %v6023
    %6042 = vmatprep.subr.bf16.mxu0 0
    %6043 = vmatpush1.bf16.msra.mxu0 %v6024
    %6044 = vmatprep.subr.bf16.mxu0 0
    %6045 = vmatpush1.bf16.msra.mxu0 %v6025
    %6046 = vmatprep.subr.bf16.mxu0 0
    %6047 = vmatpush1.bf16.msra.mxu0 0
    %6048 = vmatprep.subr.bf16.mxu0 0
    %6049 = vmatpush1.bf16.msra.mxu0 0
    %6050 = vmatprep.subr.bf16.mxu0 0
    %6051 = vmatpush1.bf16.msra.mxu0 0
    %6052 = vmatprep.subr.bf16.mxu0 0
    %6053 = vmatpush1.bf16.msra.mxu0 0
    %6054 = vmatprep.subr.bf16.mxu0 0
    %6055 = vmatpush1.bf16.msra.mxu0 0
    %6056 = vmatprep.subr.bf16.mxu0 0
    %6057 = vmatpush1.bf16.msra.mxu0 0
    %6058 = vmatprep.subr.bf16.mxu0 0
    %6059 = vmatpush1.bf16.msra.mxu0 0
    %6060 = vmatprep.subr.bf16.mxu0 0
    %6061 = vmatpush1.bf16.msra.mxu0 0
    %6062 = vmatprep.subr.bf16.mxu0 0
    %6063 = vmatpush1.bf16.msra.mxu0 0
    %6064 = vmatprep.subr.bf16.mxu0 0
    %6065 = vmatpush1.bf16.msra.mxu0 0
    %6066 = vmatprep.mubr.bf16.mxu0 0
    %6067 = vmatmul.mubr.bf16.gmra.mrb[0].mxu0 %v6032
    %v6068 = vpop.f32.mrb[0].mxu0
    %v6069 = vadd.f32 %v6030, %v6068
    %v6070 = vpop.f32.mrb[0].mxu0
    %v6071 = vpop.f32.mrb[0].mxu0
    %v6072 = vadd.f32 %v6030, %v6071
    %v6073 = vpop.f32.mrb[0].mxu0
    %6074 = vdwg.mxu0
    %v6075 = vld [vmem:[#allocation2 + $0x4c0] sm:$0x1]
    %v6076 = vld [vmem:[#allocation2 + $0x4c8] sm:$0x1]
    %v6077 = vsel %vm874, %v6069, 0.0
    %v6078 = vrot.slane %v6077, 4
    %v6079 = vadd.f32 %v6077, %v6078
    %v6080 = vrot.slane %v6079, 2
    %v6081 = vadd.f32 %v6079, %v6080
    %v6082 = vrot.slane %v6081, 1
    %v6083 = vadd.f32 %v6081, %v6082
    %v6084 = vsel %vm874, %v6072, 0.0
    %v6085 = vrot.slane %v6084, 4
    %v6086 = vadd.f32 %v6084, %v6085
    %v6087 = vrot.slane %v6086, 2
    %v6088 = vadd.f32 %v6086, %v6087
    %v6089 = vrot.slane %v6088, 1
    %v6090 = vadd.f32 %v6088, %v6089
    %v6093 = vsel %vm344, %v6090, %v6083
    %v6094 = vsel %vm874, %v6093, 0
    %6096 = vmatprep.subr.mxu0 0.0
    %6097 = vmatpush1.msra.mxu0 %v2679
    %6098 = vmatprep.subr.mxu0 0.0
    %6099 = vmatpush1.msra.mxu0 %v2680
    %6100 = vmatprep.subr.mxu0 0.0
    %6101 = vmatpush1.msra.mxu0 %v2681
    %6102 = vmatprep.subr.mxu0 0.0
    %6103 = vmatpush1.msra.mxu0 %v2682
    %6104 = vmatprep.subr.mxu0 0.0
    %6105 = vmatpush1.msra.mxu0 0.0
    %6106 = vmatprep.subr.mxu0 0.0
    %6107 = vmatpush1.msra.mxu0 0.0
    %6108 = vmatprep.subr.mxu0 0.0
    %6109 = vmatpush1.msra.mxu0 0.0
    %6110 = vmatprep.subr.mxu0 0.0
    %6111 = vmatpush1.msra.mxu0 0.0
    %6112 = vmatprep.subr.mxu0 0.0
    %6113 = vmatpush1.msra.mxu0 0.0
    %6114 = vmatprep.subr.mxu0 0.0
    %6115 = vmatpush1.msra.mxu0 0.0
    %6116 = vmatprep.subr.mxu0 0.0
    %6117 = vmatpush1.msra.mxu0 0.0
    %6118 = vmatprep.subr.mxu0 0.0
    %6119 = vmatpush1.msra.mxu0 0.0
    %6120 = vmatprep.subr.mxu0 0.0
    %6121 = vmatpush1.msra.mxu0 0.0
    %6122 = vmatprep.subr.mxu0 0.0
    %6123 = vmatpush1.msra.mxu0 0.0
    %6124 = vmatprep.subr.mxu0 0.0
    %6125 = vmatpush1.msra.mxu0 0.0
    %6126 = vmatprep.subr.mxu0 0.0
    %6127 = vmatpush1.msra.mxu0 0.0
    %6128 = vmatprep.subr.mxu0 0.0
    %6129 = vmatpush1.msra.mxu0 0.0
    %6130 = vmatprep.subr.mxu0 0.0
    %6131 = vmatpush1.msra.mxu0 0.0
    %6132 = vmatprep.subr.mxu0 0.0
    %6133 = vmatpush1.msra.mxu0 0.0
    %6134 = vmatprep.subr.mxu0 0.0
    %6135 = vmatpush1.msra.mxu0 0.0
    %6136 = vmatprep.subr.mxu0 0.0
    %6137 = vmatpush1.msra.mxu0 0.0
    %6138 = vmatprep.subr.mxu0 0.0
    %6139 = vmatpush1.msra.mxu0 0.0
    %6140 = vmatprep.subr.mxu0 0.0
    %6141 = vmatpush1.msra.mxu0 0.0
    %6142 = vmatprep.subr.mxu0 0.0
    %6143 = vmatpush1.msra.mxu0 0.0
    %6144 = vmatprep.subr.mxu0 0.0
    %6145 = vmatpush1.msra.mxu0 0.0
    %6146 = vmatprep.subr.mxu0 0.0
    %6147 = vmatpush1.msra.mxu0 0.0
    %6148 = vmatprep.subr.mxu0 0.0
    %6149 = vmatpush1.msra.mxu0 0.0
    %6150 = vmatprep.subr.mxu0 0.0
    %6151 = vmatpush1.msra.mxu0 0.0
    %6152 = vmatprep.subr.mxu0 0.0
    %6153 = vmatpush1.msra.mxu0 0.0
    %6154 = vmatprep.subr.mxu0 0.0
    %6155 = vmatpush1.msra.mxu0 0.0
    %6156 = vmatprep.subr.mxu0 0.0
    %6157 = vmatpush1.msra.mxu0 0.0
    %6158 = vmatprep.subr.mxu0 0.0
    %6159 = vmatpush1.msra.mxu0 0.0
    %6160 = vmatprep.mubr.f32.mxu0 0.0
    %6161 = vmatmul.mubr.f32.gmra.mrb[0].mxu0 %v6094
    %v6162 = vpop.f32.mrb[0].mxu0
    %v6163 = vadd.f32 0.0, %v6162
    %v6164 = vpop.f32.mrb[0].mxu0
    %6165 = vdwg.mxu0
    %v6166 = vmul.f32 %v6069, %v6069
    %v6167 = vmul.f32 %v6072, %v6072
    %v6168 = vsel %vm874, %v6166, 0.0
    %v6169 = vrot.slane %v6168, 4
    %v6170 = vadd.f32 %v6168, %v6169
    %v6171 = vrot.slane %v6170, 2
    %v6172 = vadd.f32 %v6170, %v6171
    %v6173 = vrot.slane %v6172, 1
    %v6174 = vadd.f32 %v6172, %v6173
    %v6175 = vsel %vm874, %v6167, 0.0
    %v6176 = vrot.slane %v6175, 4
    %v6177 = vadd.f32 %v6175, %v6176
    %v6178 = vrot.slane %v6177, 2
    %v6179 = vadd.f32 %v6177, %v6178
    %v6180 = vrot.slane %v6179, 1
    %v6181 = vadd.f32 %v6179, %v6180
    %v6184 = vsel %vm344, %v6181, %v6174
    %v6185 = vsel %vm874, %v6184, 0
    %6187 = vmatprep.subr.mxu0 0.0
    %6188 = vmatpush1.msra.mxu0 %v2679
    %6189 = vmatprep.subr.mxu0 0.0
    %6190 = vmatpush1.msra.mxu0 %v2680
    %6191 = vmatprep.subr.mxu0 0.0
    %6192 = vmatpush1.msra.mxu0 %v2681
    %6193 = vmatprep.subr.mxu0 0.0
    %6194 = vmatpush1.msra.mxu0 %v2682
    %6195 = vmatprep.subr.mxu0 0.0
    %6196 = vmatpush1.msra.mxu0 0.0
    %6197 = vmatprep.subr.mxu0 0.0
    %6198 = vmatpush1.msra.mxu0 0.0
    %6199 = vmatprep.subr.mxu0 0.0
    %6200 = vmatpush1.msra.mxu0 0.0
    %6201 = vmatprep.subr.mxu0 0.0
    %6202 = vmatpush1.msra.mxu0 0.0
    %6203 = vmatprep.subr.mxu0 0.0
    %6204 = vmatpush1.msra.mxu0 0.0
    %6205 = vmatprep.subr.mxu0 0.0
    %6206 = vmatpush1.msra.mxu0 0.0
    %6207 = vmatprep.subr.mxu0 0.0
    %6208 = vmatpush1.msra.mxu0 0.0
    %6209 = vmatprep.subr.mxu0 0.0
    %6210 = vmatpush1.msra.mxu0 0.0
    %6211 = vmatprep.subr.mxu0 0.0
    %6212 = vmatpush1.msra.mxu0 0.0
    %6213 = vmatprep.subr.mxu0 0.0
    %6214 = vmatpush1.msra.mxu0 0.0
    %6215 = vmatprep.subr.mxu0 0.0
    %6216 = vmatpush1.msra.mxu0 0.0
    %6217 = vmatprep.subr.mxu0 0.0
    %6218 = vmatpush1.msra.mxu0 0.0
    %6219 = vmatprep.subr.mxu0 0.0
    %6220 = vmatpush1.msra.mxu0 0.0
    %6221 = vmatprep.subr.mxu0 0.0
    %6222 = vmatpush1.msra.mxu0 0.0
    %6223 = vmatprep.subr.mxu0 0.0
    %6224 = vmatpush1.msra.mxu0 0.0
    %6225 = vmatprep.subr.mxu0 0.0
    %6226 = vmatpush1.msra.mxu0 0.0
    %6227 = vmatprep.subr.mxu0 0.0
    %6228 = vmatpush1.msra.mxu0 0.0
    %6229 = vmatprep.subr.mxu0 0.0
    %6230 = vmatpush1.msra.mxu0 0.0
    %6231 = vmatprep.subr.mxu0 0.0
    %6232 = vmatpush1.msra.mxu0 0.0
    %6233 = vmatprep.subr.mxu0 0.0
    %6234 = vmatpush1.msra.mxu0 0.0
    %6235 = vmatprep.subr.mxu0 0.0
    %6236 = vmatpush1.msra.mxu0 0.0
    %6237 = vmatprep.subr.mxu0 0.0
    %6238 = vmatpush1.msra.mxu0 0.0
    %6239 = vmatprep.subr.mxu0 0.0
    %6240 = vmatpush1.msra.mxu0 0.0
    %6241 = vmatprep.subr.mxu0 0.0
    %6242 = vmatpush1.msra.mxu0 0.0
    %6243 = vmatprep.subr.mxu0 0.0
    %6244 = vmatpush1.msra.mxu0 0.0
    %6245 = vmatprep.subr.mxu0 0.0
    %6246 = vmatpush1.msra.mxu0 0.0
    %6247 = vmatprep.subr.mxu0 0.0
    %6248 = vmatpush1.msra.mxu0 0.0
    %6249 = vmatprep.subr.mxu0 0.0
    %6250 = vmatpush1.msra.mxu0 0.0
    %6251 = vmatprep.mubr.f32.mxu0 0.0
    %6252 = vmatmul.mubr.f32.gmra.mrb[0].mxu0 %v6185
    %v6253 = vpop.f32.mrb[0].mxu0
    %v6254 = vadd.f32 0.0, %v6253
    %v6255 = vpop.f32.mrb[0].mxu0
    %6256 = vdwg.mxu0
    %v6257 = vmul.f32 %v6163, %v2866
    %v6258 = vmul.f32 %v6254, %v2866
    %v6259 = vmul.f32 %v6257, %v6257
    %v6260 = vsub.f32 %v6258, %v6259
    %v6261 = vmax.f32 %v6260, 0.0
    %v6262 = vadd.f32 %v6261, 1e-05
    %v6263 = vrsqrt.pop %v6262
    %v6265 = vsel %vm243, %v6257, 0
    %6267 = vmatprep.subr.mxu0 0.0
    %6268 = vmatpush1.msra.mxu0 %v2683
    %6269 = vmatprep.subr.mxu0 0.0
    %6270 = vmatpush1.msra.mxu0 0.0
    %6271 = vmatprep.subr.mxu0 0.0
    %6272 = vmatpush1.msra.mxu0 0.0
    %6273 = vmatprep.subr.mxu0 0.0
    %6274 = vmatpush1.msra.mxu0 0.0
    %6275 = vmatprep.subr.mxu0 0.0
    %6276 = vmatpush1.msra.mxu0 0.0
    %6277 = vmatprep.subr.mxu0 0.0
    %6278 = vmatpush1.msra.mxu0 0.0
    %6279 = vmatprep.subr.mxu0 0.0
    %6280 = vmatpush1.msra.mxu0 0.0
    %6281 = vmatprep.subr.mxu0 0.0
    %6282 = vmatpush1.msra.mxu0 0.0
    %6283 = vmatprep.subr.mxu0 0.0
    %6284 = vmatpush1.msra.mxu0 0.0
    %6285 = vmatprep.subr.mxu0 0.0
    %6286 = vmatpush1.msra.mxu0 0.0
    %6287 = vmatprep.subr.mxu0 0.0
    %6288 = vmatpush1.msra.mxu0 0.0
    %6289 = vmatprep.subr.mxu0 0.0
    %6290 = vmatpush1.msra.mxu0 0.0
    %6291 = vmatprep.subr.mxu0 0.0
    %6292 = vmatpush1.msra.mxu0 0.0
    %6293 = vmatprep.subr.mxu0 0.0
    %6294 = vmatpush1.msra.mxu0 0.0
    %6295 = vmatprep.subr.mxu0 0.0
    %6296 = vmatpush1.msra.mxu0 0.0
    %6297 = vmatprep.subr.mxu0 0.0
    %6298 = vmatpush1.msra.mxu0 0.0
    %6299 = vmatprep.subr.mxu0 0.0
    %6300 = vmatpush1.msra.mxu0 0.0
    %6301 = vmatprep.subr.mxu0 0.0
    %6302 = vmatpush1.msra.mxu0 0.0
    %6303 = vmatprep.subr.mxu0 0.0
    %6304 = vmatpush1.msra.mxu0 0.0
    %6305 = vmatprep.subr.mxu0 0.0
    %6306 = vmatpush1.msra.mxu0 0.0
    %6307 = vmatprep.subr.mxu0 0.0
    %6308 = vmatpush1.msra.mxu0 0.0
    %6309 = vmatprep.subr.mxu0 0.0
    %6310 = vmatpush1.msra.mxu0 0.0
    %6311 = vmatprep.subr.mxu0 0.0
    %6312 = vmatpush1.msra.mxu0 0.0
    %6313 = vmatprep.subr.mxu0 0.0
    %6314 = vmatpush1.msra.mxu0 0.0
    %6315 = vmatprep.subr.mxu0 0.0
    %6316 = vmatpush1.msra.mxu0 0.0
    %6317 = vmatprep.subr.mxu0 0.0
    %6318 = vmatpush1.msra.mxu0 0.0
    %6319 = vmatprep.subr.mxu0 0.0
    %6320 = vmatpush1.msra.mxu0 0.0
    %6321 = vmatprep.subr.mxu0 0.0
    %6322 = vmatpush1.msra.mxu0 0.0
    %6323 = vmatprep.subr.mxu0 0.0
    %6324 = vmatpush1.msra.mxu0 0.0
    %6325 = vmatprep.subr.mxu0 0.0
    %6326 = vmatpush1.msra.mxu0 0.0
    %6327 = vmatprep.subr.mxu0 0.0
    %6328 = vmatpush1.msra.mxu0 0.0
    %6329 = vmatprep.subr.mxu0 0.0
    %6330 = vmatpush1.msra.mxu0 0.0
    %6331 = vmatprep.mubr.f32.mxu0 0.0
    %6332 = vmatmul.mubr.f32.gmra.mrb[0].mxu0 %v6265
    %v6333 = vpop.f32.mrb[0].mxu0
    %v6334 = vadd.f32 0.0, %v6333
    %v6335 = vpop.f32.mrb[0].mxu0
    %6336 = vdwg.mxu0
    %v6338 = vsel %vm243, %v6263, 0
    %6340 = vmatprep.subr.mxu0 0.0
    %6341 = vmatpush1.msra.mxu0 %v2683
    %6342 = vmatprep.subr.mxu0 0.0
    %6343 = vmatpush1.msra.mxu0 0.0
    %6344 = vmatprep.subr.mxu0 0.0
    %6345 = vmatpush1.msra.mxu0 0.0
    %6346 = vmatprep.subr.mxu0 0.0
    %6347 = vmatpush1.msra.mxu0 0.0
    %6348 = vmatprep.subr.mxu0 0.0
    %6349 = vmatpush1.msra.mxu0 0.0
    %6350 = vmatprep.subr.mxu0 0.0
    %6351 = vmatpush1.msra.mxu0 0.0
    %6352 = vmatprep.subr.mxu0 0.0
    %6353 = vmatpush1.msra.mxu0 0.0
    %6354 = vmatprep.subr.mxu0 0.0
    %6355 = vmatpush1.msra.mxu0 0.0
    %6356 = vmatprep.subr.mxu0 0.0
    %6357 = vmatpush1.msra.mxu0 0.0
    %6358 = vmatprep.subr.mxu0 0.0
    %6359 = vmatpush1.msra.mxu0 0.0
    %6360 = vmatprep.subr.mxu0 0.0
    %6361 = vmatpush1.msra.mxu0 0.0
    %6362 = vmatprep.subr.mxu0 0.0
    %6363 = vmatpush1.msra.mxu0 0.0
    %6364 = vmatprep.subr.mxu0 0.0
    %6365 = vmatpush1.msra.mxu0 0.0
    %6366 = vmatprep.subr.mxu0 0.0
    %6367 = vmatpush1.msra.mxu0 0.0
    %6368 = vmatprep.subr.mxu0 0.0
    %6369 = vmatpush1.msra.mxu0 0.0
    %6370 = vmatprep.subr.mxu0 0.0
    %6371 = vmatpush1.msra.mxu0 0.0
    %6372 = vmatprep.subr.mxu0 0.0
    %6373 = vmatpush1.msra.mxu0 0.0
    %6374 = vmatprep.subr.mxu0 0.0
    %6375 = vmatpush1.msra.mxu0 0.0
    %6376 = vmatprep.subr.mxu0 0.0
    %6377 = vmatpush1.msra.mxu0 0.0
    %6378 = vmatprep.subr.mxu0 0.0
    %6379 = vmatpush1.msra.mxu0 0.0
    %6380 = vmatprep.subr.mxu0 0.0
    %6381 = vmatpush1.msra.mxu0 0.0
    %6382 = vmatprep.subr.mxu0 0.0
    %6383 = vmatpush1.msra.mxu0 0.0
    %6384 = vmatprep.subr.mxu0 0.0
    %6385 = vmatpush1.msra.mxu0 0.0
    %6386 = vmatprep.subr.mxu0 0.0
    %6387 = vmatpush1.msra.mxu0 0.0
    %6388 = vmatprep.subr.mxu0 0.0
    %6389 = vmatpush1.msra.mxu0 0.0
    %6390 = vmatprep.subr.mxu0 0.0
    %6391 = vmatpush1.msra.mxu0 0.0
    %6392 = vmatprep.subr.mxu0 0.0
    %6393 = vmatpush1.msra.mxu0 0.0
    %6394 = vmatprep.subr.mxu0 0.0
    %6395 = vmatpush1.msra.mxu0 0.0
    %6396 = vmatprep.subr.mxu0 0.0
    %6397 = vmatpush1.msra.mxu0 0.0
    %6398 = vmatprep.subr.mxu0 0.0
    %6399 = vmatpush1.msra.mxu0 0.0
    %6400 = vmatprep.subr.mxu0 0.0
    %6401 = vmatpush1.msra.mxu0 0.0
    %6402 = vmatprep.subr.mxu0 0.0
    %6403 = vmatpush1.msra.mxu0 0.0
    %6404 = vmatprep.mubr.f32.mxu0 0.0
    %6405 = vmatmul.mubr.f32.gmra.mrb[0].mxu0 %v6338
    %v6406 = vpop.f32.mrb[0].mxu0
    %v6407 = vadd.f32 0.0, %v6406
    %v6408 = vpop.f32.mrb[0].mxu0
    %6409 = vdwg.mxu0
    %v6412 = vunpack.c.l.s4 1966171168
    %v6413 = vunpack.c.0.s8 %v6412
    %v6414 = vlaneseq
    %v6415 = vshrl.u32 %v6414, 7
    %v6416 = vsub.s32 %v6413, %v6415
    %v6417 = vrot.slane %v6334, %v6416
    %v6418 = vcombine.high %v6417, %v6417
    %v6420 = vunpack.c.l.s4 1966171168
    %v6421 = vunpack.c.0.s8 %v6420
    %v6422 = vlaneseq
    %v6423 = vshrl.u32 %v6422, 7
    %v6424 = vsub.s32 %v6421, %v6423
    %v6425 = vrot.slane %v6417, %v6424
    %v6427 = vunpack.c.l.s4 1966171168
    %v6428 = vunpack.c.0.s8 %v6427
    %v6429 = vlaneseq
    %v6430 = vshrl.u32 %v6429, 7
    %v6431 = vsub.s32 %v6428, %v6430
    %v6432 = vrot.slane %v6418, %v6431
    %v6433 = vlaneseq
    %v6434 = vshrl.u32 %v6433, 7
    %v6435 = vsub.s32 0, %v6434
    %v6436 = vrot.slane %v6425, %v6435
    %v6437 = vlaneseq
    %v6438 = vshrl.u32 %v6437, 7
    %v6439 = vsub.s32 0, %v6438
    %v6440 = vrot.slane %v6432, %v6439
    %v6443 = vsub.f32 %v6069, %v6436
    %v6444 = vsub.f32 %v6072, %v6440
    %v6447 = vunpack.c.l.s4 1966171168
    %v6448 = vunpack.c.0.s8 %v6447
    %v6449 = vlaneseq
    %v6450 = vshrl.u32 %v6449, 7
    %v6451 = vsub.s32 %v6448, %v6450
    %v6452 = vrot.slane %v6407, %v6451
    %v6453 = vcombine.high %v6452, %v6452
    %v6455 = vunpack.c.l.s4 1966171168
    %v6456 = vunpack.c.0.s8 %v6455
    %v6457 = vlaneseq
    %v6458 = vshrl.u32 %v6457, 7
    %v6459 = vsub.s32 %v6456, %v6458
    %v6460 = vrot.slane %v6452, %v6459
    %v6462 = vunpack.c.l.s4 1966171168
    %v6463 = vunpack.c.0.s8 %v6462
    %v6464 = vlaneseq
    %v6465 = vshrl.u32 %v6464, 7
    %v6466 = vsub.s32 %v6463, %v6465
    %v6467 = vrot.slane %v6453, %v6466
    %v6468 = vlaneseq
    %v6469 = vshrl.u32 %v6468, 7
    %v6470 = vsub.s32 0, %v6469
    %v6471 = vrot.slane %v6460, %v6470
    %v6472 = vlaneseq
    %v6473 = vshrl.u32 %v6472, 7
    %v6474 = vsub.s32 0, %v6473
    %v6475 = vrot.slane %v6467, %v6474
    %v6478 = vmul.f32 %v6443, %v6471
    %v6479 = vmul.f32 %v6444, %v6475
    %v6480 = vlaneseq
    %v6481 = vshrl.u32 %v6480, 7
    %v6482 = vsub.s32 0, %v6481
    %v6483 = vrot.slane %v6075, %v6482
    %v6484 = vmul.f32 %v6478, %v6483
    %v6485 = vmul.f32 %v6479, %v6483
    %v6486 = vlaneseq
    %v6487 = vshrl.u32 %v6486, 7
    %v6488 = vsub.s32 0, %v6487
    %v6489 = vrot.slane %v6076, %v6488
    %v6490 = vadd.f32 %v6484, %v6489
    %v6491 = vadd.f32 %v6485, %v6489
    %v6492 = vmax.f32 %v6490, 0.0
    %v6493 = vmax.f32 %v6491, 0.0
    %v6494 = vand.u32 2147483647, %v6490
    %v6495 = vand.u32 2147483647, %v6491
    %v6496 = vsub.f32 0.0, %v6494
    %v6497 = vsub.f32 0.0, %v6495
    %v6498 = vmul.f32 %v6496, 1.442695
    %v6499 = vpow.pop %v6498
    %v6500 = vmul.f32 %v6497, 1.442695
    %v6501 = vpow.pop %v6500
    %v6502 = vadd.f32 %v6499, 1.0
    %v6503 = vadd.f32 %v6501, 1.0
    %v6504 = vlog2.pop %v6502
    %v6505 = vmul.f32 %v6504, 0.6931472
    %v6506 = vlog2.pop %v6503
    %v6507 = vmul.f32 %v6506, 0.6931472
    %v6508 = vadd.f32 %v6492, %v6505
    %v6509 = vadd.f32 %v6493, %v6507
    %v6510 = vtanh.pop %v6508
    %v6511 = vtanh.pop %v6509
    %v6512 = vmul.f32 %v6490, %v6510
    %v6513 = vmul.f32 %v6491, %v6511
    %v6516 = vunpack.c.l.s4 1966171168
    %v6517 = vunpack.c.0.s8 %v6516
    %v6518 = vlaneseq
    %v6519 = vshrl.u32 %v6518, 7
    %v6520 = vsub.s32 %v6517, %v6519
    %v6521 = vrot.slane %v168, %v6520
    %v6522 = vcombine.high %v6521, %v6521
    %v6524 = vunpack.c.l.s4 1966171168
    %v6525 = vunpack.c.0.s8 %v6524
    %v6526 = vlaneseq
    %v6527 = vshrl.u32 %v6526, 7
    %v6528 = vsub.s32 %v6525, %v6527
    %v6529 = vrot.slane %v6521, %v6528
    %v6531 = vunpack.c.l.s4 1966171168
    %v6532 = vunpack.c.0.s8 %v6531
    %v6533 = vlaneseq
    %v6534 = vshrl.u32 %v6533, 7
    %v6535 = vsub.s32 %v6532, %v6534
    %v6536 = vrot.slane %v6522, %v6535
    %v6537 = vlaneseq
    %v6538 = vshrl.u32 %v6537, 7
    %v6539 = vsub.s32 0, %v6538
    %v6540 = vrot.slane %v6529, %v6539
    %v6541 = vlaneseq
    %v6542 = vshrl.u32 %v6541, 7
    %v6543 = vsub.s32 0, %v6542
    %v6544 = vrot.slane %v6536, %v6543
    %v6547 = vmul.f32 %v6540, %v6512
    %v6548 = vmul.f32 %v6544, %v6513
    %6549 = vrot.lane.b32.xlu0 %v6540, 96
    %v6550 = vpop.permute.xlu0 %6549
    %6551 = vrot.lane.b32.xlu0 %v6544, 96
    %v6552 = vpop.permute.xlu0 %6551
    %v6555 = vadd.f32 %v6547, %v6550
    %v6556 = vadd.f32 %v6548, %v6552
    %v6559 = vrot.slane %v6555, 7
    %v6560 = vrot.slane %v6556, 7
    %v6563 = vsel %vm2570, 0.0, %v6559
    %v6564 = vsel %vm2570, 0.0, %v6560
    %v6565 = vsel %vm2570, %v6559, 0.0
    %v6566 = vsel %vm2570, %v6560, 0.0
    %v6571 = vrot.slane %v6563, 1
    %v6572 = vrot.slane %v6565, 1
    %v6573 = vsel %vm188, %v6571, %v6572
    %v6574 = vrot.slane %v6564, 1
    %v6575 = vrot.slane %v6566, 1
    %v6576 = vsel %vm188, %v6574, %v6575
    %6577 = vrot.lane.b32.xlu0 %v6573, 32
    %v6578 = vpop.permute.xlu0 %6577
    %6579 = vrot.lane.b32.xlu0 %v6576, 32
    %v6580 = vpop.permute.xlu0 %6579
    %v6583 = vrot.slane %v6563, 2
    %v6584 = vrot.slane %v6565, 2
    %v6585 = vsel %vm201, %v6583, %v6584
    %v6586 = vrot.slane %v6564, 2
    %v6587 = vrot.slane %v6566, 2
    %v6588 = vsel %vm201, %v6586, %v6587
    %6589 = vrot.lane.b32.xlu0 %v6585, 64
    %v6590 = vpop.permute.xlu0 %6589
    %6591 = vrot.lane.b32.xlu0 %v6588, 64
    %v6592 = vpop.permute.xlu0 %6591
    %v6595 = vsel %vm874, %v6563, %v6578
    %v6596 = vsel %vm874, %v6564, %v6580
    %v6597 = vsel %vm880, %v6595, %v6590
    %v6598 = vsel %vm880, %v6596, %v6592
    %v6599 = vld [vmem:[#allocation2 + $0x4d0] sm:$0xff]
    %v6600 = vld [vmem:[#allocation2 + $0x4d8] sm:$0xff]
    %v6601 = vld [vmem:[#allocation2 + $0x4e0] sm:$0xff]
    %v6602 = vld [vmem:[#allocation2 + $0x4e8] sm:$0xff]
    %v6603 = vld [vmem:[#allocation2 + $0x4f0] sm:$0xff]
    %v6604 = vld [vmem:[#allocation2 + $0x4f8] sm:$0xff]
    %v6605 = vld [vmem:[#allocation2 + $0x500] sm:$0xff]
    %v6606 = vld [vmem:[#allocation2 + $0x508] sm:$0xff]
    %v6607 = vld [vmem:[#allocation2 + $0x510] sm:$0xff]
    %v6608 = vld [vmem:[#allocation2 + $0x518] sm:$0xff]
    %v6609 = vld [vmem:[#allocation2 + $0x520] sm:$0xff]
    %v6610 = vld [vmem:[#allocation2 + $0x528] sm:$0xff]
    %v6611 = vpack.c.bf16 %v6598, %v6597
    %v6612 = vpack.c.bf16 %v6600, %v6599
    %v6613 = vpack.c.bf16 %v6602, %v6601
    %v6614 = vpack.c.bf16 %v6604, %v6603
    %v6615 = vpack.c.bf16 %v6606, %v6605
    %v6616 = vpack.c.bf16 %v6608, %v6607
    %v6617 = vpack.c.bf16 %v6610, %v6609
    %v6618 = vld [vmem:[#allocation2 + $0x530] sm:$0x1]
    %v6619 = vlaneseq
    %v6620 = vshrl.u32 %v6619, 7
    %v6621 = vsub.s32 0, %v6620
    %v6622 = vrot.slane %v6618, %v6621
    %v6624 = vsel %vm3212, %v6611, 0
    %6626 = vmatprep.subr.bf16.mxu0 0
    %6627 = vmatpush1.bf16.msra.mxu0 %v6612
    %6628 = vmatprep.subr.bf16.mxu0 0
    %6629 = vmatpush1.bf16.msra.mxu0 %v6613
    %6630 = vmatprep.subr.bf16.mxu0 0
    %6631 = vmatpush1.bf16.msra.mxu0 %v6614
    %6632 = vmatprep.subr.bf16.mxu0 0
    %6633 = vmatpush1.bf16.msra.mxu0 %v6615
    %6634 = vmatprep.subr.bf16.mxu0 0
    %6635 = vmatpush1.bf16.msra.mxu0 %v6616
    %6636 = vmatprep.subr.bf16.mxu0 0
    %6637 = vmatpush1.bf16.msra.mxu0 %v6617
    %6638 = vmatprep.subr.bf16.mxu0 0
    %6639 = vmatpush1.bf16.msra.mxu0 0
    %6640 = vmatprep.subr.bf16.mxu0 0
    %6641 = vmatpush1.bf16.msra.mxu0 0
    %6642 = vmatprep.subr.bf16.mxu0 0
    %6643 = vmatpush1.bf16.msra.mxu0 0
    %6644 = vmatprep.subr.bf16.mxu0 0
    %6645 = vmatpush1.bf16.msra.mxu0 0
    %6646 = vmatprep.subr.bf16.mxu0 0
    %6647 = vmatpush1.bf16.msra.mxu0 0
    %6648 = vmatprep.subr.bf16.mxu0 0
    %6649 = vmatpush1.bf16.msra.mxu0 0
    %6650 = vmatprep.subr.bf16.mxu0 0
    %6651 = vmatpush1.bf16.msra.mxu0 0
    %6652 = vmatprep.subr.bf16.mxu0 0
    %6653 = vmatpush1.bf16.msra.mxu0 0
    %6654 = vmatprep.subr.bf16.mxu0 0
    %6655 = vmatpush1.bf16.msra.mxu0 0
    %6656 = vmatprep.subr.bf16.mxu0 0
    %6657 = vmatpush1.bf16.msra.mxu0 0
    %6658 = vmatprep.mubr.bf16.mxu0 0
    %6659 = vmatmul.mubr.bf16.gmra.mrb[0].mxu0 %v6624
    %v6660 = vpop.f32.mrb[0].mxu0
    %v6661 = vadd.f32 %v6622, %v6660
    %v6662 = vpop.f32.mrb[0].mxu0
    %v6663 = vpop.f32.mrb[0].mxu0
    %v6664 = vadd.f32 %v6622, %v6663
    %v6665 = vpop.f32.mrb[0].mxu0
    %6666 = vdwg.mxu0
    %v6667 = vld [vmem:[#allocation2 + $0x538] sm:$0x1]
    %v6668 = vld [vmem:[#allocation2 + $0x540] sm:$0x1]
    %v6669 = vsel %vm874, %v6661, 0.0
    %v6670 = vrot.slane %v6669, 4
    %v6671 = vadd.f32 %v6669, %v6670
    %v6672 = vrot.slane %v6671, 2
    %v6673 = vadd.f32 %v6671, %v6672
    %v6674 = vrot.slane %v6673, 1
    %v6675 = vadd.f32 %v6673, %v6674
    %v6676 = vsel %vm874, %v6664, 0.0
    %v6677 = vrot.slane %v6676, 4
    %v6678 = vadd.f32 %v6676, %v6677
    %v6679 = vrot.slane %v6678, 2
    %v6680 = vadd.f32 %v6678, %v6679
    %v6681 = vrot.slane %v6680, 1
    %v6682 = vadd.f32 %v6680, %v6681
    %v6685 = vsel %vm344, %v6682, %v6675
    %v6686 = vsel %vm874, %v6685, 0
    %6688 = vmatprep.subr.mxu0 0.0
    %6689 = vmatpush1.msra.mxu0 %v2679
    %6690 = vmatprep.subr.mxu0 0.0
    %6691 = vmatpush1.msra.mxu0 %v2680
    %6692 = vmatprep.subr.mxu0 0.0
    %6693 = vmatpush1.msra.mxu0 %v2681
    %6694 = vmatprep.subr.mxu0 0.0
    %6695 = vmatpush1.msra.mxu0 %v2682
    %6696 = vmatprep.subr.mxu0 0.0
    %6697 = vmatpush1.msra.mxu0 0.0
    %6698 = vmatprep.subr.mxu0 0.0
    %6699 = vmatpush1.msra.mxu0 0.0
    %6700 = vmatprep.subr.mxu0 0.0
    %6701 = vmatpush1.msra.mxu0 0.0
    %6702 = vmatprep.subr.mxu0 0.0
    %6703 = vmatpush1.msra.mxu0 0.0
    %6704 = vmatprep.subr.mxu0 0.0
    %6705 = vmatpush1.msra.mxu0 0.0
    %6706 = vmatprep.subr.mxu0 0.0
    %6707 = vmatpush1.msra.mxu0 0.0
    %6708 = vmatprep.subr.mxu0 0.0
    %6709 = vmatpush1.msra.mxu0 0.0
    %6710 = vmatprep.subr.mxu0 0.0
    %6711 = vmatpush1.msra.mxu0 0.0
    %6712 = vmatprep.subr.mxu0 0.0
    %6713 = vmatpush1.msra.mxu0 0.0
    %6714 = vmatprep.subr.mxu0 0.0
    %6715 = vmatpush1.msra.mxu0 0.0
    %6716 = vmatprep.subr.mxu0 0.0
    %6717 = vmatpush1.msra.mxu0 0.0
    %6718 = vmatprep.subr.mxu0 0.0
    %6719 = vmatpush1.msra.mxu0 0.0
    %6720 = vmatprep.subr.mxu0 0.0
    %6721 = vmatpush1.msra.mxu0 0.0
    %6722 = vmatprep.subr.mxu0 0.0
    %6723 = vmatpush1.msra.mxu0 0.0
    %6724 = vmatprep.subr.mxu0 0.0
    %6725 = vmatpush1.msra.mxu0 0.0
    %6726 = vmatprep.subr.mxu0 0.0
    %6727 = vmatpush1.msra.mxu0 0.0
    %6728 = vmatprep.subr.mxu0 0.0
    %6729 = vmatpush1.msra.mxu0 0.0
    %6730 = vmatprep.subr.mxu0 0.0
    %6731 = vmatpush1.msra.mxu0 0.0
    %6732 = vmatprep.subr.mxu0 0.0
    %6733 = vmatpush1.msra.mxu0 0.0
    %6734 = vmatprep.subr.mxu0 0.0
    %6735 = vmatpush1.msra.mxu0 0.0
    %6736 = vmatprep.subr.mxu0 0.0
    %6737 = vmatpush1.msra.mxu0 0.0
    %6738 = vmatprep.subr.mxu0 0.0
    %6739 = vmatpush1.msra.mxu0 0.0
    %6740 = vmatprep.subr.mxu0 0.0
    %6741 = vmatpush1.msra.mxu0 0.0
    %6742 = vmatprep.subr.mxu0 0.0
    %6743 = vmatpush1.msra.mxu0 0.0
    %6744 = vmatprep.subr.mxu0 0.0
    %6745 = vmatpush1.msra.mxu0 0.0
    %6746 = vmatprep.subr.mxu0 0.0
    %6747 = vmatpush1.msra.mxu0 0.0
    %6748 = vmatprep.subr.mxu0 0.0
    %6749 = vmatpush1.msra.mxu0 0.0
    %6750 = vmatprep.subr.mxu0 0.0
    %6751 = vmatpush1.msra.mxu0 0.0
    %6752 = vmatprep.mubr.f32.mxu0 0.0
    %6753 = vmatmul.mubr.f32.gmra.mrb[0].mxu0 %v6686
    %v6754 = vpop.f32.mrb[0].mxu0
    %v6755 = vadd.f32 0.0, %v6754
    %v6756 = vpop.f32.mrb[0].mxu0
    %6757 = vdwg.mxu0
    %v6758 = vmul.f32 %v6661, %v6661
    %v6759 = vmul.f32 %v6664, %v6664
    %v6760 = vsel %vm874, %v6758, 0.0
    %v6761 = vrot.slane %v6760, 4
    %v6762 = vadd.f32 %v6760, %v6761
    %v6763 = vrot.slane %v6762, 2
    %v6764 = vadd.f32 %v6762, %v6763
    %v6765 = vrot.slane %v6764, 1
    %v6766 = vadd.f32 %v6764, %v6765
    %v6767 = vsel %vm874, %v6759, 0.0
    %v6768 = vrot.slane %v6767, 4
    %v6769 = vadd.f32 %v6767, %v6768
    %v6770 = vrot.slane %v6769, 2
    %v6771 = vadd.f32 %v6769, %v6770
    %v6772 = vrot.slane %v6771, 1
    %v6773 = vadd.f32 %v6771, %v6772
    %v6776 = vsel %vm344, %v6773, %v6766
    %v6777 = vsel %vm874, %v6776, 0
    %6779 = vmatprep.subr.mxu0 0.0
    %6780 = vmatpush1.msra.mxu0 %v2679
    %6781 = vmatprep.subr.mxu0 0.0
    %6782 = vmatpush1.msra.mxu0 %v2680
    %6783 = vmatprep.subr.mxu0 0.0
    %6784 = vmatpush1.msra.mxu0 %v2681
    %6785 = vmatprep.subr.mxu0 0.0
    %6786 = vmatpush1.msra.mxu0 %v2682
    %6787 = vmatprep.subr.mxu0 0.0
    %6788 = vmatpush1.msra.mxu0 0.0
    %6789 = vmatprep.subr.mxu0 0.0
    %6790 = vmatpush1.msra.mxu0 0.0
    %6791 = vmatprep.subr.mxu0 0.0
    %6792 = vmatpush1.msra.mxu0 0.0
    %6793 = vmatprep.subr.mxu0 0.0
    %6794 = vmatpush1.msra.mxu0 0.0
    %6795 = vmatprep.subr.mxu0 0.0
    %6796 = vmatpush1.msra.mxu0 0.0
    %6797 = vmatprep.subr.mxu0 0.0
    %6798 = vmatpush1.msra.mxu0 0.0
    %6799 = vmatprep.subr.mxu0 0.0
    %6800 = vmatpush1.msra.mxu0 0.0
    %6801 = vmatprep.subr.mxu0 0.0
    %6802 = vmatpush1.msra.mxu0 0.0
    %6803 = vmatprep.subr.mxu0 0.0
    %6804 = vmatpush1.msra.mxu0 0.0
    %6805 = vmatprep.subr.mxu0 0.0
    %6806 = vmatpush1.msra.mxu0 0.0
    %6807 = vmatprep.subr.mxu0 0.0
    %6808 = vmatpush1.msra.mxu0 0.0
    %6809 = vmatprep.subr.mxu0 0.0
    %6810 = vmatpush1.msra.mxu0 0.0
    %6811 = vmatprep.subr.mxu0 0.0
    %6812 = vmatpush1.msra.mxu0 0.0
    %6813 = vmatprep.subr.mxu0 0.0
    %6814 = vmatpush1.msra.mxu0 0.0
    %6815 = vmatprep.subr.mxu0 0.0
    %6816 = vmatpush1.msra.mxu0 0.0
    %6817 = vmatprep.subr.mxu0 0.0
    %6818 = vmatpush1.msra.mxu0 0.0
    %6819 = vmatprep.subr.mxu0 0.0
    %6820 = vmatpush1.msra.mxu0 0.0
    %6821 = vmatprep.subr.mxu0 0.0
    %6822 = vmatpush1.msra.mxu0 0.0
    %6823 = vmatprep.subr.mxu0 0.0
    %6824 = vmatpush1.msra.mxu0 0.0
    %6825 = vmatprep.subr.mxu0 0.0
    %6826 = vmatpush1.msra.mxu0 0.0
    %6827 = vmatprep.subr.mxu0 0.0
    %6828 = vmatpush1.msra.mxu0 0.0
    %6829 = vmatprep.subr.mxu0 0.0
    %6830 = vmatpush1.msra.mxu0 0.0
    %6831 = vmatprep.subr.mxu0 0.0
    %6832 = vmatpush1.msra.mxu0 0.0
    %6833 = vmatprep.subr.mxu0 0.0
    %6834 = vmatpush1.msra.mxu0 0.0
    %6835 = vmatprep.subr.mxu0 0.0
    %6836 = vmatpush1.msra.mxu0 0.0
    %6837 = vmatprep.subr.mxu0 0.0
    %6838 = vmatpush1.msra.mxu0 0.0
    %6839 = vmatprep.subr.mxu0 0.0
    %6840 = vmatpush1.msra.mxu0 0.0
    %6841 = vmatprep.subr.mxu0 0.0
    %6842 = vmatpush1.msra.mxu0 0.0
    %6843 = vmatprep.mubr.f32.mxu0 0.0
    %6844 = vmatmul.mubr.f32.gmra.mrb[0].mxu0 %v6777
    %v6845 = vpop.f32.mrb[0].mxu0
    %v6846 = vadd.f32 0.0, %v6845
    %v6847 = vpop.f32.mrb[0].mxu0
    %6848 = vdwg.mxu0
    %v6849 = vmul.f32 %v6755, %v2866
    %v6850 = vmul.f32 %v6846, %v2866
    %v6851 = vmul.f32 %v6849, %v6849
    %v6852 = vsub.f32 %v6850, %v6851
    %v6853 = vmax.f32 %v6852, 0.0
    %v6854 = vadd.f32 %v6853, 1e-05
    %v6855 = vrsqrt.pop %v6854
    %v6857 = vsel %vm243, %v6849, 0
    %6859 = vmatprep.subr.mxu0 0.0
    %6860 = vmatpush1.msra.mxu0 %v2683
    %6861 = vmatprep.subr.mxu0 0.0
    %6862 = vmatpush1.msra.mxu0 0.0
    %6863 = vmatprep.subr.mxu0 0.0
    %6864 = vmatpush1.msra.mxu0 0.0
    %6865 = vmatprep.subr.mxu0 0.0
    %6866 = vmatpush1.msra.mxu0 0.0
    %6867 = vmatprep.subr.mxu0 0.0
    %6868 = vmatpush1.msra.mxu0 0.0
    %6869 = vmatprep.subr.mxu0 0.0
    %6870 = vmatpush1.msra.mxu0 0.0
    %6871 = vmatprep.subr.mxu0 0.0
    %6872 = vmatpush1.msra.mxu0 0.0
    %6873 = vmatprep.subr.mxu0 0.0
    %6874 = vmatpush1.msra.mxu0 0.0
    %6875 = vmatprep.subr.mxu0 0.0
    %6876 = vmatpush1.msra.mxu0 0.0
    %6877 = vmatprep.subr.mxu0 0.0
    %6878 = vmatpush1.msra.mxu0 0.0
    %6879 = vmatprep.subr.mxu0 0.0
    %6880 = vmatpush1.msra.mxu0 0.0
    %6881 = vmatprep.subr.mxu0 0.0
    %6882 = vmatpush1.msra.mxu0 0.0
    %6883 = vmatprep.subr.mxu0 0.0
    %6884 = vmatpush1.msra.mxu0 0.0
    %6885 = vmatprep.subr.mxu0 0.0
    %6886 = vmatpush1.msra.mxu0 0.0
    %6887 = vmatprep.subr.mxu0 0.0
    %6888 = vmatpush1.msra.mxu0 0.0
    %6889 = vmatprep.subr.mxu0 0.0
    %6890 = vmatpush1.msra.mxu0 0.0
    %6891 = vmatprep.subr.mxu0 0.0
    %6892 = vmatpush1.msra.mxu0 0.0
    %6893 = vmatprep.subr.mxu0 0.0
    %6894 = vmatpush1.msra.mxu0 0.0
    %6895 = vmatprep.subr.mxu0 0.0
    %6896 = vmatpush1.msra.mxu0 0.0
    %6897 = vmatprep.subr.mxu0 0.0
    %6898 = vmatpush1.msra.mxu0 0.0
    %6899 = vmatprep.subr.mxu0 0.0
    %6900 = vmatpush1.msra.mxu0 0.0
    %6901 = vmatprep.subr.mxu0 0.0
    %6902 = vmatpush1.msra.mxu0 0.0
    %6903 = vmatprep.subr.mxu0 0.0
    %6904 = vmatpush1.msra.mxu0 0.0
    %6905 = vmatprep.subr.mxu0 0.0
    %6906 = vmatpush1.msra.mxu0 0.0
    %6907 = vmatprep.subr.mxu0 0.0
    %6908 = vmatpush1.msra.mxu0 0.0
    %6909 = vmatprep.subr.mxu0 0.0
    %6910 = vmatpush1.msra.mxu0 0.0
    %6911 = vmatprep.subr.mxu0 0.0
    %6912 = vmatpush1.msra.mxu0 0.0
    %6913 = vmatprep.subr.mxu0 0.0
    %6914 = vmatpush1.msra.mxu0 0.0
    %6915 = vmatprep.subr.mxu0 0.0
    %6916 = vmatpush1.msra.mxu0 0.0
    %6917 = vmatprep.subr.mxu0 0.0
    %6918 = vmatpush1.msra.mxu0 0.0
    %6919 = vmatprep.subr.mxu0 0.0
    %6920 = vmatpush1.msra.mxu0 0.0
    %6921 = vmatprep.subr.mxu0 0.0
    %6922 = vmatpush1.msra.mxu0 0.0
    %6923 = vmatprep.mubr.f32.mxu0 0.0
    %6924 = vmatmul.mubr.f32.gmra.mrb[0].mxu0 %v6857
    %v6925 = vpop.f32.mrb[0].mxu0
    %v6926 = vadd.f32 0.0, %v6925
    %v6927 = vpop.f32.mrb[0].mxu0
    %6928 = vdwg.mxu0
    %v6930 = vsel %vm243, %v6855, 0
    %6932 = vmatprep.subr.mxu0 0.0
    %6933 = vmatpush1.msra.mxu0 %v2683
    %6934 = vmatprep.subr.mxu0 0.0
    %6935 = vmatpush1.msra.mxu0 0.0
    %6936 = vmatprep.subr.mxu0 0.0
    %6937 = vmatpush1.msra.mxu0 0.0
    %6938 = vmatprep.subr.mxu0 0.0
    %6939 = vmatpush1.msra.mxu0 0.0
    %6940 = vmatprep.subr.mxu0 0.0
    %6941 = vmatpush1.msra.mxu0 0.0
    %6942 = vmatprep.subr.mxu0 0.0
    %6943 = vmatpush1.msra.mxu0 0.0
    %6944 = vmatprep.subr.mxu0 0.0
    %6945 = vmatpush1.msra.mxu0 0.0
    %6946 = vmatprep.subr.mxu0 0.0
    %6947 = vmatpush1.msra.mxu0 0.0
    %6948 = vmatprep.subr.mxu0 0.0
    %6949 = vmatpush1.msra.mxu0 0.0
    %6950 = vmatprep.subr.mxu0 0.0
    %6951 = vmatpush1.msra.mxu0 0.0
    %6952 = vmatprep.subr.mxu0 0.0
    %6953 = vmatpush1.msra.mxu0 0.0
    %6954 = vmatprep.subr.mxu0 0.0
    %6955 = vmatpush1.msra.mxu0 0.0
    %6956 = vmatprep.subr.mxu0 0.0
    %6957 = vmatpush1.msra.mxu0 0.0
    %6958 = vmatprep.subr.mxu0 0.0
    %6959 = vmatpush1.msra.mxu0 0.0
    %6960 = vmatprep.subr.mxu0 0.0
    %6961 = vmatpush1.msra.mxu0 0.0
    %6962 = vmatprep.subr.mxu0 0.0
    %6963 = vmatpush1.msra.mxu0 0.0
    %6964 = vmatprep.subr.mxu0 0.0
    %6965 = vmatpush1.msra.mxu0 0.0
    %6966 = vmatprep.subr.mxu0 0.0
    %6967 = vmatpush1.msra.mxu0 0.0
    %6968 = vmatprep.subr.mxu0 0.0
    %6969 = vmatpush1.msra.mxu0 0.0
    %6970 = vmatprep.subr.mxu0 0.0
    %6971 = vmatpush1.msra.mxu0 0.0
    %6972 = vmatprep.subr.mxu0 0.0
    %6973 = vmatpush1.msra.mxu0 0.0
    %6974 = vmatprep.subr.mxu0 0.0
    %6975 = vmatpush1.msra.mxu0 0.0
    %6976 = vmatprep.subr.mxu0 0.0
    %6977 = vmatpush1.msra.mxu0 0.0
    %6978 = vmatprep.subr.mxu0 0.0
    %6979 = vmatpush1.msra.mxu0 0.0
    %6980 = vmatprep.subr.mxu0 0.0
    %6981 = vmatpush1.msra.mxu0 0.0
    %6982 = vmatprep.subr.mxu0 0.0
    %6983 = vmatpush1.msra.mxu0 0.0
    %6984 = vmatprep.subr.mxu0 0.0
    %6985 = vmatpush1.msra.mxu0 0.0
    %6986 = vmatprep.subr.mxu0 0.0
    %6987 = vmatpush1.msra.mxu0 0.0
    %6988 = vmatprep.subr.mxu0 0.0
    %6989 = vmatpush1.msra.mxu0 0.0
    %6990 = vmatprep.subr.mxu0 0.0
    %6991 = vmatpush1.msra.mxu0 0.0
    %6992 = vmatprep.subr.mxu0 0.0
    %6993 = vmatpush1.msra.mxu0 0.0
    %6994 = vmatprep.subr.mxu0 0.0
    %6995 = vmatpush1.msra.mxu0 0.0
    %6996 = vmatprep.mubr.f32.mxu0 0.0
    %6997 = vmatmul.mubr.f32.gmra.mrb[0].mxu0 %v6930
    %v6998 = vpop.f32.mrb[0].mxu0
    %v6999 = vadd.f32 0.0, %v6998
    %v7000 = vpop.f32.mrb[0].mxu0
    %7001 = vdwg.mxu0
    %v7004 = vunpack.c.l.s4 1966171168
    %v7005 = vunpack.c.0.s8 %v7004
    %v7006 = vlaneseq
    %v7007 = vshrl.u32 %v7006, 7
    %v7008 = vsub.s32 %v7005, %v7007
    %v7009 = vrot.slane %v6926, %v7008
    %v7010 = vcombine.high %v7009, %v7009
    %v7012 = vunpack.c.l.s4 1966171168
    %v7013 = vunpack.c.0.s8 %v7012
    %v7014 = vlaneseq
    %v7015 = vshrl.u32 %v7014, 7
    %v7016 = vsub.s32 %v7013, %v7015
    %v7017 = vrot.slane %v7009, %v7016
    %v7019 = vunpack.c.l.s4 1966171168
    %v7020 = vunpack.c.0.s8 %v7019
    %v7021 = vlaneseq
    %v7022 = vshrl.u32 %v7021, 7
    %v7023 = vsub.s32 %v7020, %v7022
    %v7024 = vrot.slane %v7010, %v7023
    %v7025 = vlaneseq
    %v7026 = vshrl.u32 %v7025, 7
    %v7027 = vsub.s32 0, %v7026
    %v7028 = vrot.slane %v7017, %v7027
    %v7029 = vlaneseq
    %v7030 = vshrl.u32 %v7029, 7
    %v7031 = vsub.s32 0, %v7030
    %v7032 = vrot.slane %v7024, %v7031
    %v7035 = vsub.f32 %v6661, %v7028
    %v7036 = vsub.f32 %v6664, %v7032
    %v7039 = vunpack.c.l.s4 1966171168
    %v7040 = vunpack.c.0.s8 %v7039
    %v7041 = vlaneseq
    %v7042 = vshrl.u32 %v7041, 7
    %v7043 = vsub.s32 %v7040, %v7042
    %v7044 = vrot.slane %v6999, %v7043
    %v7045 = vcombine.high %v7044, %v7044
    %v7047 = vunpack.c.l.s4 1966171168
    %v7048 = vunpack.c.0.s8 %v7047
    %v7049 = vlaneseq
    %v7050 = vshrl.u32 %v7049, 7
    %v7051 = vsub.s32 %v7048, %v7050
    %v7052 = vrot.slane %v7044, %v7051
    %v7054 = vunpack.c.l.s4 1966171168
    %v7055 = vunpack.c.0.s8 %v7054
    %v7056 = vlaneseq
    %v7057 = vshrl.u32 %v7056, 7
    %v7058 = vsub.s32 %v7055, %v7057
    %v7059 = vrot.slane %v7045, %v7058
    %v7060 = vlaneseq
    %v7061 = vshrl.u32 %v7060, 7
    %v7062 = vsub.s32 0, %v7061
    %v7063 = vrot.slane %v7052, %v7062
    %v7064 = vlaneseq
    %v7065 = vshrl.u32 %v7064, 7
    %v7066 = vsub.s32 0, %v7065
    %v7067 = vrot.slane %v7059, %v7066
    %v7070 = vmul.f32 %v7035, %v7063
    %v7071 = vmul.f32 %v7036, %v7067
    %v7072 = vlaneseq
    %v7073 = vshrl.u32 %v7072, 7
    %v7074 = vsub.s32 0, %v7073
    %v7075 = vrot.slane %v6667, %v7074
    %v7076 = vmul.f32 %v7070, %v7075
    %v7077 = vmul.f32 %v7071, %v7075
    %v7078 = vlaneseq
    %v7079 = vshrl.u32 %v7078, 7
    %v7080 = vsub.s32 0, %v7079
    %v7081 = vrot.slane %v6668, %v7080
    %v7082 = vadd.f32 %v7076, %v7081
    %v7083 = vadd.f32 %v7077, %v7081
    %v7084 = vmax.f32 %v7082, 0.0
    %v7085 = vmax.f32 %v7083, 0.0
    %v7086 = vand.u32 2147483647, %v7082
    %v7087 = vand.u32 2147483647, %v7083
    %v7088 = vsub.f32 0.0, %v7086
    %v7089 = vsub.f32 0.0, %v7087
    %v7090 = vmul.f32 %v7088, 1.442695
    %v7091 = vpow.pop %v7090
    %v7092 = vmul.f32 %v7089, 1.442695
    %v7093 = vpow.pop %v7092
    %v7094 = vadd.f32 %v7091, 1.0
    %v7095 = vadd.f32 %v7093, 1.0
    %v7096 = vlog2.pop %v7094
    %v7097 = vmul.f32 %v7096, 0.6931472
    %v7098 = vlog2.pop %v7095
    %v7099 = vmul.f32 %v7098, 0.6931472
    %v7100 = vadd.f32 %v7084, %v7097
    %v7101 = vadd.f32 %v7085, %v7099
    %v7102 = vtanh.pop %v7100
    %v7103 = vtanh.pop %v7101
    %v7104 = vmul.f32 %v7082, %v7102
    %v7105 = vmul.f32 %v7083, %v7103
    %v7106 = vadd.f32 %v7104, %v5963
    %v7107 = vadd.f32 %v7105, %v5964
    %v7108 = vld [vmem:[#allocation2 + $0x548] sm:$0x1]
    %v7109 = vld [vmem:[#allocation2 + $0x550] sm:$0x1]
    %v7110 = vsel %vm874, %v7106, 0.0
    %7111 = vadd.xlane.f32.xlu0 %v7110
    %v7112 = vpop.xlane.xlu0 %7111
    %v7113 = vsel %vm874, %v7107, 0.0
    %7114 = vadd.xlane.f32.xlu0 %v7113
    %v7115 = vpop.xlane.xlu0 %7114
    %v7116 = vmul.f32 %v7112, %v2866
    %v7117 = vmul.f32 %v7115, %v2866
    %v7118 = vsub.f32 %v7106, %v7116
    %v7119 = vsub.f32 %v7107, %v7117
    %v7120 = vmul.f32 %v7118, %v7118
    %v7121 = vmul.f32 %v7119, %v7119
    %v7122 = vsel %vm874, %v7120, 0.0
    %7123 = vadd.xlane.f32.xlu0 %v7122
    %v7124 = vpop.xlane.xlu0 %7123
    %v7125 = vsel %vm874, %v7121, 0.0
    %7126 = vadd.xlane.f32.xlu0 %v7125
    %v7127 = vpop.xlane.xlu0 %7126
    %v7128 = vmul.f32 %v7124, %v2866
    %v7129 = vmul.f32 %v7127, %v2866
    %v7130 = vadd.f32 %v7128, 1e-05
    %v7131 = vadd.f32 %v7129, 1e-05
    %v7132 = vrsqrt.pop %v7130
    %v7133 = vrsqrt.pop %v7131
    %v7134 = vmul.f32 %v7118, %v7132
    %v7135 = vmul.f32 %v7119, %v7133
    %v7136 = vlaneseq
    %v7137 = vshrl.u32 %v7136, 7
    %v7138 = vsub.s32 0, %v7137
    %v7139 = vrot.slane %v7108, %v7138
    %v7140 = vmul.f32 %v7134, %v7139
    %v7141 = vmul.f32 %v7135, %v7139
    %v7142 = vlaneseq
    %v7143 = vshrl.u32 %v7142, 7
    %v7144 = vsub.s32 0, %v7143
    %v7145 = vrot.slane %v7109, %v7144
    %v7146 = vadd.f32 %v7140, %v7145
    %v7147 = vadd.f32 %v7141, %v7145
    %v7148 = vld [vmem:[#allocation2 + $0x558] sm:$0xff]
    %v7149 = vld [vmem:[#allocation2 + $0x560] sm:$0xff]
    %v7150 = vld [vmem:[#allocation2 + $0x568] sm:$0xff]
    %v7151 = vld [vmem:[#allocation2 + $0x570] sm:$0xff]
    %v7152 = vpack.c.bf16 %v7147, %v7146
    %v7153 = vpack.c.bf16 %v7149, %v7148
    %v7154 = vpack.c.bf16 %v7151, %v7150
    %v7155 = vld [vmem:[#allocation2 + $0x578] sm:$0x1]
    %v7156 = vlaneseq
    %v7157 = vshrl.u32 %v7156, 7
    %v7158 = vsub.s32 0, %v7157
    %v7159 = vrot.slane %v7155, %v7158
    %v7161 = vsel %vm874, %v7152, 0
    %7163 = vmatprep.subr.bf16.mxu0 0
    %7164 = vmatpush1.bf16.msra.mxu0 %v7153
    %7165 = vmatprep.subr.bf16.mxu0 0
    %7166 = vmatpush1.bf16.msra.mxu0 %v7154
    %7167 = vmatprep.subr.bf16.mxu0 0
    %7168 = vmatpush1.bf16.msra.mxu0 0
    %7169 = vmatprep.subr.bf16.mxu0 0
    %7170 = vmatpush1.bf16.msra.mxu0 0
    %7171 = vmatprep.subr.bf16.mxu0 0
    %7172 = vmatpush1.bf16.msra.mxu0 0
    %7173 = vmatprep.subr.bf16.mxu0 0
    %7174 = vmatpush1.bf16.msra.mxu0 0
    %7175 = vmatprep.subr.bf16.mxu0 0
    %7176 = vmatpush1.bf16.msra.mxu0 0
    %7177 = vmatprep.subr.bf16.mxu0 0
    %7178 = vmatpush1.bf16.msra.mxu0 0
    %7179 = vmatprep.subr.bf16.mxu0 0
    %7180 = vmatpush1.bf16.msra.mxu0 0
    %7181 = vmatprep.subr.bf16.mxu0 0
    %7182 = vmatpush1.bf16.msra.mxu0 0
    %7183 = vmatprep.subr.bf16.mxu0 0
    %7184 = vmatpush1.bf16.msra.mxu0 0
    %7185 = vmatprep.subr.bf16.mxu0 0
    %7186 = vmatpush1.bf16.msra.mxu0 0
    %7187 = vmatprep.subr.bf16.mxu0 0
    %7188 = vmatpush1.bf16.msra.mxu0 0
    %7189 = vmatprep.subr.bf16.mxu0 0
    %7190 = vmatpush1.bf16.msra.mxu0 0
    %7191 = vmatprep.subr.bf16.mxu0 0
    %7192 = vmatpush1.bf16.msra.mxu0 0
    %7193 = vmatprep.subr.bf16.mxu0 0
    %7194 = vmatpush1.bf16.msra.mxu0 0
    %7195 = vmatprep.mubr.bf16.mxu0 0
    %7196 = vmatmul.mubr.bf16.gmra.mrb[0].mxu0 %v7161
    %v7197 = vpop.f32.mrb[0].mxu0
    %v7198 = vadd.f32 %v7159, %v7197
    %v7199 = vpop.f32.mrb[0].mxu0
    %v7200 = vpop.f32.mrb[0].mxu0
    %v7201 = vadd.f32 %v7159, %v7200
    %v7202 = vpop.f32.mrb[0].mxu0
    %7203 = vdwg.mxu0
    %v7204 = vmul.f32 %v7198, 0.5
    %v7205 = vmul.f32 %v7201, 0.5
    %v7206 = vmul.f32 %v7198, 0.044715
    %v7207 = vmul.f32 %v7201, 0.044715
    %v7208 = vmul.f32 %v7206, %v7198
    %v7209 = vmul.f32 %v7207, %v7201
    %v7210 = vmul.f32 %v7208, %v7198
    %v7211 = vmul.f32 %v7209, %v7201
    %v7212 = vadd.f32 %v7198, %v7210
    %v7213 = vadd.f32 %v7201, %v7211
    %v7214 = vmul.f32 %v7212, 0.7978846
    %v7215 = vmul.f32 %v7213, 0.7978846
    %v7216 = vtanh.pop %v7214
    %v7217 = vtanh.pop %v7215
    %v7218 = vadd.f32 %v7216, 1.0
    %v7219 = vadd.f32 %v7217, 1.0
    %v7220 = vmul.f32 %v7204, %v7218
    %v7221 = vmul.f32 %v7205, %v7219
    %v7222 = vld [vmem:[#allocation2 + $0x580] sm:$0xff]
    %v7223 = vpack.c.bf16 %v7221, %v7220
    %v7224 = vpack.c.bf16 %v7222, %v7222
    %v7225 = vld [vmem:[#allocation2 + $0x588] sm:$0x1]
    %v7226 = vlaneseq
    %v7227 = vshrl.u32 %v7226, 7
    %v7228 = vsub.s32 0, %v7227
    %v7229 = vrot.slane %v7225, %v7228
    %v7231 = vsel %vm243, %v7223, 0
    %v7234 = vsel %vm227, %v7224, 0
    %7236 = vmatprep.subr.bf16.mxu0 0
    %7237 = vmatpush1.bf16.msra.mxu0 %v7234
    %7238 = vmatprep.subr.bf16.mxu0 0
    %7239 = vmatpush1.bf16.msra.mxu0 0
    %7240 = vmatprep.subr.bf16.mxu0 0
    %7241 = vmatpush1.bf16.msra.mxu0 0
    %7242 = vmatprep.subr.bf16.mxu0 0
    %7243 = vmatpush1.bf16.msra.mxu0 0
    %7244 = vmatprep.subr.bf16.mxu0 0
    %7245 = vmatpush1.bf16.msra.mxu0 0
    %7246 = vmatprep.subr.bf16.mxu0 0
    %7247 = vmatpush1.bf16.msra.mxu0 0
    %7248 = vmatprep.subr.bf16.mxu0 0
    %7249 = vmatpush1.bf16.msra.mxu0 0
    %7250 = vmatprep.subr.bf16.mxu0 0
    %7251 = vmatpush1.bf16.msra.mxu0 0
    %7252 = vmatprep.subr.bf16.mxu0 0
    %7253 = vmatpush1.bf16.msra.mxu0 0
    %7254 = vmatprep.subr.bf16.mxu0 0
    %7255 = vmatpush1.bf16.msra.mxu0 0
    %7256 = vmatprep.subr.bf16.mxu0 0
    %7257 = vmatpush1.bf16.msra.mxu0 0
    %7258 = vmatprep.subr.bf16.mxu0 0
    %7259 = vmatpush1.bf16.msra.mxu0 0
    %7260 = vmatprep.subr.bf16.mxu0 0
    %7261 = vmatpush1.bf16.msra.mxu0 0
    %7262 = vmatprep.subr.bf16.mxu0 0
    %7263 = vmatpush1.bf16.msra.mxu0 0
    %7264 = vmatprep.subr.bf16.mxu0 0
    %7265 = vmatpush1.bf16.msra.mxu0 0
    %7266 = vmatprep.subr.bf16.mxu0 0
    %7267 = vmatpush1.bf16.msra.mxu0 0
    %7268 = vmatprep.mubr.bf16.mxu0 0
    %7269 = vmatmul.mubr.bf16.gmra.mrb[0].mxu0 %v7231
    %v7270 = vpop.f32.mrb[0].mxu0
    %v7271 = vadd.f32 %v7229, %v7270
    %v7272 = vpop.f32.mrb[0].mxu0
    %v7273 = vpop.f32.mrb[0].mxu0
    %v7274 = vadd.f32 %v7229, %v7273
    %v7275 = vpop.f32.mrb[0].mxu0
    %7276 = vdwg.mxu0
    %vm7277 = vcmask 7168
    %v7278 = vsel %vm7277, %v7271, -inf
    %v7279 = vrot.slane %v7278, 4
    %v7280 = vmax.f32 %v7278, %v7279
    %v7281 = vrot.slane %v7280, 2
    %v7282 = vmax.f32 %v7280, %v7281
    %v7283 = vrot.slane %v7282, 1
    %v7284 = vmax.f32 %v7282, %v7283
    %v7285 = vsel %vm7277, %v7274, -inf
    %v7286 = vrot.slane %v7285, 4
    %v7287 = vmax.f32 %v7285, %v7286
    %v7288 = vrot.slane %v7287, 2
    %v7289 = vmax.f32 %v7287, %v7288
    %v7290 = vrot.slane %v7289, 1
    %v7291 = vmax.f32 %v7289, %v7290
    %v7292 = vsub.f32 %v7271, %v7284
    %v7293 = vsub.f32 %v7274, %v7291
    %v7294 = vmul.f32 %v7292, 1.442695
    %v7295 = vpow.pop %v7294
    %v7296 = vmul.f32 %v7293, 1.442695
    %v7297 = vpow.pop %v7296
    %v7298 = vsel %vm7277, %v7295, 0.0
    %v7299 = vrot.slane %v7298, 4
    %v7300 = vadd.f32 %v7298, %v7299
    %v7301 = vrot.slane %v7300, 2
    %v7302 = vadd.f32 %v7300, %v7301
    %v7303 = vrot.slane %v7302, 1
    %v7304 = vadd.f32 %v7302, %v7303
    %v7305 = vsel %vm7277, %v7297, 0.0
    %v7306 = vrot.slane %v7305, 4
    %v7307 = vadd.f32 %v7305, %v7306
    %v7308 = vrot.slane %v7307, 2
    %v7309 = vadd.f32 %v7307, %v7308
    %v7310 = vrot.slane %v7309, 1
    %v7311 = vadd.f32 %v7309, %v7310
    %v7312 = vrcp.pop %v7304
    %v7313 = vmul.f32 %v7295, %v7312
    %v7314 = vrcp.pop %v7311
    %v7315 = vmul.f32 %v7297, %v7314
    %7317 = vset.pattern.permute.xlu0 0
    %7318 = vperm.xlu0 %7317, %v7313
    %v7319 = vpop.permute.xlu0 %7318
    %7322 = vset.pattern.permute.xlu0 0
    %7323 = vperm.xlu0 %7322, %v7315
    %v7324 = vpop.permute.xlu0 %7323
    %v7326 = vmul.f32 %v7319, %v7106
    %v7327 = vmul.f32 %v7324, %v7107
    %v7328 = vsel %vm874, %v7326, 0.0
    %v7329 = vrot.slane %v7328, 4
    %v7330 = vadd.f32 %v7328, %v7329
    %v7331 = vrot.slane %v7330, 2
    %v7332 = vadd.f32 %v7330, %v7331
    %v7333 = vrot.slane %v7332, 1
    %v7334 = vadd.f32 %v7332, %v7333
    %v7335 = vsel %vm874, %v7327, 0.0
    %v7336 = vrot.slane %v7335, 4
    %v7337 = vadd.f32 %v7335, %v7336
    %v7338 = vrot.slane %v7337, 2
    %v7339 = vadd.f32 %v7337, %v7338
    %v7340 = vrot.slane %v7339, 1
    %v7341 = vadd.f32 %v7339, %v7340
    %v7342 = vld [vmem:[#allocation2 + $0x590] sm:$0xff]
    %v7343 = vld [vmem:[#allocation2 + $0x598] sm:$0xff]
    %v7344 = vld [vmem:[#allocation2 + $0x5a0] sm:$0xff]
    %v7345 = vld [vmem:[#allocation2 + $0x5a8] sm:$0xff]
    %v7346 = vpack.c.bf16 %v7334, %v7334
    %v7347 = vpack.c.bf16 %v7341, %v7341
    %v7348 = vpack.c.bf16 %v7343, %v7342
    %v7349 = vpack.c.bf16 %v7345, %v7344
    %v7350 = vld [vmem:[#allocation2 + $0x5b0] sm:$0x1]
    %v7351 = vlaneseq
    %v7352 = vshrl.u32 %v7351, 7
    %v7353 = vsub.s32 0, %v7352
    %v7354 = vrot.slane %v7350, %v7353
    %v7357 = vunpack.c.l.b16 %v7346
    %v7358 = vunpack.c.l.b16 %v7347
    %v7359 = vsel %vm344, %v7358, %v7357
    %v7360 = vpack.c.b16 %v7359, %v7359
    %v7362 = vsel %vm874, %v7360, 0
    %7364 = vmatprep.subr.bf16.mxu0 0
    %7365 = vmatpush1.bf16.msra.mxu0 %v7348
    %7366 = vmatprep.subr.bf16.mxu0 0
    %7367 = vmatpush1.bf16.msra.mxu0 %v7349
    %7368 = vmatprep.subr.bf16.mxu0 0
    %7369 = vmatpush1.bf16.msra.mxu0 0
    %7370 = vmatprep.subr.bf16.mxu0 0
    %7371 = vmatpush1.bf16.msra.mxu0 0
    %7372 = vmatprep.subr.bf16.mxu0 0
    %7373 = vmatpush1.bf16.msra.mxu0 0
    %7374 = vmatprep.subr.bf16.mxu0 0
    %7375 = vmatpush1.bf16.msra.mxu0 0
    %7376 = vmatprep.subr.bf16.mxu0 0
    %7377 = vmatpush1.bf16.msra.mxu0 0
    %7378 = vmatprep.subr.bf16.mxu0 0
    %7379 = vmatpush1.bf16.msra.mxu0 0
    %7380 = vmatprep.subr.bf16.mxu0 0
    %7381 = vmatpush1.bf16.msra.mxu0 0
    %7382 = vmatprep.subr.bf16.mxu0 0
    %7383 = vmatpush1.bf16.msra.mxu0 0
    %7384 = vmatprep.subr.bf16.mxu0 0
    %7385 = vmatpush1.bf16.msra.mxu0 0
    %7386 = vmatprep.subr.bf16.mxu0 0
    %7387 = vmatpush1.bf16.msra.mxu0 0
    %7388 = vmatprep.subr.bf16.mxu0 0
    %7389 = vmatpush1.bf16.msra.mxu0 0
    %7390 = vmatprep.subr.bf16.mxu0 0
    %7391 = vmatpush1.bf16.msra.mxu0 0
    %7392 = vmatprep.subr.bf16.mxu0 0
    %7393 = vmatpush1.bf16.msra.mxu0 0
    %7394 = vmatprep.subr.bf16.mxu0 0
    %7395 = vmatpush1.bf16.msra.mxu0 0
    %7396 = vmatprep.mubr.bf16.mxu0 0
    %7397 = vmatmul.mubr.bf16.gmra.mrb[0].mxu0 %v7362
    %v7398 = vpop.f32.mrb[0].mxu0
    %v7399 = vadd.f32 %v7354, %v7398
    %v7400 = vpop.f32.mrb[0].mxu0
    %v7401 = vpop.f32.mrb[0].mxu0
    %v7402 = vpop.f32.mrb[0].mxu0
    %7403 = vdwg.mxu0
    %v7404 = vmax.f32 %v7399, 0.0
    %v7405 = vand.u32 2147483647, %v7399
    %v7406 = vsub.f32 0.0, %v7405
    %v7407 = vmul.f32 %v7406, 1.442695
    %v7408 = vpow.pop %v7407
    %v7409 = vadd.f32 %v7408, 1.0
    %v7410 = vlog2.pop %v7409
    %v7411 = vmul.f32 %v7410, 0.6931472
    %v7412 = vadd.f32 %v7404, %v7411
    %v7413 = vtanh.pop %v7412
    %v7414 = vmul.f32 %v7399, %v7413
    %v7415 = vld [vmem:[#allocation2 + $0x5b8] sm:$0xff]
    %v7416 = vpack.c.bf16 %v7414, %v7414
    %v7417 = vpack.c.bf16 %v7415, %v7415
    %v7418 = vld [vmem:[#allocation2 + $0x5c0] sm:$0x1]
    %v7419 = vlaneseq
    %v7420 = vshrl.u32 %v7419, 7
    %v7421 = vsub.s32 0, %v7420
    %v7422 = vrot.slane %v7418, %v7421
    %v7424 = vsel %vm243, %v7416, 0
    %v7427 = vsel %vm227, %v7417, 0
    %7429 = vmatprep.subr.bf16.mxu0 0
    %7430 = vmatpush1.bf16.msra.mxu0 %v7427
    %7431 = vmatprep.subr.bf16.mxu0 0
    %7432 = vmatpush1.bf16.msra.mxu0 0
    %7433 = vmatprep.subr.bf16.mxu0 0
    %7434 = vmatpush1.bf16.msra.mxu0 0
    %7435 = vmatprep.subr.bf16.mxu0 0
    %7436 = vmatpush1.bf16.msra.mxu0 0
    %7437 = vmatprep.subr.bf16.mxu0 0
    %7438 = vmatpush1.bf16.msra.mxu0 0
    %7439 = vmatprep.subr.bf16.mxu0 0
    %7440 = vmatpush1.bf16.msra.mxu0 0
    %7441 = vmatprep.subr.bf16.mxu0 0
    %7442 = vmatpush1.bf16.msra.mxu0 0
    %7443 = vmatprep.subr.bf16.mxu0 0
    %7444 = vmatpush1.bf16.msra.mxu0 0
    %7445 = vmatprep.subr.bf16.mxu0 0
    %7446 = vmatpush1.bf16.msra.mxu0 0
    %7447 = vmatprep.subr.bf16.mxu0 0
    %7448 = vmatpush1.bf16.msra.mxu0 0
    %7449 = vmatprep.subr.bf16.mxu0 0
    %7450 = vmatpush1.bf16.msra.mxu0 0
    %7451 = vmatprep.subr.bf16.mxu0 0
    %7452 = vmatpush1.bf16.msra.mxu0 0
    %7453 = vmatprep.subr.bf16.mxu0 0
    %7454 = vmatpush1.bf16.msra.mxu0 0
    %7455 = vmatprep.subr.bf16.mxu0 0
    %7456 = vmatpush1.bf16.msra.mxu0 0
    %7457 = vmatprep.subr.bf16.mxu0 0
    %7458 = vmatpush1.bf16.msra.mxu0 0
    %7459 = vmatprep.subr.bf16.mxu0 0
    %7460 = vmatpush1.bf16.msra.mxu0 0
    %7461 = vmatprep.mubr.bf16.mxu0 0
    %7462 = vmatmul.mubr.bf16.gmra.mrb[0].mxu0 %v7424
    %v7463 = vpop.f32.mrb[0].mxu0
    %v7464 = vadd.f32 %v7422, %v7463
    %v7465 = vpop.f32.mrb[0].mxu0
    %v7466 = vpop.f32.mrb[0].mxu0
    %v7467 = vpop.f32.mrb[0].mxu0
    %7468 = vdwg.mxu0
    %vm7469 = vcmask 1024
    %7470 = vst.msk [vmem:[%s4] sm:$0x3] %vm7469, %v7464
    // Predicated region
    $region26: #{_lambda_.1} parent=1 // pred_check
      _
    $region27: #{_lambda_.1} parent=1 // pred_check_branch
      %7472 = sbr.rel (0) target = $region29
    $region28: #{_lambda_.1} parent=1 // pred_region
      _
    $region29: #{_lambda_.1} parent=1 // pred_fallthru
      _
    // Predicated region
    $region30: #{_lambda_.1} parent=1 // pred_check
      _
    $region31: #{_lambda_.1} parent=1 // pred_check_branch
      %7474 = sbr.rel (0) target = $region33
    $region32: #{_lambda_.1} parent=1 // pred_region
      _
    $region33: #{_lambda_.1} parent=1 // pred_fallthru
      _
    %7475 = vsyncpa [#allocation3], 1
    %7476 = vsyncpa [#allocation5], 1

</llo_original>
